<compile_context>
chip_gen: v7x
topology: tpu7x:2x2x1
jax: 0.10.0
libtpu: 0.0.40
codegen_flags: <defaults>
</compile_context>

<pallas_src>
import functools
import math

import jax
import jax.numpy as jnp
from jax.experimental import pallas as pl
from jax.experimental.pallas import tpu as pltpu


_LN_EPS = 1e-5
_NEG_INF = -1e30


# -----------------------------------------------------------------------------
# In-kernel helpers (operate on VMEM-resident values)
# -----------------------------------------------------------------------------
def _mm(a, w):
    """MXU matmul: bf16 operands, f32 accumulation (weights are already bf16)."""
    return jnp.dot(a.astype(jnp.bfloat16), w, preferred_element_type=jnp.float32)


def _layernorm(x, gamma, beta):
    """LayerNorm over the last dim; stats in f32, rsqrt on the EUP."""
    mean = jnp.mean(x, axis=-1, keepdims=True)
    c = x - mean
    var = jnp.mean(c * c, axis=-1, keepdims=True)
    return c * jax.lax.rsqrt(var + _LN_EPS) * gamma + beta


def _split_heads(x, num_heads):
    """(N, D) -> (H, N, hd).  See TODO(synk) above re: reshape-based split."""
    n, d = x.shape
    hd = d // num_heads
    return jnp.stack([x[:, h * hd:(h + 1) * hd] for h in range(num_heads)],
                     axis=0)


def _fold_wo(o_heads, woh, preferred=jnp.float32):
    """Output projection with W_o folded into the head contraction.

    o_heads: (H, Q, hd) f32, woh: (H, hd, D) bf16.
    Per-head (hd -> D) contraction + head-sum — no lane concat of 32-wide pieces.
    """
    per_head = jnp.einsum("hqe,hed->hqd", o_heads.astype(jnp.bfloat16), woh,
                          preferred_element_type=preferred)        # (H, Q, D)
    return jnp.sum(per_head, axis=0)                               # (Q, D)


def _full_attention(qh, kh, vh, woh, scale):
    """Small (self-)attention: full softmax, heads batched on the leading axis."""
    s = jnp.einsum("hqe,hke->hqk", qh, kh,
                   preferred_element_type=jnp.float32) * scale     # (H, Q, K)
    s = s - jnp.max(s, axis=-1, keepdims=True)
    p = jnp.exp(s)
    p = p * pl.reciprocal(jnp.sum(p, axis=-1, keepdims=True), approx=True)
    o = jnp.einsum("hqk,hke->hqe", p.astype(jnp.bfloat16), vh,
                   preferred_element_type=jnp.float32)             # (H, Q, hd)
    return _fold_wo(o, woh)                                        # (Q, D)


# -----------------------------------------------------------------------------
# Fused decoder-layer kernel (grid = (B, S/TS); S axis is flash-tiled)
# -----------------------------------------------------------------------------
def _decoder_layer_kernel(
        # activations
        tgt_ref, qse_ref, memk_ref, memv_ref,
        # weights
        rph_w0_ref, rph_w1_ref, rph_b_ref,
        sa_wqk_ref, sa_bqk_ref, sa_wv_ref, sa_woh_ref, sa_bvo_ref,
        ca_wq_ref, ca_wkv_ref, ca_woh_ref, ca_b_ref,
        ffn_w1_ref, ffn_b1_ref, ffn_w2_ref, ffn_b2_ref,
        ln_g_ref, ln_b_ref,
        # outputs
        out_ref, normed_ref,
        # scratch
        tgt1_scr, qh_scr, m_scr, l_scr, acc_scr,
        *, num_heads, s_valid, s_tile, mask_needed):
    s_idx = pl.program_id(1)
    n_s = pl.num_programs(1)
    d = tgt_ref.shape[2]
    hd = d // num_heads
    scale = 1.0 / math.sqrt(hd)

    # ----------------------------------------------------------- s_idx == 0
    # ref_point_head MLP, self-attention + LN1, cross-attn query projection,
    # and flash-statistics init.  Everything stays resident in VMEM scratch.
    @pl.when(s_idx == 0)
    def _prologue():
        tgt = tgt_ref[0].astype(jnp.float32)                        # (Q, D)
        qse = qse_ref[0].astype(jnp.float32)                        # (Q, 2D)
        rph_b = rph_b_ref[...]
        ln_g = ln_g_ref[...]
        ln_b = ln_b_ref[...]
        sa_bvo = sa_bvo_ref[...]
        ca_b = ca_b_ref[...]

        # ref_point_head MLP(2D -> D -> D): query positional embedding.
        h = jnp.maximum(_mm(qse, rph_w0_ref[...]) + rph_b[0:1], 0.0)
        query_pos = _mm(h, rph_w1_ref[...]) + rph_b[1:2]            # (Q, D)

        # --- self-attention (post-norm); Wq & Wk merged (x_q == x_k) ---
        x = tgt + query_pos
        qk = _mm(x, sa_wqk_ref[...]) + sa_bqk_ref[...]              # (Q, 2D)
        v = _mm(tgt, sa_wv_ref[...]) + sa_bvo[0:1]                  # (Q, D)
        qh = _split_heads(qk[:, :d], num_heads).astype(jnp.bfloat16)
        kh = _split_heads(qk[:, d:], num_heads).astype(jnp.bfloat16)
        vh = _split_heads(v, num_heads).astype(jnp.bfloat16)
        sa = _full_attention(qh, kh, vh, sa_woh_ref[...], scale) + sa_bvo[1:2]
        tgt1 = _layernorm(tgt + sa, ln_g[0:1], ln_b[0:1])
        tgt1_scr[...] = tgt1

        # cross-attention query projection (reused by every S tile)
        qc = _mm(tgt1 + query_pos, ca_wq_ref[...]) + ca_b[0:1]      # (Q, D)
        qh_scr[...] = _split_heads(qc, num_heads).astype(jnp.bfloat16)

        # flash running statistics
        m_scr[...] = jnp.full(m_scr.shape, _NEG_INF, jnp.float32)
        l_scr[...] = jnp.zeros(l_scr.shape, jnp.float32)
        acc_scr[...] = jnp.zeros(acc_scr.shape, jnp.float32)

    # -------------------------------------------- every S tile (online softmax)
    ca_b = ca_b_ref[...]
    memk = memk_ref[0]                                              # (TS, D) bf16
    memv = memv_ref[0]                                              # (TS, D) bf16
    # per-tile K/V projections (full-width D contraction on the MXU)
    k = _mm(memk, ca_wkv_ref[0]) + ca_b[1:2]                        # (TS, D)
    v = _mm(memv, ca_wkv_ref[1]) + ca_b[2:3]                        # (TS, D)
    kh = _split_heads(k, num_heads).astype(jnp.bfloat16)            # (H, TS, hd)
    vh = _split_heads(v, num_heads).astype(jnp.bfloat16)            # (H, TS, hd)

    s = jnp.einsum("hqe,hke->hqk", qh_scr[...], kh,
                   preferred_element_type=jnp.float32) * scale      # (H, Q, TS)
    if mask_needed:
        col = jax.lax.broadcasted_iota(jnp.int32, (s.shape[1], s.shape[2]), 1)
        col = col + s_idx * s_tile
        s = jnp.where((col < s_valid)[None], s, _NEG_INF)

    m_prev = m_scr[...]                                             # (H, Q, 1)
    m_new = jnp.maximum(m_prev, jnp.max(s, axis=-1, keepdims=True))
    alpha = jnp.exp(m_prev - m_new)
    p = jnp.exp(s - m_new)
    l_scr[...] = alpha * l_scr[...] + jnp.sum(p, axis=-1, keepdims=True)
    pv = jnp.einsum("hqk,hke->hqe", p.astype(jnp.bfloat16), vh,
                    preferred_element_type=jnp.float32)             # (H, Q, hd)
    acc_scr[...] = alpha * acc_scr[...] + pv
    m_scr[...] = m_new

    # ------------------------------------------------------- s_idx == last
    @pl.when(s_idx == n_s - 1)
    def _epilogue():
        ln_g = ln_g_ref[...]
        ln_b = ln_b_ref[...]
        o = acc_scr[...] * pl.reciprocal(l_scr[...], approx=True)   # (H, Q, hd)
        ca = _fold_wo(o, ca_woh_ref[...]) + ca_b[3:4]               # (Q, D)
        tgt2 = _layernorm(tgt1_scr[...] + ca, ln_g[1:2], ln_b[1:2])

        # FFN (hidden activation never leaves VMEM)
        hidden = jnp.maximum(_mm(tgt2, ffn_w1_ref[...]) + ffn_b1_ref[...], 0.0)
        ffn = _mm(hidden, ffn_w2_ref[...]) + ffn_b2_ref[...]
        tgt3 = _layernorm(tgt2 + ffn, ln_g[2:3], ln_b[2:3])

        out_ref[0] = tgt3.astype(out_ref.dtype)
        # Decoder-level LayerNorm (self.norm) fused as a second output.
        normed_ref[0] = _layernorm(tgt3, ln_g[3:4], ln_b[3:4]).astype(normed_ref.dtype)


def _pick_vmem_limit_bytes():
    """Generation-aware VMEM budget (v5e/v6e: 128 MiB phys, v7x: 64 MiB)."""
    try:
        cap = int(pltpu.get_tpu_info().vmem_capacity_bytes)
        return max(32 * 1024 * 1024, min(cap * 3 // 4, 112 * 1024 * 1024))
    except Exception:
        return 48 * 1024 * 1024   # safe on every generation


def pallas_decoder_layer(tgt, query_sine_embed, mem_k, mem_v, lw, *,
                         num_heads, s_valid, s_tile, vmem_limit_bytes):
    """Runs one fused decoder layer. Returns (new_tgt, norm(new_tgt))."""
    B, Q, D = tgt.shape
    S_pad = mem_k.shape[1]
    assert S_pad % s_tile == 0
    n_s = S_pad // s_tile
    D2 = query_sine_embed.shape[-1]
    F = lw["ffn_w1"].shape[-1]
    hd = D // num_heads

    def act(n, dd):
        return pl.BlockSpec((1, n, dd), lambda b, s: (b, 0, 0))

    mem_spec = pl.BlockSpec((1, s_tile, D), lambda b, s: (b, s, 0))

    def rep(shape):
        nd = len(shape)
        # constant index_map -> bf16 weights are DMA'd once, not per grid step.
        return pl.BlockSpec(shape, lambda b, s: (0,) * nd)

    kernel = functools.partial(
        _decoder_layer_kernel, num_heads=num_heads, s_valid=s_valid,
        s_tile=s_tile, mask_needed=(S_pad != s_valid))

    return pl.pallas_call(
        kernel,
        grid=(B, n_s),
        out_shape=(jax.ShapeDtypeStruct((B, Q, D), tgt.dtype),
                   jax.ShapeDtypeStruct((B, Q, D), tgt.dtype)),
        in_specs=[
            act(Q, D),               # tgt
            act(Q, D2),              # query_sine_embed
            mem_spec,                # memory + pos   (bf16, flash-tiled over S)
            mem_spec,                # memory (V src) (bf16, flash-tiled over S)
            rep((D2, D)),            # rph_w0 (bf16)
            rep((D, D)),             # rph_w1 (bf16)
            rep((2, D)),             # rph_b
            rep((D, 2 * D)),         # sa_wqk (bf16)  [Wq | Wk]
            rep((1, 2 * D)),         # sa_bqk
            rep((D, D)),             # sa_wv (bf16)
            rep((num_heads, hd, D)),  # sa_woh (bf16)  W_o folded per head
            rep((2, D)),             # sa_bvo
            rep((D, D)),             # ca_wq (bf16)
            rep((2, D, D)),          # ca_wkv (bf16)  [Wk, Wv]
            rep((num_heads, hd, D)),  # ca_woh (bf16)
            rep((4, D)),             # ca_b
            rep((D, F)),             # ffn_w1 (bf16)
            rep((1, F)),             # ffn_b1
            rep((F, D)),             # ffn_w2 (bf16)
            rep((1, D)),             # ffn_b2
            rep((4, D)),             # ln_g  [ln1, ln2, ln3, decoder norm]
            rep((4, D)),             # ln_b
        ],
        out_specs=(act(Q, D), act(Q, D)),
        scratch_shapes=[
            pltpu.VMEM((Q, D), jnp.float32),               # tgt after SA + LN1
            pltpu.VMEM((num_heads, Q, hd), jnp.bfloat16),  # cross-attn Q heads
            pltpu.VMEM((num_heads, Q, 1), jnp.float32),    # running max  m
            pltpu.VMEM((num_heads, Q, 1), jnp.float32),    # running sum  l
            pltpu.VMEM((num_heads, Q, hd), jnp.float32),   # running acc
        ],
        compiler_params=pltpu.CompilerParams(
            dimension_semantics=("parallel", "arbitrary"),  # batch // S-stream
            vmem_limit_bytes=int(vmem_limit_bytes)),
    )(tgt, query_sine_embed, mem_k, mem_v,
      lw["rph_w0"], lw["rph_w1"], lw["rph_b"],
      lw["sa_wqk"], lw["sa_bqk"], lw["sa_wv"], lw["sa_woh"], lw["sa_bvo"],
      lw["ca_wq"], lw["ca_wkv"], lw["ca_woh"], lw["ca_b"],
      lw["ffn_w1"], lw["ffn_b1"], lw["ffn_w2"], lw["ffn_b2"],
      lw["ln_g"], lw["ln_b"])


# -----------------------------------------------------------------------------
# Plain-JAX glue (lane-sparse pieces deliberately left to XLA)
# -----------------------------------------------------------------------------
def gen_sineembed_for_position(pos_tensor, dim):
    """pos_tensor: (B, Q, 4) -> (B, Q, 4*dim). Matches the torch reference."""
    scale = 2 * math.pi
    dim_t = jnp.arange(dim, dtype=pos_tensor.dtype)
    dim_t = 10000.0 ** (2.0 * jnp.floor(dim_t / 2.0) / float(dim))

    def embed(coord):                                        # coord: (B, Q)
        p = coord[:, :, None] * scale / dim_t                # (B, Q, dim)
        s = jnp.sin(p[:, :, 0::2])
        c = jnp.cos(p[:, :, 1::2])
        return jnp.stack((s, c), axis=3).reshape(p.shape[0], p.shape[1], -1)

    pos_x = embed(pos_tensor[:, :, 0])
    pos_y = embed(pos_tensor[:, :, 1])
    pos_w = embed(pos_tensor[:, :, 2])
    pos_h = embed(pos_tensor[:, :, 3])
    return jnp.concatenate((pos_y, pos_x, pos_w, pos_h), axis=2)


def bbox_embed_forward(p, x):
    # out_dim=4: left to XLA — a 4-lane Pallas output is all masked stores.
    h = jax.nn.relu(jnp.dot(x, p["be_w0"]) + p["be_b0"])
    h = jax.nn.relu(jnp.dot(h, p["be_w1"]) + p["be_b1"])
    return jnp.dot(h, p["be_w2"]) + p["be_b2"]


def refpoints_refine(refpoints_unsigmoid, delta, bbox_reparam):
    if bbox_reparam:
        new_cxcy = delta[..., :2] * refpoints_unsigmoid[..., 2:] + refpoints_unsigmoid[..., :2]
        new_wh = jnp.exp(delta[..., 2:]) * refpoints_unsigmoid[..., 2:]
        return jnp.concatenate([new_cxcy, new_wh], axis=-1)
    return refpoints_unsigmoid + delta


# -----------------------------------------------------------------------------
# Parameter init (deterministic, synthetic; weights packed for the fused kernel)
# -----------------------------------------------------------------------------
def init_params(key, d_model, ffn_dim, num_layers, num_heads):
    assert d_model % num_heads == 0, "num_heads must divide d_model"
    hd = d_model // num_heads
    keys = iter(jax.random.split(key, 512))
    wdt = jnp.bfloat16      # MXU-operand dtype for fused-kernel weights

    def lin(din, dout):
        w = jax.random.normal(next(keys), (din, dout), jnp.float32) / math.sqrt(din)
        b = jax.random.normal(next(keys), (dout,), jnp.float32) * 0.01
        return w, b

    def attn():
        return [lin(d_model, d_model) for _ in range(4)]   # q, k, v, o

    # ref_point_head: MLP(2D, D, D, 2) — shared across layers.
    rph_w0, rph_b0 = lin(2 * d_model, d_model)
    rph_w1, rph_b1 = lin(d_model, d_model)
    rph = dict(rph_w0=rph_w0.astype(wdt), rph_w1=rph_w1.astype(wdt),
               rph_b=jnp.stack([rph_b0, rph_b1]))

    norm_g = jnp.ones((d_model,), jnp.float32)
    norm_b = jnp.zeros((d_model,), jnp.float32)

    layers = []
    for _ in range(num_layers):
        (swq, sbq), (swk, sbk), (swv, sbv), (swo, sbo) = attn()   # self-attn
        (cwq, cbq), (cwk, cbk), (cwv, cbv), (cwo, cbo) = attn()   # cross-attn
        w1, b1 = lin(d_model, ffn_dim)
        w2, b2 = lin(ffn_dim, d_model)
        layers.append(dict(
            sa_wqk=jnp.concatenate([swq, swk], axis=1).astype(wdt),   # (D, 2D)
            sa_bqk=jnp.concatenate([sbq, sbk]).reshape(1, -1),        # (1, 2D)
            sa_wv=swv.astype(wdt),
            sa_woh=swo.reshape(num_heads, hd, d_model).astype(wdt),   # (H, hd, D)
            sa_bvo=jnp.stack([sbv, sbo]),                             # (2, D)
            ca_wq=cwq.astype(wdt),
            ca_wkv=jnp.stack([cwk, cwv]).astype(wdt),                 # (2, D, D)
            ca_woh=cwo.reshape(num_heads, hd, d_model).astype(wdt),
            ca_b=jnp.stack([cbq, cbk, cbv, cbo]),                     # (4, D)
            ffn_w1=w1.astype(wdt), ffn_b1=b1.reshape(1, -1),
            ffn_w2=w2.astype(wdt), ffn_b2=b2.reshape(1, -1),
            ln_g=jnp.stack([jnp.ones((d_model,), jnp.float32)] * 3 + [norm_g]),
            ln_b=jnp.stack([jnp.zeros((d_model,), jnp.float32)] * 3 + [norm_b]),
            **rph,
        ))

    # bbox_embed: MLP(D, D, 4, 3) — plain JAX (f32).
    be_w0, be_b0 = lin(d_model, d_model)
    be_w1, be_b1 = lin(d_model, d_model)
    be_w2, be_b2 = lin(d_model, 4)

    return dict(layers=layers,
                be_w0=be_w0, be_b0=be_b0, be_w1=be_w1, be_b1=be_b1,
                be_w2=be_w2, be_b2=be_b2)


# -----------------------------------------------------------------------------
# Decoder forward
# -----------------------------------------------------------------------------
def transformer_decoder_forward(params, tgt, memory, pos, refpoints_unsigmoid,
                                valid_ratios, *, num_layers, d_model, num_heads,
                                bbox_reparam=True, s_tile=512,
                                vmem_limit_bytes=None):
    """Matches TransformerDecoder.forward with return_intermediate=True,
    lite_refpoint_refine=False, bbox_reparam=True, _export=False."""
    B, S, D = memory.shape

    # memory + pos is identical across layers: hoist it, stream K/V in bf16.
    mem_k = (memory + pos).astype(jnp.bfloat16)
    mem_v = memory.astype(jnp.bfloat16)

    # S tile: 256-512 for v7x, 1-2k for v5e/v6e (kept a parameter, not hard-coded).
    ts = min(int(s_tile), S)
    if ts < S:
        ts = max(8, (ts // 8) * 8)
    s_pad = pl.cdiv(S, ts) * ts
    if s_pad != S:
        padw = ((0, 0), (0, s_pad - S), (0, 0))
        mem_k = jnp.pad(mem_k, padw)
        mem_v = jnp.pad(mem_v, padw)

    if vmem_limit_bytes is None:
        vmem_limit_bytes = _pick_vmem_limit_bytes()

    output = tgt
    intermediate = []
    hs_refpoints = [refpoints_unsigmoid]

    for layer_id in range(num_layers):
        lw = params["layers"][layer_id]

        # get_reference (bbox_reparam=True -> no sigmoid on refpoints)
        obj_center = refpoints_unsigmoid[..., :4]                       # (B, Q, 4)
        vr4 = jnp.concatenate([valid_ratios, valid_ratios], axis=-1)    # (B, L, 4)
        refpoints_input = obj_center[:, :, None, :] * vr4[:, None]      # (B, Q, L, 4)
        query_sine_embed = gen_sineembed_for_position(
            refpoints_input[:, :, 0, :], d_model // 2)                  # (B, Q, 2D)

        # Fused layer: ref_point_head + self-attn + flash cross-attn + FFN + norms
        # (query_pos * pos_transformation with pos_transformation == 1).
        output, normed = pallas_decoder_layer(
            output, query_sine_embed, mem_k, mem_v, lw,
            num_heads=num_heads, s_valid=S, s_tile=ts,
            vmem_limit_bytes=vmem_limit_bytes)

        # bbox refinement (plain JAX, out_dim=4)
        delta = bbox_embed_forward(params, output)                      # (B, Q, 4)
        new_ref = refpoints_refine(refpoints_unsigmoid, delta, bbox_reparam)
        if layer_id != num_layers - 1:
            hs_refpoints.append(new_ref)
        refpoints_unsigmoid = jax.lax.stop_gradient(new_ref)

        intermediate.append(normed)

    # Reference does: output = norm(output); intermediate.pop(); append(output)
    # — identical to the last fused `normed`, so nothing further to do here.
    return jnp.stack(intermediate), jnp.stack(hs_refpoints)


# -----------------------------------------------------------------------------
# Main
# -----------------------------------------------------------------------------
if __name__ == "__main__":
    d_model = 32
    num_heads = 4
    ffn_dim = 64
    num_layers = 2
    B, Q, S, L = 2, 8, 40, 2          # S=40 with s_tile=16 exercises tiling+mask

    key = jax.random.PRNGKey(0)
    kp, kt, km, kpos, kr, kv = jax.random.split(key, 6)

    params = init_params(kp, d_model, ffn_dim, num_layers, num_heads)

    tgt = jax.random.normal(kt, (B, Q, d_model), jnp.float32)
    memory = jax.random.normal(km, (B, S, d_model), jnp.float32)
    pos = jax.random.normal(kpos, (B, S, d_model), jnp.float32)
    refpoints_unsigmoid = jax.random.uniform(kr, (B, Q, 4), jnp.float32,
                                             minval=0.1, maxval=0.9)
    valid_ratios = jax.random.uniform(kv, (B, L, 2), jnp.float32,
                                      minval=0.5, maxval=1.0)

    fwd = jax.jit(functools.partial(
        transformer_decoder_forward, num_layers=num_layers, d_model=d_model,
        num_heads=num_heads, bbox_reparam=True, s_tile=16))

    hs, refs = fwd(params, tgt, memory, pos, refpoints_unsigmoid, valid_ratios)

    jax.block_until_ready((hs, refs))
    assert hs.shape == (num_layers, B, Q, d_model)
    assert refs.shape == (num_layers, B, Q, 4)
    assert bool(jnp.all(jnp.isfinite(hs))) and bool(jnp.all(jnp.isfinite(refs)))
    print("KERNEL_OK")
</pallas_src>

<mosaic_0001>
module attributes {stable_mosaic.version = 11 : i64} {
  func.func @_decoder_layer_kernel(%arg0: i32, %arg1: i32, %arg2: memref<1x8x32xf32, #tpu.memory_space<vmem>>, %arg3: memref<1x8x64xf32, #tpu.memory_space<vmem>>, %arg4: memref<1x16x32xbf16, #tpu.memory_space<vmem>>, %arg5: memref<1x16x32xbf16, #tpu.memory_space<vmem>>, %arg6: memref<64x32xbf16, #tpu.memory_space<vmem>>, %arg7: memref<32x32xbf16, #tpu.memory_space<vmem>>, %arg8: memref<2x32xf32, #tpu.memory_space<vmem>>, %arg9: memref<32x64xbf16, #tpu.memory_space<vmem>>, %arg10: memref<1x64xf32, #tpu.memory_space<vmem>>, %arg11: memref<32x32xbf16, #tpu.memory_space<vmem>>, %arg12: memref<4x8x32xbf16, #tpu.memory_space<vmem>>, %arg13: memref<2x32xf32, #tpu.memory_space<vmem>>, %arg14: memref<32x32xbf16, #tpu.memory_space<vmem>>, %arg15: memref<2x32x32xbf16, #tpu.memory_space<vmem>>, %arg16: memref<4x8x32xbf16, #tpu.memory_space<vmem>>, %arg17: memref<4x32xf32, #tpu.memory_space<vmem>>, %arg18: memref<32x64xbf16, #tpu.memory_space<vmem>>, %arg19: memref<1x64xf32, #tpu.memory_space<vmem>>, %arg20: memref<64x32xbf16, #tpu.memory_space<vmem>>, %arg21: memref<1x32xf32, #tpu.memory_space<vmem>>, %arg22: memref<4x32xf32, #tpu.memory_space<vmem>>, %arg23: memref<4x32xf32, #tpu.memory_space<vmem>>, %arg24: memref<1x8x32xf32, #tpu.memory_space<vmem>>, %arg25: memref<1x8x32xf32, #tpu.memory_space<vmem>>, %arg26: memref<8x32xf32, #tpu.memory_space<vmem>>, %arg27: memref<4x8x8xbf16, #tpu.memory_space<vmem>>, %arg28: memref<4x8x1xf32, #tpu.memory_space<vmem>>, %arg29: memref<4x8x1xf32, #tpu.memory_space<vmem>>, %arg30: memref<4x8x8xf32, #tpu.memory_space<vmem>>) attributes {dimension_semantics = [#tpu.dimension_semantics<parallel>, #tpu.dimension_semantics<arbitrary>], iteration_bounds = array<i64: 2, 3>, scalar_prefetch = 0 : i64, scratch_operands = 5 : i64, tpu.core_type = #tpu.core_type<tc>, window_params = [{transform_indices = @transform_0, window_bounds = array<i64: 1, 8, 32>}, {transform_indices = @transform_1, window_bounds = array<i64: 1, 8, 64>}, {transform_indices = @transform_2, window_bounds = array<i64: 1, 16, 32>}, {transform_indices = @transform_3, window_bounds = array<i64: 1, 16, 32>}, {pipeline_mode = #tpu.pipeline_mode<synchronous>, transform_indices = @transform_4, window_bounds = array<i64: 64, 32>}, {pipeline_mode = #tpu.pipeline_mode<synchronous>, transform_indices = @transform_5, window_bounds = array<i64: 32, 32>}, {pipeline_mode = #tpu.pipeline_mode<synchronous>, transform_indices = @transform_6, window_bounds = array<i64: 2, 32>}, {pipeline_mode = #tpu.pipeline_mode<synchronous>, transform_indices = @transform_7, window_bounds = array<i64: 32, 64>}, {pipeline_mode = #tpu.pipeline_mode<synchronous>, transform_indices = @transform_8, window_bounds = array<i64: 1, 64>}, {pipeline_mode = #tpu.pipeline_mode<synchronous>, transform_indices = @transform_9, window_bounds = array<i64: 32, 32>}, {pipeline_mode = #tpu.pipeline_mode<synchronous>, transform_indices = @transform_10, window_bounds = array<i64: 4, 8, 32>}, {pipeline_mode = #tpu.pipeline_mode<synchronous>, transform_indices = @transform_11, window_bounds = array<i64: 2, 32>}, {pipeline_mode = #tpu.pipeline_mode<synchronous>, transform_indices = @transform_12, window_bounds = array<i64: 32, 32>}, {pipeline_mode = #tpu.pipeline_mode<synchronous>, transform_indices = @transform_13, window_bounds = array<i64: 2, 32, 32>}, {pipeline_mode = #tpu.pipeline_mode<synchronous>, transform_indices = @transform_14, window_bounds = array<i64: 4, 8, 32>}, {pipeline_mode = #tpu.pipeline_mode<synchronous>, transform_indices = @transform_15, window_bounds = array<i64: 4, 32>}, {pipeline_mode = #tpu.pipeline_mode<synchronous>, transform_indices = @transform_16, window_bounds = array<i64: 32, 64>}, {pipeline_mode = #tpu.pipeline_mode<synchronous>, transform_indices = @transform_17, window_bounds = array<i64: 1, 64>}, {pipeline_mode = #tpu.pipeline_mode<synchronous>, transform_indices = @transform_18, window_bounds = array<i64: 64, 32>}, {pipeline_mode = #tpu.pipeline_mode<synchronous>, transform_indices = @transform_19, window_bounds = array<i64: 1, 32>}, {pipeline_mode = #tpu.pipeline_mode<synchronous>, transform_indices = @transform_20, window_bounds = array<i64: 4, 32>}, {pipeline_mode = #tpu.pipeline_mode<synchronous>, transform_indices = @transform_21, window_bounds = array<i64: 4, 32>}, {transform_indices = @transform_22, window_bounds = array<i64: 1, 8, 32>}, {transform_indices = @transform_23, window_bounds = array<i64: 1, 8, 32>}]} {
    %c0_i32 = arith.constant 0 : i32
    %0 = arith.cmpi eq, %arg1, %c0_i32 : i32
    %1 = arith.extui %0 : i1 to i32
    %c0_i32_0 = arith.constant 0 : i32
    %2 = arith.cmpi ne, %1, %c0_i32_0 : i32
    scf.if %2 {
      %c0_42 = arith.constant 0 : index
      %c0_43 = arith.constant 0 : index
      %c0_44 = arith.constant 0 : index
      %81 = vector.load %arg2[%c0_42, %c0_43, %c0_44] : memref<1x8x32xf32, #tpu.memory_space<vmem>>, vector<1x8x32xf32>
      %82 = vector.shape_cast %81 : vector<1x8x32xf32> to vector<8x32xf32>
      %c0_45 = arith.constant 0 : index
      %c0_46 = arith.constant 0 : index
      %c0_47 = arith.constant 0 : index
      %83 = vector.load %arg3[%c0_45, %c0_46, %c0_47] : memref<1x8x64xf32, #tpu.memory_space<vmem>>, vector<1x8x64xf32>
      %84 = vector.shape_cast %83 : vector<1x8x64xf32> to vector<8x64xf32>
      %c0_48 = arith.constant 0 : index
      %c0_49 = arith.constant 0 : index
      %85 = vector.load %arg8[%c0_48, %c0_49] : memref<2x32xf32, #tpu.memory_space<vmem>>, vector<2x32xf32>
      %c0_50 = arith.constant 0 : index
      %c0_51 = arith.constant 0 : index
      %86 = vector.load %arg22[%c0_50, %c0_51] : memref<4x32xf32, #tpu.memory_space<vmem>>, vector<4x32xf32>
      %c0_52 = arith.constant 0 : index
      %c0_53 = arith.constant 0 : index
      %87 = vector.load %arg23[%c0_52, %c0_53] : memref<4x32xf32, #tpu.memory_space<vmem>>, vector<4x32xf32>
      %c0_54 = arith.constant 0 : index
      %c0_55 = arith.constant 0 : index
      %88 = vector.load %arg13[%c0_54, %c0_55] : memref<2x32xf32, #tpu.memory_space<vmem>>, vector<2x32xf32>
      %c0_56 = arith.constant 0 : index
      %c0_57 = arith.constant 0 : index
      %89 = vector.load %arg17[%c0_56, %c0_57] : memref<4x32xf32, #tpu.memory_space<vmem>>, vector<4x32xf32>
      %c0_58 = arith.constant 0 : index
      %c0_59 = arith.constant 0 : index
      %90 = vector.load %arg6[%c0_58, %c0_59] : memref<64x32xbf16, #tpu.memory_space<vmem>>, vector<64x32xbf16>
      %91 = arith.truncf %84 : vector<8x64xf32> to vector<8x64xbf16>
      %cst_60 = arith.constant dense<0.000000e+00> : vector<8x32xf32>
      %92 = tpu.matmul %91, %90, %cst_60 {dimension_numbers = #tpu.dot_dimension_numbers<[1], [0], [0], [1], [0, 0, 1, 1], [], []>} : vector<8x64xbf16>, vector<64x32xbf16>, vector<8x32xf32> -> vector<8x32xf32>
      %93 = vector.extract_strided_slice %85 {offsets = [0, 0], sizes = [1, 32], strides = [1, 1]} : vector<2x32xf32> to vector<1x32xf32>
      %94 = vector.broadcast %93 : vector<1x32xf32> to vector<8x32xf32>
      %95 = arith.addf %92, %94 : vector<8x32xf32>
      %cst_61 = arith.constant 0.000000e+00 : f32
      %96 = vector.broadcast %cst_61 : f32 to vector<8x32xf32>
      %97 = arith.maximumf %95, %96 : vector<8x32xf32>
      %c0_62 = arith.constant 0 : index
      %c0_63 = arith.constant 0 : index
      %98 = vector.load %arg7[%c0_62, %c0_63] : memref<32x32xbf16, #tpu.memory_space<vmem>>, vector<32x32xbf16>
      %99 = arith.truncf %97 : vector<8x32xf32> to vector<8x32xbf16>
      %cst_64 = arith.constant dense<0.000000e+00> : vector<8x32xf32>
      %100 = tpu.matmul %99, %98, %cst_64 {dimension_numbers = #tpu.dot_dimension_numbers<[1], [0], [0], [1], [0, 0, 1, 1], [], []>} : vector<8x32xbf16>, vector<32x32xbf16>, vector<8x32xf32> -> vector<8x32xf32>
      %101 = vector.extract_strided_slice %85 {offsets = [1, 0], sizes = [1, 32], strides = [1, 1]} : vector<2x32xf32> to vector<1x32xf32>
      %102 = vector.broadcast %101 : vector<1x32xf32> to vector<8x32xf32>
      %103 = arith.addf %100, %102 : vector<8x32xf32>
      %104 = arith.addf %82, %103 : vector<8x32xf32>
      %c0_65 = arith.constant 0 : index
      %c0_66 = arith.constant 0 : index
      %105 = vector.load %arg9[%c0_65, %c0_66] : memref<32x64xbf16, #tpu.memory_space<vmem>>, vector<32x64xbf16>
      %106 = arith.truncf %104 : vector<8x32xf32> to vector<8x32xbf16>
      %cst_67 = arith.constant dense<0.000000e+00> : vector<8x64xf32>
      %107 = tpu.matmul %106, %105, %cst_67 {dimension_numbers = #tpu.dot_dimension_numbers<[1], [0], [0], [1], [0, 0, 1, 1], [], []>} : vector<8x32xbf16>, vector<32x64xbf16>, vector<8x64xf32> -> vector<8x64xf32>
      %c0_68 = arith.constant 0 : index
      %c0_69 = arith.constant 0 : index
      %108 = vector.load %arg10[%c0_68, %c0_69] : memref<1x64xf32, #tpu.memory_space<vmem>>, vector<1x64xf32>
      %109 = vector.broadcast %108 : vector<1x64xf32> to vector<8x64xf32>
      %110 = arith.addf %107, %109 : vector<8x64xf32>
      %c0_70 = arith.constant 0 : index
      %c0_71 = arith.constant 0 : index
      %111 = vector.load %arg11[%c0_70, %c0_71] : memref<32x32xbf16, #tpu.memory_space<vmem>>, vector<32x32xbf16>
      %112 = arith.truncf %82 : vector<8x32xf32> to vector<8x32xbf16>
      %cst_72 = arith.constant dense<0.000000e+00> : vector<8x32xf32>
      %113 = tpu.matmul %112, %111, %cst_72 {dimension_numbers = #tpu.dot_dimension_numbers<[1], [0], [0], [1], [0, 0, 1, 1], [], []>} : vector<8x32xbf16>, vector<32x32xbf16>, vector<8x32xf32> -> vector<8x32xf32>
      %114 = vector.extract_strided_slice %88 {offsets = [0, 0], sizes = [1, 32], strides = [1, 1]} : vector<2x32xf32> to vector<1x32xf32>
      %115 = vector.broadcast %114 : vector<1x32xf32> to vector<8x32xf32>
      %116 = arith.addf %113, %115 : vector<8x32xf32>
      %117 = vector.extract_strided_slice %110 {offsets = [0, 0], sizes = [8, 32], strides = [1, 1]} : vector<8x64xf32> to vector<8x32xf32>
      %118 = vector.extract_strided_slice %117 {offsets = [0, 0], sizes = [8, 8], strides = [1, 1]} : vector<8x32xf32> to vector<8x8xf32>
      %119 = vector.extract_strided_slice %117 {offsets = [0, 8], sizes = [8, 8], strides = [1, 1]} : vector<8x32xf32> to vector<8x8xf32>
      %120 = vector.extract_strided_slice %117 {offsets = [0, 16], sizes = [8, 8], strides = [1, 1]} : vector<8x32xf32> to vector<8x8xf32>
      %121 = vector.extract_strided_slice %117 {offsets = [0, 24], sizes = [8, 8], strides = [1, 1]} : vector<8x32xf32> to vector<8x8xf32>
      %122 = vector.shape_cast %118 : vector<8x8xf32> to vector<1x8x8xf32>
      %123 = vector.shape_cast %119 : vector<8x8xf32> to vector<1x8x8xf32>
      %124 = vector.shape_cast %120 : vector<8x8xf32> to vector<1x8x8xf32>
      %125 = vector.shape_cast %121 : vector<8x8xf32> to vector<1x8x8xf32>
      %126 = tpu.concatenate %122, %123, %124, %125 in 0 : vector<1x8x8xf32>, vector<1x8x8xf32>, vector<1x8x8xf32>, vector<1x8x8xf32> -> vector<4x8x8xf32>
      %127 = arith.truncf %126 : vector<4x8x8xf32> to vector<4x8x8xbf16>
      %128 = vector.extract_strided_slice %110 {offsets = [0, 32], sizes = [8, 32], strides = [1, 1]} : vector<8x64xf32> to vector<8x32xf32>
      %129 = vector.extract_strided_slice %128 {offsets = [0, 0], sizes = [8, 8], strides = [1, 1]} : vector<8x32xf32> to vector<8x8xf32>
      %130 = vector.extract_strided_slice %128 {offsets = [0, 8], sizes = [8, 8], strides = [1, 1]} : vector<8x32xf32> to vector<8x8xf32>
      %131 = vector.extract_strided_slice %128 {offsets = [0, 16], sizes = [8, 8], strides = [1, 1]} : vector<8x32xf32> to vector<8x8xf32>
      %132 = vector.extract_strided_slice %128 {offsets = [0, 24], sizes = [8, 8], strides = [1, 1]} : vector<8x32xf32> to vector<8x8xf32>
      %133 = vector.shape_cast %129 : vector<8x8xf32> to vector<1x8x8xf32>
      %134 = vector.shape_cast %130 : vector<8x8xf32> to vector<1x8x8xf32>
      %135 = vector.shape_cast %131 : vector<8x8xf32> to vector<1x8x8xf32>
      %136 = vector.shape_cast %132 : vector<8x8xf32> to vector<1x8x8xf32>
      %137 = tpu.concatenate %133, %134, %135, %136 in 0 : vector<1x8x8xf32>, vector<1x8x8xf32>, vector<1x8x8xf32>, vector<1x8x8xf32> -> vector<4x8x8xf32>
      %138 = arith.truncf %137 : vector<4x8x8xf32> to vector<4x8x8xbf16>
      %139 = vector.extract_strided_slice %116 {offsets = [0, 0], sizes = [8, 8], strides = [1, 1]} : vector<8x32xf32> to vector<8x8xf32>
      %140 = vector.extract_strided_slice %116 {offsets = [0, 8], sizes = [8, 8], strides = [1, 1]} : vector<8x32xf32> to vector<8x8xf32>
      %141 = vector.extract_strided_slice %116 {offsets = [0, 16], sizes = [8, 8], strides = [1, 1]} : vector<8x32xf32> to vector<8x8xf32>
      %142 = vector.extract_strided_slice %116 {offsets = [0, 24], sizes = [8, 8], strides = [1, 1]} : vector<8x32xf32> to vector<8x8xf32>
      %143 = vector.shape_cast %139 : vector<8x8xf32> to vector<1x8x8xf32>
      %144 = vector.shape_cast %140 : vector<8x8xf32> to vector<1x8x8xf32>
      %145 = vector.shape_cast %141 : vector<8x8xf32> to vector<1x8x8xf32>
      %146 = vector.shape_cast %142 : vector<8x8xf32> to vector<1x8x8xf32>
      %147 = tpu.concatenate %143, %144, %145, %146 in 0 : vector<1x8x8xf32>, vector<1x8x8xf32>, vector<1x8x8xf32>, vector<1x8x8xf32> -> vector<4x8x8xf32>
      %148 = arith.truncf %147 : vector<4x8x8xf32> to vector<4x8x8xbf16>
      %c0_73 = arith.constant 0 : index
      %c0_74 = arith.constant 0 : index
      %c0_75 = arith.constant 0 : index
      %149 = vector.load %arg12[%c0_73, %c0_74, %c0_75] : memref<4x8x32xbf16, #tpu.memory_space<vmem>>, vector<4x8x32xbf16>
      "tpu.trace_start"() <{level = 10 : i32, message = "hqe,hke->hqk"}> : () -> ()
      %cst_76 = arith.constant dense<0.000000e+00> : vector<4x8x8xf32>
      %150 = tpu.matmul %127, %138, %cst_76 {dimension_numbers = #tpu.dot_dimension_numbers<[2], [2], [1], [1], [0, 0, 0, 1, 1, 1], [0], [0]>} : vector<4x8x8xbf16>, vector<4x8x8xbf16>, vector<4x8x8xf32> -> vector<4x8x8xf32>
      "tpu.trace_stop"() : () -> ()
      %cst_77 = arith.constant 0.353553385 : f32
      %151 = vector.broadcast %cst_77 : f32 to vector<4x8x8xf32>
      %152 = arith.mulf %150, %151 : vector<4x8x8xf32>
      %cst_78 = arith.constant dense<0xFF800000> : vector<4x8xf32>
      %153 = vector.multi_reduction <maximumf>, %152, %cst_78 [2] : vector<4x8x8xf32> to vector<4x8xf32>
      %154 = vector.shape_cast %153 : vector<4x8xf32> to vector<4x8x1xf32>
      %155 = vector.broadcast %154 : vector<4x8x1xf32> to vector<4x8x8xf32>
      %156 = arith.subf %152, %155 : vector<4x8x8xf32>
      %157 = math.exp %156 : vector<4x8x8xf32>
      %cst_79 = arith.constant dense<0.000000e+00> : vector<4x8xf32>
      %158 = vector.multi_reduction <add>, %157, %cst_79 [2] : vector<4x8x8xf32> to vector<4x8xf32>
      %159 = vector.shape_cast %158 : vector<4x8xf32> to vector<4x8x1xf32>
      %160 = tpu.reciprocal %159 {approx = true} : vector<4x8x1xf32> -> vector<4x8x1xf32>
      %161 = vector.broadcast %160 : vector<4x8x1xf32> to vector<4x8x8xf32>
      %162 = arith.mulf %157, %161 : vector<4x8x8xf32>
      %163 = arith.truncf %162 : vector<4x8x8xf32> to vector<4x8x8xbf16>
      "tpu.trace_start"() <{level = 10 : i32, message = "hqk,hke->hqe"}> : () -> ()
      %cst_80 = arith.constant dense<0.000000e+00> : vector<4x8x8xf32>
      %164 = tpu.matmul %163, %148, %cst_80 {dimension_numbers = #tpu.dot_dimension_numbers<[2], [1], [1], [2], [0, 0, 0, 1, 1, 2], [0], [0]>} : vector<4x8x8xbf16>, vector<4x8x8xbf16>, vector<4x8x8xf32> -> vector<4x8x8xf32>
      "tpu.trace_stop"() : () -> ()
      %165 = arith.truncf %164 : vector<4x8x8xf32> to vector<4x8x8xbf16>
      "tpu.trace_start"() <{level = 10 : i32, message = "hqe,hed->hqd"}> : () -> ()
      %cst_81 = arith.constant dense<0.000000e+00> : vector<4x8x32xf32>
      %166 = tpu.matmul %165, %149, %cst_81 {dimension_numbers = #tpu.dot_dimension_numbers<[2], [1], [1], [2], [0, 0, 0, 1, 1, 2], [0], [0]>} : vector<4x8x8xbf16>, vector<4x8x32xbf16>, vector<4x8x32xf32> -> vector<4x8x32xf32>
      "tpu.trace_stop"() : () -> ()
      %cst_82 = arith.constant dense<0.000000e+00> : vector<8x32xf32>
      %167 = vector.multi_reduction <add>, %166, %cst_82 [0] : vector<4x8x32xf32> to vector<8x32xf32>
      %168 = vector.extract_strided_slice %88 {offsets = [1, 0], sizes = [1, 32], strides = [1, 1]} : vector<2x32xf32> to vector<1x32xf32>
      %169 = vector.broadcast %168 : vector<1x32xf32> to vector<8x32xf32>
      %170 = arith.addf %167, %169 : vector<8x32xf32>
      %171 = arith.addf %82, %170 : vector<8x32xf32>
      %172 = vector.extract_strided_slice %86 {offsets = [0, 0], sizes = [1, 32], strides = [1, 1]} : vector<4x32xf32> to vector<1x32xf32>
      %173 = vector.extract_strided_slice %87 {offsets = [0, 0], sizes = [1, 32], strides = [1, 1]} : vector<4x32xf32> to vector<1x32xf32>
      %cst_83 = arith.constant dense<0.000000e+00> : vector<8xf32>
      %174 = vector.multi_reduction <add>, %171, %cst_83 [1] : vector<8x32xf32> to vector<8xf32>
      %175 = vector.shape_cast %174 : vector<8xf32> to vector<8x1xf32>
      %cst_84 = arith.constant 3.200000e+01 : f32
      %176 = vector.broadcast %cst_84 : f32 to vector<8x1xf32>
      %177 = arith.divf %175, %176 : vector<8x1xf32>
      %178 = vector.broadcast %177 : vector<8x1xf32> to vector<8x32xf32>
      %179 = arith.subf %171, %178 : vector<8x32xf32>
      %180 = arith.mulf %179, %179 : vector<8x32xf32>
      %cst_85 = arith.constant dense<0.000000e+00> : vector<8xf32>
      %181 = vector.multi_reduction <add>, %180, %cst_85 [1] : vector<8x32xf32> to vector<8xf32>
      %182 = vector.shape_cast %181 : vector<8xf32> to vector<8x1xf32>
      %cst_86 = arith.constant 3.200000e+01 : f32
      %183 = vector.broadcast %cst_86 : f32 to vector<8x1xf32>
      %184 = arith.divf %182, %183 : vector<8x1xf32>
      %cst_87 = arith.constant 9.99999974E-6 : f32
      %185 = vector.broadcast %cst_87 : f32 to vector<8x1xf32>
      %186 = arith.addf %184, %185 : vector<8x1xf32>
      %187 = math.rsqrt %186 : vector<8x1xf32>
      %188 = vector.broadcast %187 : vector<8x1xf32> to vector<8x32xf32>
      %189 = arith.mulf %179, %188 : vector<8x32xf32>
      %190 = vector.broadcast %172 : vector<1x32xf32> to vector<8x32xf32>
      %191 = arith.mulf %189, %190 : vector<8x32xf32>
      %192 = vector.broadcast %173 : vector<1x32xf32> to vector<8x32xf32>
      %193 = arith.addf %191, %192 : vector<8x32xf32>
      %c0_88 = arith.constant 0 : index
      %c0_89 = arith.constant 0 : index
      %194 = vector.load %arg26[%c0_88, %c0_89] : memref<8x32xf32, #tpu.memory_space<vmem>>, vector<8x32xf32>
      tpu.vector_store %arg26[%c0_88, %c0_89], %193 {strides = array<i32>} : memref<8x32xf32, #tpu.memory_space<vmem>>, vector<8x32xf32>,
      %195 = arith.addf %193, %103 : vector<8x32xf32>
      %c0_90 = arith.constant 0 : index
      %c0_91 = arith.constant 0 : index
      %196 = vector.load %arg14[%c0_90, %c0_91] : memref<32x32xbf16, #tpu.memory_space<vmem>>, vector<32x32xbf16>
      %197 = arith.truncf %195 : vector<8x32xf32> to vector<8x32xbf16>
      %cst_92 = arith.constant dense<0.000000e+00> : vector<8x32xf32>
      %198 = tpu.matmul %197, %196, %cst_92 {dimension_numbers = #tpu.dot_dimension_numbers<[1], [0], [0], [1], [0, 0, 1, 1], [], []>} : vector<8x32xbf16>, vector<32x32xbf16>, vector<8x32xf32> -> vector<8x32xf32>
      %199 = vector.extract_strided_slice %89 {offsets = [0, 0], sizes = [1, 32], strides = [1, 1]} : vector<4x32xf32> to vector<1x32xf32>
      %200 = vector.broadcast %199 : vector<1x32xf32> to vector<8x32xf32>
      %201 = arith.addf %198, %200 : vector<8x32xf32>
      %202 = vector.extract_strided_slice %201 {offsets = [0, 0], sizes = [8, 8], strides = [1, 1]} : vector<8x32xf32> to vector<8x8xf32>
      %203 = vector.extract_strided_slice %201 {offsets = [0, 8], sizes = [8, 8], strides = [1, 1]} : vector<8x32xf32> to vector<8x8xf32>
      %204 = vector.extract_strided_slice %201 {offsets = [0, 16], sizes = [8, 8], strides = [1, 1]} : vector<8x32xf32> to vector<8x8xf32>
      %205 = vector.extract_strided_slice %201 {offsets = [0, 24], sizes = [8, 8], strides = [1, 1]} : vector<8x32xf32> to vector<8x8xf32>
      %206 = vector.shape_cast %202 : vector<8x8xf32> to vector<1x8x8xf32>
      %207 = vector.shape_cast %203 : vector<8x8xf32> to vector<1x8x8xf32>
      %208 = vector.shape_cast %204 : vector<8x8xf32> to vector<1x8x8xf32>
      %209 = vector.shape_cast %205 : vector<8x8xf32> to vector<1x8x8xf32>
      %210 = tpu.concatenate %206, %207, %208, %209 in 0 : vector<1x8x8xf32>, vector<1x8x8xf32>, vector<1x8x8xf32>, vector<1x8x8xf32> -> vector<4x8x8xf32>
      %211 = arith.truncf %210 : vector<4x8x8xf32> to vector<4x8x8xbf16>
      %c0_93 = arith.constant 0 : index
      %c0_94 = arith.constant 0 : index
      %c0_95 = arith.constant 0 : index
      %212 = vector.load %arg27[%c0_93, %c0_94, %c0_95] : memref<4x8x8xbf16, #tpu.memory_space<vmem>>, vector<4x8x8xbf16>
      tpu.vector_store %arg27[%c0_93, %c0_94, %c0_95], %211 {strides = array<i32>} : memref<4x8x8xbf16, #tpu.memory_space<vmem>>, vector<4x8x8xbf16>,
      %cst_96 = arith.constant -1.000000e+30 : f32
      %213 = vector.broadcast %cst_96 : f32 to vector<4x8x1xf32>
      %c0_97 = arith.constant 0 : index
      %c0_98 = arith.constant 0 : index
      %c0_99 = arith.constant 0 : index
      %214 = vector.load %arg28[%c0_97, %c0_98, %c0_99] : memref<4x8x1xf32, #tpu.memory_space<vmem>>, vector<4x8x1xf32>
      tpu.vector_store %arg28[%c0_97, %c0_98, %c0_99], %213 {strides = array<i32>} : memref<4x8x1xf32, #tpu.memory_space<vmem>>, vector<4x8x1xf32>,
      %cst_100 = arith.constant 0.000000e+00 : f32
      %215 = vector.broadcast %cst_100 : f32 to vector<4x8x1xf32>
      %c0_101 = arith.constant 0 : index
      %c0_102 = arith.constant 0 : index
      %c0_103 = arith.constant 0 : index
      %216 = vector.load %arg29[%c0_101, %c0_102, %c0_103] : memref<4x8x1xf32, #tpu.memory_space<vmem>>, vector<4x8x1xf32>
      tpu.vector_store %arg29[%c0_101, %c0_102, %c0_103], %215 {strides = array<i32>} : memref<4x8x1xf32, #tpu.memory_space<vmem>>, vector<4x8x1xf32>,
      %cst_104 = arith.constant 0.000000e+00 : f32
      %217 = vector.broadcast %cst_104 : f32 to vector<4x8x8xf32>
      %c0_105 = arith.constant 0 : index
      %c0_106 = arith.constant 0 : index
      %c0_107 = arith.constant 0 : index
      %218 = vector.load %arg30[%c0_105, %c0_106, %c0_107] : memref<4x8x8xf32, #tpu.memory_space<vmem>>, vector<4x8x8xf32>
      tpu.vector_store %arg30[%c0_105, %c0_106, %c0_107], %217 {strides = array<i32>} : memref<4x8x8xf32, #tpu.memory_space<vmem>>, vector<4x8x8xf32>,
    } else {
    }
    %c0 = arith.constant 0 : index
    %c0_1 = arith.constant 0 : index
    %3 = vector.load %arg17[%c0, %c0_1] : memref<4x32xf32, #tpu.memory_space<vmem>>, vector<4x32xf32>
    %c0_2 = arith.constant 0 : index
    %c0_3 = arith.constant 0 : index
    %c0_4 = arith.constant 0 : index
    %4 = vector.load %arg4[%c0_2, %c0_3, %c0_4] : memref<1x16x32xbf16, #tpu.memory_space<vmem>>, vector<1x16x32xbf16>
    %5 = vector.shape_cast %4 : vector<1x16x32xbf16> to vector<16x32xbf16>
    %c0_5 = arith.constant 0 : index
    %c0_6 = arith.constant 0 : index
    %c0_7 = arith.constant 0 : index
    %6 = vector.load %arg5[%c0_5, %c0_6, %c0_7] : memref<1x16x32xbf16, #tpu.memory_space<vmem>>, vector<1x16x32xbf16>
    %7 = vector.shape_cast %6 : vector<1x16x32xbf16> to vector<16x32xbf16>
    %c0_8 = arith.constant 0 : index
    %c0_9 = arith.constant 0 : index
    %c0_10 = arith.constant 0 : index
    %8 = vector.load %arg15[%c0_8, %c0_9, %c0_10] : memref<2x32x32xbf16, #tpu.memory_space<vmem>>, vector<1x32x32xbf16>
    %9 = vector.shape_cast %8 : vector<1x32x32xbf16> to vector<32x32xbf16>
    %cst = arith.constant dense<0.000000e+00> : vector<16x32xf32>
    %10 = tpu.matmul %5, %9, %cst {dimension_numbers = #tpu.dot_dimension_numbers<[1], [0], [0], [1], [0, 0, 1, 1], [], []>} : vector<16x32xbf16>, vector<32x32xbf16>, vector<16x32xf32> -> vector<16x32xf32>
    %11 = vector.extract_strided_slice %3 {offsets = [1, 0], sizes = [1, 32], strides = [1, 1]} : vector<4x32xf32> to vector<1x32xf32>
    %12 = vector.broadcast %11 : vector<1x32xf32> to vector<16x32xf32>
    %13 = arith.addf %10, %12 : vector<16x32xf32>
    %c1 = arith.constant 1 : index
    %c0_11 = arith.constant 0 : index
    %c0_12 = arith.constant 0 : index
    %14 = vector.load %arg15[%c1, %c0_11, %c0_12] : memref<2x32x32xbf16, #tpu.memory_space<vmem>>, vector<1x32x32xbf16>
    %15 = vector.shape_cast %14 : vector<1x32x32xbf16> to vector<32x32xbf16>
    %cst_13 = arith.constant dense<0.000000e+00> : vector<16x32xf32>
    %16 = tpu.matmul %7, %15, %cst_13 {dimension_numbers = #tpu.dot_dimension_numbers<[1], [0], [0], [1], [0, 0, 1, 1], [], []>} : vector<16x32xbf16>, vector<32x32xbf16>, vector<16x32xf32> -> vector<16x32xf32>
    %17 = vector.extract_strided_slice %3 {offsets = [2, 0], sizes = [1, 32], strides = [1, 1]} : vector<4x32xf32> to vector<1x32xf32>
    %18 = vector.broadcast %17 : vector<1x32xf32> to vector<16x32xf32>
    %19 = arith.addf %16, %18 : vector<16x32xf32>
    %20 = vector.extract_strided_slice %13 {offsets = [0, 0], sizes = [16, 8], strides = [1, 1]} : vector<16x32xf32> to vector<16x8xf32>
    %21 = vector.extract_strided_slice %13 {offsets = [0, 8], sizes = [16, 8], strides = [1, 1]} : vector<16x32xf32> to vector<16x8xf32>
    %22 = vector.extract_strided_slice %13 {offsets = [0, 16], sizes = [16, 8], strides = [1, 1]} : vector<16x32xf32> to vector<16x8xf32>
    %23 = vector.extract_strided_slice %13 {offsets = [0, 24], sizes = [16, 8], strides = [1, 1]} : vector<16x32xf32> to vector<16x8xf32>
    %24 = vector.shape_cast %20 : vector<16x8xf32> to vector<1x16x8xf32>
    %25 = vector.shape_cast %21 : vector<16x8xf32> to vector<1x16x8xf32>
    %26 = vector.shape_cast %22 : vector<16x8xf32> to vector<1x16x8xf32>
    %27 = vector.shape_cast %23 : vector<16x8xf32> to vector<1x16x8xf32>
    %28 = tpu.concatenate %24, %25, %26, %27 in 0 : vector<1x16x8xf32>, vector<1x16x8xf32>, vector<1x16x8xf32>, vector<1x16x8xf32> -> vector<4x16x8xf32>
    %29 = arith.truncf %28 : vector<4x16x8xf32> to vector<4x16x8xbf16>
    %30 = vector.extract_strided_slice %19 {offsets = [0, 0], sizes = [16, 8], strides = [1, 1]} : vector<16x32xf32> to vector<16x8xf32>
    %31 = vector.extract_strided_slice %19 {offsets = [0, 8], sizes = [16, 8], strides = [1, 1]} : vector<16x32xf32> to vector<16x8xf32>
    %32 = vector.extract_strided_slice %19 {offsets = [0, 16], sizes = [16, 8], strides = [1, 1]} : vector<16x32xf32> to vector<16x8xf32>
    %33 = vector.extract_strided_slice %19 {offsets = [0, 24], sizes = [16, 8], strides = [1, 1]} : vector<16x32xf32> to vector<16x8xf32>
    %34 = vector.shape_cast %30 : vector<16x8xf32> to vector<1x16x8xf32>
    %35 = vector.shape_cast %31 : vector<16x8xf32> to vector<1x16x8xf32>
    %36 = vector.shape_cast %32 : vector<16x8xf32> to vector<1x16x8xf32>
    %37 = vector.shape_cast %33 : vector<16x8xf32> to vector<1x16x8xf32>
    %38 = tpu.concatenate %34, %35, %36, %37 in 0 : vector<1x16x8xf32>, vector<1x16x8xf32>, vector<1x16x8xf32>, vector<1x16x8xf32> -> vector<4x16x8xf32>
    %39 = arith.truncf %38 : vector<4x16x8xf32> to vector<4x16x8xbf16>
    %c0_14 = arith.constant 0 : index
    %c0_15 = arith.constant 0 : index
    %c0_16 = arith.constant 0 : index
    %40 = vector.load %arg27[%c0_14, %c0_15, %c0_16] : memref<4x8x8xbf16, #tpu.memory_space<vmem>>, vector<4x8x8xbf16>
    "tpu.trace_start"() <{level = 10 : i32, message = "hqe,hke->hqk"}> : () -> ()
    %cst_17 = arith.constant dense<0.000000e+00> : vector<4x8x16xf32>
    %41 = tpu.matmul %40, %29, %cst_17 {dimension_numbers = #tpu.dot_dimension_numbers<[2], [2], [1], [1], [0, 0, 0, 1, 1, 1], [0], [0]>} : vector<4x8x8xbf16>, vector<4x16x8xbf16>, vector<4x8x16xf32> -> vector<4x8x16xf32>
    "tpu.trace_stop"() : () -> ()
    %cst_18 = arith.constant 0.353553385 : f32
    %42 = vector.broadcast %cst_18 : f32 to vector<4x8x16xf32>
    %43 = arith.mulf %41, %42 : vector<4x8x16xf32>
    %44 = tpu.iota {dimensions = array<i32: 1>} : vector<8x16xi32>
    %c16_i32 = arith.constant 16 : i32
    %45 = arith.muli %arg1, %c16_i32 : i32
    %46 = vector.broadcast %45 : i32 to vector<8x16xi32>
    %47 = arith.addi %44, %46 : vector<8x16xi32>
    %c40_i32 = arith.constant 40 : i32
    %48 = vector.broadcast %c40_i32 : i32 to vector<8x16xi32>
    %49 = arith.cmpi slt, %47, %48 : vector<8x16xi32>
    %50 = vector.shape_cast %49 : vector<8x16xi1> to vector<1x8x16xi1>
    %cst_19 = arith.constant -1.000000e+30 : f32
    %51 = vector.shape_cast %50 : vector<1x8x16xi1> to vector<1x8x16xi1>
    %52 = vector.broadcast %51 : vector<1x8x16xi1> to vector<4x8x16xi1>
    %53 = vector.broadcast %cst_19 : f32 to vector<4x8x16xf32>
    %54 = arith.select %52, %43, %53 : vector<4x8x16xi1>, vector<4x8x16xf32>
    %c0_20 = arith.constant 0 : index
    %c0_21 = arith.constant 0 : index
    %c0_22 = arith.constant 0 : index
    %55 = vector.load %arg28[%c0_20, %c0_21, %c0_22] : memref<4x8x1xf32, #tpu.memory_space<vmem>>, vector<4x8x1xf32>
    %cst_23 = arith.constant dense<0xFF800000> : vector<4x8xf32>
    %56 = vector.multi_reduction <maximumf>, %54, %cst_23 [2] : vector<4x8x16xf32> to vector<4x8xf32>
    %57 = vector.shape_cast %56 : vector<4x8xf32> to vector<4x8x1xf32>
    %58 = arith.maximumf %55, %57 : vector<4x8x1xf32>
    %59 = arith.subf %55, %58 : vector<4x8x1xf32>
    %60 = math.exp %59 : vector<4x8x1xf32>
    %61 = vector.broadcast %58 : vector<4x8x1xf32> to vector<4x8x16xf32>
    %62 = arith.subf %54, %61 : vector<4x8x16xf32>
    %63 = math.exp %62 : vector<4x8x16xf32>
    %c0_24 = arith.constant 0 : index
    %c0_25 = arith.constant 0 : index
    %c0_26 = arith.constant 0 : index
    %64 = vector.load %arg29[%c0_24, %c0_25, %c0_26] : memref<4x8x1xf32, #tpu.memory_space<vmem>>, vector<4x8x1xf32>
    %65 = arith.mulf %60, %64 : vector<4x8x1xf32>
    %cst_27 = arith.constant dense<0.000000e+00> : vector<4x8xf32>
    %66 = vector.multi_reduction <add>, %63, %cst_27 [2] : vector<4x8x16xf32> to vector<4x8xf32>
    %67 = vector.shape_cast %66 : vector<4x8xf32> to vector<4x8x1xf32>
    %68 = arith.addf %65, %67 : vector<4x8x1xf32>
    %c0_28 = arith.constant 0 : index
    %c0_29 = arith.constant 0 : index
    %c0_30 = arith.constant 0 : index
    %69 = vector.load %arg29[%c0_28, %c0_29, %c0_30] : memref<4x8x1xf32, #tpu.memory_space<vmem>>, vector<4x8x1xf32>
    tpu.vector_store %arg29[%c0_28, %c0_29, %c0_30], %68 {strides = array<i32>} : memref<4x8x1xf32, #tpu.memory_space<vmem>>, vector<4x8x1xf32>,
    %70 = arith.truncf %63 : vector<4x8x16xf32> to vector<4x8x16xbf16>
    "tpu.trace_start"() <{level = 10 : i32, message = "hqk,hke->hqe"}> : () -> ()
    %cst_31 = arith.constant dense<0.000000e+00> : vector<4x8x8xf32>
    %71 = tpu.matmul %70, %39, %cst_31 {dimension_numbers = #tpu.dot_dimension_numbers<[2], [1], [1], [2], [0, 0, 0, 1, 1, 2], [0], [0]>} : vector<4x8x16xbf16>, vector<4x16x8xbf16>, vector<4x8x8xf32> -> vector<4x8x8xf32>
    "tpu.trace_stop"() : () -> ()
    %c0_32 = arith.constant 0 : index
    %c0_33 = arith.constant 0 : index
    %c0_34 = arith.constant 0 : index
    %72 = vector.load %arg30[%c0_32, %c0_33, %c0_34] : memref<4x8x8xf32, #tpu.memory_space<vmem>>, vector<4x8x8xf32>
    %73 = vector.broadcast %60 : vector<4x8x1xf32> to vector<4x8x8xf32>
    %74 = arith.mulf %73, %72 : vector<4x8x8xf32>
    %75 = arith.addf %74, %71 : vector<4x8x8xf32>
    %c0_35 = arith.constant 0 : index
    %c0_36 = arith.constant 0 : index
    %c0_37 = arith.constant 0 : index
    %76 = vector.load %arg30[%c0_35, %c0_36, %c0_37] : memref<4x8x8xf32, #tpu.memory_space<vmem>>, vector<4x8x8xf32>
    tpu.vector_store %arg30[%c0_35, %c0_36, %c0_37], %75 {strides = array<i32>} : memref<4x8x8xf32, #tpu.memory_space<vmem>>, vector<4x8x8xf32>,
    %c0_38 = arith.constant 0 : index
    %c0_39 = arith.constant 0 : index
    %c0_40 = arith.constant 0 : index
    %77 = vector.load %arg28[%c0_38, %c0_39, %c0_40] : memref<4x8x1xf32, #tpu.memory_space<vmem>>, vector<4x8x1xf32>
    tpu.vector_store %arg28[%c0_38, %c0_39, %c0_40], %58 {strides = array<i32>} : memref<4x8x1xf32, #tpu.memory_space<vmem>>, vector<4x8x1xf32>,
    %c2_i32 = arith.constant 2 : i32
    %78 = arith.cmpi eq, %arg1, %c2_i32 : i32
    %79 = arith.extui %78 : i1 to i32
    %c0_i32_41 = arith.constant 0 : i32
    %80 = arith.cmpi ne, %79, %c0_i32_41 : i32
    scf.if %80 {
      %c0_42 = arith.constant 0 : index
      %c0_43 = arith.constant 0 : index
      %81 = vector.load %arg22[%c0_42, %c0_43] : memref<4x32xf32, #tpu.memory_space<vmem>>, vector<4x32xf32>
      %c0_44 = arith.constant 0 : index
      %c0_45 = arith.constant 0 : index
      %82 = vector.load %arg23[%c0_44, %c0_45] : memref<4x32xf32, #tpu.memory_space<vmem>>, vector<4x32xf32>
      %c0_46 = arith.constant 0 : index
      %c0_47 = arith.constant 0 : index
      %c0_48 = arith.constant 0 : index
      %83 = vector.load %arg30[%c0_46, %c0_47, %c0_48] : memref<4x8x8xf32, #tpu.memory_space<vmem>>, vector<4x8x8xf32>
      %c0_49 = arith.constant 0 : index
      %c0_50 = arith.constant 0 : index
      %c0_51 = arith.constant 0 : index
      %84 = vector.load %arg29[%c0_49, %c0_50, %c0_51] : memref<4x8x1xf32, #tpu.memory_space<vmem>>, vector<4x8x1xf32>
      %85 = tpu.reciprocal %84 {approx = true} : vector<4x8x1xf32> -> vector<4x8x1xf32>
      %86 = vector.broadcast %85 : vector<4x8x1xf32> to vector<4x8x8xf32>
      %87 = arith.mulf %83, %86 : vector<4x8x8xf32>
      %c0_52 = arith.constant 0 : index
      %c0_53 = arith.constant 0 : index
      %c0_54 = arith.constant 0 : index
      %88 = vector.load %arg16[%c0_52, %c0_53, %c0_54] : memref<4x8x32xbf16, #tpu.memory_space<vmem>>, vector<4x8x32xbf16>
      %89 = arith.truncf %87 : vector<4x8x8xf32> to vector<4x8x8xbf16>
      "tpu.trace_start"() <{level = 10 : i32, message = "hqe,hed->hqd"}> : () -> ()
      %cst_55 = arith.constant dense<0.000000e+00> : vector<4x8x32xf32>
      %90 = tpu.matmul %89, %88, %cst_55 {dimension_numbers = #tpu.dot_dimension_numbers<[2], [1], [1], [2], [0, 0, 0, 1, 1, 2], [0], [0]>} : vector<4x8x8xbf16>, vector<4x8x32xbf16>, vector<4x8x32xf32> -> vector<4x8x32xf32>
      "tpu.trace_stop"() : () -> ()
      %cst_56 = arith.constant dense<0.000000e+00> : vector<8x32xf32>
      %91 = vector.multi_reduction <add>, %90, %cst_56 [0] : vector<4x8x32xf32> to vector<8x32xf32>
      %92 = vector.extract_strided_slice %3 {offsets = [3, 0], sizes = [1, 32], strides = [1, 1]} : vector<4x32xf32> to vector<1x32xf32>
      %93 = vector.broadcast %92 : vector<1x32xf32> to vector<8x32xf32>
      %94 = arith.addf %91, %93 : vector<8x32xf32>
      %c0_57 = arith.constant 0 : index
      %c0_58 = arith.constant 0 : index
      %95 = vector.load %arg26[%c0_57, %c0_58] : memref<8x32xf32, #tpu.memory_space<vmem>>, vector<8x32xf32>
      %96 = arith.addf %95, %94 : vector<8x32xf32>
      %97 = vector.extract_strided_slice %81 {offsets = [1, 0], sizes = [1, 32], strides = [1, 1]} : vector<4x32xf32> to vector<1x32xf32>
      %98 = vector.extract_strided_slice %82 {offsets = [1, 0], sizes = [1, 32], strides = [1, 1]} : vector<4x32xf32> to vector<1x32xf32>
      %cst_59 = arith.constant dense<0.000000e+00> : vector<8xf32>
      %99 = vector.multi_reduction <add>, %96, %cst_59 [1] : vector<8x32xf32> to vector<8xf32>
      %100 = vector.shape_cast %99 : vector<8xf32> to vector<8x1xf32>
      %cst_60 = arith.constant 3.200000e+01 : f32
      %101 = vector.broadcast %cst_60 : f32 to vector<8x1xf32>
      %102 = arith.divf %100, %101 : vector<8x1xf32>
      %103 = vector.broadcast %102 : vector<8x1xf32> to vector<8x32xf32>
      %104 = arith.subf %96, %103 : vector<8x32xf32>
      %105 = arith.mulf %104, %104 : vector<8x32xf32>
      %cst_61 = arith.constant dense<0.000000e+00> : vector<8xf32>
      %106 = vector.multi_reduction <add>, %105, %cst_61 [1] : vector<8x32xf32> to vector<8xf32>
      %107 = vector.shape_cast %106 : vector<8xf32> to vector<8x1xf32>
      %cst_62 = arith.constant 3.200000e+01 : f32
      %108 = vector.broadcast %cst_62 : f32 to vector<8x1xf32>
      %109 = arith.divf %107, %108 : vector<8x1xf32>
      %cst_63 = arith.constant 9.99999974E-6 : f32
      %110 = vector.broadcast %cst_63 : f32 to vector<8x1xf32>
      %111 = arith.addf %109, %110 : vector<8x1xf32>
      %112 = math.rsqrt %111 : vector<8x1xf32>
      %113 = vector.broadcast %112 : vector<8x1xf32> to vector<8x32xf32>
      %114 = arith.mulf %104, %113 : vector<8x32xf32>
      %115 = vector.broadcast %97 : vector<1x32xf32> to vector<8x32xf32>
      %116 = arith.mulf %114, %115 : vector<8x32xf32>
      %117 = vector.broadcast %98 : vector<1x32xf32> to vector<8x32xf32>
      %118 = arith.addf %116, %117 : vector<8x32xf32>
      %c0_64 = arith.constant 0 : index
      %c0_65 = arith.constant 0 : index
      %119 = vector.load %arg18[%c0_64, %c0_65] : memref<32x64xbf16, #tpu.memory_space<vmem>>, vector<32x64xbf16>
      %120 = arith.truncf %118 : vector<8x32xf32> to vector<8x32xbf16>
      %cst_66 = arith.constant dense<0.000000e+00> : vector<8x64xf32>
      %121 = tpu.matmul %120, %119, %cst_66 {dimension_numbers = #tpu.dot_dimension_numbers<[1], [0], [0], [1], [0, 0, 1, 1], [], []>} : vector<8x32xbf16>, vector<32x64xbf16>, vector<8x64xf32> -> vector<8x64xf32>
      %c0_67 = arith.constant 0 : index
      %c0_68 = arith.constant 0 : index
      %122 = vector.load %arg19[%c0_67, %c0_68] : memref<1x64xf32, #tpu.memory_space<vmem>>, vector<1x64xf32>
      %123 = vector.broadcast %122 : vector<1x64xf32> to vector<8x64xf32>
      %124 = arith.addf %121, %123 : vector<8x64xf32>
      %cst_69 = arith.constant 0.000000e+00 : f32
      %125 = vector.broadcast %cst_69 : f32 to vector<8x64xf32>
      %126 = arith.maximumf %124, %125 : vector<8x64xf32>
      %c0_70 = arith.constant 0 : index
      %c0_71 = arith.constant 0 : index
      %127 = vector.load %arg20[%c0_70, %c0_71] : memref<64x32xbf16, #tpu.memory_space<vmem>>, vector<64x32xbf16>
      %128 = arith.truncf %126 : vector<8x64xf32> to vector<8x64xbf16>
      %cst_72 = arith.constant dense<0.000000e+00> : vector<8x32xf32>
      %129 = tpu.matmul %128, %127, %cst_72 {dimension_numbers = #tpu.dot_dimension_numbers<[1], [0], [0], [1], [0, 0, 1, 1], [], []>} : vector<8x64xbf16>, vector<64x32xbf16>, vector<8x32xf32> -> vector<8x32xf32>
      %c0_73 = arith.constant 0 : index
      %c0_74 = arith.constant 0 : index
      %130 = vector.load %arg21[%c0_73, %c0_74] : memref<1x32xf32, #tpu.memory_space<vmem>>, vector<1x32xf32>
      %131 = vector.broadcast %130 : vector<1x32xf32> to vector<8x32xf32>
      %132 = arith.addf %129, %131 : vector<8x32xf32>
      %133 = arith.addf %118, %132 : vector<8x32xf32>
      %134 = vector.extract_strided_slice %81 {offsets = [2, 0], sizes = [1, 32], strides = [1, 1]} : vector<4x32xf32> to vector<1x32xf32>
      %135 = vector.extract_strided_slice %82 {offsets = [2, 0], sizes = [1, 32], strides = [1, 1]} : vector<4x32xf32> to vector<1x32xf32>
      %cst_75 = arith.constant dense<0.000000e+00> : vector<8xf32>
      %136 = vector.multi_reduction <add>, %133, %cst_75 [1] : vector<8x32xf32> to vector<8xf32>
      %137 = vector.shape_cast %136 : vector<8xf32> to vector<8x1xf32>
      %cst_76 = arith.constant 3.200000e+01 : f32
      %138 = vector.broadcast %cst_76 : f32 to vector<8x1xf32>
      %139 = arith.divf %137, %138 : vector<8x1xf32>
      %140 = vector.broadcast %139 : vector<8x1xf32> to vector<8x32xf32>
      %141 = arith.subf %133, %140 : vector<8x32xf32>
      %142 = arith.mulf %141, %141 : vector<8x32xf32>
      %cst_77 = arith.constant dense<0.000000e+00> : vector<8xf32>
      %143 = vector.multi_reduction <add>, %142, %cst_77 [1] : vector<8x32xf32> to vector<8xf32>
      %144 = vector.shape_cast %143 : vector<8xf32> to vector<8x1xf32>
      %cst_78 = arith.constant 3.200000e+01 : f32
      %145 = vector.broadcast %cst_78 : f32 to vector<8x1xf32>
      %146 = arith.divf %144, %145 : vector<8x1xf32>
      %cst_79 = arith.constant 9.99999974E-6 : f32
      %147 = vector.broadcast %cst_79 : f32 to vector<8x1xf32>
      %148 = arith.addf %146, %147 : vector<8x1xf32>
      %149 = math.rsqrt %148 : vector<8x1xf32>
      %150 = vector.broadcast %149 : vector<8x1xf32> to vector<8x32xf32>
      %151 = arith.mulf %141, %150 : vector<8x32xf32>
      %152 = vector.broadcast %134 : vector<1x32xf32> to vector<8x32xf32>
      %153 = arith.mulf %151, %152 : vector<8x32xf32>
      %154 = vector.broadcast %135 : vector<1x32xf32> to vector<8x32xf32>
      %155 = arith.addf %153, %154 : vector<8x32xf32>
      %c0_80 = arith.constant 0 : index
      %c0_81 = arith.constant 0 : index
      %c0_82 = arith.constant 0 : index
      %156 = vector.load %arg24[%c0_80, %c0_81, %c0_82] : memref<1x8x32xf32, #tpu.memory_space<vmem>>, vector<1x8x32xf32>
      %157 = vector.shape_cast %156 : vector<1x8x32xf32> to vector<8x32xf32>
      %158 = vector.shape_cast %155 : vector<8x32xf32> to vector<1x8x32xf32>
      tpu.vector_store %arg24[%c0_80, %c0_81, %c0_82], %158 {strides = array<i32>} : memref<1x8x32xf32, #tpu.memory_space<vmem>>, vector<1x8x32xf32>,
      %159 = vector.extract_strided_slice %81 {offsets = [3, 0], sizes = [1, 32], strides = [1, 1]} : vector<4x32xf32> to vector<1x32xf32>
      %160 = vector.extract_strided_slice %82 {offsets = [3, 0], sizes = [1, 32], strides = [1, 1]} : vector<4x32xf32> to vector<1x32xf32>
      %cst_83 = arith.constant dense<0.000000e+00> : vector<8xf32>
      %161 = vector.multi_reduction <add>, %155, %cst_83 [1] : vector<8x32xf32> to vector<8xf32>
      %162 = vector.shape_cast %161 : vector<8xf32> to vector<8x1xf32>
      %cst_84 = arith.constant 3.200000e+01 : f32
      %163 = vector.broadcast %cst_84 : f32 to vector<8x1xf32>
      %164 = arith.divf %162, %163 : vector<8x1xf32>
      %165 = vector.broadcast %164 : vector<8x1xf32> to vector<8x32xf32>
      %166 = arith.subf %155, %165 : vector<8x32xf32>
      %167 = arith.mulf %166, %166 : vector<8x32xf32>
      %cst_85 = arith.constant dense<0.000000e+00> : vector<8xf32>
      %168 = vector.multi_reduction <add>, %167, %cst_85 [1] : vector<8x32xf32> to vector<8xf32>
      %169 = vector.shape_cast %168 : vector<8xf32> to vector<8x1xf32>
      %cst_86 = arith.constant 3.200000e+01 : f32
      %170 = vector.broadcast %cst_86 : f32 to vector<8x1xf32>
      %171 = arith.divf %169, %170 : vector<8x1xf32>
      %cst_87 = arith.constant 9.99999974E-6 : f32
      %172 = vector.broadcast %cst_87 : f32 to vector<8x1xf32>
      %173 = arith.addf %171, %172 : vector<8x1xf32>
      %174 = math.rsqrt %173 : vector<8x1xf32>
      %175 = vector.broadcast %174 : vector<8x1xf32> to vector<8x32xf32>
      %176 = arith.mulf %166, %175 : vector<8x32xf32>
      %177 = vector.broadcast %159 : vector<1x32xf32> to vector<8x32xf32>
      %178 = arith.mulf %176, %177 : vector<8x32xf32>
      %179 = vector.broadcast %160 : vector<1x32xf32> to vector<8x32xf32>
      %180 = arith.addf %178, %179 : vector<8x32xf32>
      %c0_88 = arith.constant 0 : index
      %c0_89 = arith.constant 0 : index
      %c0_90 = arith.constant 0 : index
      %181 = vector.load %arg25[%c0_88, %c0_89, %c0_90] : memref<1x8x32xf32, #tpu.memory_space<vmem>>, vector<1x8x32xf32>
      %182 = vector.shape_cast %181 : vector<1x8x32xf32> to vector<8x32xf32>
      %183 = vector.shape_cast %180 : vector<8x32xf32> to vector<1x8x32xf32>
      tpu.vector_store %arg25[%c0_88, %c0_89, %c0_90], %183 {strides = array<i32>} : memref<1x8x32xf32, #tpu.memory_space<vmem>>, vector<1x8x32xf32>,
    } else {
    }
    return
  }
  func.func @transform_0(%arg0: i32, %arg1: i32) -> (i32, i32, i32) {
    %c0_i32 = arith.constant 0 : i32
    %c0_i32_0 = arith.constant 0 : i32
    %c0_i32_1 = arith.constant 0 : i32
    return %arg0, %c0_i32, %c0_i32_0 : i32, i32, i32
  }
  func.func @transform_1(%arg0: i32, %arg1: i32) -> (i32, i32, i32) {
    %c0_i32 = arith.constant 0 : i32
    %c0_i32_0 = arith.constant 0 : i32
    %c0_i32_1 = arith.constant 0 : i32
    return %arg0, %c0_i32, %c0_i32_0 : i32, i32, i32
  }
  func.func @transform_2(%arg0: i32, %arg1: i32) -> (i32, i32, i32) {
    %c0_i32 = arith.constant 0 : i32
    %c0_i32_0 = arith.constant 0 : i32
    return %arg0, %arg1, %c0_i32 : i32, i32, i32
  }
  func.func @transform_3(%arg0: i32, %arg1: i32) -> (i32, i32, i32) {
    %c0_i32 = arith.constant 0 : i32
    %c0_i32_0 = arith.constant 0 : i32
    return %arg0, %arg1, %c0_i32 : i32, i32, i32
  }
  func.func @transform_4(%arg0: i32, %arg1: i32) -> (i32, i32) {
    %c0_i32 = arith.constant 0 : i32
    %c0_i32_0 = arith.constant 0 : i32
    %c0_i32_1 = arith.constant 0 : i32
    return %c0_i32, %c0_i32_0 : i32, i32
  }
  func.func @transform_5(%arg0: i32, %arg1: i32) -> (i32, i32) {
    %c0_i32 = arith.constant 0 : i32
    %c0_i32_0 = arith.constant 0 : i32
    %c0_i32_1 = arith.constant 0 : i32
    return %c0_i32, %c0_i32_0 : i32, i32
  }
  func.func @transform_6(%arg0: i32, %arg1: i32) -> (i32, i32) {
    %c0_i32 = arith.constant 0 : i32
    %c0_i32_0 = arith.constant 0 : i32
    %c0_i32_1 = arith.constant 0 : i32
    return %c0_i32, %c0_i32_0 : i32, i32
  }
  func.func @transform_7(%arg0: i32, %arg1: i32) -> (i32, i32) {
    %c0_i32 = arith.constant 0 : i32
    %c0_i32_0 = arith.constant 0 : i32
    %c0_i32_1 = arith.constant 0 : i32
    return %c0_i32, %c0_i32_0 : i32, i32
  }
  func.func @transform_8(%arg0: i32, %arg1: i32) -> (i32, i32) {
    %c0_i32 = arith.constant 0 : i32
    %c0_i32_0 = arith.constant 0 : i32
    %c0_i32_1 = arith.constant 0 : i32
    return %c0_i32, %c0_i32_0 : i32, i32
  }
  func.func @transform_9(%arg0: i32, %arg1: i32) -> (i32, i32) {
    %c0_i32 = arith.constant 0 : i32
    %c0_i32_0 = arith.constant 0 : i32
    %c0_i32_1 = arith.constant 0 : i32
    return %c0_i32, %c0_i32_0 : i32, i32
  }
  func.func @transform_10(%arg0: i32, %arg1: i32) -> (i32, i32, i32) {
    %c0_i32 = arith.constant 0 : i32
    %c0_i32_0 = arith.constant 0 : i32
    %c0_i32_1 = arith.constant 0 : i32
    %c0_i32_2 = arith.constant 0 : i32
    return %c0_i32, %c0_i32_0, %c0_i32_1 : i32, i32, i32
  }
  func.func @transform_11(%arg0: i32, %arg1: i32) -> (i32, i32) {
    %c0_i32 = arith.constant 0 : i32
    %c0_i32_0 = arith.constant 0 : i32
    %c0_i32_1 = arith.constant 0 : i32
    return %c0_i32, %c0_i32_0 : i32, i32
  }
  func.func @transform_12(%arg0: i32, %arg1: i32) -> (i32, i32) {
    %c0_i32 = arith.constant 0 : i32
    %c0_i32_0 = arith.constant 0 : i32
    %c0_i32_1 = arith.constant 0 : i32
    return %c0_i32, %c0_i32_0 : i32, i32
  }
  func.func @transform_13(%arg0: i32, %arg1: i32) -> (i32, i32, i32) {
    %c0_i32 = arith.constant 0 : i32
    %c0_i32_0 = arith.constant 0 : i32
    %c0_i32_1 = arith.constant 0 : i32
    %c0_i32_2 = arith.constant 0 : i32
    return %c0_i32, %c0_i32_0, %c0_i32_1 : i32, i32, i32
  }
  func.func @transform_14(%arg0: i32, %arg1: i32) -> (i32, i32, i32) {
    %c0_i32 = arith.constant 0 : i32
    %c0_i32_0 = arith.constant 0 : i32
    %c0_i32_1 = arith.constant 0 : i32
    %c0_i32_2 = arith.constant 0 : i32
    return %c0_i32, %c0_i32_0, %c0_i32_1 : i32, i32, i32
  }
  func.func @transform_15(%arg0: i32, %arg1: i32) -> (i32, i32) {
    %c0_i32 = arith.constant 0 : i32
    %c0_i32_0 = arith.constant 0 : i32
    %c0_i32_1 = arith.constant 0 : i32
    return %c0_i32, %c0_i32_0 : i32, i32
  }
  func.func @transform_16(%arg0: i32, %arg1: i32) -> (i32, i32) {
    %c0_i32 = arith.constant 0 : i32
    %c0_i32_0 = arith.constant 0 : i32
    %c0_i32_1 = arith.constant 0 : i32
    return %c0_i32, %c0_i32_0 : i32, i32
  }
  func.func @transform_17(%arg0: i32, %arg1: i32) -> (i32, i32) {
    %c0_i32 = arith.constant 0 : i32
    %c0_i32_0 = arith.constant 0 : i32
    %c0_i32_1 = arith.constant 0 : i32
    return %c0_i32, %c0_i32_0 : i32, i32
  }
  func.func @transform_18(%arg0: i32, %arg1: i32) -> (i32, i32) {
    %c0_i32 = arith.constant 0 : i32
    %c0_i32_0 = arith.constant 0 : i32
    %c0_i32_1 = arith.constant 0 : i32
    return %c0_i32, %c0_i32_0 : i32, i32
  }
  func.func @transform_19(%arg0: i32, %arg1: i32) -> (i32, i32) {
    %c0_i32 = arith.constant 0 : i32
    %c0_i32_0 = arith.constant 0 : i32
    %c0_i32_1 = arith.constant 0 : i32
    return %c0_i32, %c0_i32_0 : i32, i32
  }
  func.func @transform_20(%arg0: i32, %arg1: i32) -> (i32, i32) {
    %c0_i32 = arith.constant 0 : i32
    %c0_i32_0 = arith.constant 0 : i32
    %c0_i32_1 = arith.constant 0 : i32
    return %c0_i32, %c0_i32_0 : i32, i32
  }
  func.func @transform_21(%arg0: i32, %arg1: i32) -> (i32, i32) {
    %c0_i32 = arith.constant 0 : i32
    %c0_i32_0 = arith.constant 0 : i32
    %c0_i32_1 = arith.constant 0 : i32
    return %c0_i32, %c0_i32_0 : i32, i32
  }
  func.func @transform_22(%arg0: i32, %arg1: i32) -> (i32, i32, i32) {
    %c0_i32 = arith.constant 0 : i32
    %c0_i32_0 = arith.constant 0 : i32
    %c0_i32_1 = arith.constant 0 : i32
    return %arg0, %c0_i32, %c0_i32_0 : i32, i32, i32
  }
  func.func @transform_23(%arg0: i32, %arg1: i32) -> (i32, i32, i32) {
    %c0_i32 = arith.constant 0 : i32
    %c0_i32_0 = arith.constant 0 : i32
    %c0_i32_1 = arith.constant 0 : i32
    return %arg0, %c0_i32, %c0_i32_0 : i32, i32, i32
  }
}

module attributes {stable_mosaic.version = 11 : i64} {
  func.func @_decoder_layer_kernel(%arg0: i32, %arg1: i32, %arg2: memref<1x8x32xf32, #tpu.memory_space<vmem>>, %arg3: memref<1x8x64xf32, #tpu.memory_space<vmem>>, %arg4: memref<1x16x32xbf16, #tpu.memory_space<vmem>>, %arg5: memref<1x16x32xbf16, #tpu.memory_space<vmem>>, %arg6: memref<64x32xbf16, #tpu.memory_space<vmem>>, %arg7: memref<32x32xbf16, #tpu.memory_space<vmem>>, %arg8: memref<2x32xf32, #tpu.memory_space<vmem>>, %arg9: memref<32x64xbf16, #tpu.memory_space<vmem>>, %arg10: memref<1x64xf32, #tpu.memory_space<vmem>>, %arg11: memref<32x32xbf16, #tpu.memory_space<vmem>>, %arg12: memref<4x8x32xbf16, #tpu.memory_space<vmem>>, %arg13: memref<2x32xf32, #tpu.memory_space<vmem>>, %arg14: memref<32x32xbf16, #tpu.memory_space<vmem>>, %arg15: memref<2x32x32xbf16, #tpu.memory_space<vmem>>, %arg16: memref<4x8x32xbf16, #tpu.memory_space<vmem>>, %arg17: memref<4x32xf32, #tpu.memory_space<vmem>>, %arg18: memref<32x64xbf16, #tpu.memory_space<vmem>>, %arg19: memref<1x64xf32, #tpu.memory_space<vmem>>, %arg20: memref<64x32xbf16, #tpu.memory_space<vmem>>, %arg21: memref<1x32xf32, #tpu.memory_space<vmem>>, %arg22: memref<4x32xf32, #tpu.memory_space<vmem>>, %arg23: memref<4x32xf32, #tpu.memory_space<vmem>>, %arg24: memref<1x8x32xf32, #tpu.memory_space<vmem>>, %arg25: memref<1x8x32xf32, #tpu.memory_space<vmem>>, %arg26: memref<8x32xf32, #tpu.memory_space<vmem>>, %arg27: memref<4x8x8xbf16, #tpu.memory_space<vmem>>, %arg28: memref<4x8x1xf32, #tpu.memory_space<vmem>>, %arg29: memref<4x8x1xf32, #tpu.memory_space<vmem>>, %arg30: memref<4x8x8xf32, #tpu.memory_space<vmem>>) attributes {dimension_semantics = [#tpu.dimension_semantics<parallel>, #tpu.dimension_semantics<arbitrary>], iteration_bounds = array<i64: 2, 3>, scalar_prefetch = 0 : i64, scratch_operands = 5 : i64, tpu.core_type = #tpu.core_type<tc>, window_params = [{transform_indices = @transform_0, window_bounds = array<i64: 1, 8, 32>}, {transform_indices = @transform_1, window_bounds = array<i64: 1, 8, 64>}, {transform_indices = @transform_2, window_bounds = array<i64: 1, 16, 32>}, {transform_indices = @transform_3, window_bounds = array<i64: 1, 16, 32>}, {pipeline_mode = #tpu.pipeline_mode<synchronous>, transform_indices = @transform_4, window_bounds = array<i64: 64, 32>}, {pipeline_mode = #tpu.pipeline_mode<synchronous>, transform_indices = @transform_5, window_bounds = array<i64: 32, 32>}, {pipeline_mode = #tpu.pipeline_mode<synchronous>, transform_indices = @transform_6, window_bounds = array<i64: 2, 32>}, {pipeline_mode = #tpu.pipeline_mode<synchronous>, transform_indices = @transform_7, window_bounds = array<i64: 32, 64>}, {pipeline_mode = #tpu.pipeline_mode<synchronous>, transform_indices = @transform_8, window_bounds = array<i64: 1, 64>}, {pipeline_mode = #tpu.pipeline_mode<synchronous>, transform_indices = @transform_9, window_bounds = array<i64: 32, 32>}, {pipeline_mode = #tpu.pipeline_mode<synchronous>, transform_indices = @transform_10, window_bounds = array<i64: 4, 8, 32>}, {pipeline_mode = #tpu.pipeline_mode<synchronous>, transform_indices = @transform_11, window_bounds = array<i64: 2, 32>}, {pipeline_mode = #tpu.pipeline_mode<synchronous>, transform_indices = @transform_12, window_bounds = array<i64: 32, 32>}, {pipeline_mode = #tpu.pipeline_mode<synchronous>, transform_indices = @transform_13, window_bounds = array<i64: 2, 32, 32>}, {pipeline_mode = #tpu.pipeline_mode<synchronous>, transform_indices = @transform_14, window_bounds = array<i64: 4, 8, 32>}, {pipeline_mode = #tpu.pipeline_mode<synchronous>, transform_indices = @transform_15, window_bounds = array<i64: 4, 32>}, {pipeline_mode = #tpu.pipeline_mode<synchronous>, transform_indices = @transform_16, window_bounds = array<i64: 32, 64>}, {pipeline_mode = #tpu.pipeline_mode<synchronous>, transform_indices = @transform_17, window_bounds = array<i64: 1, 64>}, {pipeline_mode = #tpu.pipeline_mode<synchronous>, transform_indices = @transform_18, window_bounds = array<i64: 64, 32>}, {pipeline_mode = #tpu.pipeline_mode<synchronous>, transform_indices = @transform_19, window_bounds = array<i64: 1, 32>}, {pipeline_mode = #tpu.pipeline_mode<synchronous>, transform_indices = @transform_20, window_bounds = array<i64: 4, 32>}, {pipeline_mode = #tpu.pipeline_mode<synchronous>, transform_indices = @transform_21, window_bounds = array<i64: 4, 32>}, {transform_indices = @transform_22, window_bounds = array<i64: 1, 8, 32>}, {transform_indices = @transform_23, window_bounds = array<i64: 1, 8, 32>}]} {
    %c0_i32 = arith.constant 0 : i32
    %0 = arith.cmpi eq, %arg1, %c0_i32 : i32
    %1 = arith.extui %0 : i1 to i32
    %c0_i32_0 = arith.constant 0 : i32
    %2 = arith.cmpi ne, %1, %c0_i32_0 : i32
    scf.if %2 {
      %c0_42 = arith.constant 0 : index
      %c0_43 = arith.constant 0 : index
      %c0_44 = arith.constant 0 : index
      %81 = vector.load %arg2[%c0_42, %c0_43, %c0_44] : memref<1x8x32xf32, #tpu.memory_space<vmem>>, vector<1x8x32xf32>
      %82 = vector.shape_cast %81 : vector<1x8x32xf32> to vector<8x32xf32>
      %c0_45 = arith.constant 0 : index
      %c0_46 = arith.constant 0 : index
      %c0_47 = arith.constant 0 : index
      %83 = vector.load %arg3[%c0_45, %c0_46, %c0_47] : memref<1x8x64xf32, #tpu.memory_space<vmem>>, vector<1x8x64xf32>
      %84 = vector.shape_cast %83 : vector<1x8x64xf32> to vector<8x64xf32>
      %c0_48 = arith.constant 0 : index
      %c0_49 = arith.constant 0 : index
      %85 = vector.load %arg8[%c0_48, %c0_49] : memref<2x32xf32, #tpu.memory_space<vmem>>, vector<2x32xf32>
      %c0_50 = arith.constant 0 : index
      %c0_51 = arith.constant 0 : index
      %86 = vector.load %arg22[%c0_50, %c0_51] : memref<4x32xf32, #tpu.memory_space<vmem>>, vector<4x32xf32>
      %c0_52 = arith.constant 0 : index
      %c0_53 = arith.constant 0 : index
      %87 = vector.load %arg23[%c0_52, %c0_53] : memref<4x32xf32, #tpu.memory_space<vmem>>, vector<4x32xf32>
      %c0_54 = arith.constant 0 : index
      %c0_55 = arith.constant 0 : index
      %88 = vector.load %arg13[%c0_54, %c0_55] : memref<2x32xf32, #tpu.memory_space<vmem>>, vector<2x32xf32>
      %c0_56 = arith.constant 0 : index
      %c0_57 = arith.constant 0 : index
      %89 = vector.load %arg17[%c0_56, %c0_57] : memref<4x32xf32, #tpu.memory_space<vmem>>, vector<4x32xf32>
      %c0_58 = arith.constant 0 : index
      %c0_59 = arith.constant 0 : index
      %90 = vector.load %arg6[%c0_58, %c0_59] : memref<64x32xbf16, #tpu.memory_space<vmem>>, vector<64x32xbf16>
      %91 = arith.truncf %84 : vector<8x64xf32> to vector<8x64xbf16>
      %cst_60 = arith.constant dense<0.000000e+00> : vector<8x32xf32>
      %92 = tpu.matmul %91, %90, %cst_60 {dimension_numbers = #tpu.dot_dimension_numbers<[1], [0], [0], [1], [0, 0, 1, 1], [], []>} : vector<8x64xbf16>, vector<64x32xbf16>, vector<8x32xf32> -> vector<8x32xf32>
      %93 = vector.extract_strided_slice %85 {offsets = [0, 0], sizes = [1, 32], strides = [1, 1]} : vector<2x32xf32> to vector<1x32xf32>
      %94 = vector.broadcast %93 : vector<1x32xf32> to vector<8x32xf32>
      %95 = arith.addf %92, %94 : vector<8x32xf32>
      %cst_61 = arith.constant 0.000000e+00 : f32
      %96 = vector.broadcast %cst_61 : f32 to vector<8x32xf32>
      %97 = arith.maximumf %95, %96 : vector<8x32xf32>
      %c0_62 = arith.constant 0 : index
      %c0_63 = arith.constant 0 : index
      %98 = vector.load %arg7[%c0_62, %c0_63] : memref<32x32xbf16, #tpu.memory_space<vmem>>, vector<32x32xbf16>
      %99 = arith.truncf %97 : vector<8x32xf32> to vector<8x32xbf16>
      %cst_64 = arith.constant dense<0.000000e+00> : vector<8x32xf32>
      %100 = tpu.matmul %99, %98, %cst_64 {dimension_numbers = #tpu.dot_dimension_numbers<[1], [0], [0], [1], [0, 0, 1, 1], [], []>} : vector<8x32xbf16>, vector<32x32xbf16>, vector<8x32xf32> -> vector<8x32xf32>
      %101 = vector.extract_strided_slice %85 {offsets = [1, 0], sizes = [1, 32], strides = [1, 1]} : vector<2x32xf32> to vector<1x32xf32>
      %102 = vector.broadcast %101 : vector<1x32xf32> to vector<8x32xf32>
      %103 = arith.addf %100, %102 : vector<8x32xf32>
      %104 = arith.addf %82, %103 : vector<8x32xf32>
      %c0_65 = arith.constant 0 : index
      %c0_66 = arith.constant 0 : index
      %105 = vector.load %arg9[%c0_65, %c0_66] : memref<32x64xbf16, #tpu.memory_space<vmem>>, vector<32x64xbf16>
      %106 = arith.truncf %104 : vector<8x32xf32> to vector<8x32xbf16>
      %cst_67 = arith.constant dense<0.000000e+00> : vector<8x64xf32>
      %107 = tpu.matmul %106, %105, %cst_67 {dimension_numbers = #tpu.dot_dimension_numbers<[1], [0], [0], [1], [0, 0, 1, 1], [], []>} : vector<8x32xbf16>, vector<32x64xbf16>, vector<8x64xf32> -> vector<8x64xf32>
      %c0_68 = arith.constant 0 : index
      %c0_69 = arith.constant 0 : index
      %108 = vector.load %arg10[%c0_68, %c0_69] : memref<1x64xf32, #tpu.memory_space<vmem>>, vector<1x64xf32>
      %109 = vector.broadcast %108 : vector<1x64xf32> to vector<8x64xf32>
      %110 = arith.addf %107, %109 : vector<8x64xf32>
      %c0_70 = arith.constant 0 : index
      %c0_71 = arith.constant 0 : index
      %111 = vector.load %arg11[%c0_70, %c0_71] : memref<32x32xbf16, #tpu.memory_space<vmem>>, vector<32x32xbf16>
      %112 = arith.truncf %82 : vector<8x32xf32> to vector<8x32xbf16>
      %cst_72 = arith.constant dense<0.000000e+00> : vector<8x32xf32>
      %113 = tpu.matmul %112, %111, %cst_72 {dimension_numbers = #tpu.dot_dimension_numbers<[1], [0], [0], [1], [0, 0, 1, 1], [], []>} : vector<8x32xbf16>, vector<32x32xbf16>, vector<8x32xf32> -> vector<8x32xf32>
      %114 = vector.extract_strided_slice %88 {offsets = [0, 0], sizes = [1, 32], strides = [1, 1]} : vector<2x32xf32> to vector<1x32xf32>
      %115 = vector.broadcast %114 : vector<1x32xf32> to vector<8x32xf32>
      %116 = arith.addf %113, %115 : vector<8x32xf32>
      %117 = vector.extract_strided_slice %110 {offsets = [0, 0], sizes = [8, 32], strides = [1, 1]} : vector<8x64xf32> to vector<8x32xf32>
      %118 = vector.extract_strided_slice %117 {offsets = [0, 0], sizes = [8, 8], strides = [1, 1]} : vector<8x32xf32> to vector<8x8xf32>
      %119 = vector.extract_strided_slice %117 {offsets = [0, 8], sizes = [8, 8], strides = [1, 1]} : vector<8x32xf32> to vector<8x8xf32>
      %120 = vector.extract_strided_slice %117 {offsets = [0, 16], sizes = [8, 8], strides = [1, 1]} : vector<8x32xf32> to vector<8x8xf32>
      %121 = vector.extract_strided_slice %117 {offsets = [0, 24], sizes = [8, 8], strides = [1, 1]} : vector<8x32xf32> to vector<8x8xf32>
      %122 = vector.shape_cast %118 : vector<8x8xf32> to vector<1x8x8xf32>
      %123 = vector.shape_cast %119 : vector<8x8xf32> to vector<1x8x8xf32>
      %124 = vector.shape_cast %120 : vector<8x8xf32> to vector<1x8x8xf32>
      %125 = vector.shape_cast %121 : vector<8x8xf32> to vector<1x8x8xf32>
      %126 = tpu.concatenate %122, %123, %124, %125 in 0 : vector<1x8x8xf32>, vector<1x8x8xf32>, vector<1x8x8xf32>, vector<1x8x8xf32> -> vector<4x8x8xf32>
      %127 = arith.truncf %126 : vector<4x8x8xf32> to vector<4x8x8xbf16>
      %128 = vector.extract_strided_slice %110 {offsets = [0, 32], sizes = [8, 32], strides = [1, 1]} : vector<8x64xf32> to vector<8x32xf32>
      %129 = vector.extract_strided_slice %128 {offsets = [0, 0], sizes = [8, 8], strides = [1, 1]} : vector<8x32xf32> to vector<8x8xf32>
      %130 = vector.extract_strided_slice %128 {offsets = [0, 8], sizes = [8, 8], strides = [1, 1]} : vector<8x32xf32> to vector<8x8xf32>
      %131 = vector.extract_strided_slice %128 {offsets = [0, 16], sizes = [8, 8], strides = [1, 1]} : vector<8x32xf32> to vector<8x8xf32>
      %132 = vector.extract_strided_slice %128 {offsets = [0, 24], sizes = [8, 8], strides = [1, 1]} : vector<8x32xf32> to vector<8x8xf32>
      %133 = vector.shape_cast %129 : vector<8x8xf32> to vector<1x8x8xf32>
      %134 = vector.shape_cast %130 : vector<8x8xf32> to vector<1x8x8xf32>
      %135 = vector.shape_cast %131 : vector<8x8xf32> to vector<1x8x8xf32>
      %136 = vector.shape_cast %132 : vector<8x8xf32> to vector<1x8x8xf32>
      %137 = tpu.concatenate %133, %134, %135, %136 in 0 : vector<1x8x8xf32>, vector<1x8x8xf32>, vector<1x8x8xf32>, vector<1x8x8xf32> -> vector<4x8x8xf32>
      %138 = arith.truncf %137 : vector<4x8x8xf32> to vector<4x8x8xbf16>
      %139 = vector.extract_strided_slice %116 {offsets = [0, 0], sizes = [8, 8], strides = [1, 1]} : vector<8x32xf32> to vector<8x8xf32>
      %140 = vector.extract_strided_slice %116 {offsets = [0, 8], sizes = [8, 8], strides = [1, 1]} : vector<8x32xf32> to vector<8x8xf32>
      %141 = vector.extract_strided_slice %116 {offsets = [0, 16], sizes = [8, 8], strides = [1, 1]} : vector<8x32xf32> to vector<8x8xf32>
      %142 = vector.extract_strided_slice %116 {offsets = [0, 24], sizes = [8, 8], strides = [1, 1]} : vector<8x32xf32> to vector<8x8xf32>
      %143 = vector.shape_cast %139 : vector<8x8xf32> to vector<1x8x8xf32>
      %144 = vector.shape_cast %140 : vector<8x8xf32> to vector<1x8x8xf32>
      %145 = vector.shape_cast %141 : vector<8x8xf32> to vector<1x8x8xf32>
      %146 = vector.shape_cast %142 : vector<8x8xf32> to vector<1x8x8xf32>
      %147 = tpu.concatenate %143, %144, %145, %146 in 0 : vector<1x8x8xf32>, vector<1x8x8xf32>, vector<1x8x8xf32>, vector<1x8x8xf32> -> vector<4x8x8xf32>
      %148 = arith.truncf %147 : vector<4x8x8xf32> to vector<4x8x8xbf16>
      %c0_73 = arith.constant 0 : index
      %c0_74 = arith.constant 0 : index
      %c0_75 = arith.constant 0 : index
      %149 = vector.load %arg12[%c0_73, %c0_74, %c0_75] : memref<4x8x32xbf16, #tpu.memory_space<vmem>>, vector<4x8x32xbf16>
      "tpu.trace_start"() <{level = 10 : i32, message = "hqe,hke->hqk"}> : () -> ()
      %cst_76 = arith.constant dense<0.000000e+00> : vector<4x8x8xf32>
      %150 = tpu.matmul %127, %138, %cst_76 {dimension_numbers = #tpu.dot_dimension_numbers<[2], [2], [1], [1], [0, 0, 0, 1, 1, 1], [0], [0]>} : vector<4x8x8xbf16>, vector<4x8x8xbf16>, vector<4x8x8xf32> -> vector<4x8x8xf32>
      "tpu.trace_stop"() : () -> ()
      %cst_77 = arith.constant 0.353553385 : f32
      %151 = vector.broadcast %cst_77 : f32 to vector<4x8x8xf32>
      %152 = arith.mulf %150, %151 : vector<4x8x8xf32>
      %cst_78 = arith.constant dense<0xFF800000> : vector<4x8xf32>
      %153 = vector.multi_reduction <maximumf>, %152, %cst_78 [2] : vector<4x8x8xf32> to vector<4x8xf32>
      %154 = vector.shape_cast %153 : vector<4x8xf32> to vector<4x8x1xf32>
      %155 = vector.broadcast %154 : vector<4x8x1xf32> to vector<4x8x8xf32>
      %156 = arith.subf %152, %155 : vector<4x8x8xf32>
      %157 = math.exp %156 : vector<4x8x8xf32>
      %cst_79 = arith.constant dense<0.000000e+00> : vector<4x8xf32>
      %158 = vector.multi_reduction <add>, %157, %cst_79 [2] : vector<4x8x8xf32> to vector<4x8xf32>
      %159 = vector.shape_cast %158 : vector<4x8xf32> to vector<4x8x1xf32>
      %160 = tpu.reciprocal %159 {approx = true} : vector<4x8x1xf32> -> vector<4x8x1xf32>
      %161 = vector.broadcast %160 : vector<4x8x1xf32> to vector<4x8x8xf32>
      %162 = arith.mulf %157, %161 : vector<4x8x8xf32>
      %163 = arith.truncf %162 : vector<4x8x8xf32> to vector<4x8x8xbf16>
      "tpu.trace_start"() <{level = 10 : i32, message = "hqk,hke->hqe"}> : () -> ()
      %cst_80 = arith.constant dense<0.000000e+00> : vector<4x8x8xf32>
      %164 = tpu.matmul %163, %148, %cst_80 {dimension_numbers = #tpu.dot_dimension_numbers<[2], [1], [1], [2], [0, 0, 0, 1, 1, 2], [0], [0]>} : vector<4x8x8xbf16>, vector<4x8x8xbf16>, vector<4x8x8xf32> -> vector<4x8x8xf32>
      "tpu.trace_stop"() : () -> ()
      %165 = arith.truncf %164 : vector<4x8x8xf32> to vector<4x8x8xbf16>
      "tpu.trace_start"() <{level = 10 : i32, message = "hqe,hed->hqd"}> : () -> ()
      %cst_81 = arith.constant dense<0.000000e+00> : vector<4x8x32xf32>
      %166 = tpu.matmul %165, %149, %cst_81 {dimension_numbers = #tpu.dot_dimension_numbers<[2], [1], [1], [2], [0, 0, 0, 1, 1, 2], [0], [0]>} : vector<4x8x8xbf16>, vector<4x8x32xbf16>, vector<4x8x32xf32> -> vector<4x8x32xf32>
      "tpu.trace_stop"() : () -> ()
      %cst_82 = arith.constant dense<0.000000e+00> : vector<8x32xf32>
      %167 = vector.multi_reduction <add>, %166, %cst_82 [0] : vector<4x8x32xf32> to vector<8x32xf32>
      %168 = vector.extract_strided_slice %88 {offsets = [1, 0], sizes = [1, 32], strides = [1, 1]} : vector<2x32xf32> to vector<1x32xf32>
      %169 = vector.broadcast %168 : vector<1x32xf32> to vector<8x32xf32>
      %170 = arith.addf %167, %169 : vector<8x32xf32>
      %171 = arith.addf %82, %170 : vector<8x32xf32>
      %172 = vector.extract_strided_slice %86 {offsets = [0, 0], sizes = [1, 32], strides = [1, 1]} : vector<4x32xf32> to vector<1x32xf32>
      %173 = vector.extract_strided_slice %87 {offsets = [0, 0], sizes = [1, 32], strides = [1, 1]} : vector<4x32xf32> to vector<1x32xf32>
      %cst_83 = arith.constant dense<0.000000e+00> : vector<8xf32>
      %174 = vector.multi_reduction <add>, %171, %cst_83 [1] : vector<8x32xf32> to vector<8xf32>
      %175 = vector.shape_cast %174 : vector<8xf32> to vector<8x1xf32>
      %cst_84 = arith.constant 3.200000e+01 : f32
      %176 = vector.broadcast %cst_84 : f32 to vector<8x1xf32>
      %177 = arith.divf %175, %176 : vector<8x1xf32>
      %178 = vector.broadcast %177 : vector<8x1xf32> to vector<8x32xf32>
      %179 = arith.subf %171, %178 : vector<8x32xf32>
      %180 = arith.mulf %179, %179 : vector<8x32xf32>
      %cst_85 = arith.constant dense<0.000000e+00> : vector<8xf32>
      %181 = vector.multi_reduction <add>, %180, %cst_85 [1] : vector<8x32xf32> to vector<8xf32>
      %182 = vector.shape_cast %181 : vector<8xf32> to vector<8x1xf32>
      %cst_86 = arith.constant 3.200000e+01 : f32
      %183 = vector.broadcast %cst_86 : f32 to vector<8x1xf32>
      %184 = arith.divf %182, %183 : vector<8x1xf32>
      %cst_87 = arith.constant 9.99999974E-6 : f32
      %185 = vector.broadcast %cst_87 : f32 to vector<8x1xf32>
      %186 = arith.addf %184, %185 : vector<8x1xf32>
      %187 = math.rsqrt %186 : vector<8x1xf32>
      %188 = vector.broadcast %187 : vector<8x1xf32> to vector<8x32xf32>
      %189 = arith.mulf %179, %188 : vector<8x32xf32>
      %190 = vector.broadcast %172 : vector<1x32xf32> to vector<8x32xf32>
      %191 = arith.mulf %189, %190 : vector<8x32xf32>
      %192 = vector.broadcast %173 : vector<1x32xf32> to vector<8x32xf32>
      %193 = arith.addf %191, %192 : vector<8x32xf32>
      %c0_88 = arith.constant 0 : index
      %c0_89 = arith.constant 0 : index
      %194 = vector.load %arg26[%c0_88, %c0_89] : memref<8x32xf32, #tpu.memory_space<vmem>>, vector<8x32xf32>
      tpu.vector_store %arg26[%c0_88, %c0_89], %193 {strides = array<i32>} : memref<8x32xf32, #tpu.memory_space<vmem>>, vector<8x32xf32>,
      %195 = arith.addf %193, %103 : vector<8x32xf32>
      %c0_90 = arith.constant 0 : index
      %c0_91 = arith.constant 0 : index
      %196 = vector.load %arg14[%c0_90, %c0_91] : memref<32x32xbf16, #tpu.memory_space<vmem>>, vector<32x32xbf16>
      %197 = arith.truncf %195 : vector<8x32xf32> to vector<8x32xbf16>
      %cst_92 = arith.constant dense<0.000000e+00> : vector<8x32xf32>
      %198 = tpu.matmul %197, %196, %cst_92 {dimension_numbers = #tpu.dot_dimension_numbers<[1], [0], [0], [1], [0, 0, 1, 1], [], []>} : vector<8x32xbf16>, vector<32x32xbf16>, vector<8x32xf32> -> vector<8x32xf32>
      %199 = vector.extract_strided_slice %89 {offsets = [0, 0], sizes = [1, 32], strides = [1, 1]} : vector<4x32xf32> to vector<1x32xf32>
      %200 = vector.broadcast %199 : vector<1x32xf32> to vector<8x32xf32>
      %201 = arith.addf %198, %200 : vector<8x32xf32>
      %202 = vector.extract_strided_slice %201 {offsets = [0, 0], sizes = [8, 8], strides = [1, 1]} : vector<8x32xf32> to vector<8x8xf32>
      %203 = vector.extract_strided_slice %201 {offsets = [0, 8], sizes = [8, 8], strides = [1, 1]} : vector<8x32xf32> to vector<8x8xf32>
      %204 = vector.extract_strided_slice %201 {offsets = [0, 16], sizes = [8, 8], strides = [1, 1]} : vector<8x32xf32> to vector<8x8xf32>
      %205 = vector.extract_strided_slice %201 {offsets = [0, 24], sizes = [8, 8], strides = [1, 1]} : vector<8x32xf32> to vector<8x8xf32>
      %206 = vector.shape_cast %202 : vector<8x8xf32> to vector<1x8x8xf32>
      %207 = vector.shape_cast %203 : vector<8x8xf32> to vector<1x8x8xf32>
      %208 = vector.shape_cast %204 : vector<8x8xf32> to vector<1x8x8xf32>
      %209 = vector.shape_cast %205 : vector<8x8xf32> to vector<1x8x8xf32>
      %210 = tpu.concatenate %206, %207, %208, %209 in 0 : vector<1x8x8xf32>, vector<1x8x8xf32>, vector<1x8x8xf32>, vector<1x8x8xf32> -> vector<4x8x8xf32>
      %211 = arith.truncf %210 : vector<4x8x8xf32> to vector<4x8x8xbf16>
      %c0_93 = arith.constant 0 : index
      %c0_94 = arith.constant 0 : index
      %c0_95 = arith.constant 0 : index
      %212 = vector.load %arg27[%c0_93, %c0_94, %c0_95] : memref<4x8x8xbf16, #tpu.memory_space<vmem>>, vector<4x8x8xbf16>
      tpu.vector_store %arg27[%c0_93, %c0_94, %c0_95], %211 {strides = array<i32>} : memref<4x8x8xbf16, #tpu.memory_space<vmem>>, vector<4x8x8xbf16>,
      %cst_96 = arith.constant -1.000000e+30 : f32
      %213 = vector.broadcast %cst_96 : f32 to vector<4x8x1xf32>
      %c0_97 = arith.constant 0 : index
      %c0_98 = arith.constant 0 : index
      %c0_99 = arith.constant 0 : index
      %214 = vector.load %arg28[%c0_97, %c0_98, %c0_99] : memref<4x8x1xf32, #tpu.memory_space<vmem>>, vector<4x8x1xf32>
      tpu.vector_store %arg28[%c0_97, %c0_98, %c0_99], %213 {strides = array<i32>} : memref<4x8x1xf32, #tpu.memory_space<vmem>>, vector<4x8x1xf32>,
      %cst_100 = arith.constant 0.000000e+00 : f32
      %215 = vector.broadcast %cst_100 : f32 to vector<4x8x1xf32>
      %c0_101 = arith.constant 0 : index
      %c0_102 = arith.constant 0 : index
      %c0_103 = arith.constant 0 : index
      %216 = vector.load %arg29[%c0_101, %c0_102, %c0_103] : memref<4x8x1xf32, #tpu.memory_space<vmem>>, vector<4x8x1xf32>
      tpu.vector_store %arg29[%c0_101, %c0_102, %c0_103], %215 {strides = array<i32>} : memref<4x8x1xf32, #tpu.memory_space<vmem>>, vector<4x8x1xf32>,
      %cst_104 = arith.constant 0.000000e+00 : f32
      %217 = vector.broadcast %cst_104 : f32 to vector<4x8x8xf32>
      %c0_105 = arith.constant 0 : index
      %c0_106 = arith.constant 0 : index
      %c0_107 = arith.constant 0 : index
      %218 = vector.load %arg30[%c0_105, %c0_106, %c0_107] : memref<4x8x8xf32, #tpu.memory_space<vmem>>, vector<4x8x8xf32>
      tpu.vector_store %arg30[%c0_105, %c0_106, %c0_107], %217 {strides = array<i32>} : memref<4x8x8xf32, #tpu.memory_space<vmem>>, vector<4x8x8xf32>,
    } else {
    }
    %c0 = arith.constant 0 : index
    %c0_1 = arith.constant 0 : index
    %3 = vector.load %arg17[%c0, %c0_1] : memref<4x32xf32, #tpu.memory_space<vmem>>, vector<4x32xf32>
    %c0_2 = arith.constant 0 : index
    %c0_3 = arith.constant 0 : index
    %c0_4 = arith.constant 0 : index
    %4 = vector.load %arg4[%c0_2, %c0_3, %c0_4] : memref<1x16x32xbf16, #tpu.memory_space<vmem>>, vector<1x16x32xbf16>
    %5 = vector.shape_cast %4 : vector<1x16x32xbf16> to vector<16x32xbf16>
    %c0_5 = arith.constant 0 : index
    %c0_6 = arith.constant 0 : index
    %c0_7 = arith.constant 0 : index
    %6 = vector.load %arg5[%c0_5, %c0_6, %c0_7] : memref<1x16x32xbf16, #tpu.memory_space<vmem>>, vector<1x16x32xbf16>
    %7 = vector.shape_cast %6 : vector<1x16x32xbf16> to vector<16x32xbf16>
    %c0_8 = arith.constant 0 : index
    %c0_9 = arith.constant 0 : index
    %c0_10 = arith.constant 0 : index
    %8 = vector.load %arg15[%c0_8, %c0_9, %c0_10] : memref<2x32x32xbf16, #tpu.memory_space<vmem>>, vector<1x32x32xbf16>
    %9 = vector.shape_cast %8 : vector<1x32x32xbf16> to vector<32x32xbf16>
    %cst = arith.constant dense<0.000000e+00> : vector<16x32xf32>
    %10 = tpu.matmul %5, %9, %cst {dimension_numbers = #tpu.dot_dimension_numbers<[1], [0], [0], [1], [0, 0, 1, 1], [], []>} : vector<16x32xbf16>, vector<32x32xbf16>, vector<16x32xf32> -> vector<16x32xf32>
    %11 = vector.extract_strided_slice %3 {offsets = [1, 0], sizes = [1, 32], strides = [1, 1]} : vector<4x32xf32> to vector<1x32xf32>
    %12 = vector.broadcast %11 : vector<1x32xf32> to vector<16x32xf32>
    %13 = arith.addf %10, %12 : vector<16x32xf32>
    %c1 = arith.constant 1 : index
    %c0_11 = arith.constant 0 : index
    %c0_12 = arith.constant 0 : index
    %14 = vector.load %arg15[%c1, %c0_11, %c0_12] : memref<2x32x32xbf16, #tpu.memory_space<vmem>>, vector<1x32x32xbf16>
    %15 = vector.shape_cast %14 : vector<1x32x32xbf16> to vector<32x32xbf16>
    %cst_13 = arith.constant dense<0.000000e+00> : vector<16x32xf32>
    %16 = tpu.matmul %7, %15, %cst_13 {dimension_numbers = #tpu.dot_dimension_numbers<[1], [0], [0], [1], [0, 0, 1, 1], [], []>} : vector<16x32xbf16>, vector<32x32xbf16>, vector<16x32xf32> -> vector<16x32xf32>
    %17 = vector.extract_strided_slice %3 {offsets = [2, 0], sizes = [1, 32], strides = [1, 1]} : vector<4x32xf32> to vector<1x32xf32>
    %18 = vector.broadcast %17 : vector<1x32xf32> to vector<16x32xf32>
    %19 = arith.addf %16, %18 : vector<16x32xf32>
    %20 = vector.extract_strided_slice %13 {offsets = [0, 0], sizes = [16, 8], strides = [1, 1]} : vector<16x32xf32> to vector<16x8xf32>
    %21 = vector.extract_strided_slice %13 {offsets = [0, 8], sizes = [16, 8], strides = [1, 1]} : vector<16x32xf32> to vector<16x8xf32>
    %22 = vector.extract_strided_slice %13 {offsets = [0, 16], sizes = [16, 8], strides = [1, 1]} : vector<16x32xf32> to vector<16x8xf32>
    %23 = vector.extract_strided_slice %13 {offsets = [0, 24], sizes = [16, 8], strides = [1, 1]} : vector<16x32xf32> to vector<16x8xf32>
    %24 = vector.shape_cast %20 : vector<16x8xf32> to vector<1x16x8xf32>
    %25 = vector.shape_cast %21 : vector<16x8xf32> to vector<1x16x8xf32>
    %26 = vector.shape_cast %22 : vector<16x8xf32> to vector<1x16x8xf32>
    %27 = vector.shape_cast %23 : vector<16x8xf32> to vector<1x16x8xf32>
    %28 = tpu.concatenate %24, %25, %26, %27 in 0 : vector<1x16x8xf32>, vector<1x16x8xf32>, vector<1x16x8xf32>, vector<1x16x8xf32> -> vector<4x16x8xf32>
    %29 = arith.truncf %28 : vector<4x16x8xf32> to vector<4x16x8xbf16>
    %30 = vector.extract_strided_slice %19 {offsets = [0, 0], sizes = [16, 8], strides = [1, 1]} : vector<16x32xf32> to vector<16x8xf32>
    %31 = vector.extract_strided_slice %19 {offsets = [0, 8], sizes = [16, 8], strides = [1, 1]} : vector<16x32xf32> to vector<16x8xf32>
    %32 = vector.extract_strided_slice %19 {offsets = [0, 16], sizes = [16, 8], strides = [1, 1]} : vector<16x32xf32> to vector<16x8xf32>
    %33 = vector.extract_strided_slice %19 {offsets = [0, 24], sizes = [16, 8], strides = [1, 1]} : vector<16x32xf32> to vector<16x8xf32>
    %34 = vector.shape_cast %30 : vector<16x8xf32> to vector<1x16x8xf32>
    %35 = vector.shape_cast %31 : vector<16x8xf32> to vector<1x16x8xf32>
    %36 = vector.shape_cast %32 : vector<16x8xf32> to vector<1x16x8xf32>
    %37 = vector.shape_cast %33 : vector<16x8xf32> to vector<1x16x8xf32>
    %38 = tpu.concatenate %34, %35, %36, %37 in 0 : vector<1x16x8xf32>, vector<1x16x8xf32>, vector<1x16x8xf32>, vector<1x16x8xf32> -> vector<4x16x8xf32>
    %39 = arith.truncf %38 : vector<4x16x8xf32> to vector<4x16x8xbf16>
    %c0_14 = arith.constant 0 : index
    %c0_15 = arith.constant 0 : index
    %c0_16 = arith.constant 0 : index
    %40 = vector.load %arg27[%c0_14, %c0_15, %c0_16] : memref<4x8x8xbf16, #tpu.memory_space<vmem>>, vector<4x8x8xbf16>
    "tpu.trace_start"() <{level = 10 : i32, message = "hqe,hke->hqk"}> : () -> ()
    %cst_17 = arith.constant dense<0.000000e+00> : vector<4x8x16xf32>
    %41 = tpu.matmul %40, %29, %cst_17 {dimension_numbers = #tpu.dot_dimension_numbers<[2], [2], [1], [1], [0, 0, 0, 1, 1, 1], [0], [0]>} : vector<4x8x8xbf16>, vector<4x16x8xbf16>, vector<4x8x16xf32> -> vector<4x8x16xf32>
    "tpu.trace_stop"() : () -> ()
    %cst_18 = arith.constant 0.353553385 : f32
    %42 = vector.broadcast %cst_18 : f32 to vector<4x8x16xf32>
    %43 = arith.mulf %41, %42 : vector<4x8x16xf32>
    %44 = tpu.iota {dimensions = array<i32: 1>} : vector<8x16xi32>
    %c16_i32 = arith.constant 16 : i32
    %45 = arith.muli %arg1, %c16_i32 : i32
    %46 = vector.broadcast %45 : i32 to vector<8x16xi32>
    %47 = arith.addi %44, %46 : vector<8x16xi32>
    %c40_i32 = arith.constant 40 : i32
    %48 = vector.broadcast %c40_i32 : i32 to vector<8x16xi32>
    %49 = arith.cmpi slt, %47, %48 : vector<8x16xi32>
    %50 = vector.shape_cast %49 : vector<8x16xi1> to vector<1x8x16xi1>
    %cst_19 = arith.constant -1.000000e+30 : f32
    %51 = vector.shape_cast %50 : vector<1x8x16xi1> to vector<1x8x16xi1>
    %52 = vector.broadcast %51 : vector<1x8x16xi1> to vector<4x8x16xi1>
    %53 = vector.broadcast %cst_19 : f32 to vector<4x8x16xf32>
    %54 = arith.select %52, %43, %53 : vector<4x8x16xi1>, vector<4x8x16xf32>
    %c0_20 = arith.constant 0 : index
    %c0_21 = arith.constant 0 : index
    %c0_22 = arith.constant 0 : index
    %55 = vector.load %arg28[%c0_20, %c0_21, %c0_22] : memref<4x8x1xf32, #tpu.memory_space<vmem>>, vector<4x8x1xf32>
    %cst_23 = arith.constant dense<0xFF800000> : vector<4x8xf32>
    %56 = vector.multi_reduction <maximumf>, %54, %cst_23 [2] : vector<4x8x16xf32> to vector<4x8xf32>
    %57 = vector.shape_cast %56 : vector<4x8xf32> to vector<4x8x1xf32>
    %58 = arith.maximumf %55, %57 : vector<4x8x1xf32>
    %59 = arith.subf %55, %58 : vector<4x8x1xf32>
    %60 = math.exp %59 : vector<4x8x1xf32>
    %61 = vector.broadcast %58 : vector<4x8x1xf32> to vector<4x8x16xf32>
    %62 = arith.subf %54, %61 : vector<4x8x16xf32>
    %63 = math.exp %62 : vector<4x8x16xf32>
    %c0_24 = arith.constant 0 : index
    %c0_25 = arith.constant 0 : index
    %c0_26 = arith.constant 0 : index
    %64 = vector.load %arg29[%c0_24, %c0_25, %c0_26] : memref<4x8x1xf32, #tpu.memory_space<vmem>>, vector<4x8x1xf32>
    %65 = arith.mulf %60, %64 : vector<4x8x1xf32>
    %cst_27 = arith.constant dense<0.000000e+00> : vector<4x8xf32>
    %66 = vector.multi_reduction <add>, %63, %cst_27 [2] : vector<4x8x16xf32> to vector<4x8xf32>
    %67 = vector.shape_cast %66 : vector<4x8xf32> to vector<4x8x1xf32>
    %68 = arith.addf %65, %67 : vector<4x8x1xf32>
    %c0_28 = arith.constant 0 : index
    %c0_29 = arith.constant 0 : index
    %c0_30 = arith.constant 0 : index
    %69 = vector.load %arg29[%c0_28, %c0_29, %c0_30] : memref<4x8x1xf32, #tpu.memory_space<vmem>>, vector<4x8x1xf32>
    tpu.vector_store %arg29[%c0_28, %c0_29, %c0_30], %68 {strides = array<i32>} : memref<4x8x1xf32, #tpu.memory_space<vmem>>, vector<4x8x1xf32>,
    %70 = arith.truncf %63 : vector<4x8x16xf32> to vector<4x8x16xbf16>
    "tpu.trace_start"() <{level = 10 : i32, message = "hqk,hke->hqe"}> : () -> ()
    %cst_31 = arith.constant dense<0.000000e+00> : vector<4x8x8xf32>
    %71 = tpu.matmul %70, %39, %cst_31 {dimension_numbers = #tpu.dot_dimension_numbers<[2], [1], [1], [2], [0, 0, 0, 1, 1, 2], [0], [0]>} : vector<4x8x16xbf16>, vector<4x16x8xbf16>, vector<4x8x8xf32> -> vector<4x8x8xf32>
    "tpu.trace_stop"() : () -> ()
    %c0_32 = arith.constant 0 : index
    %c0_33 = arith.constant 0 : index
    %c0_34 = arith.constant 0 : index
    %72 = vector.load %arg30[%c0_32, %c0_33, %c0_34] : memref<4x8x8xf32, #tpu.memory_space<vmem>>, vector<4x8x8xf32>
    %73 = vector.broadcast %60 : vector<4x8x1xf32> to vector<4x8x8xf32>
    %74 = arith.mulf %73, %72 : vector<4x8x8xf32>
    %75 = arith.addf %74, %71 : vector<4x8x8xf32>
    %c0_35 = arith.constant 0 : index
    %c0_36 = arith.constant 0 : index
    %c0_37 = arith.constant 0 : index
    %76 = vector.load %arg30[%c0_35, %c0_36, %c0_37] : memref<4x8x8xf32, #tpu.memory_space<vmem>>, vector<4x8x8xf32>
    tpu.vector_store %arg30[%c0_35, %c0_36, %c0_37], %75 {strides = array<i32>} : memref<4x8x8xf32, #tpu.memory_space<vmem>>, vector<4x8x8xf32>,
    %c0_38 = arith.constant 0 : index
    %c0_39 = arith.constant 0 : index
    %c0_40 = arith.constant 0 : index
    %77 = vector.load %arg28[%c0_38, %c0_39, %c0_40] : memref<4x8x1xf32, #tpu.memory_space<vmem>>, vector<4x8x1xf32>
    tpu.vector_store %arg28[%c0_38, %c0_39, %c0_40], %58 {strides = array<i32>} : memref<4x8x1xf32, #tpu.memory_space<vmem>>, vector<4x8x1xf32>,
    %c2_i32 = arith.constant 2 : i32
    %78 = arith.cmpi eq, %arg1, %c2_i32 : i32
    %79 = arith.extui %78 : i1 to i32
    %c0_i32_41 = arith.constant 0 : i32
    %80 = arith.cmpi ne, %79, %c0_i32_41 : i32
    scf.if %80 {
      %c0_42 = arith.constant 0 : index
      %c0_43 = arith.constant 0 : index
      %81 = vector.load %arg22[%c0_42, %c0_43] : memref<4x32xf32, #tpu.memory_space<vmem>>, vector<4x32xf32>
      %c0_44 = arith.constant 0 : index
      %c0_45 = arith.constant 0 : index
      %82 = vector.load %arg23[%c0_44, %c0_45] : memref<4x32xf32, #tpu.memory_space<vmem>>, vector<4x32xf32>
      %c0_46 = arith.constant 0 : index
      %c0_47 = arith.constant 0 : index
      %c0_48 = arith.constant 0 : index
      %83 = vector.load %arg30[%c0_46, %c0_47, %c0_48] : memref<4x8x8xf32, #tpu.memory_space<vmem>>, vector<4x8x8xf32>
      %c0_49 = arith.constant 0 : index
      %c0_50 = arith.constant 0 : index
      %c0_51 = arith.constant 0 : index
      %84 = vector.load %arg29[%c0_49, %c0_50, %c0_51] : memref<4x8x1xf32, #tpu.memory_space<vmem>>, vector<4x8x1xf32>
      %85 = tpu.reciprocal %84 {approx = true} : vector<4x8x1xf32> -> vector<4x8x1xf32>
      %86 = vector.broadcast %85 : vector<4x8x1xf32> to vector<4x8x8xf32>
      %87 = arith.mulf %83, %86 : vector<4x8x8xf32>
      %c0_52 = arith.constant 0 : index
      %c0_53 = arith.constant 0 : index
      %c0_54 = arith.constant 0 : index
      %88 = vector.load %arg16[%c0_52, %c0_53, %c0_54] : memref<4x8x32xbf16, #tpu.memory_space<vmem>>, vector<4x8x32xbf16>
      %89 = arith.truncf %87 : vector<4x8x8xf32> to vector<4x8x8xbf16>
      "tpu.trace_start"() <{level = 10 : i32, message = "hqe,hed->hqd"}> : () -> ()
      %cst_55 = arith.constant dense<0.000000e+00> : vector<4x8x32xf32>
      %90 = tpu.matmul %89, %88, %cst_55 {dimension_numbers = #tpu.dot_dimension_numbers<[2], [1], [1], [2], [0, 0, 0, 1, 1, 2], [0], [0]>} : vector<4x8x8xbf16>, vector<4x8x32xbf16>, vector<4x8x32xf32> -> vector<4x8x32xf32>
      "tpu.trace_stop"() : () -> ()
      %cst_56 = arith.constant dense<0.000000e+00> : vector<8x32xf32>
      %91 = vector.multi_reduction <add>, %90, %cst_56 [0] : vector<4x8x32xf32> to vector<8x32xf32>
      %92 = vector.extract_strided_slice %3 {offsets = [3, 0], sizes = [1, 32], strides = [1, 1]} : vector<4x32xf32> to vector<1x32xf32>
      %93 = vector.broadcast %92 : vector<1x32xf32> to vector<8x32xf32>
      %94 = arith.addf %91, %93 : vector<8x32xf32>
      %c0_57 = arith.constant 0 : index
      %c0_58 = arith.constant 0 : index
      %95 = vector.load %arg26[%c0_57, %c0_58] : memref<8x32xf32, #tpu.memory_space<vmem>>, vector<8x32xf32>
      %96 = arith.addf %95, %94 : vector<8x32xf32>
      %97 = vector.extract_strided_slice %81 {offsets = [1, 0], sizes = [1, 32], strides = [1, 1]} : vector<4x32xf32> to vector<1x32xf32>
      %98 = vector.extract_strided_slice %82 {offsets = [1, 0], sizes = [1, 32], strides = [1, 1]} : vector<4x32xf32> to vector<1x32xf32>
      %cst_59 = arith.constant dense<0.000000e+00> : vector<8xf32>
      %99 = vector.multi_reduction <add>, %96, %cst_59 [1] : vector<8x32xf32> to vector<8xf32>
      %100 = vector.shape_cast %99 : vector<8xf32> to vector<8x1xf32>
      %cst_60 = arith.constant 3.200000e+01 : f32
      %101 = vector.broadcast %cst_60 : f32 to vector<8x1xf32>
      %102 = arith.divf %100, %101 : vector<8x1xf32>
      %103 = vector.broadcast %102 : vector<8x1xf32> to vector<8x32xf32>
      %104 = arith.subf %96, %103 : vector<8x32xf32>
      %105 = arith.mulf %104, %104 : vector<8x32xf32>
      %cst_61 = arith.constant dense<0.000000e+00> : vector<8xf32>
      %106 = vector.multi_reduction <add>, %105, %cst_61 [1] : vector<8x32xf32> to vector<8xf32>
      %107 = vector.shape_cast %106 : vector<8xf32> to vector<8x1xf32>
      %cst_62 = arith.constant 3.200000e+01 : f32
      %108 = vector.broadcast %cst_62 : f32 to vector<8x1xf32>
      %109 = arith.divf %107, %108 : vector<8x1xf32>
      %cst_63 = arith.constant 9.99999974E-6 : f32
      %110 = vector.broadcast %cst_63 : f32 to vector<8x1xf32>
      %111 = arith.addf %109, %110 : vector<8x1xf32>
      %112 = math.rsqrt %111 : vector<8x1xf32>
      %113 = vector.broadcast %112 : vector<8x1xf32> to vector<8x32xf32>
      %114 = arith.mulf %104, %113 : vector<8x32xf32>
      %115 = vector.broadcast %97 : vector<1x32xf32> to vector<8x32xf32>
      %116 = arith.mulf %114, %115 : vector<8x32xf32>
      %117 = vector.broadcast %98 : vector<1x32xf32> to vector<8x32xf32>
      %118 = arith.addf %116, %117 : vector<8x32xf32>
      %c0_64 = arith.constant 0 : index
      %c0_65 = arith.constant 0 : index
      %119 = vector.load %arg18[%c0_64, %c0_65] : memref<32x64xbf16, #tpu.memory_space<vmem>>, vector<32x64xbf16>
      %120 = arith.truncf %118 : vector<8x32xf32> to vector<8x32xbf16>
      %cst_66 = arith.constant dense<0.000000e+00> : vector<8x64xf32>
      %121 = tpu.matmul %120, %119, %cst_66 {dimension_numbers = #tpu.dot_dimension_numbers<[1], [0], [0], [1], [0, 0, 1, 1], [], []>} : vector<8x32xbf16>, vector<32x64xbf16>, vector<8x64xf32> -> vector<8x64xf32>
      %c0_67 = arith.constant 0 : index
      %c0_68 = arith.constant 0 : index
      %122 = vector.load %arg19[%c0_67, %c0_68] : memref<1x64xf32, #tpu.memory_space<vmem>>, vector<1x64xf32>
      %123 = vector.broadcast %122 : vector<1x64xf32> to vector<8x64xf32>
      %124 = arith.addf %121, %123 : vector<8x64xf32>
      %cst_69 = arith.constant 0.000000e+00 : f32
      %125 = vector.broadcast %cst_69 : f32 to vector<8x64xf32>
      %126 = arith.maximumf %124, %125 : vector<8x64xf32>
      %c0_70 = arith.constant 0 : index
      %c0_71 = arith.constant 0 : index
      %127 = vector.load %arg20[%c0_70, %c0_71] : memref<64x32xbf16, #tpu.memory_space<vmem>>, vector<64x32xbf16>
      %128 = arith.truncf %126 : vector<8x64xf32> to vector<8x64xbf16>
      %cst_72 = arith.constant dense<0.000000e+00> : vector<8x32xf32>
      %129 = tpu.matmul %128, %127, %cst_72 {dimension_numbers = #tpu.dot_dimension_numbers<[1], [0], [0], [1], [0, 0, 1, 1], [], []>} : vector<8x64xbf16>, vector<64x32xbf16>, vector<8x32xf32> -> vector<8x32xf32>
      %c0_73 = arith.constant 0 : index
      %c0_74 = arith.constant 0 : index
      %130 = vector.load %arg21[%c0_73, %c0_74] : memref<1x32xf32, #tpu.memory_space<vmem>>, vector<1x32xf32>
      %131 = vector.broadcast %130 : vector<1x32xf32> to vector<8x32xf32>
      %132 = arith.addf %129, %131 : vector<8x32xf32>
      %133 = arith.addf %118, %132 : vector<8x32xf32>
      %134 = vector.extract_strided_slice %81 {offsets = [2, 0], sizes = [1, 32], strides = [1, 1]} : vector<4x32xf32> to vector<1x32xf32>
      %135 = vector.extract_strided_slice %82 {offsets = [2, 0], sizes = [1, 32], strides = [1, 1]} : vector<4x32xf32> to vector<1x32xf32>
      %cst_75 = arith.constant dense<0.000000e+00> : vector<8xf32>
      %136 = vector.multi_reduction <add>, %133, %cst_75 [1] : vector<8x32xf32> to vector<8xf32>
      %137 = vector.shape_cast %136 : vector<8xf32> to vector<8x1xf32>
      %cst_76 = arith.constant 3.200000e+01 : f32
      %138 = vector.broadcast %cst_76 : f32 to vector<8x1xf32>
      %139 = arith.divf %137, %138 : vector<8x1xf32>
      %140 = vector.broadcast %139 : vector<8x1xf32> to vector<8x32xf32>
      %141 = arith.subf %133, %140 : vector<8x32xf32>
      %142 = arith.mulf %141, %141 : vector<8x32xf32>
      %cst_77 = arith.constant dense<0.000000e+00> : vector<8xf32>
      %143 = vector.multi_reduction <add>, %142, %cst_77 [1] : vector<8x32xf32> to vector<8xf32>
      %144 = vector.shape_cast %143 : vector<8xf32> to vector<8x1xf32>
      %cst_78 = arith.constant 3.200000e+01 : f32
      %145 = vector.broadcast %cst_78 : f32 to vector<8x1xf32>
      %146 = arith.divf %144, %145 : vector<8x1xf32>
      %cst_79 = arith.constant 9.99999974E-6 : f32
      %147 = vector.broadcast %cst_79 : f32 to vector<8x1xf32>
      %148 = arith.addf %146, %147 : vector<8x1xf32>
      %149 = math.rsqrt %148 : vector<8x1xf32>
      %150 = vector.broadcast %149 : vector<8x1xf32> to vector<8x32xf32>
      %151 = arith.mulf %141, %150 : vector<8x32xf32>
      %152 = vector.broadcast %134 : vector<1x32xf32> to vector<8x32xf32>
      %153 = arith.mulf %151, %152 : vector<8x32xf32>
      %154 = vector.broadcast %135 : vector<1x32xf32> to vector<8x32xf32>
      %155 = arith.addf %153, %154 : vector<8x32xf32>
      %c0_80 = arith.constant 0 : index
      %c0_81 = arith.constant 0 : index
      %c0_82 = arith.constant 0 : index
      %156 = vector.load %arg24[%c0_80, %c0_81, %c0_82] : memref<1x8x32xf32, #tpu.memory_space<vmem>>, vector<1x8x32xf32>
      %157 = vector.shape_cast %156 : vector<1x8x32xf32> to vector<8x32xf32>
      %158 = vector.shape_cast %155 : vector<8x32xf32> to vector<1x8x32xf32>
      tpu.vector_store %arg24[%c0_80, %c0_81, %c0_82], %158 {strides = array<i32>} : memref<1x8x32xf32, #tpu.memory_space<vmem>>, vector<1x8x32xf32>,
      %159 = vector.extract_strided_slice %81 {offsets = [3, 0], sizes = [1, 32], strides = [1, 1]} : vector<4x32xf32> to vector<1x32xf32>
      %160 = vector.extract_strided_slice %82 {offsets = [3, 0], sizes = [1, 32], strides = [1, 1]} : vector<4x32xf32> to vector<1x32xf32>
      %cst_83 = arith.constant dense<0.000000e+00> : vector<8xf32>
      %161 = vector.multi_reduction <add>, %155, %cst_83 [1] : vector<8x32xf32> to vector<8xf32>
      %162 = vector.shape_cast %161 : vector<8xf32> to vector<8x1xf32>
      %cst_84 = arith.constant 3.200000e+01 : f32
      %163 = vector.broadcast %cst_84 : f32 to vector<8x1xf32>
      %164 = arith.divf %162, %163 : vector<8x1xf32>
      %165 = vector.broadcast %164 : vector<8x1xf32> to vector<8x32xf32>
      %166 = arith.subf %155, %165 : vector<8x32xf32>
      %167 = arith.mulf %166, %166 : vector<8x32xf32>
      %cst_85 = arith.constant dense<0.000000e+00> : vector<8xf32>
      %168 = vector.multi_reduction <add>, %167, %cst_85 [1] : vector<8x32xf32> to vector<8xf32>
      %169 = vector.shape_cast %168 : vector<8xf32> to vector<8x1xf32>
      %cst_86 = arith.constant 3.200000e+01 : f32
      %170 = vector.broadcast %cst_86 : f32 to vector<8x1xf32>
      %171 = arith.divf %169, %170 : vector<8x1xf32>
      %cst_87 = arith.constant 9.99999974E-6 : f32
      %172 = vector.broadcast %cst_87 : f32 to vector<8x1xf32>
      %173 = arith.addf %171, %172 : vector<8x1xf32>
      %174 = math.rsqrt %173 : vector<8x1xf32>
      %175 = vector.broadcast %174 : vector<8x1xf32> to vector<8x32xf32>
      %176 = arith.mulf %166, %175 : vector<8x32xf32>
      %177 = vector.broadcast %159 : vector<1x32xf32> to vector<8x32xf32>
      %178 = arith.mulf %176, %177 : vector<8x32xf32>
      %179 = vector.broadcast %160 : vector<1x32xf32> to vector<8x32xf32>
      %180 = arith.addf %178, %179 : vector<8x32xf32>
      %c0_88 = arith.constant 0 : index
      %c0_89 = arith.constant 0 : index
      %c0_90 = arith.constant 0 : index
      %181 = vector.load %arg25[%c0_88, %c0_89, %c0_90] : memref<1x8x32xf32, #tpu.memory_space<vmem>>, vector<1x8x32xf32>
      %182 = vector.shape_cast %181 : vector<1x8x32xf32> to vector<8x32xf32>
      %183 = vector.shape_cast %180 : vector<8x32xf32> to vector<1x8x32xf32>
      tpu.vector_store %arg25[%c0_88, %c0_89, %c0_90], %183 {strides = array<i32>} : memref<1x8x32xf32, #tpu.memory_space<vmem>>, vector<1x8x32xf32>,
    } else {
    }
    return
  }
  func.func @transform_0(%arg0: i32, %arg1: i32) -> (i32, i32, i32) {
    %c0_i32 = arith.constant 0 : i32
    %c0_i32_0 = arith.constant 0 : i32
    %c0_i32_1 = arith.constant 0 : i32
    return %arg0, %c0_i32, %c0_i32_0 : i32, i32, i32
  }
  func.func @transform_1(%arg0: i32, %arg1: i32) -> (i32, i32, i32) {
    %c0_i32 = arith.constant 0 : i32
    %c0_i32_0 = arith.constant 0 : i32
    %c0_i32_1 = arith.constant 0 : i32
    return %arg0, %c0_i32, %c0_i32_0 : i32, i32, i32
  }
  func.func @transform_2(%arg0: i32, %arg1: i32) -> (i32, i32, i32) {
    %c0_i32 = arith.constant 0 : i32
    %c0_i32_0 = arith.constant 0 : i32
    return %arg0, %arg1, %c0_i32 : i32, i32, i32
  }
  func.func @transform_3(%arg0: i32, %arg1: i32) -> (i32, i32, i32) {
    %c0_i32 = arith.constant 0 : i32
    %c0_i32_0 = arith.constant 0 : i32
    return %arg0, %arg1, %c0_i32 : i32, i32, i32
  }
  func.func @transform_4(%arg0: i32, %arg1: i32) -> (i32, i32) {
    %c0_i32 = arith.constant 0 : i32
    %c0_i32_0 = arith.constant 0 : i32
    %c0_i32_1 = arith.constant 0 : i32
    return %c0_i32, %c0_i32_0 : i32, i32
  }
  func.func @transform_5(%arg0: i32, %arg1: i32) -> (i32, i32) {
    %c0_i32 = arith.constant 0 : i32
    %c0_i32_0 = arith.constant 0 : i32
    %c0_i32_1 = arith.constant 0 : i32
    return %c0_i32, %c0_i32_0 : i32, i32
  }
  func.func @transform_6(%arg0: i32, %arg1: i32) -> (i32, i32) {
    %c0_i32 = arith.constant 0 : i32
    %c0_i32_0 = arith.constant 0 : i32
    %c0_i32_1 = arith.constant 0 : i32
    return %c0_i32, %c0_i32_0 : i32, i32
  }
  func.func @transform_7(%arg0: i32, %arg1: i32) -> (i32, i32) {
    %c0_i32 = arith.constant 0 : i32
    %c0_i32_0 = arith.constant 0 : i32
    %c0_i32_1 = arith.constant 0 : i32
    return %c0_i32, %c0_i32_0 : i32, i32
  }
  func.func @transform_8(%arg0: i32, %arg1: i32) -> (i32, i32) {
    %c0_i32 = arith.constant 0 : i32
    %c0_i32_0 = arith.constant 0 : i32
    %c0_i32_1 = arith.constant 0 : i32
    return %c0_i32, %c0_i32_0 : i32, i32
  }
  func.func @transform_9(%arg0: i32, %arg1: i32) -> (i32, i32) {
    %c0_i32 = arith.constant 0 : i32
    %c0_i32_0 = arith.constant 0 : i32
    %c0_i32_1 = arith.constant 0 : i32
    return %c0_i32, %c0_i32_0 : i32, i32
  }
  func.func @transform_10(%arg0: i32, %arg1: i32) -> (i32, i32, i32) {
    %c0_i32 = arith.constant 0 : i32
    %c0_i32_0 = arith.constant 0 : i32
    %c0_i32_1 = arith.constant 0 : i32
    %c0_i32_2 = arith.constant 0 : i32
    return %c0_i32, %c0_i32_0, %c0_i32_1 : i32, i32, i32
  }
  func.func @transform_11(%arg0: i32, %arg1: i32) -> (i32, i32) {
    %c0_i32 = arith.constant 0 : i32
    %c0_i32_0 = arith.constant 0 : i32
    %c0_i32_1 = arith.constant 0 : i32
    return %c0_i32, %c0_i32_0 : i32, i32
  }
  func.func @transform_12(%arg0: i32, %arg1: i32) -> (i32, i32) {
    %c0_i32 = arith.constant 0 : i32
    %c0_i32_0 = arith.constant 0 : i32
    %c0_i32_1 = arith.constant 0 : i32
    return %c0_i32, %c0_i32_0 : i32, i32
  }
  func.func @transform_13(%arg0: i32, %arg1: i32) -> (i32, i32, i32) {
    %c0_i32 = arith.constant 0 : i32
    %c0_i32_0 = arith.constant 0 : i32
    %c0_i32_1 = arith.constant 0 : i32
    %c0_i32_2 = arith.constant 0 : i32
    return %c0_i32, %c0_i32_0, %c0_i32_1 : i32, i32, i32
  }
  func.func @transform_14(%arg0: i32, %arg1: i32) -> (i32, i32, i32) {
    %c0_i32 = arith.constant 0 : i32
    %c0_i32_0 = arith.constant 0 : i32
    %c0_i32_1 = arith.constant 0 : i32
    %c0_i32_2 = arith.constant 0 : i32
    return %c0_i32, %c0_i32_0, %c0_i32_1 : i32, i32, i32
  }
  func.func @transform_15(%arg0: i32, %arg1: i32) -> (i32, i32) {
    %c0_i32 = arith.constant 0 : i32
    %c0_i32_0 = arith.constant 0 : i32
    %c0_i32_1 = arith.constant 0 : i32
    return %c0_i32, %c0_i32_0 : i32, i32
  }
  func.func @transform_16(%arg0: i32, %arg1: i32) -> (i32, i32) {
    %c0_i32 = arith.constant 0 : i32
    %c0_i32_0 = arith.constant 0 : i32
    %c0_i32_1 = arith.constant 0 : i32
    return %c0_i32, %c0_i32_0 : i32, i32
  }
  func.func @transform_17(%arg0: i32, %arg1: i32) -> (i32, i32) {
    %c0_i32 = arith.constant 0 : i32
    %c0_i32_0 = arith.constant 0 : i32
    %c0_i32_1 = arith.constant 0 : i32
    return %c0_i32, %c0_i32_0 : i32, i32
  }
  func.func @transform_18(%arg0: i32, %arg1: i32) -> (i32, i32) {
    %c0_i32 = arith.constant 0 : i32
    %c0_i32_0 = arith.constant 0 : i32
    %c0_i32_1 = arith.constant 0 : i32
    return %c0_i32, %c0_i32_0 : i32, i32
  }
  func.func @transform_19(%arg0: i32, %arg1: i32) -> (i32, i32) {
    %c0_i32 = arith.constant 0 : i32
    %c0_i32_0 = arith.constant 0 : i32
    %c0_i32_1 = arith.constant 0 : i32
    return %c0_i32, %c0_i32_0 : i32, i32
  }
  func.func @transform_20(%arg0: i32, %arg1: i32) -> (i32, i32) {
    %c0_i32 = arith.constant 0 : i32
    %c0_i32_0 = arith.constant 0 : i32
    %c0_i32_1 = arith.constant 0 : i32
    return %c0_i32, %c0_i32_0 : i32, i32
  }
  func.func @transform_21(%arg0: i32, %arg1: i32) -> (i32, i32) {
    %c0_i32 = arith.constant 0 : i32
    %c0_i32_0 = arith.constant 0 : i32
    %c0_i32_1 = arith.constant 0 : i32
    return %c0_i32, %c0_i32_0 : i32, i32
  }
  func.func @transform_22(%arg0: i32, %arg1: i32) -> (i32, i32, i32) {
    %c0_i32 = arith.constant 0 : i32
    %c0_i32_0 = arith.constant 0 : i32
    %c0_i32_1 = arith.constant 0 : i32
    return %arg0, %c0_i32, %c0_i32_0 : i32, i32, i32
  }
  func.func @transform_23(%arg0: i32, %arg1: i32) -> (i32, i32, i32) {
    %c0_i32 = arith.constant 0 : i32
    %c0_i32_0 = arith.constant 0 : i32
    %c0_i32_1 = arith.constant 0 : i32
    return %arg0, %c0_i32, %c0_i32_0 : i32, i32, i32
  }
}

</mosaic_0001>

<llo_original>
// kernel: transformer_decoder_forward.2
$region0: #{transformer_decoder_forward.2}
  #allocation0 [shape = 'u32[]', space=smem, size = 0x4, offset = 0x4, fixed_abs, tag = 'smem constant byte address 0x4 - core index']
  #allocation1 [shape = 'u32[144,128]{1,0:T(1,128)}', space=vmem, size = 0x12000, scoped, tag = 'internal scratch']
  #allocation2 [shape = 'f32[8,32]{1,0:T(8,128)}', space=vmem, size = 0x1000, scoped, tag = 'scratch operand']
  #allocation3 [shape = 'bf16[4,8,8]{2,1,0:T(8,128)(2,1)}', space=vmem, size = 0x2000, scoped, tag = 'scratch operand']
  #allocation4 [shape = 'f32[4,8,1]{2,1,0:T(8,128)}', space=vmem, size = 0x4000, scoped, tag = 'scratch operand']
  #allocation5 [shape = 'f32[4,8,1]{2,1,0:T(8,128)}', space=vmem, size = 0x4000, scoped, tag = 'scratch operand']
  #allocation6 [shape = 'f32[4,8,8]{2,1,0:T(8,128)}', space=vmem, size = 0x4000, scoped, tag = 'scratch operand']
  %s0 = inlined_call_operand.vmem [shape: f32[2,8,32], index: 0, kind: input, shape index: {}]
  %s1 = inlined_call_operand.vmem [shape: f32[2,8,64], index: 1, kind: input, shape index: {}]
  %s2 = inlined_call_operand.vmem [shape: bf16[2,48,32], index: 2, kind: input, shape index: {}]
  %s3 = inlined_call_operand.vmem [shape: bf16[2,48,32], index: 3, kind: input, shape index: {}]
  %s4 = inlined_call_operand.vmem [shape: bf16[64,32], index: 4, kind: input, shape index: {}]
  %s5 = inlined_call_operand.vmem [shape: bf16[32,32], index: 5, kind: input, shape index: {}]
  %s6 = inlined_call_operand.vmem [shape: f32[2,32], index: 6, kind: input, shape index: {}]
  %s7 = inlined_call_operand.vmem [shape: bf16[32,64], index: 7, kind: input, shape index: {}]
  %s8 = inlined_call_operand.vmem [shape: f32[1,64], index: 8, kind: input, shape index: {}]
  %s9 = inlined_call_operand.vmem [shape: bf16[32,32], index: 9, kind: input, shape index: {}]
  %s10 = inlined_call_operand.vmem [shape: bf16[4,8,32], index: 10, kind: input, shape index: {}]
  %s11 = inlined_call_operand.vmem [shape: f32[2,32], index: 11, kind: input, shape index: {}]
  %s12 = inlined_call_operand.vmem [shape: bf16[32,32], index: 12, kind: input, shape index: {}]
  %s13 = inlined_call_operand.vmem [shape: bf16[2,32,32], index: 13, kind: input, shape index: {}]
  %s14 = inlined_call_operand.vmem [shape: bf16[4,8,32], index: 14, kind: input, shape index: {}]
  %s15 = inlined_call_operand.vmem [shape: f32[4,32], index: 15, kind: input, shape index: {}]
  %s16 = inlined_call_operand.vmem [shape: bf16[32,64], index: 16, kind: input, shape index: {}]
  %s17 = inlined_call_operand.vmem [shape: f32[1,64], index: 17, kind: input, shape index: {}]
  %s18 = inlined_call_operand.vmem [shape: bf16[64,32], index: 18, kind: input, shape index: {}]
  %s19 = inlined_call_operand.vmem [shape: f32[1,32], index: 19, kind: input, shape index: {}]
  %s20 = inlined_call_operand.vmem [shape: f32[4,32], index: 20, kind: input, shape index: {}]
  %s21 = inlined_call_operand.vmem [shape: f32[4,32], index: 21, kind: input, shape index: {}]
  %s22 = inlined_call_operand.vmem [shape: f32[2,8,32], index: 22, kind: output, shape index: {0}]
  %s23 = inlined_call_operand.vmem [shape: f32[2,8,32], index: 23, kind: output, shape index: {1}]
  %24 = xla_tuple %s22, %s23
  %s25 = sld [smem:[#allocation0]]
  $region137: #{transformer_decoder_forward.2} parent=0
    _
  %s27 = ssub.s32 1, %s25
  %s28 = scalar_select 0, %s27, %s25
  loop: start=0, step=1, limit=8
  $region2: #{transformer_decoder_forward.2} parent=0 // loop_pre_header
    _
  $region3: #{transformer_decoder_forward.2} parent=0 // loop_header
    %s30 = sphi 0, %s34
    %p31 = scmp.ge.s32.totalorder %s30, 8
    %s37 = sphi 0, %s49
    %s38 = sphi 0, %s45
    %s39 = sphi 0, %s37
    %s40 = sphi 0, %s38
    %s41 = sphi 0, %s39
    %s42 = sphi 0, %s40
    %s52 = sphi 0, %s54
    %s55 = sphi 0, %s52
    %s56 = sphi 0, %s55
    %s72 = sphi 0, %s56
    %s78 = sphi 0, %s80
    %s81 = sphi 0, %s78
    %s82 = sphi 0, %s81
    %s98 = sphi 0, %s82
    %s106 = sphi 0, %s108
    %s109 = sphi 0, %s106
    %s110 = sphi 0, %s109
    %s126 = sphi 0, %s110
    %s134 = sphi 0, %s136
    %s137 = sphi 0, %s134
    %s138 = sphi 0, %s137
    %s154 = sphi 0, %s138
    %s158 = sphi 0, %s158
    %s160 = sphi 0, %s158
    %s161 = sphi 0, %s160
    %s175 = sphi 0, %s161
    %s179 = sphi 0, %s179
    %s181 = sphi 0, %s179
    %s182 = sphi 0, %s181
    %s196 = sphi 0, %s182
    %s200 = sphi 0, %s200
    %s202 = sphi 0, %s200
    %s203 = sphi 0, %s202
    %s217 = sphi 0, %s203
    %s221 = sphi 0, %s221
    %s223 = sphi 0, %s221
    %s224 = sphi 0, %s223
    %s238 = sphi 0, %s224
    %s242 = sphi 0, %s242
    %s244 = sphi 0, %s242
    %s245 = sphi 0, %s244
    %s259 = sphi 0, %s245
    %s263 = sphi 0, %s263
    %s265 = sphi 0, %s263
    %s266 = sphi 0, %s265
    %s280 = sphi 0, %s266
    %s284 = sphi 0, %s284
    %s286 = sphi 0, %s284
    %s287 = sphi 0, %s286
    %s301 = sphi 0, %s287
    %s305 = sphi 0, %s305
    %s307 = sphi 0, %s305
    %s308 = sphi 0, %s307
    %s322 = sphi 0, %s308
    %s326 = sphi 0, %s326
    %s328 = sphi 0, %s326
    %s329 = sphi 0, %s328
    %s343 = sphi 0, %s329
    %s347 = sphi 0, %s347
    %s349 = sphi 0, %s347
    %s350 = sphi 0, %s349
    %s364 = sphi 0, %s350
    %s368 = sphi 0, %s368
    %s370 = sphi 0, %s368
    %s371 = sphi 0, %s370
    %s385 = sphi 0, %s371
    %s389 = sphi 0, %s389
    %s391 = sphi 0, %s389
    %s392 = sphi 0, %s391
    %s406 = sphi 0, %s392
    %s410 = sphi 0, %s410
    %s412 = sphi 0, %s410
    %s413 = sphi 0, %s412
    %s427 = sphi 0, %s413
    %s431 = sphi 0, %s431
    %s433 = sphi 0, %s431
    %s434 = sphi 0, %s433
    %s448 = sphi 0, %s434
    %s452 = sphi 0, %s452
    %s454 = sphi 0, %s452
    %s455 = sphi 0, %s454
    %s469 = sphi 0, %s455
    %s473 = sphi 0, %s473
    %s475 = sphi 0, %s473
    %s476 = sphi 0, %s475
    %s490 = sphi 0, %s476
    %s494 = sphi 0, %s494
    %s496 = sphi 0, %s494
    %s497 = sphi 0, %s496
    %s511 = sphi 0, %s497
    %s515 = sphi 0, %s515
    %s517 = sphi 0, %s515
    %s518 = sphi 0, %s517
    %s532 = sphi 0, %s518
    %s538 = sphi 0, %s540
    %s541 = sphi 0, %s538
    %s542 = sphi 0, %s541
    %s558 = sphi 0, %s542
    %s564 = sphi 0, %s566
    %s567 = sphi 0, %s564
    %s568 = sphi 0, %s567
    %s584 = sphi 0, %s568
  $region4: #{transformer_decoder_forward.2} parent=0 // loop_header_branch
    %33 = sbr.rel (%p31) target = $region8
  $region5: #{transformer_decoder_forward.2} parent=0 // loop_body
    %s35 = ssub.s32 %s30, 1
    %s36 = ssub.s32 %s30, 2
    %s43 = sadd.s32 1, %s38
    %p44 = scmp.ge.s32.totalorder %s43, 3
    %s45 = scalar_select %p44, 0, %s43
    %s46 = sadd.s32 1, %s37
    %s47 = scalar_select %p44, %s46, %s37
    %p48 = scmp.ge.s32.totalorder %s47, 2
    %s49 = scalar_select %p48, 0, %s47
    %s50 = ssub.s32 %s37, %s49
    %p51 = scmp.eq.s32.totalorder %s50, 0
    %s53 = sadd.s32 %s52, 1
    %s54 = scalar_select %p51, %s52, %s53
    %p57 = pneg %p51
    %p58 = scmp.eq.s32.totalorder %s30, 5
    %p59 = por %p57, %p58
    %p60 = scmp.ne.s32.totalorder %s52, %s55
    %p61 = scmp.eq.s32.totalorder %s30, 0
    %p62 = por %p60, %p61
    %p63 = scmp.ne.s32.totalorder %s52, %s55
    %p64 = scmp.eq.s32.totalorder %s35, 5
    %p65 = por %p63, %p64
    %p66 = scmp.ne.s32.totalorder %s55, %s56
    %p67 = scmp.eq.s32.totalorder %s35, 0
    %p68 = por %p66, %p67
    %p69 = scmp.ne.s32.totalorder %s55, %s56
    %p70 = scmp.eq.s32.totalorder %s36, 5
    %p71 = por %p69, %p70
    %p73 = scmp.ne.s32.totalorder %s56, %s72
    %p74 = scmp.eq.s32.totalorder %s36, 0
    %p75 = por %p73, %p74
    %s76 = ssub.s32 %s37, %s49
    %p77 = scmp.eq.s32.totalorder %s76, 0
    %s79 = sadd.s32 %s78, 1
    %s80 = scalar_select %p77, %s78, %s79
    %p83 = pneg %p77
    %p84 = scmp.eq.s32.totalorder %s30, 5
    %p85 = por %p83, %p84
    %p86 = scmp.ne.s32.totalorder %s78, %s81
    %p87 = scmp.eq.s32.totalorder %s30, 0
    %p88 = por %p86, %p87
    %p89 = scmp.ne.s32.totalorder %s78, %s81
    %p90 = scmp.eq.s32.totalorder %s35, 5
    %p91 = por %p89, %p90
    %p92 = scmp.ne.s32.totalorder %s81, %s82
    %p93 = scmp.eq.s32.totalorder %s35, 0
    %p94 = por %p92, %p93
    %p95 = scmp.ne.s32.totalorder %s81, %s82
    %p96 = scmp.eq.s32.totalorder %s36, 5
    %p97 = por %p95, %p96
    %p99 = scmp.ne.s32.totalorder %s82, %s98
    %p100 = scmp.eq.s32.totalorder %s36, 0
    %p101 = por %p99, %p100
    %s102 = ssub.s32 %s37, %s49
    %s103 = ssub.s32 %s38, %s45
    %s104 = sor.u32 %s102, %s103
    %p105 = scmp.eq.s32.totalorder %s104, 0
    %s107 = sadd.s32 %s106, 1
    %s108 = scalar_select %p105, %s106, %s107
    %p111 = pneg %p105
    %p112 = scmp.eq.s32.totalorder %s30, 5
    %p113 = por %p111, %p112
    %p114 = scmp.ne.s32.totalorder %s106, %s109
    %p115 = scmp.eq.s32.totalorder %s30, 0
    %p116 = por %p114, %p115
    %p117 = scmp.ne.s32.totalorder %s106, %s109
    %p118 = scmp.eq.s32.totalorder %s35, 5
    %p119 = por %p117, %p118
    %p120 = scmp.ne.s32.totalorder %s109, %s110
    %p121 = scmp.eq.s32.totalorder %s35, 0
    %p122 = por %p120, %p121
    %p123 = scmp.ne.s32.totalorder %s109, %s110
    %p124 = scmp.eq.s32.totalorder %s36, 5
    %p125 = por %p123, %p124
    %p127 = scmp.ne.s32.totalorder %s110, %s126
    %p128 = scmp.eq.s32.totalorder %s36, 0
    %p129 = por %p127, %p128
    %s130 = ssub.s32 %s37, %s49
    %s131 = ssub.s32 %s38, %s45
    %s132 = sor.u32 %s130, %s131
    %p133 = scmp.eq.s32.totalorder %s132, 0
    %s135 = sadd.s32 %s134, 1
    %s136 = scalar_select %p133, %s134, %s135
    %p139 = pneg %p133
    %p140 = scmp.eq.s32.totalorder %s30, 5
    %p141 = por %p139, %p140
    %p142 = scmp.ne.s32.totalorder %s134, %s137
    %p143 = scmp.eq.s32.totalorder %s30, 0
    %p144 = por %p142, %p143
    %p145 = scmp.ne.s32.totalorder %s134, %s137
    %p146 = scmp.eq.s32.totalorder %s35, 5
    %p147 = por %p145, %p146
    %p148 = scmp.ne.s32.totalorder %s137, %s138
    %p149 = scmp.eq.s32.totalorder %s35, 0
    %p150 = por %p148, %p149
    %p151 = scmp.ne.s32.totalorder %s137, %s138
    %p152 = scmp.eq.s32.totalorder %s36, 5
    %p153 = por %p151, %p152
    %p155 = scmp.ne.s32.totalorder %s138, %s154
    %p156 = scmp.eq.s32.totalorder %s36, 0
    %p157 = por %p155, %p156
    %s159 = sadd.s32 %s158, 1
    %p162 = scmp.eq.s32.totalorder %s30, 5
    %p163 = scmp.ne.s32.totalorder %s158, %s160
    %p164 = scmp.eq.s32.totalorder %s30, 0
    %p165 = por %p163, %p164
    %p166 = scmp.ne.s32.totalorder %s158, %s160
    %p167 = scmp.eq.s32.totalorder %s35, 5
    %p168 = por %p166, %p167
    %p169 = scmp.ne.s32.totalorder %s160, %s161
    %p170 = scmp.eq.s32.totalorder %s35, 0
    %p171 = por %p169, %p170
    %p172 = scmp.ne.s32.totalorder %s160, %s161
    %p173 = scmp.eq.s32.totalorder %s36, 5
    %p174 = por %p172, %p173
    %p176 = scmp.ne.s32.totalorder %s161, %s175
    %p177 = scmp.eq.s32.totalorder %s36, 0
    %p178 = por %p176, %p177
    %s180 = sadd.s32 %s179, 1
    %p183 = scmp.eq.s32.totalorder %s30, 5
    %p184 = scmp.ne.s32.totalorder %s179, %s181
    %p185 = scmp.eq.s32.totalorder %s30, 0
    %p186 = por %p184, %p185
    %p187 = scmp.ne.s32.totalorder %s179, %s181
    %p188 = scmp.eq.s32.totalorder %s35, 5
    %p189 = por %p187, %p188
    %p190 = scmp.ne.s32.totalorder %s181, %s182
    %p191 = scmp.eq.s32.totalorder %s35, 0
    %p192 = por %p190, %p191
    %p193 = scmp.ne.s32.totalorder %s181, %s182
    %p194 = scmp.eq.s32.totalorder %s36, 5
    %p195 = por %p193, %p194
    %p197 = scmp.ne.s32.totalorder %s182, %s196
    %p198 = scmp.eq.s32.totalorder %s36, 0
    %p199 = por %p197, %p198
    %s201 = sadd.s32 %s200, 1
    %p204 = scmp.eq.s32.totalorder %s30, 5
    %p205 = scmp.ne.s32.totalorder %s200, %s202
    %p206 = scmp.eq.s32.totalorder %s30, 0
    %p207 = por %p205, %p206
    %p208 = scmp.ne.s32.totalorder %s200, %s202
    %p209 = scmp.eq.s32.totalorder %s35, 5
    %p210 = por %p208, %p209
    %p211 = scmp.ne.s32.totalorder %s202, %s203
    %p212 = scmp.eq.s32.totalorder %s35, 0
    %p213 = por %p211, %p212
    %p214 = scmp.ne.s32.totalorder %s202, %s203
    %p215 = scmp.eq.s32.totalorder %s36, 5
    %p216 = por %p214, %p215
    %p218 = scmp.ne.s32.totalorder %s203, %s217
    %p219 = scmp.eq.s32.totalorder %s36, 0
    %p220 = por %p218, %p219
    %s222 = sadd.s32 %s221, 1
    %p225 = scmp.eq.s32.totalorder %s30, 5
    %p226 = scmp.ne.s32.totalorder %s221, %s223
    %p227 = scmp.eq.s32.totalorder %s30, 0
    %p228 = por %p226, %p227
    %p229 = scmp.ne.s32.totalorder %s221, %s223
    %p230 = scmp.eq.s32.totalorder %s35, 5
    %p231 = por %p229, %p230
    %p232 = scmp.ne.s32.totalorder %s223, %s224
    %p233 = scmp.eq.s32.totalorder %s35, 0
    %p234 = por %p232, %p233
    %p235 = scmp.ne.s32.totalorder %s223, %s224
    %p236 = scmp.eq.s32.totalorder %s36, 5
    %p237 = por %p235, %p236
    %p239 = scmp.ne.s32.totalorder %s224, %s238
    %p240 = scmp.eq.s32.totalorder %s36, 0
    %p241 = por %p239, %p240
    %s243 = sadd.s32 %s242, 1
    %p246 = scmp.eq.s32.totalorder %s30, 5
    %p247 = scmp.ne.s32.totalorder %s242, %s244
    %p248 = scmp.eq.s32.totalorder %s30, 0
    %p249 = por %p247, %p248
    %p250 = scmp.ne.s32.totalorder %s242, %s244
    %p251 = scmp.eq.s32.totalorder %s35, 5
    %p252 = por %p250, %p251
    %p253 = scmp.ne.s32.totalorder %s244, %s245
    %p254 = scmp.eq.s32.totalorder %s35, 0
    %p255 = por %p253, %p254
    %p256 = scmp.ne.s32.totalorder %s244, %s245
    %p257 = scmp.eq.s32.totalorder %s36, 5
    %p258 = por %p256, %p257
    %p260 = scmp.ne.s32.totalorder %s245, %s259
    %p261 = scmp.eq.s32.totalorder %s36, 0
    %p262 = por %p260, %p261
    %s264 = sadd.s32 %s263, 1
    %p267 = scmp.eq.s32.totalorder %s30, 5
    %p268 = scmp.ne.s32.totalorder %s263, %s265
    %p269 = scmp.eq.s32.totalorder %s30, 0
    %p270 = por %p268, %p269
    %p271 = scmp.ne.s32.totalorder %s263, %s265
    %p272 = scmp.eq.s32.totalorder %s35, 5
    %p273 = por %p271, %p272
    %p274 = scmp.ne.s32.totalorder %s265, %s266
    %p275 = scmp.eq.s32.totalorder %s35, 0
    %p276 = por %p274, %p275
    %p277 = scmp.ne.s32.totalorder %s265, %s266
    %p278 = scmp.eq.s32.totalorder %s36, 5
    %p279 = por %p277, %p278
    %p281 = scmp.ne.s32.totalorder %s266, %s280
    %p282 = scmp.eq.s32.totalorder %s36, 0
    %p283 = por %p281, %p282
    %s285 = sadd.s32 %s284, 1
    %p288 = scmp.eq.s32.totalorder %s30, 5
    %p289 = scmp.ne.s32.totalorder %s284, %s286
    %p290 = scmp.eq.s32.totalorder %s30, 0
    %p291 = por %p289, %p290
    %p292 = scmp.ne.s32.totalorder %s284, %s286
    %p293 = scmp.eq.s32.totalorder %s35, 5
    %p294 = por %p292, %p293
    %p295 = scmp.ne.s32.totalorder %s286, %s287
    %p296 = scmp.eq.s32.totalorder %s35, 0
    %p297 = por %p295, %p296
    %p298 = scmp.ne.s32.totalorder %s286, %s287
    %p299 = scmp.eq.s32.totalorder %s36, 5
    %p300 = por %p298, %p299
    %p302 = scmp.ne.s32.totalorder %s287, %s301
    %p303 = scmp.eq.s32.totalorder %s36, 0
    %p304 = por %p302, %p303
    %s306 = sadd.s32 %s305, 1
    %p309 = scmp.eq.s32.totalorder %s30, 5
    %p310 = scmp.ne.s32.totalorder %s305, %s307
    %p311 = scmp.eq.s32.totalorder %s30, 0
    %p312 = por %p310, %p311
    %p313 = scmp.ne.s32.totalorder %s305, %s307
    %p314 = scmp.eq.s32.totalorder %s35, 5
    %p315 = por %p313, %p314
    %p316 = scmp.ne.s32.totalorder %s307, %s308
    %p317 = scmp.eq.s32.totalorder %s35, 0
    %p318 = por %p316, %p317
    %p319 = scmp.ne.s32.totalorder %s307, %s308
    %p320 = scmp.eq.s32.totalorder %s36, 5
    %p321 = por %p319, %p320
    %p323 = scmp.ne.s32.totalorder %s308, %s322
    %p324 = scmp.eq.s32.totalorder %s36, 0
    %p325 = por %p323, %p324
    %s327 = sadd.s32 %s326, 1
    %p330 = scmp.eq.s32.totalorder %s30, 5
    %p331 = scmp.ne.s32.totalorder %s326, %s328
    %p332 = scmp.eq.s32.totalorder %s30, 0
    %p333 = por %p331, %p332
    %p334 = scmp.ne.s32.totalorder %s326, %s328
    %p335 = scmp.eq.s32.totalorder %s35, 5
    %p336 = por %p334, %p335
    %p337 = scmp.ne.s32.totalorder %s328, %s329
    %p338 = scmp.eq.s32.totalorder %s35, 0
    %p339 = por %p337, %p338
    %p340 = scmp.ne.s32.totalorder %s328, %s329
    %p341 = scmp.eq.s32.totalorder %s36, 5
    %p342 = por %p340, %p341
    %p344 = scmp.ne.s32.totalorder %s329, %s343
    %p345 = scmp.eq.s32.totalorder %s36, 0
    %p346 = por %p344, %p345
    %s348 = sadd.s32 %s347, 1
    %p351 = scmp.eq.s32.totalorder %s30, 5
    %p352 = scmp.ne.s32.totalorder %s347, %s349
    %p353 = scmp.eq.s32.totalorder %s30, 0
    %p354 = por %p352, %p353
    %p355 = scmp.ne.s32.totalorder %s347, %s349
    %p356 = scmp.eq.s32.totalorder %s35, 5
    %p357 = por %p355, %p356
    %p358 = scmp.ne.s32.totalorder %s349, %s350
    %p359 = scmp.eq.s32.totalorder %s35, 0
    %p360 = por %p358, %p359
    %p361 = scmp.ne.s32.totalorder %s349, %s350
    %p362 = scmp.eq.s32.totalorder %s36, 5
    %p363 = por %p361, %p362
    %p365 = scmp.ne.s32.totalorder %s350, %s364
    %p366 = scmp.eq.s32.totalorder %s36, 0
    %p367 = por %p365, %p366
    %s369 = sadd.s32 %s368, 1
    %p372 = scmp.eq.s32.totalorder %s30, 5
    %p373 = scmp.ne.s32.totalorder %s368, %s370
    %p374 = scmp.eq.s32.totalorder %s30, 0
    %p375 = por %p373, %p374
    %p376 = scmp.ne.s32.totalorder %s368, %s370
    %p377 = scmp.eq.s32.totalorder %s35, 5
    %p378 = por %p376, %p377
    %p379 = scmp.ne.s32.totalorder %s370, %s371
    %p380 = scmp.eq.s32.totalorder %s35, 0
    %p381 = por %p379, %p380
    %p382 = scmp.ne.s32.totalorder %s370, %s371
    %p383 = scmp.eq.s32.totalorder %s36, 5
    %p384 = por %p382, %p383
    %p386 = scmp.ne.s32.totalorder %s371, %s385
    %p387 = scmp.eq.s32.totalorder %s36, 0
    %p388 = por %p386, %p387
    %s390 = sadd.s32 %s389, 1
    %p393 = scmp.eq.s32.totalorder %s30, 5
    %p394 = scmp.ne.s32.totalorder %s389, %s391
    %p395 = scmp.eq.s32.totalorder %s30, 0
    %p396 = por %p394, %p395
    %p397 = scmp.ne.s32.totalorder %s389, %s391
    %p398 = scmp.eq.s32.totalorder %s35, 5
    %p399 = por %p397, %p398
    %p400 = scmp.ne.s32.totalorder %s391, %s392
    %p401 = scmp.eq.s32.totalorder %s35, 0
    %p402 = por %p400, %p401
    %p403 = scmp.ne.s32.totalorder %s391, %s392
    %p404 = scmp.eq.s32.totalorder %s36, 5
    %p405 = por %p403, %p404
    %p407 = scmp.ne.s32.totalorder %s392, %s406
    %p408 = scmp.eq.s32.totalorder %s36, 0
    %p409 = por %p407, %p408
    %s411 = sadd.s32 %s410, 1
    %p414 = scmp.eq.s32.totalorder %s30, 5
    %p415 = scmp.ne.s32.totalorder %s410, %s412
    %p416 = scmp.eq.s32.totalorder %s30, 0
    %p417 = por %p415, %p416
    %p418 = scmp.ne.s32.totalorder %s410, %s412
    %p419 = scmp.eq.s32.totalorder %s35, 5
    %p420 = por %p418, %p419
    %p421 = scmp.ne.s32.totalorder %s412, %s413
    %p422 = scmp.eq.s32.totalorder %s35, 0
    %p423 = por %p421, %p422
    %p424 = scmp.ne.s32.totalorder %s412, %s413
    %p425 = scmp.eq.s32.totalorder %s36, 5
    %p426 = por %p424, %p425
    %p428 = scmp.ne.s32.totalorder %s413, %s427
    %p429 = scmp.eq.s32.totalorder %s36, 0
    %p430 = por %p428, %p429
    %s432 = sadd.s32 %s431, 1
    %p435 = scmp.eq.s32.totalorder %s30, 5
    %p436 = scmp.ne.s32.totalorder %s431, %s433
    %p437 = scmp.eq.s32.totalorder %s30, 0
    %p438 = por %p436, %p437
    %p439 = scmp.ne.s32.totalorder %s431, %s433
    %p440 = scmp.eq.s32.totalorder %s35, 5
    %p441 = por %p439, %p440
    %p442 = scmp.ne.s32.totalorder %s433, %s434
    %p443 = scmp.eq.s32.totalorder %s35, 0
    %p444 = por %p442, %p443
    %p445 = scmp.ne.s32.totalorder %s433, %s434
    %p446 = scmp.eq.s32.totalorder %s36, 5
    %p447 = por %p445, %p446
    %p449 = scmp.ne.s32.totalorder %s434, %s448
    %p450 = scmp.eq.s32.totalorder %s36, 0
    %p451 = por %p449, %p450
    %s453 = sadd.s32 %s452, 1
    %p456 = scmp.eq.s32.totalorder %s30, 5
    %p457 = scmp.ne.s32.totalorder %s452, %s454
    %p458 = scmp.eq.s32.totalorder %s30, 0
    %p459 = por %p457, %p458
    %p460 = scmp.ne.s32.totalorder %s452, %s454
    %p461 = scmp.eq.s32.totalorder %s35, 5
    %p462 = por %p460, %p461
    %p463 = scmp.ne.s32.totalorder %s454, %s455
    %p464 = scmp.eq.s32.totalorder %s35, 0
    %p465 = por %p463, %p464
    %p466 = scmp.ne.s32.totalorder %s454, %s455
    %p467 = scmp.eq.s32.totalorder %s36, 5
    %p468 = por %p466, %p467
    %p470 = scmp.ne.s32.totalorder %s455, %s469
    %p471 = scmp.eq.s32.totalorder %s36, 0
    %p472 = por %p470, %p471
    %s474 = sadd.s32 %s473, 1
    %p477 = scmp.eq.s32.totalorder %s30, 5
    %p478 = scmp.ne.s32.totalorder %s473, %s475
    %p479 = scmp.eq.s32.totalorder %s30, 0
    %p480 = por %p478, %p479
    %p481 = scmp.ne.s32.totalorder %s473, %s475
    %p482 = scmp.eq.s32.totalorder %s35, 5
    %p483 = por %p481, %p482
    %p484 = scmp.ne.s32.totalorder %s475, %s476
    %p485 = scmp.eq.s32.totalorder %s35, 0
    %p486 = por %p484, %p485
    %p487 = scmp.ne.s32.totalorder %s475, %s476
    %p488 = scmp.eq.s32.totalorder %s36, 5
    %p489 = por %p487, %p488
    %p491 = scmp.ne.s32.totalorder %s476, %s490
    %p492 = scmp.eq.s32.totalorder %s36, 0
    %p493 = por %p491, %p492
    %s495 = sadd.s32 %s494, 1
    %p498 = scmp.eq.s32.totalorder %s30, 5
    %p499 = scmp.ne.s32.totalorder %s494, %s496
    %p500 = scmp.eq.s32.totalorder %s30, 0
    %p501 = por %p499, %p500
    %p502 = scmp.ne.s32.totalorder %s494, %s496
    %p503 = scmp.eq.s32.totalorder %s35, 5
    %p504 = por %p502, %p503
    %p505 = scmp.ne.s32.totalorder %s496, %s497
    %p506 = scmp.eq.s32.totalorder %s35, 0
    %p507 = por %p505, %p506
    %p508 = scmp.ne.s32.totalorder %s496, %s497
    %p509 = scmp.eq.s32.totalorder %s36, 5
    %p510 = por %p508, %p509
    %p512 = scmp.ne.s32.totalorder %s497, %s511
    %p513 = scmp.eq.s32.totalorder %s36, 0
    %p514 = por %p512, %p513
    %s516 = sadd.s32 %s515, 1
    %p519 = scmp.eq.s32.totalorder %s30, 5
    %p520 = scmp.ne.s32.totalorder %s515, %s517
    %p521 = scmp.eq.s32.totalorder %s30, 0
    %p522 = por %p520, %p521
    %p523 = scmp.ne.s32.totalorder %s515, %s517
    %p524 = scmp.eq.s32.totalorder %s35, 5
    %p525 = por %p523, %p524
    %p526 = scmp.ne.s32.totalorder %s517, %s518
    %p527 = scmp.eq.s32.totalorder %s35, 0
    %p528 = por %p526, %p527
    %p529 = scmp.ne.s32.totalorder %s517, %s518
    %p530 = scmp.eq.s32.totalorder %s36, 5
    %p531 = por %p529, %p530
    %p533 = scmp.ne.s32.totalorder %s518, %s532
    %p534 = scmp.eq.s32.totalorder %s36, 0
    %p535 = por %p533, %p534
    %s536 = ssub.s32 %s37, %s49
    %p537 = scmp.eq.s32.totalorder %s536, 0
    %s539 = sadd.s32 %s538, 1
    %s540 = scalar_select %p537, %s538, %s539
    %p543 = pneg %p537
    %p544 = scmp.eq.s32.totalorder %s30, 5
    %p545 = por %p543, %p544
    %p546 = scmp.ne.s32.totalorder %s538, %s541
    %p547 = scmp.eq.s32.totalorder %s30, 0
    %p548 = por %p546, %p547
    %p549 = scmp.ne.s32.totalorder %s538, %s541
    %p550 = scmp.eq.s32.totalorder %s35, 5
    %p551 = por %p549, %p550
    %p552 = scmp.ne.s32.totalorder %s541, %s542
    %p553 = scmp.eq.s32.totalorder %s35, 0
    %p554 = por %p552, %p553
    %p555 = scmp.ne.s32.totalorder %s541, %s542
    %p556 = scmp.eq.s32.totalorder %s36, 5
    %p557 = por %p555, %p556
    %p559 = scmp.ne.s32.totalorder %s542, %s558
    %p560 = scmp.eq.s32.totalorder %s36, 0
    %p561 = por %p559, %p560
    %s562 = ssub.s32 %s37, %s49
    %p563 = scmp.eq.s32.totalorder %s562, 0
    %s565 = sadd.s32 %s564, 1
    %s566 = scalar_select %p563, %s564, %s565
    %p569 = pneg %p563
    %p570 = scmp.eq.s32.totalorder %s30, 5
    %p571 = por %p569, %p570
    %p572 = scmp.ne.s32.totalorder %s564, %s567
    %p573 = scmp.eq.s32.totalorder %s30, 0
    %p574 = por %p572, %p573
    %p575 = scmp.ne.s32.totalorder %s564, %s567
    %p576 = scmp.eq.s32.totalorder %s35, 5
    %p577 = por %p575, %p576
    %p578 = scmp.ne.s32.totalorder %s567, %s568
    %p579 = scmp.eq.s32.totalorder %s35, 0
    %p580 = por %p578, %p579
    %p581 = scmp.ne.s32.totalorder %s567, %s568
    %p582 = scmp.eq.s32.totalorder %s36, 5
    %p583 = por %p581, %p582
    %p585 = scmp.ne.s32.totalorder %s568, %s584
    %p586 = scmp.eq.s32.totalorder %s36, 0
    %p587 = por %p585, %p586
    %p588 = scmp.le.s32.totalorder 1, %s30
    %p589 = scmp.lt.s32.totalorder %s30, 7
    %p590 = pnand %p588, %p589
    %p591 = pneg %p590
    // Predicated region
    $region9: #{transformer_decoder_forward.2} parent=5 // pred_check
      _
    $region10: #{transformer_decoder_forward.2} parent=5 // pred_check_branch
      %593 = sbr.rel (%p590) target = $region12
    $region11: #{transformer_decoder_forward.2} parent=5 // pred_region
      %s594 = ssub.s32 %s30, 1
      // Predicated region
      $region13: #{transformer_decoder_forward.2} parent=11 // pred_check
        %p595 = pneg %p171
      $region14: #{transformer_decoder_forward.2} parent=11 // pred_check_branch
        %597 = sbr.rel (%p595) target = $region16
      $region15: #{transformer_decoder_forward.2} parent=11 // pred_region
        _
      $region16: #{transformer_decoder_forward.2} parent=11 // pred_fallthru
        _
      // Predicated region
      $region17: #{transformer_decoder_forward.2} parent=11 // pred_check
        %p598 = pneg %p192
      $region18: #{transformer_decoder_forward.2} parent=11 // pred_check_branch
        %600 = sbr.rel (%p598) target = $region20
      $region19: #{transformer_decoder_forward.2} parent=11 // pred_region
        _
      $region20: #{transformer_decoder_forward.2} parent=11 // pred_fallthru
        _
      // Predicated region
      $region21: #{transformer_decoder_forward.2} parent=11 // pred_check
        %p601 = pneg %p213
      $region22: #{transformer_decoder_forward.2} parent=11 // pred_check_branch
        %603 = sbr.rel (%p601) target = $region24
      $region23: #{transformer_decoder_forward.2} parent=11 // pred_region
        _
      $region24: #{transformer_decoder_forward.2} parent=11 // pred_fallthru
        _
      // Predicated region
      $region25: #{transformer_decoder_forward.2} parent=11 // pred_check
        %p604 = pneg %p234
      $region26: #{transformer_decoder_forward.2} parent=11 // pred_check_branch
        %606 = sbr.rel (%p604) target = $region28
      $region27: #{transformer_decoder_forward.2} parent=11 // pred_region
        _
      $region28: #{transformer_decoder_forward.2} parent=11 // pred_fallthru
        _
      // Predicated region
      $region29: #{transformer_decoder_forward.2} parent=11 // pred_check
        %p607 = pneg %p255
      $region30: #{transformer_decoder_forward.2} parent=11 // pred_check_branch
        %609 = sbr.rel (%p607) target = $region32
      $region31: #{transformer_decoder_forward.2} parent=11 // pred_region
        _
      $region32: #{transformer_decoder_forward.2} parent=11 // pred_fallthru
        _
      // Predicated region
      $region33: #{transformer_decoder_forward.2} parent=11 // pred_check
        %p610 = pneg %p276
      $region34: #{transformer_decoder_forward.2} parent=11 // pred_check_branch
        %612 = sbr.rel (%p610) target = $region36
      $region35: #{transformer_decoder_forward.2} parent=11 // pred_region
        _
      $region36: #{transformer_decoder_forward.2} parent=11 // pred_fallthru
        _
      // Predicated region
      $region37: #{transformer_decoder_forward.2} parent=11 // pred_check
        %p613 = pneg %p297
      $region38: #{transformer_decoder_forward.2} parent=11 // pred_check_branch
        %615 = sbr.rel (%p613) target = $region40
      $region39: #{transformer_decoder_forward.2} parent=11 // pred_region
        _
      $region40: #{transformer_decoder_forward.2} parent=11 // pred_fallthru
        _
      // Predicated region
      $region41: #{transformer_decoder_forward.2} parent=11 // pred_check
        %p616 = pneg %p318
      $region42: #{transformer_decoder_forward.2} parent=11 // pred_check_branch
        %618 = sbr.rel (%p616) target = $region44
      $region43: #{transformer_decoder_forward.2} parent=11 // pred_region
        _
      $region44: #{transformer_decoder_forward.2} parent=11 // pred_fallthru
        _
      // Predicated region
      $region45: #{transformer_decoder_forward.2} parent=11 // pred_check
        %p619 = pneg %p339
      $region46: #{transformer_decoder_forward.2} parent=11 // pred_check_branch
        %621 = sbr.rel (%p619) target = $region48
      $region47: #{transformer_decoder_forward.2} parent=11 // pred_region
        _
      $region48: #{transformer_decoder_forward.2} parent=11 // pred_fallthru
        _
      // Predicated region
      $region49: #{transformer_decoder_forward.2} parent=11 // pred_check
        %p622 = pneg %p360
      $region50: #{transformer_decoder_forward.2} parent=11 // pred_check_branch
        %624 = sbr.rel (%p622) target = $region52
      $region51: #{transformer_decoder_forward.2} parent=11 // pred_region
        _
      $region52: #{transformer_decoder_forward.2} parent=11 // pred_fallthru
        _
      // Predicated region
      $region53: #{transformer_decoder_forward.2} parent=11 // pred_check
        %p625 = pneg %p381
      $region54: #{transformer_decoder_forward.2} parent=11 // pred_check_branch
        %627 = sbr.rel (%p625) target = $region56
      $region55: #{transformer_decoder_forward.2} parent=11 // pred_region
        _
      $region56: #{transformer_decoder_forward.2} parent=11 // pred_fallthru
        _
      // Predicated region
      $region57: #{transformer_decoder_forward.2} parent=11 // pred_check
        %p628 = pneg %p402
      $region58: #{transformer_decoder_forward.2} parent=11 // pred_check_branch
        %630 = sbr.rel (%p628) target = $region60
      $region59: #{transformer_decoder_forward.2} parent=11 // pred_region
        _
      $region60: #{transformer_decoder_forward.2} parent=11 // pred_fallthru
        _
      // Predicated region
      $region61: #{transformer_decoder_forward.2} parent=11 // pred_check
        %p631 = pneg %p423
      $region62: #{transformer_decoder_forward.2} parent=11 // pred_check_branch
        %633 = sbr.rel (%p631) target = $region64
      $region63: #{transformer_decoder_forward.2} parent=11 // pred_region
        _
      $region64: #{transformer_decoder_forward.2} parent=11 // pred_fallthru
        _
      // Predicated region
      $region65: #{transformer_decoder_forward.2} parent=11 // pred_check
        %p634 = pneg %p444
      $region66: #{transformer_decoder_forward.2} parent=11 // pred_check_branch
        %636 = sbr.rel (%p634) target = $region68
      $region67: #{transformer_decoder_forward.2} parent=11 // pred_region
        _
      $region68: #{transformer_decoder_forward.2} parent=11 // pred_fallthru
        _
      // Predicated region
      $region69: #{transformer_decoder_forward.2} parent=11 // pred_check
        %p637 = pneg %p465
      $region70: #{transformer_decoder_forward.2} parent=11 // pred_check_branch
        %639 = sbr.rel (%p637) target = $region72
      $region71: #{transformer_decoder_forward.2} parent=11 // pred_region
        _
      $region72: #{transformer_decoder_forward.2} parent=11 // pred_fallthru
        _
      // Predicated region
      $region73: #{transformer_decoder_forward.2} parent=11 // pred_check
        %p640 = pneg %p486
      $region74: #{transformer_decoder_forward.2} parent=11 // pred_check_branch
        %642 = sbr.rel (%p640) target = $region76
      $region75: #{transformer_decoder_forward.2} parent=11 // pred_region
        _
      $region76: #{transformer_decoder_forward.2} parent=11 // pred_fallthru
        _
      // Predicated region
      $region77: #{transformer_decoder_forward.2} parent=11 // pred_check
        %p643 = pneg %p507
      $region78: #{transformer_decoder_forward.2} parent=11 // pred_check_branch
        %645 = sbr.rel (%p643) target = $region80
      $region79: #{transformer_decoder_forward.2} parent=11 // pred_region
        _
      $region80: #{transformer_decoder_forward.2} parent=11 // pred_fallthru
        _
      // Predicated region
      $region81: #{transformer_decoder_forward.2} parent=11 // pred_check
        %p646 = pneg %p528
      $region82: #{transformer_decoder_forward.2} parent=11 // pred_check_branch
        %648 = sbr.rel (%p646) target = $region84
      $region83: #{transformer_decoder_forward.2} parent=11 // pred_region
        _
      $region84: #{transformer_decoder_forward.2} parent=11 // pred_fallthru
        _
    $region12: #{transformer_decoder_forward.2} parent=5 // pred_fallthru
      _
    %p649 = scmp.lt.s32.totalorder %s30, 6
    // Predicated region
    $region85: #{transformer_decoder_forward.2} parent=5 // pred_check
      %p650 = pneg %p649
    $region86: #{transformer_decoder_forward.2} parent=5 // pred_check_branch
      %652 = sbr.rel (%p650) target = $region88
    $region87: #{transformer_decoder_forward.2} parent=5 // pred_region
      // Predicated region
      $region89: #{transformer_decoder_forward.2} parent=87 // pred_check
        %p653 = pneg %p62
      $region90: #{transformer_decoder_forward.2} parent=87 // pred_check_branch
        %655 = sbr.rel (%p653) target = $region92
      $region91: #{transformer_decoder_forward.2} parent=87 // pred_region
        %p656 = scmp.lt.s32.totalorder %s37, 1
        %s657 = scalar_select %p656, %s37, 1
        %s658 = smul.addr %s657, 8
        %s659 = scalar_lea.vmem %s0, %s658
      $region92: #{transformer_decoder_forward.2} parent=87 // pred_fallthru
        _
      // Predicated region
      $region93: #{transformer_decoder_forward.2} parent=87 // pred_check
        %p660 = pneg %p88
      $region94: #{transformer_decoder_forward.2} parent=87 // pred_check_branch
        %662 = sbr.rel (%p660) target = $region96
      $region95: #{transformer_decoder_forward.2} parent=87 // pred_region
        %p663 = scmp.lt.s32.totalorder %s37, 1
        %s664 = scalar_select %p663, %s37, 1
        %s665 = smul.addr %s664, 8
        %s666 = scalar_lea.vmem %s1, %s665
      $region96: #{transformer_decoder_forward.2} parent=87 // pred_fallthru
        _
      // Predicated region
      $region97: #{transformer_decoder_forward.2} parent=87 // pred_check
        %p667 = pneg %p116
      $region98: #{transformer_decoder_forward.2} parent=87 // pred_check_branch
        %669 = sbr.rel (%p667) target = $region100
      $region99: #{transformer_decoder_forward.2} parent=87 // pred_region
        %s670 = smul.u32 2, %s38
        %p671 = scmp.lt.s32.totalorder %s37, 1
        %s672 = scalar_select %p671, %s37, 1
        %p673 = scmp.lt.s32.totalorder %s670, 5
        %s674 = scalar_select %p673, %s670, 5
        %s675 = smul.addr %s672, 6
        %s676 = sadd.s32 %s674, %s675
        %s677 = smul.addr %s676, 4
        %s678 = scalar_lea.vmem %s2, %s677
        %s679 = smul.u32 2, %s38
      $region100: #{transformer_decoder_forward.2} parent=87 // pred_fallthru
        _
      // Predicated region
      $region101: #{transformer_decoder_forward.2} parent=87 // pred_check
        %p680 = pneg %p144
      $region102: #{transformer_decoder_forward.2} parent=87 // pred_check_branch
        %682 = sbr.rel (%p680) target = $region104
      $region103: #{transformer_decoder_forward.2} parent=87 // pred_region
        %s683 = smul.u32 2, %s38
        %p684 = scmp.lt.s32.totalorder %s37, 1
        %s685 = scalar_select %p684, %s37, 1
        %p686 = scmp.lt.s32.totalorder %s683, 5
        %s687 = scalar_select %p686, %s683, 5
        %s688 = smul.addr %s685, 6
        %s689 = sadd.s32 %s687, %s688
        %s690 = smul.addr %s689, 4
        %s691 = scalar_lea.vmem %s3, %s690
        %s692 = smul.u32 2, %s38
      $region104: #{transformer_decoder_forward.2} parent=87 // pred_fallthru
        _
    $region88: #{transformer_decoder_forward.2} parent=5 // pred_fallthru
      _
    %p693 = scmp.le.s32.totalorder 1, %s30
    %p694 = scmp.lt.s32.totalorder %s30, 7
    %p695 = pnand %p693, %p694
    %p696 = pneg %p695
    // Predicated region
    $region105: #{transformer_decoder_forward.2} parent=5 // pred_check
      _
    $region106: #{transformer_decoder_forward.2} parent=5 // pred_check_branch
      %698 = sbr.rel (%p695) target = $region108
    $region107: #{transformer_decoder_forward.2} parent=5 // pred_region
      %s699 = ssub.s32 %s30, 1
      %p700 = scmp.lt.s32.totalorder %s39, 1
      %s701 = scalar_select %p700, %s39, 1
      %s702 = smul.addr %s701, 8
      %s703 = scalar_lea.vmem %s0, %s702
      %p704 = pneg %p68
      %p705 = pneg %p65
      %p706 = scmp.lt.s32.totalorder %s39, 1
      %s707 = scalar_select %p706, %s39, 1
      %s708 = smul.addr %s707, 8
      %s709 = scalar_lea.vmem %s1, %s708
      %p710 = pneg %p94
      %p711 = pneg %p91
      %s712 = smul.u32 2, %s40
      %p713 = scmp.lt.s32.totalorder %s39, 1
      %s714 = scalar_select %p713, %s39, 1
      %p715 = scmp.lt.s32.totalorder %s712, 5
      %s716 = scalar_select %p715, %s712, 5
      %s717 = smul.addr %s714, 6
      %s718 = sadd.s32 %s716, %s717
      %s719 = smul.addr %s718, 4
      %s720 = scalar_lea.vmem %s2, %s719
      %p721 = pneg %p122
      %p722 = pneg %p119
      %s723 = smul.u32 2, %s40
      %p724 = scmp.lt.s32.totalorder %s39, 1
      %s725 = scalar_select %p724, %s39, 1
      %p726 = scmp.lt.s32.totalorder %s723, 5
      %s727 = scalar_select %p726, %s723, 5
      %s728 = smul.addr %s725, 6
      %s729 = sadd.s32 %s727, %s728
      %s730 = smul.addr %s729, 4
      %s731 = scalar_lea.vmem %s3, %s730
      %p732 = pneg %p150
      %p733 = pneg %p147
      %p734 = pneg %p171
      %p735 = pneg %p168
      %p736 = pneg %p192
      %p737 = pneg %p189
      %p738 = pneg %p213
      %p739 = pneg %p210
      %p740 = pneg %p234
      %p741 = pneg %p231
      %p742 = pneg %p255
      %p743 = pneg %p252
      %p744 = pneg %p276
      %p745 = pneg %p273
      %p746 = pneg %p297
      %p747 = pneg %p294
      %p748 = pneg %p318
      %p749 = pneg %p315
      %p750 = pneg %p339
      %p751 = pneg %p336
      %p752 = pneg %p360
      %p753 = pneg %p357
      %p754 = pneg %p381
      %p755 = pneg %p378
      %p756 = pneg %p402
      %p757 = pneg %p399
      %p758 = pneg %p423
      %p759 = pneg %p420
      %p760 = pneg %p444
      %p761 = pneg %p441
      %p762 = pneg %p465
      %p763 = pneg %p462
      %p764 = pneg %p486
      %p765 = pneg %p483
      %p766 = pneg %p507
      %p767 = pneg %p504
      %p768 = pneg %p528
      %p769 = pneg %p525
      %p770 = pneg %p554
      %p771 = pneg %p551
      %p772 = scmp.lt.s32.totalorder %s39, 1
      %s773 = scalar_select %p772, %s39, 1
      %s774 = smul.addr %s773, 8
      %s775 = scalar_lea.vmem %s22, %s774
      %p776 = pneg %p580
      %p777 = pneg %p577
      %p778 = scmp.lt.s32.totalorder %s39, 1
      %s779 = scalar_select %p778, %s39, 1
      %s780 = smul.addr %s779, 8
      %s781 = scalar_lea.vmem %s23, %s780
      %p782 = scmp.lt.s32.totalorder %s39, 1
      %s783 = scalar_select %p782, %s39, 1
      %s784 = smul.addr %s783, 8
      %s785 = scalar_lea.vmem %s0, %s784
      %p786 = scmp.lt.s32.totalorder %s39, 1
      %s787 = scalar_select %p786, %s39, 1
      %s788 = smul.addr %s787, 8
      %s789 = scalar_lea.vmem %s1, %s788
      %s790 = smul.u32 2, %s40
      %p791 = scmp.lt.s32.totalorder %s39, 1
      %s792 = scalar_select %p791, %s39, 1
      %p793 = scmp.lt.s32.totalorder %s790, 5
      %s794 = scalar_select %p793, %s790, 5
      %s795 = smul.addr %s792, 6
      %s796 = sadd.s32 %s794, %s795
      %s797 = smul.addr %s796, 4
      %s798 = scalar_lea.vmem %s2, %s797
      %s799 = smul.u32 2, %s40
      %s800 = smul.u32 2, %s40
      %p801 = scmp.lt.s32.totalorder %s39, 1
      %s802 = scalar_select %p801, %s39, 1
      %p803 = scmp.lt.s32.totalorder %s800, 5
      %s804 = scalar_select %p803, %s800, 5
      %s805 = smul.addr %s802, 6
      %s806 = sadd.s32 %s804, %s805
      %s807 = smul.addr %s806, 4
      %s808 = scalar_lea.vmem %s3, %s807
      %s809 = smul.u32 2, %s40
      %p810 = scmp.lt.s32.totalorder %s39, 1
      %s811 = scalar_select %p810, %s39, 1
      %s812 = smul.addr %s811, 8
      %s813 = scalar_lea.vmem %s22, %s812
      %p814 = scmp.lt.s32.totalorder %s39, 1
      %s815 = scalar_select %p814, %s39, 1
      %s816 = smul.addr %s815, 8
      %s817 = scalar_lea.vmem %s23, %s816
      %p819 = scmp.eq.s32.totalorder %s40, 0
      // Predicated region
      $region109: #{transformer_decoder_forward.2} parent=107 // pred_check
        %p820 = pneg %p819
      $region110: #{transformer_decoder_forward.2} parent=107 // pred_check_branch
        %822 = sbr.rel (%p820) target = $region112
      $region111: #{transformer_decoder_forward.2} parent=107 // pred_region
        %v823 = vld [vmem:[%s785] sm:$0xff]
        %v824 = vld [vmem:[%s789] sm:$0xff]
        %v825 = vld [vmem:[%s6] sm:$0x3]
        %v826 = vld [vmem:[%s20] sm:$0xf]
        %v827 = vld [vmem:[%s21] sm:$0xf]
        %v828 = vld [vmem:[%s11] sm:$0x3]
        %v829 = vld [vmem:[%s15] sm:$0xf]
        %v830 = vld [vmem:[%s4] sm:$0xf]
        %v831 = vld [vmem:[%s4 + $0x4] sm:$0xf]
        %v832 = vld [vmem:[%s4 + $0x8] sm:$0xf]
        %v833 = vld [vmem:[%s4 + $0xc] sm:$0xf]
        %v834 = vld [vmem:[%s4 + $0x10] sm:$0xf]
        %v835 = vld [vmem:[%s4 + $0x14] sm:$0xf]
        %v836 = vld [vmem:[%s4 + $0x18] sm:$0xf]
        %v837 = vld [vmem:[%s4 + $0x1c] sm:$0xf]
        %v838 = vpack.c.bf16 %v824, %v824
        %v839 = vlaneseq
        %v840 = vshrl.u32 %v839, 7
        %v841 = vsub.s32 0, %v840
        %v842 = vrot.slane %v825, %v841
        %v851 = vunpack.c.l.b16 %v830
        %v852 = vunpack.c.l.b16 %v831
        %v853 = vunpack.c.l.b16 %v832
        %v854 = vunpack.c.l.b16 %v833
        %v855 = vunpack.c.l.b16 %v834
        %v856 = vunpack.c.l.b16 %v835
        %v857 = vunpack.c.l.b16 %v836
        %v858 = vunpack.c.l.b16 %v837
        %v859 = vpack.c.b16 %v852, %v851
        %v860 = vpack.c.b16 %v854, %v853
        %v861 = vpack.c.b16 %v856, %v855
        %v862 = vpack.c.b16 %v858, %v857
        %vm867 = vcmask 523264
        %v869 = vsel %vm867, %v838, 0
        %871 = vmatprep.subr.bf16.mxu0 0
        %872 = vmatpush1.bf16.msra.mxu0 %v859
        %873 = vmatprep.subr.bf16.mxu0 0
        %874 = vmatpush1.bf16.msra.mxu0 %v860
        %875 = vmatprep.subr.bf16.mxu0 0
        %876 = vmatpush1.bf16.msra.mxu0 %v861
        %877 = vmatprep.subr.bf16.mxu0 0
        %878 = vmatpush1.bf16.msra.mxu0 %v862
        %879 = vmatprep.subr.bf16.mxu0 0
        %880 = vmatpush1.bf16.msra.mxu0 0
        %881 = vmatprep.subr.bf16.mxu0 0
        %882 = vmatpush1.bf16.msra.mxu0 0
        %883 = vmatprep.subr.bf16.mxu0 0
        %884 = vmatpush1.bf16.msra.mxu0 0
        %885 = vmatprep.subr.bf16.mxu0 0
        %886 = vmatpush1.bf16.msra.mxu0 0
        %887 = vmatprep.subr.bf16.mxu0 0
        %888 = vmatpush1.bf16.msra.mxu0 0
        %889 = vmatprep.subr.bf16.mxu0 0
        %890 = vmatpush1.bf16.msra.mxu0 0
        %891 = vmatprep.subr.bf16.mxu0 0
        %892 = vmatpush1.bf16.msra.mxu0 0
        %893 = vmatprep.subr.bf16.mxu0 0
        %894 = vmatpush1.bf16.msra.mxu0 0
        %895 = vmatprep.subr.bf16.mxu0 0
        %896 = vmatpush1.bf16.msra.mxu0 0
        %897 = vmatprep.subr.bf16.mxu0 0
        %898 = vmatpush1.bf16.msra.mxu0 0
        %899 = vmatprep.subr.bf16.mxu0 0
        %900 = vmatpush1.bf16.msra.mxu0 0
        %901 = vmatprep.subr.bf16.mxu0 0
        %902 = vmatpush1.bf16.msra.mxu0 0
        %903 = vmatprep.mubr.bf16.mxu0 0
        %904 = vmatmul.mubr.bf16.gmra.mrb[0].mxu0 %v869
        %v905 = vpop.f32.mrb[0].mxu0
        %v906 = vadd.f32 %v842, %v905
        %v907 = vpop.f32.mrb[0].mxu0
        %v908 = vpop.f32.mrb[0].mxu0
        %v909 = vpop.f32.mrb[0].mxu0
        %910 = vdwg.mxu0
        %v911 = vmax.f32 %v906, 0.0
        %v912 = vld [vmem:[%s5] sm:$0xf]
        %v913 = vld [vmem:[%s5 + $0x4] sm:$0xf]
        %v914 = vld [vmem:[%s5 + $0x8] sm:$0xf]
        %v915 = vld [vmem:[%s5 + $0xc] sm:$0xf]
        %v916 = vpack.c.bf16 %v911, %v911
        %v917 = vlaneseq
        %v918 = vshrl.u32 %v917, 7
        %v919 = vsub.s32 1, %v918
        %v920 = vrot.slane %v825, %v919
        %v925 = vunpack.c.l.b16 %v912
        %v926 = vunpack.c.l.b16 %v913
        %v927 = vunpack.c.l.b16 %v914
        %v928 = vunpack.c.l.b16 %v915
        %v929 = vpack.c.b16 %v926, %v925
        %v930 = vpack.c.b16 %v928, %v927
        %vm933 = vcmask 261120
        %v935 = vsel %vm933, %v916, 0
        %937 = vmatprep.subr.bf16.mxu0 0
        %938 = vmatpush1.bf16.msra.mxu0 %v929
        %939 = vmatprep.subr.bf16.mxu0 0
        %940 = vmatpush1.bf16.msra.mxu0 %v930
        %941 = vmatprep.subr.bf16.mxu0 0
        %942 = vmatpush1.bf16.msra.mxu0 0
        %943 = vmatprep.subr.bf16.mxu0 0
        %944 = vmatpush1.bf16.msra.mxu0 0
        %945 = vmatprep.subr.bf16.mxu0 0
        %946 = vmatpush1.bf16.msra.mxu0 0
        %947 = vmatprep.subr.bf16.mxu0 0
        %948 = vmatpush1.bf16.msra.mxu0 0
        %949 = vmatprep.subr.bf16.mxu0 0
        %950 = vmatpush1.bf16.msra.mxu0 0
        %951 = vmatprep.subr.bf16.mxu0 0
        %952 = vmatpush1.bf16.msra.mxu0 0
        %953 = vmatprep.subr.bf16.mxu0 0
        %954 = vmatpush1.bf16.msra.mxu0 0
        %955 = vmatprep.subr.bf16.mxu0 0
        %956 = vmatpush1.bf16.msra.mxu0 0
        %957 = vmatprep.subr.bf16.mxu0 0
        %958 = vmatpush1.bf16.msra.mxu0 0
        %959 = vmatprep.subr.bf16.mxu0 0
        %960 = vmatpush1.bf16.msra.mxu0 0
        %961 = vmatprep.subr.bf16.mxu0 0
        %962 = vmatpush1.bf16.msra.mxu0 0
        %963 = vmatprep.subr.bf16.mxu0 0
        %964 = vmatpush1.bf16.msra.mxu0 0
        %965 = vmatprep.subr.bf16.mxu0 0
        %966 = vmatpush1.bf16.msra.mxu0 0
        %967 = vmatprep.subr.bf16.mxu0 0
        %968 = vmatpush1.bf16.msra.mxu0 0
        %969 = vmatprep.mubr.bf16.mxu0 0
        %970 = vmatmul.mubr.bf16.gmra.mrb[0].mxu0 %v935
        %v971 = vpop.f32.mrb[0].mxu0
        %v972 = vadd.f32 %v920, %v971
        %v973 = vpop.f32.mrb[0].mxu0
        %v974 = vpop.f32.mrb[0].mxu0
        %v975 = vpop.f32.mrb[0].mxu0
        %976 = vdwg.mxu0
        %v977 = vadd.f32 %v823, %v972
        %v978 = vld [vmem:[%s7] sm:$0xf]
        %v979 = vld [vmem:[%s7 + $0x4] sm:$0xf]
        %v980 = vld [vmem:[%s7 + $0x8] sm:$0xf]
        %v981 = vld [vmem:[%s7 + $0xc] sm:$0xf]
        %v982 = vpack.c.bf16 %v977, %v977
        %v983 = vld [vmem:[%s8] sm:$0x1]
        %v985 = vlaneseq
        %v986 = vshrl.u32 %v985, 7
        %v987 = vsub.s32 0, %v986
        %v988 = vrot.slane %v983, %v987
        %v994 = vunpack.c.l.b16 %v978
        %v995 = vunpack.c.l.b16 %v979
        %v996 = vunpack.c.l.b16 %v980
        %v997 = vunpack.c.l.b16 %v981
        %v998 = vpack.c.b16 %v995, %v994
        %v999 = vpack.c.b16 %v997, %v996
        %v1003 = vsel %vm933, %v982, 0
        %1005 = vmatprep.subr.bf16.mxu0 0
        %1006 = vmatpush1.bf16.msra.mxu0 %v998
        %1007 = vmatprep.subr.bf16.mxu0 0
        %1008 = vmatpush1.bf16.msra.mxu0 %v999
        %1009 = vmatprep.subr.bf16.mxu0 0
        %1010 = vmatpush1.bf16.msra.mxu0 0
        %1011 = vmatprep.subr.bf16.mxu0 0
        %1012 = vmatpush1.bf16.msra.mxu0 0
        %1013 = vmatprep.subr.bf16.mxu0 0
        %1014 = vmatpush1.bf16.msra.mxu0 0
        %1015 = vmatprep.subr.bf16.mxu0 0
        %1016 = vmatpush1.bf16.msra.mxu0 0
        %1017 = vmatprep.subr.bf16.mxu0 0
        %1018 = vmatpush1.bf16.msra.mxu0 0
        %1019 = vmatprep.subr.bf16.mxu0 0
        %1020 = vmatpush1.bf16.msra.mxu0 0
        %1021 = vmatprep.subr.bf16.mxu0 0
        %1022 = vmatpush1.bf16.msra.mxu0 0
        %1023 = vmatprep.subr.bf16.mxu0 0
        %1024 = vmatpush1.bf16.msra.mxu0 0
        %1025 = vmatprep.subr.bf16.mxu0 0
        %1026 = vmatpush1.bf16.msra.mxu0 0
        %1027 = vmatprep.subr.bf16.mxu0 0
        %1028 = vmatpush1.bf16.msra.mxu0 0
        %1029 = vmatprep.subr.bf16.mxu0 0
        %1030 = vmatpush1.bf16.msra.mxu0 0
        %1031 = vmatprep.subr.bf16.mxu0 0
        %1032 = vmatpush1.bf16.msra.mxu0 0
        %1033 = vmatprep.subr.bf16.mxu0 0
        %1034 = vmatpush1.bf16.msra.mxu0 0
        %1035 = vmatprep.subr.bf16.mxu0 0
        %1036 = vmatpush1.bf16.msra.mxu0 0
        %1037 = vmatprep.mubr.bf16.mxu0 0
        %1038 = vmatmul.mubr.bf16.gmra.mrb[0].mxu0 %v1003
        %v1039 = vpop.f32.mrb[0].mxu0
        %v1040 = vadd.f32 %v988, %v1039
        %v1041 = vpop.f32.mrb[0].mxu0
        %v1042 = vpop.f32.mrb[0].mxu0
        %v1043 = vpop.f32.mrb[0].mxu0
        %1044 = vdwg.mxu0
        %v1045 = vld [vmem:[%s9] sm:$0xf]
        %v1046 = vld [vmem:[%s9 + $0x4] sm:$0xf]
        %v1047 = vld [vmem:[%s9 + $0x8] sm:$0xf]
        %v1048 = vld [vmem:[%s9 + $0xc] sm:$0xf]
        %v1049 = vpack.c.bf16 %v823, %v823
        %v1050 = vlaneseq
        %v1051 = vshrl.u32 %v1050, 7
        %v1052 = vsub.s32 0, %v1051
        %v1053 = vrot.slane %v828, %v1052
        %v1058 = vunpack.c.l.b16 %v1045
        %v1059 = vunpack.c.l.b16 %v1046
        %v1060 = vunpack.c.l.b16 %v1047
        %v1061 = vunpack.c.l.b16 %v1048
        %v1062 = vpack.c.b16 %v1059, %v1058
        %v1063 = vpack.c.b16 %v1061, %v1060
        %v1067 = vsel %vm933, %v1049, 0
        %1069 = vmatprep.subr.bf16.mxu0 0
        %1070 = vmatpush1.bf16.msra.mxu0 %v1062
        %1071 = vmatprep.subr.bf16.mxu0 0
        %1072 = vmatpush1.bf16.msra.mxu0 %v1063
        %1073 = vmatprep.subr.bf16.mxu0 0
        %1074 = vmatpush1.bf16.msra.mxu0 0
        %1075 = vmatprep.subr.bf16.mxu0 0
        %1076 = vmatpush1.bf16.msra.mxu0 0
        %1077 = vmatprep.subr.bf16.mxu0 0
        %1078 = vmatpush1.bf16.msra.mxu0 0
        %1079 = vmatprep.subr.bf16.mxu0 0
        %1080 = vmatpush1.bf16.msra.mxu0 0
        %1081 = vmatprep.subr.bf16.mxu0 0
        %1082 = vmatpush1.bf16.msra.mxu0 0
        %1083 = vmatprep.subr.bf16.mxu0 0
        %1084 = vmatpush1.bf16.msra.mxu0 0
        %1085 = vmatprep.subr.bf16.mxu0 0
        %1086 = vmatpush1.bf16.msra.mxu0 0
        %1087 = vmatprep.subr.bf16.mxu0 0
        %1088 = vmatpush1.bf16.msra.mxu0 0
        %1089 = vmatprep.subr.bf16.mxu0 0
        %1090 = vmatpush1.bf16.msra.mxu0 0
        %1091 = vmatprep.subr.bf16.mxu0 0
        %1092 = vmatpush1.bf16.msra.mxu0 0
        %1093 = vmatprep.subr.bf16.mxu0 0
        %1094 = vmatpush1.bf16.msra.mxu0 0
        %1095 = vmatprep.subr.bf16.mxu0 0
        %1096 = vmatpush1.bf16.msra.mxu0 0
        %1097 = vmatprep.subr.bf16.mxu0 0
        %1098 = vmatpush1.bf16.msra.mxu0 0
        %1099 = vmatprep.subr.bf16.mxu0 0
        %1100 = vmatpush1.bf16.msra.mxu0 0
        %1101 = vmatprep.mubr.bf16.mxu0 0
        %1102 = vmatmul.mubr.bf16.gmra.mrb[0].mxu0 %v1067
        %v1103 = vpop.f32.mrb[0].mxu0
        %v1104 = vadd.f32 %v1053, %v1103
        %v1105 = vpop.f32.mrb[0].mxu0
        %v1106 = vpop.f32.mrb[0].mxu0
        %v1107 = vpop.f32.mrb[0].mxu0
        %1108 = vdwg.mxu0
        %1110 = vrot.lane.b32.xlu0 %v1040, 120
        %v1111 = vpop.permute.xlu0 %1110
        %1113 = vrot.lane.b32.xlu0 %v1040, 112
        %v1114 = vpop.permute.xlu0 %1113
        %1116 = vrot.lane.b32.xlu0 %v1040, 104
        %v1117 = vpop.permute.xlu0 %1116
        %v1119 = vpack.c.bf16 %v1040, %v1040
        %v1120 = vpack.c.bf16 %v1111, %v1111
        %v1121 = vpack.c.bf16 %v1114, %v1114
        %v1122 = vpack.c.bf16 %v1117, %v1117
        %1124 = vrot.lane.b32.xlu0 %v1104, 120
        %v1125 = vpop.permute.xlu0 %1124
        %1127 = vrot.lane.b32.xlu0 %v1104, 112
        %v1128 = vpop.permute.xlu0 %1127
        %1130 = vrot.lane.b32.xlu0 %v1104, 104
        %v1131 = vpop.permute.xlu0 %1130
        %v1133 = vpack.c.bf16 %v1104, %v1104
        %v1134 = vpack.c.bf16 %v1125, %v1125
        %v1135 = vpack.c.bf16 %v1128, %v1128
        %v1136 = vpack.c.bf16 %v1131, %v1131
        %v1137 = vld [vmem:[%s10] sm:$0xf]
        %v1138 = vld [vmem:[%s10 + $0x4] sm:$0xf]
        %v1139 = vld [vmem:[%s10 + $0x8] sm:$0xf]
        %v1140 = vld [vmem:[%s10 + $0xc] sm:$0xf]
        %1142 = vrot.lane.b32.xlu0 %v1119, 96
        %v1143 = vpop.permute.xlu0 %1142
        %vm1144 = vcmask 64512
        %v1146 = vsel %vm1144, %v1119, 0
        %v1149 = vsel %vm1144, %v1143, 0
        %1151 = vmatprep.subr.bf16.mxu0 0
        %1152 = vmatpush1.bf16.xpose.msra.mxu0 %v1149
        %1153 = vmatprep.subr.bf16.mxu0 0
        %1154 = vmatpush1.bf16.xpose.msra.mxu0 0
        %1155 = vmatprep.subr.bf16.mxu0 0
        %1156 = vmatpush1.bf16.xpose.msra.mxu0 0
        %1157 = vmatprep.subr.bf16.mxu0 0
        %1158 = vmatpush1.bf16.xpose.msra.mxu0 0
        %1159 = vmatprep.subr.bf16.mxu0 0
        %1160 = vmatpush1.bf16.xpose.msra.mxu0 0
        %1161 = vmatprep.subr.bf16.mxu0 0
        %1162 = vmatpush1.bf16.xpose.msra.mxu0 0
        %1163 = vmatprep.subr.bf16.mxu0 0
        %1164 = vmatpush1.bf16.xpose.msra.mxu0 0
        %1165 = vmatprep.subr.bf16.mxu0 0
        %1166 = vmatpush1.bf16.xpose.msra.mxu0 0
        %1167 = vmatprep.subr.bf16.mxu0 0
        %1168 = vmatpush1.bf16.xpose.msra.mxu0 0
        %1169 = vmatprep.subr.bf16.mxu0 0
        %1170 = vmatpush1.bf16.xpose.msra.mxu0 0
        %1171 = vmatprep.subr.bf16.mxu0 0
        %1172 = vmatpush1.bf16.xpose.msra.mxu0 0
        %1173 = vmatprep.subr.bf16.mxu0 0
        %1174 = vmatpush1.bf16.xpose.msra.mxu0 0
        %1175 = vmatprep.subr.bf16.mxu0 0
        %1176 = vmatpush1.bf16.xpose.msra.mxu0 0
        %1177 = vmatprep.subr.bf16.mxu0 0
        %1178 = vmatpush1.bf16.xpose.msra.mxu0 0
        %1179 = vmatprep.subr.bf16.mxu0 0
        %1180 = vmatpush1.bf16.xpose.msra.mxu0 0
        %1181 = vmatprep.subr.bf16.mxu0 0
        %1182 = vmatpush1.bf16.xpose.msra.mxu0 0
        %1183 = vmatprep.mubr.bf16.mxu0 0
        %1184 = vmatmul.mubr.bf16.gmra.mrb[0].mxu0 %v1146
        %v1185 = vpop.f32.mrb[0].mxu0
        %v1186 = vadd.f32 0.0, %v1185
        %v1187 = vpop.f32.mrb[0].mxu0
        %v1188 = vpop.f32.mrb[0].mxu0
        %v1189 = vpop.f32.mrb[0].mxu0
        %1190 = vdwg.mxu0
        %1192 = vrot.lane.b32.xlu0 %v1120, 96
        %v1193 = vpop.permute.xlu0 %1192
        %v1195 = vsel %vm1144, %v1120, 0
        %v1198 = vsel %vm1144, %v1193, 0
        %1200 = vmatprep.subr.bf16.mxu0 0
        %1201 = vmatpush1.bf16.xpose.msra.mxu0 %v1198
        %1202 = vmatprep.subr.bf16.mxu0 0
        %1203 = vmatpush1.bf16.xpose.msra.mxu0 0
        %1204 = vmatprep.subr.bf16.mxu0 0
        %1205 = vmatpush1.bf16.xpose.msra.mxu0 0
        %1206 = vmatprep.subr.bf16.mxu0 0
        %1207 = vmatpush1.bf16.xpose.msra.mxu0 0
        %1208 = vmatprep.subr.bf16.mxu0 0
        %1209 = vmatpush1.bf16.xpose.msra.mxu0 0
        %1210 = vmatprep.subr.bf16.mxu0 0
        %1211 = vmatpush1.bf16.xpose.msra.mxu0 0
        %1212 = vmatprep.subr.bf16.mxu0 0
        %1213 = vmatpush1.bf16.xpose.msra.mxu0 0
        %1214 = vmatprep.subr.bf16.mxu0 0
        %1215 = vmatpush1.bf16.xpose.msra.mxu0 0
        %1216 = vmatprep.subr.bf16.mxu0 0
        %1217 = vmatpush1.bf16.xpose.msra.mxu0 0
        %1218 = vmatprep.subr.bf16.mxu0 0
        %1219 = vmatpush1.bf16.xpose.msra.mxu0 0
        %1220 = vmatprep.subr.bf16.mxu0 0
        %1221 = vmatpush1.bf16.xpose.msra.mxu0 0
        %1222 = vmatprep.subr.bf16.mxu0 0
        %1223 = vmatpush1.bf16.xpose.msra.mxu0 0
        %1224 = vmatprep.subr.bf16.mxu0 0
        %1225 = vmatpush1.bf16.xpose.msra.mxu0 0
        %1226 = vmatprep.subr.bf16.mxu0 0
        %1227 = vmatpush1.bf16.xpose.msra.mxu0 0
        %1228 = vmatprep.subr.bf16.mxu0 0
        %1229 = vmatpush1.bf16.xpose.msra.mxu0 0
        %1230 = vmatprep.subr.bf16.mxu0 0
        %1231 = vmatpush1.bf16.xpose.msra.mxu0 0
        %1232 = vmatprep.mubr.bf16.mxu0 0
        %1233 = vmatmul.mubr.bf16.gmra.mrb[0].mxu0 %v1195
        %v1234 = vpop.f32.mrb[0].mxu0
        %v1235 = vadd.f32 0.0, %v1234
        %v1236 = vpop.f32.mrb[0].mxu0
        %v1237 = vpop.f32.mrb[0].mxu0
        %v1238 = vpop.f32.mrb[0].mxu0
        %1239 = vdwg.mxu0
        %1241 = vrot.lane.b32.xlu0 %v1121, 96
        %v1242 = vpop.permute.xlu0 %1241
        %v1244 = vsel %vm1144, %v1121, 0
        %v1247 = vsel %vm1144, %v1242, 0
        %1249 = vmatprep.subr.bf16.mxu0 0
        %1250 = vmatpush1.bf16.xpose.msra.mxu0 %v1247
        %1251 = vmatprep.subr.bf16.mxu0 0
        %1252 = vmatpush1.bf16.xpose.msra.mxu0 0
        %1253 = vmatprep.subr.bf16.mxu0 0
        %1254 = vmatpush1.bf16.xpose.msra.mxu0 0
        %1255 = vmatprep.subr.bf16.mxu0 0
        %1256 = vmatpush1.bf16.xpose.msra.mxu0 0
        %1257 = vmatprep.subr.bf16.mxu0 0
        %1258 = vmatpush1.bf16.xpose.msra.mxu0 0
        %1259 = vmatprep.subr.bf16.mxu0 0
        %1260 = vmatpush1.bf16.xpose.msra.mxu0 0
        %1261 = vmatprep.subr.bf16.mxu0 0
        %1262 = vmatpush1.bf16.xpose.msra.mxu0 0
        %1263 = vmatprep.subr.bf16.mxu0 0
        %1264 = vmatpush1.bf16.xpose.msra.mxu0 0
        %1265 = vmatprep.subr.bf16.mxu0 0
        %1266 = vmatpush1.bf16.xpose.msra.mxu0 0
        %1267 = vmatprep.subr.bf16.mxu0 0
        %1268 = vmatpush1.bf16.xpose.msra.mxu0 0
        %1269 = vmatprep.subr.bf16.mxu0 0
        %1270 = vmatpush1.bf16.xpose.msra.mxu0 0
        %1271 = vmatprep.subr.bf16.mxu0 0
        %1272 = vmatpush1.bf16.xpose.msra.mxu0 0
        %1273 = vmatprep.subr.bf16.mxu0 0
        %1274 = vmatpush1.bf16.xpose.msra.mxu0 0
        %1275 = vmatprep.subr.bf16.mxu0 0
        %1276 = vmatpush1.bf16.xpose.msra.mxu0 0
        %1277 = vmatprep.subr.bf16.mxu0 0
        %1278 = vmatpush1.bf16.xpose.msra.mxu0 0
        %1279 = vmatprep.subr.bf16.mxu0 0
        %1280 = vmatpush1.bf16.xpose.msra.mxu0 0
        %1281 = vmatprep.mubr.bf16.mxu0 0
        %1282 = vmatmul.mubr.bf16.gmra.mrb[0].mxu0 %v1244
        %v1283 = vpop.f32.mrb[0].mxu0
        %v1284 = vadd.f32 0.0, %v1283
        %v1285 = vpop.f32.mrb[0].mxu0
        %v1286 = vpop.f32.mrb[0].mxu0
        %v1287 = vpop.f32.mrb[0].mxu0
        %1288 = vdwg.mxu0
        %1290 = vrot.lane.b32.xlu0 %v1122, 96
        %v1291 = vpop.permute.xlu0 %1290
        %v1293 = vsel %vm1144, %v1122, 0
        %v1296 = vsel %vm1144, %v1291, 0
        %1298 = vmatprep.subr.bf16.mxu0 0
        %1299 = vmatpush1.bf16.xpose.msra.mxu0 %v1296
        %1300 = vmatprep.subr.bf16.mxu0 0
        %1301 = vmatpush1.bf16.xpose.msra.mxu0 0
        %1302 = vmatprep.subr.bf16.mxu0 0
        %1303 = vmatpush1.bf16.xpose.msra.mxu0 0
        %1304 = vmatprep.subr.bf16.mxu0 0
        %1305 = vmatpush1.bf16.xpose.msra.mxu0 0
        %1306 = vmatprep.subr.bf16.mxu0 0
        %1307 = vmatpush1.bf16.xpose.msra.mxu0 0
        %1308 = vmatprep.subr.bf16.mxu0 0
        %1309 = vmatpush1.bf16.xpose.msra.mxu0 0
        %1310 = vmatprep.subr.bf16.mxu0 0
        %1311 = vmatpush1.bf16.xpose.msra.mxu0 0
        %1312 = vmatprep.subr.bf16.mxu0 0
        %1313 = vmatpush1.bf16.xpose.msra.mxu0 0
        %1314 = vmatprep.subr.bf16.mxu0 0
        %1315 = vmatpush1.bf16.xpose.msra.mxu0 0
        %1316 = vmatprep.subr.bf16.mxu0 0
        %1317 = vmatpush1.bf16.xpose.msra.mxu0 0
        %1318 = vmatprep.subr.bf16.mxu0 0
        %1319 = vmatpush1.bf16.xpose.msra.mxu0 0
        %1320 = vmatprep.subr.bf16.mxu0 0
        %1321 = vmatpush1.bf16.xpose.msra.mxu0 0
        %1322 = vmatprep.subr.bf16.mxu0 0
        %1323 = vmatpush1.bf16.xpose.msra.mxu0 0
        %1324 = vmatprep.subr.bf16.mxu0 0
        %1325 = vmatpush1.bf16.xpose.msra.mxu0 0
        %1326 = vmatprep.subr.bf16.mxu0 0
        %1327 = vmatpush1.bf16.xpose.msra.mxu0 0
        %1328 = vmatprep.subr.bf16.mxu0 0
        %1329 = vmatpush1.bf16.xpose.msra.mxu0 0
        %1330 = vmatprep.mubr.bf16.mxu0 0
        %1331 = vmatmul.mubr.bf16.gmra.mrb[0].mxu0 %v1293
        %v1332 = vpop.f32.mrb[0].mxu0
        %v1333 = vadd.f32 0.0, %v1332
        %v1334 = vpop.f32.mrb[0].mxu0
        %v1335 = vpop.f32.mrb[0].mxu0
        %v1336 = vpop.f32.mrb[0].mxu0
        %1337 = vdwg.mxu0
        %v1338 = vmul.f32 %v1186, 0.35355338
        %v1339 = vmul.f32 %v1235, 0.35355338
        %v1340 = vmul.f32 %v1284, 0.35355338
        %v1341 = vmul.f32 %v1333, 0.35355338
        %v1342 = vsel %vm1144, %v1338, -inf
        %1343 = vmax.xlane.f32.xlu0 %v1342
        %v1344 = vpop.xlane.xlu0 %1343
        %v1345 = vsel %vm1144, %v1339, -inf
        %1346 = vmax.xlane.f32.xlu0 %v1345
        %v1347 = vpop.xlane.xlu0 %1346
        %v1348 = vsel %vm1144, %v1340, -inf
        %1349 = vmax.xlane.f32.xlu0 %v1348
        %v1350 = vpop.xlane.xlu0 %1349
        %v1351 = vsel %vm1144, %v1341, -inf
        %1352 = vmax.xlane.f32.xlu0 %v1351
        %v1353 = vpop.xlane.xlu0 %1352
        %v1354 = vsub.f32 %v1338, %v1344
        %v1355 = vsub.f32 %v1339, %v1347
        %v1356 = vsub.f32 %v1340, %v1350
        %v1357 = vsub.f32 %v1341, %v1353
        %v1358 = vmul.f32 %v1354, 1.442695
        %v1359 = vpow.pop %v1358
        %v1360 = vmul.f32 %v1355, 1.442695
        %v1361 = vpow.pop %v1360
        %v1362 = vmul.f32 %v1356, 1.442695
        %v1363 = vpow.pop %v1362
        %v1364 = vmul.f32 %v1357, 1.442695
        %v1365 = vpow.pop %v1364
        %v1366 = vsel %vm1144, %v1359, 0.0
        %1367 = vadd.xlane.f32.xlu0 %v1366
        %v1368 = vpop.xlane.xlu0 %1367
        %v1369 = vsel %vm1144, %v1361, 0.0
        %1370 = vadd.xlane.f32.xlu0 %v1369
        %v1371 = vpop.xlane.xlu0 %1370
        %v1372 = vsel %vm1144, %v1363, 0.0
        %1373 = vadd.xlane.f32.xlu0 %v1372
        %v1374 = vpop.xlane.xlu0 %1373
        %v1375 = vsel %vm1144, %v1365, 0.0
        %1376 = vadd.xlane.f32.xlu0 %v1375
        %v1377 = vpop.xlane.xlu0 %1376
        %v1378 = vrcp.pop %v1368
        %v1379 = vrcp.pop %v1371
        %v1380 = vrcp.pop %v1374
        %v1381 = vrcp.pop %v1377
        %v1382 = vmul.f32 %v1359, %v1378
        %v1383 = vmul.f32 %v1361, %v1379
        %v1384 = vmul.f32 %v1363, %v1380
        %v1385 = vmul.f32 %v1365, %v1381
        %v1386 = vpack.c.bf16 %v1382, %v1382
        %v1387 = vpack.c.bf16 %v1383, %v1383
        %v1388 = vpack.c.bf16 %v1384, %v1384
        %v1389 = vpack.c.bf16 %v1385, %v1385
        %v1391 = vsel %vm1144, %v1386, 0
        %vm1393 = vcmask 1043456
        %v1395 = vsel %vm1393, %v1133, 0
        %1397 = vmatprep.subr.bf16.mxu0 0
        %1398 = vmatpush1.bf16.msra.mxu0 %v1395
        %1399 = vmatprep.subr.bf16.mxu0 0
        %1400 = vmatpush1.bf16.msra.mxu0 0
        %1401 = vmatprep.subr.bf16.mxu0 0
        %1402 = vmatpush1.bf16.msra.mxu0 0
        %1403 = vmatprep.subr.bf16.mxu0 0
        %1404 = vmatpush1.bf16.msra.mxu0 0
        %1405 = vmatprep.subr.bf16.mxu0 0
        %1406 = vmatpush1.bf16.msra.mxu0 0
        %1407 = vmatprep.subr.bf16.mxu0 0
        %1408 = vmatpush1.bf16.msra.mxu0 0
        %1409 = vmatprep.subr.bf16.mxu0 0
        %1410 = vmatpush1.bf16.msra.mxu0 0
        %1411 = vmatprep.subr.bf16.mxu0 0
        %1412 = vmatpush1.bf16.msra.mxu0 0
        %1413 = vmatprep.subr.bf16.mxu0 0
        %1414 = vmatpush1.bf16.msra.mxu0 0
        %1415 = vmatprep.subr.bf16.mxu0 0
        %1416 = vmatpush1.bf16.msra.mxu0 0
        %1417 = vmatprep.subr.bf16.mxu0 0
        %1418 = vmatpush1.bf16.msra.mxu0 0
        %1419 = vmatprep.subr.bf16.mxu0 0
        %1420 = vmatpush1.bf16.msra.mxu0 0
        %1421 = vmatprep.subr.bf16.mxu0 0
        %1422 = vmatpush1.bf16.msra.mxu0 0
        %1423 = vmatprep.subr.bf16.mxu0 0
        %1424 = vmatpush1.bf16.msra.mxu0 0
        %1425 = vmatprep.subr.bf16.mxu0 0
        %1426 = vmatpush1.bf16.msra.mxu0 0
        %1427 = vmatprep.subr.bf16.mxu0 0
        %1428 = vmatpush1.bf16.msra.mxu0 0
        %1429 = vmatprep.mubr.bf16.mxu0 0
        %1430 = vmatmul.mubr.bf16.gmra.mrb[0].mxu0 %v1391
        %v1431 = vpop.f32.mrb[0].mxu0
        %v1432 = vadd.f32 0.0, %v1431
        %v1433 = vpop.f32.mrb[0].mxu0
        %v1434 = vpop.f32.mrb[0].mxu0
        %v1435 = vpop.f32.mrb[0].mxu0
        %1436 = vdwg.mxu0
        %v1438 = vsel %vm1144, %v1387, 0
        %v1441 = vsel %vm1393, %v1134, 0
        %1443 = vmatprep.subr.bf16.mxu0 0
        %1444 = vmatpush1.bf16.msra.mxu0 %v1441
        %1445 = vmatprep.subr.bf16.mxu0 0
        %1446 = vmatpush1.bf16.msra.mxu0 0
        %1447 = vmatprep.subr.bf16.mxu0 0
        %1448 = vmatpush1.bf16.msra.mxu0 0
        %1449 = vmatprep.subr.bf16.mxu0 0
        %1450 = vmatpush1.bf16.msra.mxu0 0
        %1451 = vmatprep.subr.bf16.mxu0 0
        %1452 = vmatpush1.bf16.msra.mxu0 0
        %1453 = vmatprep.subr.bf16.mxu0 0
        %1454 = vmatpush1.bf16.msra.mxu0 0
        %1455 = vmatprep.subr.bf16.mxu0 0
        %1456 = vmatpush1.bf16.msra.mxu0 0
        %1457 = vmatprep.subr.bf16.mxu0 0
        %1458 = vmatpush1.bf16.msra.mxu0 0
        %1459 = vmatprep.subr.bf16.mxu0 0
        %1460 = vmatpush1.bf16.msra.mxu0 0
        %1461 = vmatprep.subr.bf16.mxu0 0
        %1462 = vmatpush1.bf16.msra.mxu0 0
        %1463 = vmatprep.subr.bf16.mxu0 0
        %1464 = vmatpush1.bf16.msra.mxu0 0
        %1465 = vmatprep.subr.bf16.mxu0 0
        %1466 = vmatpush1.bf16.msra.mxu0 0
        %1467 = vmatprep.subr.bf16.mxu0 0
        %1468 = vmatpush1.bf16.msra.mxu0 0
        %1469 = vmatprep.subr.bf16.mxu0 0
        %1470 = vmatpush1.bf16.msra.mxu0 0
        %1471 = vmatprep.subr.bf16.mxu0 0
        %1472 = vmatpush1.bf16.msra.mxu0 0
        %1473 = vmatprep.subr.bf16.mxu0 0
        %1474 = vmatpush1.bf16.msra.mxu0 0
        %1475 = vmatprep.mubr.bf16.mxu0 0
        %1476 = vmatmul.mubr.bf16.gmra.mrb[0].mxu0 %v1438
        %v1477 = vpop.f32.mrb[0].mxu0
        %v1478 = vadd.f32 0.0, %v1477
        %v1479 = vpop.f32.mrb[0].mxu0
        %v1480 = vpop.f32.mrb[0].mxu0
        %v1481 = vpop.f32.mrb[0].mxu0
        %1482 = vdwg.mxu0
        %v1484 = vsel %vm1144, %v1388, 0
        %v1487 = vsel %vm1393, %v1135, 0
        %1489 = vmatprep.subr.bf16.mxu0 0
        %1490 = vmatpush1.bf16.msra.mxu0 %v1487
        %1491 = vmatprep.subr.bf16.mxu0 0
        %1492 = vmatpush1.bf16.msra.mxu0 0
        %1493 = vmatprep.subr.bf16.mxu0 0
        %1494 = vmatpush1.bf16.msra.mxu0 0
        %1495 = vmatprep.subr.bf16.mxu0 0
        %1496 = vmatpush1.bf16.msra.mxu0 0
        %1497 = vmatprep.subr.bf16.mxu0 0
        %1498 = vmatpush1.bf16.msra.mxu0 0
        %1499 = vmatprep.subr.bf16.mxu0 0
        %1500 = vmatpush1.bf16.msra.mxu0 0
        %1501 = vmatprep.subr.bf16.mxu0 0
        %1502 = vmatpush1.bf16.msra.mxu0 0
        %1503 = vmatprep.subr.bf16.mxu0 0
        %1504 = vmatpush1.bf16.msra.mxu0 0
        %1505 = vmatprep.subr.bf16.mxu0 0
        %1506 = vmatpush1.bf16.msra.mxu0 0
        %1507 = vmatprep.subr.bf16.mxu0 0
        %1508 = vmatpush1.bf16.msra.mxu0 0
        %1509 = vmatprep.subr.bf16.mxu0 0
        %1510 = vmatpush1.bf16.msra.mxu0 0
        %1511 = vmatprep.subr.bf16.mxu0 0
        %1512 = vmatpush1.bf16.msra.mxu0 0
        %1513 = vmatprep.subr.bf16.mxu0 0
        %1514 = vmatpush1.bf16.msra.mxu0 0
        %1515 = vmatprep.subr.bf16.mxu0 0
        %1516 = vmatpush1.bf16.msra.mxu0 0
        %1517 = vmatprep.subr.bf16.mxu0 0
        %1518 = vmatpush1.bf16.msra.mxu0 0
        %1519 = vmatprep.subr.bf16.mxu0 0
        %1520 = vmatpush1.bf16.msra.mxu0 0
        %1521 = vmatprep.mubr.bf16.mxu0 0
        %1522 = vmatmul.mubr.bf16.gmra.mrb[0].mxu0 %v1484
        %v1523 = vpop.f32.mrb[0].mxu0
        %v1524 = vadd.f32 0.0, %v1523
        %v1525 = vpop.f32.mrb[0].mxu0
        %v1526 = vpop.f32.mrb[0].mxu0
        %v1527 = vpop.f32.mrb[0].mxu0
        %1528 = vdwg.mxu0
        %v1530 = vsel %vm1144, %v1389, 0
        %v1533 = vsel %vm1393, %v1136, 0
        %1535 = vmatprep.subr.bf16.mxu0 0
        %1536 = vmatpush1.bf16.msra.mxu0 %v1533
        %1537 = vmatprep.subr.bf16.mxu0 0
        %1538 = vmatpush1.bf16.msra.mxu0 0
        %1539 = vmatprep.subr.bf16.mxu0 0
        %1540 = vmatpush1.bf16.msra.mxu0 0
        %1541 = vmatprep.subr.bf16.mxu0 0
        %1542 = vmatpush1.bf16.msra.mxu0 0
        %1543 = vmatprep.subr.bf16.mxu0 0
        %1544 = vmatpush1.bf16.msra.mxu0 0
        %1545 = vmatprep.subr.bf16.mxu0 0
        %1546 = vmatpush1.bf16.msra.mxu0 0
        %1547 = vmatprep.subr.bf16.mxu0 0
        %1548 = vmatpush1.bf16.msra.mxu0 0
        %1549 = vmatprep.subr.bf16.mxu0 0
        %1550 = vmatpush1.bf16.msra.mxu0 0
        %1551 = vmatprep.subr.bf16.mxu0 0
        %1552 = vmatpush1.bf16.msra.mxu0 0
        %1553 = vmatprep.subr.bf16.mxu0 0
        %1554 = vmatpush1.bf16.msra.mxu0 0
        %1555 = vmatprep.subr.bf16.mxu0 0
        %1556 = vmatpush1.bf16.msra.mxu0 0
        %1557 = vmatprep.subr.bf16.mxu0 0
        %1558 = vmatpush1.bf16.msra.mxu0 0
        %1559 = vmatprep.subr.bf16.mxu0 0
        %1560 = vmatpush1.bf16.msra.mxu0 0
        %1561 = vmatprep.subr.bf16.mxu0 0
        %1562 = vmatpush1.bf16.msra.mxu0 0
        %1563 = vmatprep.subr.bf16.mxu0 0
        %1564 = vmatpush1.bf16.msra.mxu0 0
        %1565 = vmatprep.subr.bf16.mxu0 0
        %1566 = vmatpush1.bf16.msra.mxu0 0
        %1567 = vmatprep.mubr.bf16.mxu0 0
        %1568 = vmatmul.mubr.bf16.gmra.mrb[0].mxu0 %v1530
        %v1569 = vpop.f32.mrb[0].mxu0
        %v1570 = vadd.f32 0.0, %v1569
        %v1571 = vpop.f32.mrb[0].mxu0
        %v1572 = vpop.f32.mrb[0].mxu0
        %v1573 = vpop.f32.mrb[0].mxu0
        %1574 = vdwg.mxu0
        %v1575 = vpack.c.bf16 %v1432, %v1432
        %v1576 = vpack.c.bf16 %v1478, %v1478
        %v1577 = vpack.c.bf16 %v1524, %v1524
        %v1578 = vpack.c.bf16 %v1570, %v1570
        %v1580 = vsel %vm1144, %v1575, 0
        %v1583 = vsel %vm1393, %v1137, 0
        %1585 = vmatprep.subr.bf16.mxu0 0
        %1586 = vmatpush1.bf16.msra.mxu0 %v1583
        %1587 = vmatprep.subr.bf16.mxu0 0
        %1588 = vmatpush1.bf16.msra.mxu0 0
        %1589 = vmatprep.subr.bf16.mxu0 0
        %1590 = vmatpush1.bf16.msra.mxu0 0
        %1591 = vmatprep.subr.bf16.mxu0 0
        %1592 = vmatpush1.bf16.msra.mxu0 0
        %1593 = vmatprep.subr.bf16.mxu0 0
        %1594 = vmatpush1.bf16.msra.mxu0 0
        %1595 = vmatprep.subr.bf16.mxu0 0
        %1596 = vmatpush1.bf16.msra.mxu0 0
        %1597 = vmatprep.subr.bf16.mxu0 0
        %1598 = vmatpush1.bf16.msra.mxu0 0
        %1599 = vmatprep.subr.bf16.mxu0 0
        %1600 = vmatpush1.bf16.msra.mxu0 0
        %1601 = vmatprep.subr.bf16.mxu0 0
        %1602 = vmatpush1.bf16.msra.mxu0 0
        %1603 = vmatprep.subr.bf16.mxu0 0
        %1604 = vmatpush1.bf16.msra.mxu0 0
        %1605 = vmatprep.subr.bf16.mxu0 0
        %1606 = vmatpush1.bf16.msra.mxu0 0
        %1607 = vmatprep.subr.bf16.mxu0 0
        %1608 = vmatpush1.bf16.msra.mxu0 0
        %1609 = vmatprep.subr.bf16.mxu0 0
        %1610 = vmatpush1.bf16.msra.mxu0 0
        %1611 = vmatprep.subr.bf16.mxu0 0
        %1612 = vmatpush1.bf16.msra.mxu0 0
        %1613 = vmatprep.subr.bf16.mxu0 0
        %1614 = vmatpush1.bf16.msra.mxu0 0
        %1615 = vmatprep.subr.bf16.mxu0 0
        %1616 = vmatpush1.bf16.msra.mxu0 0
        %1617 = vmatprep.mubr.bf16.mxu0 0
        %1618 = vmatmul.mubr.bf16.gmra.mrb[0].mxu0 %v1580
        %v1619 = vpop.f32.mrb[0].mxu0
        %v1620 = vadd.f32 0.0, %v1619
        %v1621 = vpop.f32.mrb[0].mxu0
        %v1622 = vpop.f32.mrb[0].mxu0
        %v1623 = vpop.f32.mrb[0].mxu0
        %1624 = vdwg.mxu0
        %v1626 = vsel %vm1144, %v1576, 0
        %v1629 = vsel %vm1393, %v1138, 0
        %1631 = vmatprep.subr.bf16.mxu0 0
        %1632 = vmatpush1.bf16.msra.mxu0 %v1629
        %1633 = vmatprep.subr.bf16.mxu0 0
        %1634 = vmatpush1.bf16.msra.mxu0 0
        %1635 = vmatprep.subr.bf16.mxu0 0
        %1636 = vmatpush1.bf16.msra.mxu0 0
        %1637 = vmatprep.subr.bf16.mxu0 0
        %1638 = vmatpush1.bf16.msra.mxu0 0
        %1639 = vmatprep.subr.bf16.mxu0 0
        %1640 = vmatpush1.bf16.msra.mxu0 0
        %1641 = vmatprep.subr.bf16.mxu0 0
        %1642 = vmatpush1.bf16.msra.mxu0 0
        %1643 = vmatprep.subr.bf16.mxu0 0
        %1644 = vmatpush1.bf16.msra.mxu0 0
        %1645 = vmatprep.subr.bf16.mxu0 0
        %1646 = vmatpush1.bf16.msra.mxu0 0
        %1647 = vmatprep.subr.bf16.mxu0 0
        %1648 = vmatpush1.bf16.msra.mxu0 0
        %1649 = vmatprep.subr.bf16.mxu0 0
        %1650 = vmatpush1.bf16.msra.mxu0 0
        %1651 = vmatprep.subr.bf16.mxu0 0
        %1652 = vmatpush1.bf16.msra.mxu0 0
        %1653 = vmatprep.subr.bf16.mxu0 0
        %1654 = vmatpush1.bf16.msra.mxu0 0
        %1655 = vmatprep.subr.bf16.mxu0 0
        %1656 = vmatpush1.bf16.msra.mxu0 0
        %1657 = vmatprep.subr.bf16.mxu0 0
        %1658 = vmatpush1.bf16.msra.mxu0 0
        %1659 = vmatprep.subr.bf16.mxu0 0
        %1660 = vmatpush1.bf16.msra.mxu0 0
        %1661 = vmatprep.subr.bf16.mxu0 0
        %1662 = vmatpush1.bf16.msra.mxu0 0
        %1663 = vmatprep.mubr.bf16.mxu0 0
        %1664 = vmatmul.mubr.bf16.gmra.mrb[0].mxu0 %v1626
        %v1665 = vpop.f32.mrb[0].mxu0
        %v1666 = vadd.f32 0.0, %v1665
        %v1667 = vpop.f32.mrb[0].mxu0
        %v1668 = vpop.f32.mrb[0].mxu0
        %v1669 = vpop.f32.mrb[0].mxu0
        %1670 = vdwg.mxu0
        %v1672 = vsel %vm1144, %v1577, 0
        %v1675 = vsel %vm1393, %v1139, 0
        %1677 = vmatprep.subr.bf16.mxu0 0
        %1678 = vmatpush1.bf16.msra.mxu0 %v1675
        %1679 = vmatprep.subr.bf16.mxu0 0
        %1680 = vmatpush1.bf16.msra.mxu0 0
        %1681 = vmatprep.subr.bf16.mxu0 0
        %1682 = vmatpush1.bf16.msra.mxu0 0
        %1683 = vmatprep.subr.bf16.mxu0 0
        %1684 = vmatpush1.bf16.msra.mxu0 0
        %1685 = vmatprep.subr.bf16.mxu0 0
        %1686 = vmatpush1.bf16.msra.mxu0 0
        %1687 = vmatprep.subr.bf16.mxu0 0
        %1688 = vmatpush1.bf16.msra.mxu0 0
        %1689 = vmatprep.subr.bf16.mxu0 0
        %1690 = vmatpush1.bf16.msra.mxu0 0
        %1691 = vmatprep.subr.bf16.mxu0 0
        %1692 = vmatpush1.bf16.msra.mxu0 0
        %1693 = vmatprep.subr.bf16.mxu0 0
        %1694 = vmatpush1.bf16.msra.mxu0 0
        %1695 = vmatprep.subr.bf16.mxu0 0
        %1696 = vmatpush1.bf16.msra.mxu0 0
        %1697 = vmatprep.subr.bf16.mxu0 0
        %1698 = vmatpush1.bf16.msra.mxu0 0
        %1699 = vmatprep.subr.bf16.mxu0 0
        %1700 = vmatpush1.bf16.msra.mxu0 0
        %1701 = vmatprep.subr.bf16.mxu0 0
        %1702 = vmatpush1.bf16.msra.mxu0 0
        %1703 = vmatprep.subr.bf16.mxu0 0
        %1704 = vmatpush1.bf16.msra.mxu0 0
        %1705 = vmatprep.subr.bf16.mxu0 0
        %1706 = vmatpush1.bf16.msra.mxu0 0
        %1707 = vmatprep.subr.bf16.mxu0 0
        %1708 = vmatpush1.bf16.msra.mxu0 0
        %1709 = vmatprep.mubr.bf16.mxu0 0
        %1710 = vmatmul.mubr.bf16.gmra.mrb[0].mxu0 %v1672
        %v1711 = vpop.f32.mrb[0].mxu0
        %v1712 = vadd.f32 0.0, %v1711
        %v1713 = vpop.f32.mrb[0].mxu0
        %v1714 = vpop.f32.mrb[0].mxu0
        %v1715 = vpop.f32.mrb[0].mxu0
        %1716 = vdwg.mxu0
        %v1718 = vsel %vm1144, %v1578, 0
        %v1721 = vsel %vm1393, %v1140, 0
        %1723 = vmatprep.subr.bf16.mxu0 0
        %1724 = vmatpush1.bf16.msra.mxu0 %v1721
        %1725 = vmatprep.subr.bf16.mxu0 0
        %1726 = vmatpush1.bf16.msra.mxu0 0
        %1727 = vmatprep.subr.bf16.mxu0 0
        %1728 = vmatpush1.bf16.msra.mxu0 0
        %1729 = vmatprep.subr.bf16.mxu0 0
        %1730 = vmatpush1.bf16.msra.mxu0 0
        %1731 = vmatprep.subr.bf16.mxu0 0
        %1732 = vmatpush1.bf16.msra.mxu0 0
        %1733 = vmatprep.subr.bf16.mxu0 0
        %1734 = vmatpush1.bf16.msra.mxu0 0
        %1735 = vmatprep.subr.bf16.mxu0 0
        %1736 = vmatpush1.bf16.msra.mxu0 0
        %1737 = vmatprep.subr.bf16.mxu0 0
        %1738 = vmatpush1.bf16.msra.mxu0 0
        %1739 = vmatprep.subr.bf16.mxu0 0
        %1740 = vmatpush1.bf16.msra.mxu0 0
        %1741 = vmatprep.subr.bf16.mxu0 0
        %1742 = vmatpush1.bf16.msra.mxu0 0
        %1743 = vmatprep.subr.bf16.mxu0 0
        %1744 = vmatpush1.bf16.msra.mxu0 0
        %1745 = vmatprep.subr.bf16.mxu0 0
        %1746 = vmatpush1.bf16.msra.mxu0 0
        %1747 = vmatprep.subr.bf16.mxu0 0
        %1748 = vmatpush1.bf16.msra.mxu0 0
        %1749 = vmatprep.subr.bf16.mxu0 0
        %1750 = vmatpush1.bf16.msra.mxu0 0
        %1751 = vmatprep.subr.bf16.mxu0 0
        %1752 = vmatpush1.bf16.msra.mxu0 0
        %1753 = vmatprep.subr.bf16.mxu0 0
        %1754 = vmatpush1.bf16.msra.mxu0 0
        %1755 = vmatprep.mubr.bf16.mxu0 0
        %1756 = vmatmul.mubr.bf16.gmra.mrb[0].mxu0 %v1718
        %v1757 = vpop.f32.mrb[0].mxu0
        %v1758 = vadd.f32 0.0, %v1757
        %v1759 = vpop.f32.mrb[0].mxu0
        %v1760 = vpop.f32.mrb[0].mxu0
        %v1761 = vpop.f32.mrb[0].mxu0
        %1762 = vdwg.mxu0
        %v1763 = vsel %vm933, %v1620, 0.0
        %v1764 = vsel %vm933, %v1666, 0.0
        %v1765 = vadd.f32 %v1763, %v1764
        %v1766 = vsel %vm933, %v1712, 0.0
        %v1767 = vadd.f32 %v1765, %v1766
        %v1768 = vsel %vm933, %v1758, 0.0
        %v1769 = vadd.f32 %v1767, %v1768
        %v1770 = vlaneseq
        %v1771 = vshrl.u32 %v1770, 7
        %v1772 = vsub.s32 1, %v1771
        %v1773 = vrot.slane %v828, %v1772
        %v1774 = vadd.f32 %v1769, %v1773
        %v1775 = vadd.f32 %v823, %v1774
        %v1776 = vsel %vm933, %v1775, 0.0
        %1777 = vadd.xlane.f32.xlu0 %v1776
        %v1778 = vpop.xlane.xlu0 %1777
        %v1779 = vrcp.pop 32.0
        %v1780 = vmul.f32 %v1778, %v1779
        %v1781 = vsub.f32 %v1775, %v1780
        %v1782 = vmul.f32 %v1781, %v1781
        %v1783 = vsel %vm933, %v1782, 0.0
        %1784 = vadd.xlane.f32.xlu0 %v1783
        %v1785 = vpop.xlane.xlu0 %1784
        %v1786 = vmul.f32 %v1785, %v1779
        %v1787 = vadd.f32 %v1786, 1e-05
        %v1788 = vrsqrt.pop %v1787
        %v1789 = vmul.f32 %v1781, %v1788
        %v1790 = vlaneseq
        %v1791 = vshrl.u32 %v1790, 7
        %v1792 = vsub.s32 0, %v1791
        %v1793 = vrot.slane %v826, %v1792
        %v1794 = vmul.f32 %v1789, %v1793
        %v1795 = vlaneseq
        %v1796 = vshrl.u32 %v1795, 7
        %v1797 = vsub.s32 0, %v1796
        %v1798 = vrot.slane %v827, %v1797
        %v1799 = vadd.f32 %v1794, %v1798
        %1800 = vst.msk [vmem:[#allocation2] sm:$0xff] %vm933, %v1799
        %v1801 = vadd.f32 %v1799, %v972
        %v1802 = vld [vmem:[%s12] sm:$0xf]
        %v1803 = vld [vmem:[%s12 + $0x4] sm:$0xf]
        %v1804 = vld [vmem:[%s12 + $0x8] sm:$0xf]
        %v1805 = vld [vmem:[%s12 + $0xc] sm:$0xf]
        %v1806 = vpack.c.bf16 %v1801, %v1801
        %v1807 = vlaneseq
        %v1808 = vshrl.u32 %v1807, 7
        %v1809 = vsub.s32 0, %v1808
        %v1810 = vrot.slane %v829, %v1809
        %v1815 = vunpack.c.l.b16 %v1802
        %v1816 = vunpack.c.l.b16 %v1803
        %v1817 = vunpack.c.l.b16 %v1804
        %v1818 = vunpack.c.l.b16 %v1805
        %v1819 = vpack.c.b16 %v1816, %v1815
        %v1820 = vpack.c.b16 %v1818, %v1817
        %v1824 = vsel %vm933, %v1806, 0
        %1826 = vmatprep.subr.bf16.mxu0 0
        %1827 = vmatpush1.bf16.msra.mxu0 %v1819
        %1828 = vmatprep.subr.bf16.mxu0 0
        %1829 = vmatpush1.bf16.msra.mxu0 %v1820
        %1830 = vmatprep.subr.bf16.mxu0 0
        %1831 = vmatpush1.bf16.msra.mxu0 0
        %1832 = vmatprep.subr.bf16.mxu0 0
        %1833 = vmatpush1.bf16.msra.mxu0 0
        %1834 = vmatprep.subr.bf16.mxu0 0
        %1835 = vmatpush1.bf16.msra.mxu0 0
        %1836 = vmatprep.subr.bf16.mxu0 0
        %1837 = vmatpush1.bf16.msra.mxu0 0
        %1838 = vmatprep.subr.bf16.mxu0 0
        %1839 = vmatpush1.bf16.msra.mxu0 0
        %1840 = vmatprep.subr.bf16.mxu0 0
        %1841 = vmatpush1.bf16.msra.mxu0 0
        %1842 = vmatprep.subr.bf16.mxu0 0
        %1843 = vmatpush1.bf16.msra.mxu0 0
        %1844 = vmatprep.subr.bf16.mxu0 0
        %1845 = vmatpush1.bf16.msra.mxu0 0
        %1846 = vmatprep.subr.bf16.mxu0 0
        %1847 = vmatpush1.bf16.msra.mxu0 0
        %1848 = vmatprep.subr.bf16.mxu0 0
        %1849 = vmatpush1.bf16.msra.mxu0 0
        %1850 = vmatprep.subr.bf16.mxu0 0
        %1851 = vmatpush1.bf16.msra.mxu0 0
        %1852 = vmatprep.subr.bf16.mxu0 0
        %1853 = vmatpush1.bf16.msra.mxu0 0
        %1854 = vmatprep.subr.bf16.mxu0 0
        %1855 = vmatpush1.bf16.msra.mxu0 0
        %1856 = vmatprep.subr.bf16.mxu0 0
        %1857 = vmatpush1.bf16.msra.mxu0 0
        %1858 = vmatprep.mubr.bf16.mxu0 0
        %1859 = vmatmul.mubr.bf16.gmra.mrb[0].mxu0 %v1824
        %v1860 = vpop.f32.mrb[0].mxu0
        %v1861 = vadd.f32 %v1810, %v1860
        %v1862 = vpop.f32.mrb[0].mxu0
        %v1863 = vpop.f32.mrb[0].mxu0
        %v1864 = vpop.f32.mrb[0].mxu0
        %1865 = vdwg.mxu0
        %1867 = vrot.lane.b32.xlu0 %v1861, 120
        %v1868 = vpop.permute.xlu0 %1867
        %1870 = vrot.lane.b32.xlu0 %v1861, 112
        %v1871 = vpop.permute.xlu0 %1870
        %1873 = vrot.lane.b32.xlu0 %v1861, 104
        %v1874 = vpop.permute.xlu0 %1873
        %v1876 = vpack.c.bf16 %v1861, %v1861
        %v1877 = vpack.c.bf16 %v1868, %v1868
        %v1878 = vpack.c.bf16 %v1871, %v1871
        %v1879 = vpack.c.bf16 %v1874, %v1874
        %vm1880 = vcmask 60416
        %1881 = vst.msk [vmem:[#allocation3] sm:$0xf] %vm1880, %v1876
        %1882 = vst.msk [vmem:[#allocation3 + $0x4] sm:$0xf] %vm1880, %v1877
        %1883 = vst.msk [vmem:[#allocation3 + $0x8] sm:$0xf] %vm1880, %v1878
        %1884 = vst.msk [vmem:[#allocation3 + $0xc] sm:$0xf] %vm1880, %v1879
        %vm1885 = vcmask 7168
        %1886 = vst.msk [vmem:[#allocation4] sm:$0xff] %vm1885, -1e+30
        %1887 = vst.msk [vmem:[#allocation4 + $0x8] sm:$0xff] %vm1885, -1e+30
        %1888 = vst.msk [vmem:[#allocation4 + $0x10] sm:$0xff] %vm1885, -1e+30
        %1889 = vst.msk [vmem:[#allocation4 + $0x18] sm:$0xff] %vm1885, -1e+30
        %1890 = vst.msk [vmem:[#allocation5] sm:$0xff] %vm1885, 0.0
        %1891 = vst.msk [vmem:[#allocation5 + $0x8] sm:$0xff] %vm1885, 0.0
        %1892 = vst.msk [vmem:[#allocation5 + $0x10] sm:$0xff] %vm1885, 0.0
        %1893 = vst.msk [vmem:[#allocation5 + $0x18] sm:$0xff] %vm1885, 0.0
        %1894 = vst.msk [vmem:[#allocation6] sm:$0xff] %vm1144, 0.0
        %1895 = vst.msk [vmem:[#allocation6 + $0x8] sm:$0xff] %vm1144, 0.0
        %1896 = vst.msk [vmem:[#allocation6 + $0x10] sm:$0xff] %vm1144, 0.0
        %1897 = vst.msk [vmem:[#allocation6 + $0x18] sm:$0xff] %vm1144, 0.0
      $region112: #{transformer_decoder_forward.2} parent=107 // pred_fallthru
        _
      %v1898 = vld [vmem:[%s15] sm:$0xf]
      %v1899 = vld [vmem:[%s798] sm:$0xf]
      %v1900 = vld [vmem:[%s798 + $0x4] sm:$0xf]
      %v1901 = vld [vmem:[%s808] sm:$0xf]
      %v1902 = vld [vmem:[%s808 + $0x4] sm:$0xf]
      %v1903 = vld [vmem:[%s13] sm:$0xf]
      %v1904 = vld [vmem:[%s13 + $0x4] sm:$0xf]
      %v1905 = vld [vmem:[%s13 + $0x8] sm:$0xf]
      %v1906 = vld [vmem:[%s13 + $0xc] sm:$0xf]
      %v1907 = vlaneseq
      %v1908 = vshrl.u32 %v1907, 7
      %v1909 = vsub.s32 1, %v1908
      %v1910 = vrot.slane %v1898, %v1909
      %v1913 = vunpack.c.l.b16 %v1899
      %v1914 = vunpack.c.l.b16 %v1900
      %v1915 = vpack.c.b16 %v1914, %v1913
      %v1920 = vunpack.c.l.b16 %v1903
      %v1921 = vunpack.c.l.b16 %v1904
      %v1922 = vunpack.c.l.b16 %v1905
      %v1923 = vunpack.c.l.b16 %v1906
      %v1924 = vpack.c.b16 %v1921, %v1920
      %v1925 = vpack.c.b16 %v1923, %v1922
      %vm1928 = vcmask 261120
      %v1930 = vsel %vm1928, %v1915, 0
      %1932 = vmatprep.subr.bf16.mxu0 0
      %1933 = vmatpush1.bf16.msra.mxu0 %v1924
      %1934 = vmatprep.subr.bf16.mxu0 0
      %1935 = vmatpush1.bf16.msra.mxu0 %v1925
      %1936 = vmatprep.subr.bf16.mxu0 0
      %1937 = vmatpush1.bf16.msra.mxu0 0
      %1938 = vmatprep.subr.bf16.mxu0 0
      %1939 = vmatpush1.bf16.msra.mxu0 0
      %1940 = vmatprep.subr.bf16.mxu0 0
      %1941 = vmatpush1.bf16.msra.mxu0 0
      %1942 = vmatprep.subr.bf16.mxu0 0
      %1943 = vmatpush1.bf16.msra.mxu0 0
      %1944 = vmatprep.subr.bf16.mxu0 0
      %1945 = vmatpush1.bf16.msra.mxu0 0
      %1946 = vmatprep.subr.bf16.mxu0 0
      %1947 = vmatpush1.bf16.msra.mxu0 0
      %1948 = vmatprep.subr.bf16.mxu0 0
      %1949 = vmatpush1.bf16.msra.mxu0 0
      %1950 = vmatprep.subr.bf16.mxu0 0
      %1951 = vmatpush1.bf16.msra.mxu0 0
      %1952 = vmatprep.subr.bf16.mxu0 0
      %1953 = vmatpush1.bf16.msra.mxu0 0
      %1954 = vmatprep.subr.bf16.mxu0 0
      %1955 = vmatpush1.bf16.msra.mxu0 0
      %1956 = vmatprep.subr.bf16.mxu0 0
      %1957 = vmatpush1.bf16.msra.mxu0 0
      %1958 = vmatprep.subr.bf16.mxu0 0
      %1959 = vmatpush1.bf16.msra.mxu0 0
      %1960 = vmatprep.subr.bf16.mxu0 0
      %1961 = vmatpush1.bf16.msra.mxu0 0
      %1962 = vmatprep.subr.bf16.mxu0 0
      %1963 = vmatpush1.bf16.msra.mxu0 0
      %1964 = vmatprep.mubr.bf16.mxu0 0
      %1965 = vmatmul.mubr.bf16.gmra.mrb[0].mxu0 %v1930
      %v1966 = vpop.f32.mrb[0].mxu0
      %v1967 = vadd.f32 %v1910, %v1966
      %v1968 = vpop.f32.mrb[0].mxu0
      %v1969 = vpop.f32.mrb[0].mxu0
      %v1970 = vadd.f32 %v1910, %v1969
      %v1971 = vpop.f32.mrb[0].mxu0
      %1972 = vdwg.mxu0
      %s1973 = scalar_lea.vmem %s13, 16
      %v1974 = vld [vmem:[%s1973] sm:$0xf]
      %v1975 = vld [vmem:[%s1973 + $0x4] sm:$0xf]
      %v1976 = vld [vmem:[%s1973 + $0x8] sm:$0xf]
      %v1977 = vld [vmem:[%s1973 + $0xc] sm:$0xf]
      %v1978 = vlaneseq
      %v1979 = vshrl.u32 %v1978, 7
      %v1980 = vsub.s32 2, %v1979
      %v1981 = vrot.slane %v1898, %v1980
      %v1984 = vunpack.c.l.b16 %v1901
      %v1985 = vunpack.c.l.b16 %v1902
      %v1986 = vpack.c.b16 %v1985, %v1984
      %v1991 = vunpack.c.l.b16 %v1974
      %v1992 = vunpack.c.l.b16 %v1975
      %v1993 = vunpack.c.l.b16 %v1976
      %v1994 = vunpack.c.l.b16 %v1977
      %v1995 = vpack.c.b16 %v1992, %v1991
      %v1996 = vpack.c.b16 %v1994, %v1993
      %v2000 = vsel %vm1928, %v1986, 0
      %2002 = vmatprep.subr.bf16.mxu0 0
      %2003 = vmatpush1.bf16.msra.mxu0 %v1995
      %2004 = vmatprep.subr.bf16.mxu0 0
      %2005 = vmatpush1.bf16.msra.mxu0 %v1996
      %2006 = vmatprep.subr.bf16.mxu0 0
      %2007 = vmatpush1.bf16.msra.mxu0 0
      %2008 = vmatprep.subr.bf16.mxu0 0
      %2009 = vmatpush1.bf16.msra.mxu0 0
      %2010 = vmatprep.subr.bf16.mxu0 0
      %2011 = vmatpush1.bf16.msra.mxu0 0
      %2012 = vmatprep.subr.bf16.mxu0 0
      %2013 = vmatpush1.bf16.msra.mxu0 0
      %2014 = vmatprep.subr.bf16.mxu0 0
      %2015 = vmatpush1.bf16.msra.mxu0 0
      %2016 = vmatprep.subr.bf16.mxu0 0
      %2017 = vmatpush1.bf16.msra.mxu0 0
      %2018 = vmatprep.subr.bf16.mxu0 0
      %2019 = vmatpush1.bf16.msra.mxu0 0
      %2020 = vmatprep.subr.bf16.mxu0 0
      %2021 = vmatpush1.bf16.msra.mxu0 0
      %2022 = vmatprep.subr.bf16.mxu0 0
      %2023 = vmatpush1.bf16.msra.mxu0 0
      %2024 = vmatprep.subr.bf16.mxu0 0
      %2025 = vmatpush1.bf16.msra.mxu0 0
      %2026 = vmatprep.subr.bf16.mxu0 0
      %2027 = vmatpush1.bf16.msra.mxu0 0
      %2028 = vmatprep.subr.bf16.mxu0 0
      %2029 = vmatpush1.bf16.msra.mxu0 0
      %2030 = vmatprep.subr.bf16.mxu0 0
      %2031 = vmatpush1.bf16.msra.mxu0 0
      %2032 = vmatprep.subr.bf16.mxu0 0
      %2033 = vmatpush1.bf16.msra.mxu0 0
      %2034 = vmatprep.mubr.bf16.mxu0 0
      %2035 = vmatmul.mubr.bf16.gmra.mrb[0].mxu0 %v2000
      %v2036 = vpop.f32.mrb[0].mxu0
      %v2037 = vadd.f32 %v1981, %v2036
      %v2038 = vpop.f32.mrb[0].mxu0
      %v2039 = vpop.f32.mrb[0].mxu0
      %v2040 = vadd.f32 %v1981, %v2039
      %v2041 = vpop.f32.mrb[0].mxu0
      %2042 = vdwg.mxu0
      %2045 = vrot.lane.b32.xlu0 %v1967, 120
      %v2046 = vpop.permute.xlu0 %2045
      %2047 = vrot.lane.b32.xlu0 %v1970, 120
      %v2048 = vpop.permute.xlu0 %2047
      %2051 = vrot.lane.b32.xlu0 %v1967, 112
      %v2052 = vpop.permute.xlu0 %2051
      %2053 = vrot.lane.b32.xlu0 %v1970, 112
      %v2054 = vpop.permute.xlu0 %2053
      %2057 = vrot.lane.b32.xlu0 %v1967, 104
      %v2058 = vpop.permute.xlu0 %2057
      %2059 = vrot.lane.b32.xlu0 %v1970, 104
      %v2060 = vpop.permute.xlu0 %2059
      %v2063 = vpack.c.bf16 %v1970, %v1967
      %v2064 = vpack.c.bf16 %v2048, %v2046
      %v2065 = vpack.c.bf16 %v2054, %v2052
      %v2066 = vpack.c.bf16 %v2060, %v2058
      %2069 = vrot.lane.b32.xlu0 %v2037, 120
      %v2070 = vpop.permute.xlu0 %2069
      %2071 = vrot.lane.b32.xlu0 %v2040, 120
      %v2072 = vpop.permute.xlu0 %2071
      %2075 = vrot.lane.b32.xlu0 %v2037, 112
      %v2076 = vpop.permute.xlu0 %2075
      %2077 = vrot.lane.b32.xlu0 %v2040, 112
      %v2078 = vpop.permute.xlu0 %2077
      %2081 = vrot.lane.b32.xlu0 %v2037, 104
      %v2082 = vpop.permute.xlu0 %2081
      %2083 = vrot.lane.b32.xlu0 %v2040, 104
      %v2084 = vpop.permute.xlu0 %2083
      %v2087 = vpack.c.bf16 %v2040, %v2037
      %v2088 = vpack.c.bf16 %v2072, %v2070
      %v2089 = vpack.c.bf16 %v2078, %v2076
      %v2090 = vpack.c.bf16 %v2084, %v2082
      %v2091 = vld [vmem:[#allocation3] sm:$0xf]
      %v2092 = vld [vmem:[#allocation3 + $0x4] sm:$0xf]
      %v2093 = vld [vmem:[#allocation3 + $0x8] sm:$0xf]
      %v2094 = vld [vmem:[#allocation3 + $0xc] sm:$0xf]
      %vm2095 = vcmask 64512
      %v2097 = vsel %vm2095, %v2091, 0
      %v2100 = vsel %vm2095, %v2063, 0
      %2102 = vmatprep.subr.bf16.mxu0 0
      %2103 = vmatpush1.bf16.xpose.msra.mxu0 %v2100
      %2104 = vmatprep.subr.bf16.mxu0 0
      %2105 = vmatpush1.bf16.xpose.msra.mxu0 0
      %2106 = vmatprep.subr.bf16.mxu0 0
      %2107 = vmatpush1.bf16.xpose.msra.mxu0 0
      %2108 = vmatprep.subr.bf16.mxu0 0
      %2109 = vmatpush1.bf16.xpose.msra.mxu0 0
      %2110 = vmatprep.subr.bf16.mxu0 0
      %2111 = vmatpush1.bf16.xpose.msra.mxu0 0
      %2112 = vmatprep.subr.bf16.mxu0 0
      %2113 = vmatpush1.bf16.xpose.msra.mxu0 0
      %2114 = vmatprep.subr.bf16.mxu0 0
      %2115 = vmatpush1.bf16.xpose.msra.mxu0 0
      %2116 = vmatprep.subr.bf16.mxu0 0
      %2117 = vmatpush1.bf16.xpose.msra.mxu0 0
      %2118 = vmatprep.subr.bf16.mxu0 0
      %2119 = vmatpush1.bf16.xpose.msra.mxu0 0
      %2120 = vmatprep.subr.bf16.mxu0 0
      %2121 = vmatpush1.bf16.xpose.msra.mxu0 0
      %2122 = vmatprep.subr.bf16.mxu0 0
      %2123 = vmatpush1.bf16.xpose.msra.mxu0 0
      %2124 = vmatprep.subr.bf16.mxu0 0
      %2125 = vmatpush1.bf16.xpose.msra.mxu0 0
      %2126 = vmatprep.subr.bf16.mxu0 0
      %2127 = vmatpush1.bf16.xpose.msra.mxu0 0
      %2128 = vmatprep.subr.bf16.mxu0 0
      %2129 = vmatpush1.bf16.xpose.msra.mxu0 0
      %2130 = vmatprep.subr.bf16.mxu0 0
      %2131 = vmatpush1.bf16.xpose.msra.mxu0 0
      %2132 = vmatprep.subr.bf16.mxu0 0
      %2133 = vmatpush1.bf16.xpose.msra.mxu0 0
      %2134 = vmatprep.mubr.bf16.mxu0 0
      %2135 = vmatmul.mubr.bf16.gmra.mrb[0].mxu0 %v2097
      %v2136 = vpop.f32.mrb[0].mxu0
      %v2137 = vadd.f32 0.0, %v2136
      %v2138 = vpop.f32.mrb[0].mxu0
      %v2139 = vpop.f32.mrb[0].mxu0
      %v2140 = vpop.f32.mrb[0].mxu0
      %2141 = vdwg.mxu0
      %v2143 = vsel %vm2095, %v2092, 0
      %v2146 = vsel %vm2095, %v2064, 0
      %2148 = vmatprep.subr.bf16.mxu0 0
      %2149 = vmatpush1.bf16.xpose.msra.mxu0 %v2146
      %2150 = vmatprep.subr.bf16.mxu0 0
      %2151 = vmatpush1.bf16.xpose.msra.mxu0 0
      %2152 = vmatprep.subr.bf16.mxu0 0
      %2153 = vmatpush1.bf16.xpose.msra.mxu0 0
      %2154 = vmatprep.subr.bf16.mxu0 0
      %2155 = vmatpush1.bf16.xpose.msra.mxu0 0
      %2156 = vmatprep.subr.bf16.mxu0 0
      %2157 = vmatpush1.bf16.xpose.msra.mxu0 0
      %2158 = vmatprep.subr.bf16.mxu0 0
      %2159 = vmatpush1.bf16.xpose.msra.mxu0 0
      %2160 = vmatprep.subr.bf16.mxu0 0
      %2161 = vmatpush1.bf16.xpose.msra.mxu0 0
      %2162 = vmatprep.subr.bf16.mxu0 0
      %2163 = vmatpush1.bf16.xpose.msra.mxu0 0
      %2164 = vmatprep.subr.bf16.mxu0 0
      %2165 = vmatpush1.bf16.xpose.msra.mxu0 0
      %2166 = vmatprep.subr.bf16.mxu0 0
      %2167 = vmatpush1.bf16.xpose.msra.mxu0 0
      %2168 = vmatprep.subr.bf16.mxu0 0
      %2169 = vmatpush1.bf16.xpose.msra.mxu0 0
      %2170 = vmatprep.subr.bf16.mxu0 0
      %2171 = vmatpush1.bf16.xpose.msra.mxu0 0
      %2172 = vmatprep.subr.bf16.mxu0 0
      %2173 = vmatpush1.bf16.xpose.msra.mxu0 0
      %2174 = vmatprep.subr.bf16.mxu0 0
      %2175 = vmatpush1.bf16.xpose.msra.mxu0 0
      %2176 = vmatprep.subr.bf16.mxu0 0
      %2177 = vmatpush1.bf16.xpose.msra.mxu0 0
      %2178 = vmatprep.subr.bf16.mxu0 0
      %2179 = vmatpush1.bf16.xpose.msra.mxu0 0
      %2180 = vmatprep.mubr.bf16.mxu0 0
      %2181 = vmatmul.mubr.bf16.gmra.mrb[0].mxu0 %v2143
      %v2182 = vpop.f32.mrb[0].mxu0
      %v2183 = vadd.f32 0.0, %v2182
      %v2184 = vpop.f32.mrb[0].mxu0
      %v2185 = vpop.f32.mrb[0].mxu0
      %v2186 = vpop.f32.mrb[0].mxu0
      %2187 = vdwg.mxu0
      %v2189 = vsel %vm2095, %v2093, 0
      %v2192 = vsel %vm2095, %v2065, 0
      %2194 = vmatprep.subr.bf16.mxu0 0
      %2195 = vmatpush1.bf16.xpose.msra.mxu0 %v2192
      %2196 = vmatprep.subr.bf16.mxu0 0
      %2197 = vmatpush1.bf16.xpose.msra.mxu0 0
      %2198 = vmatprep.subr.bf16.mxu0 0
      %2199 = vmatpush1.bf16.xpose.msra.mxu0 0
      %2200 = vmatprep.subr.bf16.mxu0 0
      %2201 = vmatpush1.bf16.xpose.msra.mxu0 0
      %2202 = vmatprep.subr.bf16.mxu0 0
      %2203 = vmatpush1.bf16.xpose.msra.mxu0 0
      %2204 = vmatprep.subr.bf16.mxu0 0
      %2205 = vmatpush1.bf16.xpose.msra.mxu0 0
      %2206 = vmatprep.subr.bf16.mxu0 0
      %2207 = vmatpush1.bf16.xpose.msra.mxu0 0
      %2208 = vmatprep.subr.bf16.mxu0 0
      %2209 = vmatpush1.bf16.xpose.msra.mxu0 0
      %2210 = vmatprep.subr.bf16.mxu0 0
      %2211 = vmatpush1.bf16.xpose.msra.mxu0 0
      %2212 = vmatprep.subr.bf16.mxu0 0
      %2213 = vmatpush1.bf16.xpose.msra.mxu0 0
      %2214 = vmatprep.subr.bf16.mxu0 0
      %2215 = vmatpush1.bf16.xpose.msra.mxu0 0
      %2216 = vmatprep.subr.bf16.mxu0 0
      %2217 = vmatpush1.bf16.xpose.msra.mxu0 0
      %2218 = vmatprep.subr.bf16.mxu0 0
      %2219 = vmatpush1.bf16.xpose.msra.mxu0 0
      %2220 = vmatprep.subr.bf16.mxu0 0
      %2221 = vmatpush1.bf16.xpose.msra.mxu0 0
      %2222 = vmatprep.subr.bf16.mxu0 0
      %2223 = vmatpush1.bf16.xpose.msra.mxu0 0
      %2224 = vmatprep.subr.bf16.mxu0 0
      %2225 = vmatpush1.bf16.xpose.msra.mxu0 0
      %2226 = vmatprep.mubr.bf16.mxu0 0
      %2227 = vmatmul.mubr.bf16.gmra.mrb[0].mxu0 %v2189
      %v2228 = vpop.f32.mrb[0].mxu0
      %v2229 = vadd.f32 0.0, %v2228
      %v2230 = vpop.f32.mrb[0].mxu0
      %v2231 = vpop.f32.mrb[0].mxu0
      %v2232 = vpop.f32.mrb[0].mxu0
      %2233 = vdwg.mxu0
      %v2235 = vsel %vm2095, %v2094, 0
      %v2238 = vsel %vm2095, %v2066, 0
      %2240 = vmatprep.subr.bf16.mxu0 0
      %2241 = vmatpush1.bf16.xpose.msra.mxu0 %v2238
      %2242 = vmatprep.subr.bf16.mxu0 0
      %2243 = vmatpush1.bf16.xpose.msra.mxu0 0
      %2244 = vmatprep.subr.bf16.mxu0 0
      %2245 = vmatpush1.bf16.xpose.msra.mxu0 0
      %2246 = vmatprep.subr.bf16.mxu0 0
      %2247 = vmatpush1.bf16.xpose.msra.mxu0 0
      %2248 = vmatprep.subr.bf16.mxu0 0
      %2249 = vmatpush1.bf16.xpose.msra.mxu0 0
      %2250 = vmatprep.subr.bf16.mxu0 0
      %2251 = vmatpush1.bf16.xpose.msra.mxu0 0
      %2252 = vmatprep.subr.bf16.mxu0 0
      %2253 = vmatpush1.bf16.xpose.msra.mxu0 0
      %2254 = vmatprep.subr.bf16.mxu0 0
      %2255 = vmatpush1.bf16.xpose.msra.mxu0 0
      %2256 = vmatprep.subr.bf16.mxu0 0
      %2257 = vmatpush1.bf16.xpose.msra.mxu0 0
      %2258 = vmatprep.subr.bf16.mxu0 0
      %2259 = vmatpush1.bf16.xpose.msra.mxu0 0
      %2260 = vmatprep.subr.bf16.mxu0 0
      %2261 = vmatpush1.bf16.xpose.msra.mxu0 0
      %2262 = vmatprep.subr.bf16.mxu0 0
      %2263 = vmatpush1.bf16.xpose.msra.mxu0 0
      %2264 = vmatprep.subr.bf16.mxu0 0
      %2265 = vmatpush1.bf16.xpose.msra.mxu0 0
      %2266 = vmatprep.subr.bf16.mxu0 0
      %2267 = vmatpush1.bf16.xpose.msra.mxu0 0
      %2268 = vmatprep.subr.bf16.mxu0 0
      %2269 = vmatpush1.bf16.xpose.msra.mxu0 0
      %2270 = vmatprep.subr.bf16.mxu0 0
      %2271 = vmatpush1.bf16.xpose.msra.mxu0 0
      %2272 = vmatprep.mubr.bf16.mxu0 0
      %2273 = vmatmul.mubr.bf16.gmra.mrb[0].mxu0 %v2235
      %v2274 = vpop.f32.mrb[0].mxu0
      %v2275 = vadd.f32 0.0, %v2274
      %v2276 = vpop.f32.mrb[0].mxu0
      %v2277 = vpop.f32.mrb[0].mxu0
      %v2278 = vpop.f32.mrb[0].mxu0
      %2279 = vdwg.mxu0
      %v2280 = vmul.f32 %v2137, 0.35355338
      %v2281 = vmul.f32 %v2183, 0.35355338
      %v2282 = vmul.f32 %v2229, 0.35355338
      %v2283 = vmul.f32 %v2275, 0.35355338
      %v2284 = vlaneseq
      %v2285 = vand.u32 %v2284, 127
      %s2286 = smul.u32 %s40, 16
      %v2287 = vstv %s2286
      %v2288 = vadd.s32 %v2285, %v2287
      %vm2289 = vcmp.lt.s32.totalorder %v2288, 40
      %v2290 = vsel %vm2289, 1, 0
      %vm2291 = vcmp.eq.s32.totalorder %v2290, 1
      %v2292 = vsel %vm2291, %v2280, -1e+30
      %v2293 = vsel %vm2291, %v2281, -1e+30
      %v2294 = vsel %vm2291, %v2282, -1e+30
      %v2295 = vsel %vm2291, %v2283, -1e+30
      %v2296 = vld [vmem:[#allocation4] sm:$0xff]
      %v2297 = vld [vmem:[#allocation4 + $0x8] sm:$0xff]
      %v2298 = vld [vmem:[#allocation4 + $0x10] sm:$0xff]
      %v2299 = vld [vmem:[#allocation4 + $0x18] sm:$0xff]
      %vm2300 = vcmask 130048
      %v2301 = vsel %vm2300, %v2292, -inf
      %2302 = vmax.xlane.f32.xlu0 %v2301
      %v2303 = vpop.xlane.xlu0 %2302
      %v2304 = vsel %vm2300, %v2293, -inf
      %2305 = vmax.xlane.f32.xlu0 %v2304
      %v2306 = vpop.xlane.xlu0 %2305
      %v2307 = vsel %vm2300, %v2294, -inf
      %2308 = vmax.xlane.f32.xlu0 %v2307
      %v2309 = vpop.xlane.xlu0 %2308
      %v2310 = vsel %vm2300, %v2295, -inf
      %2311 = vmax.xlane.f32.xlu0 %v2310
      %v2312 = vpop.xlane.xlu0 %2311
      %v2313 = vmax.f32 %v2296, %v2303
      %v2314 = vmax.f32 %v2297, %v2306
      %v2315 = vmax.f32 %v2298, %v2309
      %v2316 = vmax.f32 %v2299, %v2312
      %v2317 = vsub.f32 %v2296, %v2313
      %v2318 = vsub.f32 %v2297, %v2314
      %v2319 = vsub.f32 %v2298, %v2315
      %v2320 = vsub.f32 %v2299, %v2316
      %v2321 = vmul.f32 %v2317, 1.442695
      %v2322 = vpow.pop %v2321
      %v2323 = vmul.f32 %v2318, 1.442695
      %v2324 = vpow.pop %v2323
      %v2325 = vmul.f32 %v2319, 1.442695
      %v2326 = vpow.pop %v2325
      %v2327 = vmul.f32 %v2320, 1.442695
      %v2328 = vpow.pop %v2327
      %2330 = vset.pattern.permute.xlu0 0
      %2331 = vperm.xlu0 %2330, %v2313
      %v2332 = vpop.permute.xlu0 %2331
      %2335 = vset.pattern.permute.xlu0 0
      %2336 = vperm.xlu0 %2335, %v2314
      %v2337 = vpop.permute.xlu0 %2336
      %2340 = vset.pattern.permute.xlu0 0
      %2341 = vperm.xlu0 %2340, %v2315
      %v2342 = vpop.permute.xlu0 %2341
      %2345 = vset.pattern.permute.xlu0 0
      %2346 = vperm.xlu0 %2345, %v2316
      %v2347 = vpop.permute.xlu0 %2346
      %v2349 = vsub.f32 %v2292, %v2332
      %v2350 = vsub.f32 %v2293, %v2337
      %v2351 = vsub.f32 %v2294, %v2342
      %v2352 = vsub.f32 %v2295, %v2347
      %v2353 = vmul.f32 %v2349, 1.442695
      %v2354 = vpow.pop %v2353
      %v2355 = vmul.f32 %v2350, 1.442695
      %v2356 = vpow.pop %v2355
      %v2357 = vmul.f32 %v2351, 1.442695
      %v2358 = vpow.pop %v2357
      %v2359 = vmul.f32 %v2352, 1.442695
      %v2360 = vpow.pop %v2359
      %v2361 = vld [vmem:[#allocation5] sm:$0xff]
      %v2362 = vld [vmem:[#allocation5 + $0x8] sm:$0xff]
      %v2363 = vld [vmem:[#allocation5 + $0x10] sm:$0xff]
      %v2364 = vld [vmem:[#allocation5 + $0x18] sm:$0xff]
      %v2365 = vmul.f32 %v2322, %v2361
      %v2366 = vmul.f32 %v2324, %v2362
      %v2367 = vmul.f32 %v2326, %v2363
      %v2368 = vmul.f32 %v2328, %v2364
      %v2369 = vsel %vm2300, %v2354, 0.0
      %2370 = vadd.xlane.f32.xlu0 %v2369
      %v2371 = vpop.xlane.xlu0 %2370
      %v2372 = vsel %vm2300, %v2356, 0.0
      %2373 = vadd.xlane.f32.xlu0 %v2372
      %v2374 = vpop.xlane.xlu0 %2373
      %v2375 = vsel %vm2300, %v2358, 0.0
      %2376 = vadd.xlane.f32.xlu0 %v2375
      %v2377 = vpop.xlane.xlu0 %2376
      %v2378 = vsel %vm2300, %v2360, 0.0
      %2379 = vadd.xlane.f32.xlu0 %v2378
      %v2380 = vpop.xlane.xlu0 %2379
      %v2381 = vadd.f32 %v2365, %v2371
      %v2382 = vadd.f32 %v2366, %v2374
      %v2383 = vadd.f32 %v2367, %v2377
      %v2384 = vadd.f32 %v2368, %v2380
      %vm2385 = vcmask 7168
      %2386 = vst.msk [vmem:[#allocation5] sm:$0xff] %vm2385, %v2381
      %2387 = vst.msk [vmem:[#allocation5 + $0x8] sm:$0xff] %vm2385, %v2382
      %2388 = vst.msk [vmem:[#allocation5 + $0x10] sm:$0xff] %vm2385, %v2383
      %2389 = vst.msk [vmem:[#allocation5 + $0x18] sm:$0xff] %vm2385, %v2384
      %v2390 = vpack.c.bf16 %v2354, %v2354
      %v2391 = vpack.c.bf16 %v2356, %v2356
      %v2392 = vpack.c.bf16 %v2358, %v2358
      %v2393 = vpack.c.bf16 %v2360, %v2360
      %v2395 = vsel %vm2300, %v2390, 0
      %2397 = vmatprep.subr.bf16.mxu0 0
      %2398 = vmatpush1.bf16.msra.mxu0 %v2087
      %2399 = vmatprep.subr.bf16.mxu0 0
      %2400 = vmatpush1.bf16.msra.mxu0 0
      %2401 = vmatprep.subr.bf16.mxu0 0
      %2402 = vmatpush1.bf16.msra.mxu0 0
      %2403 = vmatprep.subr.bf16.mxu0 0
      %2404 = vmatpush1.bf16.msra.mxu0 0
      %2405 = vmatprep.subr.bf16.mxu0 0
      %2406 = vmatpush1.bf16.msra.mxu0 0
      %2407 = vmatprep.subr.bf16.mxu0 0
      %2408 = vmatpush1.bf16.msra.mxu0 0
      %2409 = vmatprep.subr.bf16.mxu0 0
      %2410 = vmatpush1.bf16.msra.mxu0 0
      %2411 = vmatprep.subr.bf16.mxu0 0
      %2412 = vmatpush1.bf16.msra.mxu0 0
      %2413 = vmatprep.subr.bf16.mxu0 0
      %2414 = vmatpush1.bf16.msra.mxu0 0
      %2415 = vmatprep.subr.bf16.mxu0 0
      %2416 = vmatpush1.bf16.msra.mxu0 0
      %2417 = vmatprep.subr.bf16.mxu0 0
      %2418 = vmatpush1.bf16.msra.mxu0 0
      %2419 = vmatprep.subr.bf16.mxu0 0
      %2420 = vmatpush1.bf16.msra.mxu0 0
      %2421 = vmatprep.subr.bf16.mxu0 0
      %2422 = vmatpush1.bf16.msra.mxu0 0
      %2423 = vmatprep.subr.bf16.mxu0 0
      %2424 = vmatpush1.bf16.msra.mxu0 0
      %2425 = vmatprep.subr.bf16.mxu0 0
      %2426 = vmatpush1.bf16.msra.mxu0 0
      %2427 = vmatprep.subr.bf16.mxu0 0
      %2428 = vmatpush1.bf16.msra.mxu0 0
      %2429 = vmatprep.mubr.bf16.mxu0 0
      %2430 = vmatmul.mubr.bf16.gmra.mrb[0].mxu0 %v2395
      %v2431 = vpop.f32.mrb[0].mxu0
      %v2432 = vadd.f32 0.0, %v2431
      %v2433 = vpop.f32.mrb[0].mxu0
      %v2434 = vpop.f32.mrb[0].mxu0
      %v2435 = vpop.f32.mrb[0].mxu0
      %2436 = vdwg.mxu0
      %v2438 = vsel %vm2300, %v2391, 0
      %2440 = vmatprep.subr.bf16.mxu0 0
      %2441 = vmatpush1.bf16.msra.mxu0 %v2088
      %2442 = vmatprep.subr.bf16.mxu0 0
      %2443 = vmatpush1.bf16.msra.mxu0 0
      %2444 = vmatprep.subr.bf16.mxu0 0
      %2445 = vmatpush1.bf16.msra.mxu0 0
      %2446 = vmatprep.subr.bf16.mxu0 0
      %2447 = vmatpush1.bf16.msra.mxu0 0
      %2448 = vmatprep.subr.bf16.mxu0 0
      %2449 = vmatpush1.bf16.msra.mxu0 0
      %2450 = vmatprep.subr.bf16.mxu0 0
      %2451 = vmatpush1.bf16.msra.mxu0 0
      %2452 = vmatprep.subr.bf16.mxu0 0
      %2453 = vmatpush1.bf16.msra.mxu0 0
      %2454 = vmatprep.subr.bf16.mxu0 0
      %2455 = vmatpush1.bf16.msra.mxu0 0
      %2456 = vmatprep.subr.bf16.mxu0 0
      %2457 = vmatpush1.bf16.msra.mxu0 0
      %2458 = vmatprep.subr.bf16.mxu0 0
      %2459 = vmatpush1.bf16.msra.mxu0 0
      %2460 = vmatprep.subr.bf16.mxu0 0
      %2461 = vmatpush1.bf16.msra.mxu0 0
      %2462 = vmatprep.subr.bf16.mxu0 0
      %2463 = vmatpush1.bf16.msra.mxu0 0
      %2464 = vmatprep.subr.bf16.mxu0 0
      %2465 = vmatpush1.bf16.msra.mxu0 0
      %2466 = vmatprep.subr.bf16.mxu0 0
      %2467 = vmatpush1.bf16.msra.mxu0 0
      %2468 = vmatprep.subr.bf16.mxu0 0
      %2469 = vmatpush1.bf16.msra.mxu0 0
      %2470 = vmatprep.subr.bf16.mxu0 0
      %2471 = vmatpush1.bf16.msra.mxu0 0
      %2472 = vmatprep.mubr.bf16.mxu0 0
      %2473 = vmatmul.mubr.bf16.gmra.mrb[0].mxu0 %v2438
      %v2474 = vpop.f32.mrb[0].mxu0
      %v2475 = vadd.f32 0.0, %v2474
      %v2476 = vpop.f32.mrb[0].mxu0
      %v2477 = vpop.f32.mrb[0].mxu0
      %v2478 = vpop.f32.mrb[0].mxu0
      %2479 = vdwg.mxu0
      %v2481 = vsel %vm2300, %v2392, 0
      %2483 = vmatprep.subr.bf16.mxu0 0
      %2484 = vmatpush1.bf16.msra.mxu0 %v2089
      %2485 = vmatprep.subr.bf16.mxu0 0
      %2486 = vmatpush1.bf16.msra.mxu0 0
      %2487 = vmatprep.subr.bf16.mxu0 0
      %2488 = vmatpush1.bf16.msra.mxu0 0
      %2489 = vmatprep.subr.bf16.mxu0 0
      %2490 = vmatpush1.bf16.msra.mxu0 0
      %2491 = vmatprep.subr.bf16.mxu0 0
      %2492 = vmatpush1.bf16.msra.mxu0 0
      %2493 = vmatprep.subr.bf16.mxu0 0
      %2494 = vmatpush1.bf16.msra.mxu0 0
      %2495 = vmatprep.subr.bf16.mxu0 0
      %2496 = vmatpush1.bf16.msra.mxu0 0
      %2497 = vmatprep.subr.bf16.mxu0 0
      %2498 = vmatpush1.bf16.msra.mxu0 0
      %2499 = vmatprep.subr.bf16.mxu0 0
      %2500 = vmatpush1.bf16.msra.mxu0 0
      %2501 = vmatprep.subr.bf16.mxu0 0
      %2502 = vmatpush1.bf16.msra.mxu0 0
      %2503 = vmatprep.subr.bf16.mxu0 0
      %2504 = vmatpush1.bf16.msra.mxu0 0
      %2505 = vmatprep.subr.bf16.mxu0 0
      %2506 = vmatpush1.bf16.msra.mxu0 0
      %2507 = vmatprep.subr.bf16.mxu0 0
      %2508 = vmatpush1.bf16.msra.mxu0 0
      %2509 = vmatprep.subr.bf16.mxu0 0
      %2510 = vmatpush1.bf16.msra.mxu0 0
      %2511 = vmatprep.subr.bf16.mxu0 0
      %2512 = vmatpush1.bf16.msra.mxu0 0
      %2513 = vmatprep.subr.bf16.mxu0 0
      %2514 = vmatpush1.bf16.msra.mxu0 0
      %2515 = vmatprep.mubr.bf16.mxu0 0
      %2516 = vmatmul.mubr.bf16.gmra.mrb[0].mxu0 %v2481
      %v2517 = vpop.f32.mrb[0].mxu0
      %v2518 = vadd.f32 0.0, %v2517
      %v2519 = vpop.f32.mrb[0].mxu0
      %v2520 = vpop.f32.mrb[0].mxu0
      %v2521 = vpop.f32.mrb[0].mxu0
      %2522 = vdwg.mxu0
      %v2524 = vsel %vm2300, %v2393, 0
      %2526 = vmatprep.subr.bf16.mxu0 0
      %2527 = vmatpush1.bf16.msra.mxu0 %v2090
      %2528 = vmatprep.subr.bf16.mxu0 0
      %2529 = vmatpush1.bf16.msra.mxu0 0
      %2530 = vmatprep.subr.bf16.mxu0 0
      %2531 = vmatpush1.bf16.msra.mxu0 0
      %2532 = vmatprep.subr.bf16.mxu0 0
      %2533 = vmatpush1.bf16.msra.mxu0 0
      %2534 = vmatprep.subr.bf16.mxu0 0
      %2535 = vmatpush1.bf16.msra.mxu0 0
      %2536 = vmatprep.subr.bf16.mxu0 0
      %2537 = vmatpush1.bf16.msra.mxu0 0
      %2538 = vmatprep.subr.bf16.mxu0 0
      %2539 = vmatpush1.bf16.msra.mxu0 0
      %2540 = vmatprep.subr.bf16.mxu0 0
      %2541 = vmatpush1.bf16.msra.mxu0 0
      %2542 = vmatprep.subr.bf16.mxu0 0
      %2543 = vmatpush1.bf16.msra.mxu0 0
      %2544 = vmatprep.subr.bf16.mxu0 0
      %2545 = vmatpush1.bf16.msra.mxu0 0
      %2546 = vmatprep.subr.bf16.mxu0 0
      %2547 = vmatpush1.bf16.msra.mxu0 0
      %2548 = vmatprep.subr.bf16.mxu0 0
      %2549 = vmatpush1.bf16.msra.mxu0 0
      %2550 = vmatprep.subr.bf16.mxu0 0
      %2551 = vmatpush1.bf16.msra.mxu0 0
      %2552 = vmatprep.subr.bf16.mxu0 0
      %2553 = vmatpush1.bf16.msra.mxu0 0
      %2554 = vmatprep.subr.bf16.mxu0 0
      %2555 = vmatpush1.bf16.msra.mxu0 0
      %2556 = vmatprep.subr.bf16.mxu0 0
      %2557 = vmatpush1.bf16.msra.mxu0 0
      %2558 = vmatprep.mubr.bf16.mxu0 0
      %2559 = vmatmul.mubr.bf16.gmra.mrb[0].mxu0 %v2524
      %v2560 = vpop.f32.mrb[0].mxu0
      %v2561 = vadd.f32 0.0, %v2560
      %v2562 = vpop.f32.mrb[0].mxu0
      %v2563 = vpop.f32.mrb[0].mxu0
      %v2564 = vpop.f32.mrb[0].mxu0
      %2565 = vdwg.mxu0
      %v2566 = vld [vmem:[#allocation6] sm:$0xff]
      %v2567 = vld [vmem:[#allocation6 + $0x8] sm:$0xff]
      %v2568 = vld [vmem:[#allocation6 + $0x10] sm:$0xff]
      %v2569 = vld [vmem:[#allocation6 + $0x18] sm:$0xff]
      %2571 = vset.pattern.permute.xlu0 0
      %2572 = vperm.xlu0 %2571, %v2322
      %v2573 = vpop.permute.xlu0 %2572
      %2576 = vset.pattern.permute.xlu0 0
      %2577 = vperm.xlu0 %2576, %v2324
      %v2578 = vpop.permute.xlu0 %2577
      %2581 = vset.pattern.permute.xlu0 0
      %2582 = vperm.xlu0 %2581, %v2326
      %v2583 = vpop.permute.xlu0 %2582
      %2586 = vset.pattern.permute.xlu0 0
      %2587 = vperm.xlu0 %2586, %v2328
      %v2588 = vpop.permute.xlu0 %2587
      %v2590 = vmul.f32 %v2573, %v2566
      %v2591 = vmul.f32 %v2578, %v2567
      %v2592 = vmul.f32 %v2583, %v2568
      %v2593 = vmul.f32 %v2588, %v2569
      %v2594 = vadd.f32 %v2590, %v2432
      %v2595 = vadd.f32 %v2591, %v2475
      %v2596 = vadd.f32 %v2592, %v2518
      %v2597 = vadd.f32 %v2593, %v2561
      %2598 = vst.msk [vmem:[#allocation6] sm:$0xff] %vm2095, %v2594
      %2599 = vst.msk [vmem:[#allocation6 + $0x8] sm:$0xff] %vm2095, %v2595
      %2600 = vst.msk [vmem:[#allocation6 + $0x10] sm:$0xff] %vm2095, %v2596
      %2601 = vst.msk [vmem:[#allocation6 + $0x18] sm:$0xff] %vm2095, %v2597
      %2602 = vst.msk [vmem:[#allocation4] sm:$0xff] %vm2385, %v2313
      %2603 = vst.msk [vmem:[#allocation4 + $0x8] sm:$0xff] %vm2385, %v2314
      %2604 = vst.msk [vmem:[#allocation4 + $0x10] sm:$0xff] %vm2385, %v2315
      %2605 = vst.msk [vmem:[#allocation4 + $0x18] sm:$0xff] %vm2385, %v2316
      %p2606 = scmp.eq.s32.totalorder %s40, 2
      // Predicated region
      $region113: #{transformer_decoder_forward.2} parent=107 // pred_check
        %p2607 = pneg %p2606
      $region114: #{transformer_decoder_forward.2} parent=107 // pred_check_branch
        %2609 = sbr.rel (%p2607) target = $region116
      $region115: #{transformer_decoder_forward.2} parent=107 // pred_region
        %v2610 = vld [vmem:[%s20] sm:$0xf]
        %v2611 = vld [vmem:[%s21] sm:$0xf]
        %v2612 = vld [vmem:[#allocation6] sm:$0xff]
        %v2613 = vld [vmem:[#allocation6 + $0x8] sm:$0xff]
        %v2614 = vld [vmem:[#allocation6 + $0x10] sm:$0xff]
        %v2615 = vld [vmem:[#allocation6 + $0x18] sm:$0xff]
        %v2616 = vld [vmem:[#allocation5] sm:$0xff]
        %v2617 = vld [vmem:[#allocation5 + $0x8] sm:$0xff]
        %v2618 = vld [vmem:[#allocation5 + $0x10] sm:$0xff]
        %v2619 = vld [vmem:[#allocation5 + $0x18] sm:$0xff]
        %v2620 = vrcp.pop %v2616
        %v2621 = vrcp.pop %v2617
        %v2622 = vrcp.pop %v2618
        %v2623 = vrcp.pop %v2619
        %2625 = vset.pattern.permute.xlu0 0
        %2626 = vperm.xlu0 %2625, %v2620
        %v2627 = vpop.permute.xlu0 %2626
        %2630 = vset.pattern.permute.xlu0 0
        %2631 = vperm.xlu0 %2630, %v2621
        %v2632 = vpop.permute.xlu0 %2631
        %2635 = vset.pattern.permute.xlu0 0
        %2636 = vperm.xlu0 %2635, %v2622
        %v2637 = vpop.permute.xlu0 %2636
        %2640 = vset.pattern.permute.xlu0 0
        %2641 = vperm.xlu0 %2640, %v2623
        %v2642 = vpop.permute.xlu0 %2641
        %v2644 = vmul.f32 %v2612, %v2627
        %v2645 = vmul.f32 %v2613, %v2632
        %v2646 = vmul.f32 %v2614, %v2637
        %v2647 = vmul.f32 %v2615, %v2642
        %v2648 = vld [vmem:[%s14] sm:$0xf]
        %v2649 = vld [vmem:[%s14 + $0x4] sm:$0xf]
        %v2650 = vld [vmem:[%s14 + $0x8] sm:$0xf]
        %v2651 = vld [vmem:[%s14 + $0xc] sm:$0xf]
        %v2652 = vpack.c.bf16 %v2644, %v2644
        %v2653 = vpack.c.bf16 %v2645, %v2645
        %v2654 = vpack.c.bf16 %v2646, %v2646
        %v2655 = vpack.c.bf16 %v2647, %v2647
        %v2657 = vsel %vm2095, %v2652, 0
        %vm2659 = vcmask 1043456
        %v2661 = vsel %vm2659, %v2648, 0
        %2663 = vmatprep.subr.bf16.mxu0 0
        %2664 = vmatpush1.bf16.msra.mxu0 %v2661
        %2665 = vmatprep.subr.bf16.mxu0 0
        %2666 = vmatpush1.bf16.msra.mxu0 0
        %2667 = vmatprep.subr.bf16.mxu0 0
        %2668 = vmatpush1.bf16.msra.mxu0 0
        %2669 = vmatprep.subr.bf16.mxu0 0
        %2670 = vmatpush1.bf16.msra.mxu0 0
        %2671 = vmatprep.subr.bf16.mxu0 0
        %2672 = vmatpush1.bf16.msra.mxu0 0
        %2673 = vmatprep.subr.bf16.mxu0 0
        %2674 = vmatpush1.bf16.msra.mxu0 0
        %2675 = vmatprep.subr.bf16.mxu0 0
        %2676 = vmatpush1.bf16.msra.mxu0 0
        %2677 = vmatprep.subr.bf16.mxu0 0
        %2678 = vmatpush1.bf16.msra.mxu0 0
        %2679 = vmatprep.subr.bf16.mxu0 0
        %2680 = vmatpush1.bf16.msra.mxu0 0
        %2681 = vmatprep.subr.bf16.mxu0 0
        %2682 = vmatpush1.bf16.msra.mxu0 0
        %2683 = vmatprep.subr.bf16.mxu0 0
        %2684 = vmatpush1.bf16.msra.mxu0 0
        %2685 = vmatprep.subr.bf16.mxu0 0
        %2686 = vmatpush1.bf16.msra.mxu0 0
        %2687 = vmatprep.subr.bf16.mxu0 0
        %2688 = vmatpush1.bf16.msra.mxu0 0
        %2689 = vmatprep.subr.bf16.mxu0 0
        %2690 = vmatpush1.bf16.msra.mxu0 0
        %2691 = vmatprep.subr.bf16.mxu0 0
        %2692 = vmatpush1.bf16.msra.mxu0 0
        %2693 = vmatprep.subr.bf16.mxu0 0
        %2694 = vmatpush1.bf16.msra.mxu0 0
        %2695 = vmatprep.mubr.bf16.mxu0 0
        %2696 = vmatmul.mubr.bf16.gmra.mrb[0].mxu0 %v2657
        %v2697 = vpop.f32.mrb[0].mxu0
        %v2698 = vadd.f32 0.0, %v2697
        %v2699 = vpop.f32.mrb[0].mxu0
        %v2700 = vpop.f32.mrb[0].mxu0
        %v2701 = vpop.f32.mrb[0].mxu0
        %2702 = vdwg.mxu0
        %v2704 = vsel %vm2095, %v2653, 0
        %v2707 = vsel %vm2659, %v2649, 0
        %2709 = vmatprep.subr.bf16.mxu0 0
        %2710 = vmatpush1.bf16.msra.mxu0 %v2707
        %2711 = vmatprep.subr.bf16.mxu0 0
        %2712 = vmatpush1.bf16.msra.mxu0 0
        %2713 = vmatprep.subr.bf16.mxu0 0
        %2714 = vmatpush1.bf16.msra.mxu0 0
        %2715 = vmatprep.subr.bf16.mxu0 0
        %2716 = vmatpush1.bf16.msra.mxu0 0
        %2717 = vmatprep.subr.bf16.mxu0 0
        %2718 = vmatpush1.bf16.msra.mxu0 0
        %2719 = vmatprep.subr.bf16.mxu0 0
        %2720 = vmatpush1.bf16.msra.mxu0 0
        %2721 = vmatprep.subr.bf16.mxu0 0
        %2722 = vmatpush1.bf16.msra.mxu0 0
        %2723 = vmatprep.subr.bf16.mxu0 0
        %2724 = vmatpush1.bf16.msra.mxu0 0
        %2725 = vmatprep.subr.bf16.mxu0 0
        %2726 = vmatpush1.bf16.msra.mxu0 0
        %2727 = vmatprep.subr.bf16.mxu0 0
        %2728 = vmatpush1.bf16.msra.mxu0 0
        %2729 = vmatprep.subr.bf16.mxu0 0
        %2730 = vmatpush1.bf16.msra.mxu0 0
        %2731 = vmatprep.subr.bf16.mxu0 0
        %2732 = vmatpush1.bf16.msra.mxu0 0
        %2733 = vmatprep.subr.bf16.mxu0 0
        %2734 = vmatpush1.bf16.msra.mxu0 0
        %2735 = vmatprep.subr.bf16.mxu0 0
        %2736 = vmatpush1.bf16.msra.mxu0 0
        %2737 = vmatprep.subr.bf16.mxu0 0
        %2738 = vmatpush1.bf16.msra.mxu0 0
        %2739 = vmatprep.subr.bf16.mxu0 0
        %2740 = vmatpush1.bf16.msra.mxu0 0
        %2741 = vmatprep.mubr.bf16.mxu0 0
        %2742 = vmatmul.mubr.bf16.gmra.mrb[0].mxu0 %v2704
        %v2743 = vpop.f32.mrb[0].mxu0
        %v2744 = vadd.f32 0.0, %v2743
        %v2745 = vpop.f32.mrb[0].mxu0
        %v2746 = vpop.f32.mrb[0].mxu0
        %v2747 = vpop.f32.mrb[0].mxu0
        %2748 = vdwg.mxu0
        %v2750 = vsel %vm2095, %v2654, 0
        %v2753 = vsel %vm2659, %v2650, 0
        %2755 = vmatprep.subr.bf16.mxu0 0
        %2756 = vmatpush1.bf16.msra.mxu0 %v2753
        %2757 = vmatprep.subr.bf16.mxu0 0
        %2758 = vmatpush1.bf16.msra.mxu0 0
        %2759 = vmatprep.subr.bf16.mxu0 0
        %2760 = vmatpush1.bf16.msra.mxu0 0
        %2761 = vmatprep.subr.bf16.mxu0 0
        %2762 = vmatpush1.bf16.msra.mxu0 0
        %2763 = vmatprep.subr.bf16.mxu0 0
        %2764 = vmatpush1.bf16.msra.mxu0 0
        %2765 = vmatprep.subr.bf16.mxu0 0
        %2766 = vmatpush1.bf16.msra.mxu0 0
        %2767 = vmatprep.subr.bf16.mxu0 0
        %2768 = vmatpush1.bf16.msra.mxu0 0
        %2769 = vmatprep.subr.bf16.mxu0 0
        %2770 = vmatpush1.bf16.msra.mxu0 0
        %2771 = vmatprep.subr.bf16.mxu0 0
        %2772 = vmatpush1.bf16.msra.mxu0 0
        %2773 = vmatprep.subr.bf16.mxu0 0
        %2774 = vmatpush1.bf16.msra.mxu0 0
        %2775 = vmatprep.subr.bf16.mxu0 0
        %2776 = vmatpush1.bf16.msra.mxu0 0
        %2777 = vmatprep.subr.bf16.mxu0 0
        %2778 = vmatpush1.bf16.msra.mxu0 0
        %2779 = vmatprep.subr.bf16.mxu0 0
        %2780 = vmatpush1.bf16.msra.mxu0 0
        %2781 = vmatprep.subr.bf16.mxu0 0
        %2782 = vmatpush1.bf16.msra.mxu0 0
        %2783 = vmatprep.subr.bf16.mxu0 0
        %2784 = vmatpush1.bf16.msra.mxu0 0
        %2785 = vmatprep.subr.bf16.mxu0 0
        %2786 = vmatpush1.bf16.msra.mxu0 0
        %2787 = vmatprep.mubr.bf16.mxu0 0
        %2788 = vmatmul.mubr.bf16.gmra.mrb[0].mxu0 %v2750
        %v2789 = vpop.f32.mrb[0].mxu0
        %v2790 = vadd.f32 0.0, %v2789
        %v2791 = vpop.f32.mrb[0].mxu0
        %v2792 = vpop.f32.mrb[0].mxu0
        %v2793 = vpop.f32.mrb[0].mxu0
        %2794 = vdwg.mxu0
        %v2796 = vsel %vm2095, %v2655, 0
        %v2799 = vsel %vm2659, %v2651, 0
        %2801 = vmatprep.subr.bf16.mxu0 0
        %2802 = vmatpush1.bf16.msra.mxu0 %v2799
        %2803 = vmatprep.subr.bf16.mxu0 0
        %2804 = vmatpush1.bf16.msra.mxu0 0
        %2805 = vmatprep.subr.bf16.mxu0 0
        %2806 = vmatpush1.bf16.msra.mxu0 0
        %2807 = vmatprep.subr.bf16.mxu0 0
        %2808 = vmatpush1.bf16.msra.mxu0 0
        %2809 = vmatprep.subr.bf16.mxu0 0
        %2810 = vmatpush1.bf16.msra.mxu0 0
        %2811 = vmatprep.subr.bf16.mxu0 0
        %2812 = vmatpush1.bf16.msra.mxu0 0
        %2813 = vmatprep.subr.bf16.mxu0 0
        %2814 = vmatpush1.bf16.msra.mxu0 0
        %2815 = vmatprep.subr.bf16.mxu0 0
        %2816 = vmatpush1.bf16.msra.mxu0 0
        %2817 = vmatprep.subr.bf16.mxu0 0
        %2818 = vmatpush1.bf16.msra.mxu0 0
        %2819 = vmatprep.subr.bf16.mxu0 0
        %2820 = vmatpush1.bf16.msra.mxu0 0
        %2821 = vmatprep.subr.bf16.mxu0 0
        %2822 = vmatpush1.bf16.msra.mxu0 0
        %2823 = vmatprep.subr.bf16.mxu0 0
        %2824 = vmatpush1.bf16.msra.mxu0 0
        %2825 = vmatprep.subr.bf16.mxu0 0
        %2826 = vmatpush1.bf16.msra.mxu0 0
        %2827 = vmatprep.subr.bf16.mxu0 0
        %2828 = vmatpush1.bf16.msra.mxu0 0
        %2829 = vmatprep.subr.bf16.mxu0 0
        %2830 = vmatpush1.bf16.msra.mxu0 0
        %2831 = vmatprep.subr.bf16.mxu0 0
        %2832 = vmatpush1.bf16.msra.mxu0 0
        %2833 = vmatprep.mubr.bf16.mxu0 0
        %2834 = vmatmul.mubr.bf16.gmra.mrb[0].mxu0 %v2796
        %v2835 = vpop.f32.mrb[0].mxu0
        %v2836 = vadd.f32 0.0, %v2835
        %v2837 = vpop.f32.mrb[0].mxu0
        %v2838 = vpop.f32.mrb[0].mxu0
        %v2839 = vpop.f32.mrb[0].mxu0
        %2840 = vdwg.mxu0
        %v2841 = vsel %vm1928, %v2698, 0.0
        %v2842 = vsel %vm1928, %v2744, 0.0
        %v2843 = vadd.f32 %v2841, %v2842
        %v2844 = vsel %vm1928, %v2790, 0.0
        %v2845 = vadd.f32 %v2843, %v2844
        %v2846 = vsel %vm1928, %v2836, 0.0
        %v2847 = vadd.f32 %v2845, %v2846
        %v2848 = vlaneseq
        %v2849 = vshrl.u32 %v2848, 7
        %v2850 = vsub.s32 3, %v2849
        %v2851 = vrot.slane %v1898, %v2850
        %v2852 = vadd.f32 %v2847, %v2851
        %v2853 = vld [vmem:[#allocation2] sm:$0xff]
        %v2854 = vadd.f32 %v2853, %v2852
        %v2855 = vsel %vm1928, %v2854, 0.0
        %2856 = vadd.xlane.f32.xlu0 %v2855
        %v2857 = vpop.xlane.xlu0 %2856
        %v2858 = vrcp.pop 32.0
        %v2859 = vmul.f32 %v2857, %v2858
        %v2860 = vsub.f32 %v2854, %v2859
        %v2861 = vmul.f32 %v2860, %v2860
        %v2862 = vsel %vm1928, %v2861, 0.0
        %2863 = vadd.xlane.f32.xlu0 %v2862
        %v2864 = vpop.xlane.xlu0 %2863
        %v2865 = vmul.f32 %v2864, %v2858
        %v2866 = vadd.f32 %v2865, 1e-05
        %v2867 = vrsqrt.pop %v2866
        %v2868 = vmul.f32 %v2860, %v2867
        %v2869 = vlaneseq
        %v2870 = vshrl.u32 %v2869, 7
        %v2871 = vsub.s32 1, %v2870
        %v2872 = vrot.slane %v2610, %v2871
        %v2873 = vmul.f32 %v2868, %v2872
        %v2874 = vlaneseq
        %v2875 = vshrl.u32 %v2874, 7
        %v2876 = vsub.s32 1, %v2875
        %v2877 = vrot.slane %v2611, %v2876
        %v2878 = vadd.f32 %v2873, %v2877
        %v2879 = vld [vmem:[%s16] sm:$0xf]
        %v2880 = vld [vmem:[%s16 + $0x4] sm:$0xf]
        %v2881 = vld [vmem:[%s16 + $0x8] sm:$0xf]
        %v2882 = vld [vmem:[%s16 + $0xc] sm:$0xf]
        %v2883 = vpack.c.bf16 %v2878, %v2878
        %v2884 = vld [vmem:[%s17] sm:$0x1]
        %v2886 = vlaneseq
        %v2887 = vshrl.u32 %v2886, 7
        %v2888 = vsub.s32 0, %v2887
        %v2889 = vrot.slane %v2884, %v2888
        %v2895 = vunpack.c.l.b16 %v2879
        %v2896 = vunpack.c.l.b16 %v2880
        %v2897 = vunpack.c.l.b16 %v2881
        %v2898 = vunpack.c.l.b16 %v2882
        %v2899 = vpack.c.b16 %v2896, %v2895
        %v2900 = vpack.c.b16 %v2898, %v2897
        %v2904 = vsel %vm1928, %v2883, 0
        %2906 = vmatprep.subr.bf16.mxu0 0
        %2907 = vmatpush1.bf16.msra.mxu0 %v2899
        %2908 = vmatprep.subr.bf16.mxu0 0
        %2909 = vmatpush1.bf16.msra.mxu0 %v2900
        %2910 = vmatprep.subr.bf16.mxu0 0
        %2911 = vmatpush1.bf16.msra.mxu0 0
        %2912 = vmatprep.subr.bf16.mxu0 0
        %2913 = vmatpush1.bf16.msra.mxu0 0
        %2914 = vmatprep.subr.bf16.mxu0 0
        %2915 = vmatpush1.bf16.msra.mxu0 0
        %2916 = vmatprep.subr.bf16.mxu0 0
        %2917 = vmatpush1.bf16.msra.mxu0 0
        %2918 = vmatprep.subr.bf16.mxu0 0
        %2919 = vmatpush1.bf16.msra.mxu0 0
        %2920 = vmatprep.subr.bf16.mxu0 0
        %2921 = vmatpush1.bf16.msra.mxu0 0
        %2922 = vmatprep.subr.bf16.mxu0 0
        %2923 = vmatpush1.bf16.msra.mxu0 0
        %2924 = vmatprep.subr.bf16.mxu0 0
        %2925 = vmatpush1.bf16.msra.mxu0 0
        %2926 = vmatprep.subr.bf16.mxu0 0
        %2927 = vmatpush1.bf16.msra.mxu0 0
        %2928 = vmatprep.subr.bf16.mxu0 0
        %2929 = vmatpush1.bf16.msra.mxu0 0
        %2930 = vmatprep.subr.bf16.mxu0 0
        %2931 = vmatpush1.bf16.msra.mxu0 0
        %2932 = vmatprep.subr.bf16.mxu0 0
        %2933 = vmatpush1.bf16.msra.mxu0 0
        %2934 = vmatprep.subr.bf16.mxu0 0
        %2935 = vmatpush1.bf16.msra.mxu0 0
        %2936 = vmatprep.subr.bf16.mxu0 0
        %2937 = vmatpush1.bf16.msra.mxu0 0
        %2938 = vmatprep.mubr.bf16.mxu0 0
        %2939 = vmatmul.mubr.bf16.gmra.mrb[0].mxu0 %v2904
        %v2940 = vpop.f32.mrb[0].mxu0
        %v2941 = vadd.f32 %v2889, %v2940
        %v2942 = vpop.f32.mrb[0].mxu0
        %v2943 = vpop.f32.mrb[0].mxu0
        %v2944 = vpop.f32.mrb[0].mxu0
        %2945 = vdwg.mxu0
        %v2946 = vmax.f32 %v2941, 0.0
        %v2947 = vld [vmem:[%s18] sm:$0xf]
        %v2948 = vld [vmem:[%s18 + $0x4] sm:$0xf]
        %v2949 = vld [vmem:[%s18 + $0x8] sm:$0xf]
        %v2950 = vld [vmem:[%s18 + $0xc] sm:$0xf]
        %v2951 = vld [vmem:[%s18 + $0x10] sm:$0xf]
        %v2952 = vld [vmem:[%s18 + $0x14] sm:$0xf]
        %v2953 = vld [vmem:[%s18 + $0x18] sm:$0xf]
        %v2954 = vld [vmem:[%s18 + $0x1c] sm:$0xf]
        %v2955 = vpack.c.bf16 %v2946, %v2946
        %v2956 = vld [vmem:[%s19] sm:$0x1]
        %v2958 = vlaneseq
        %v2959 = vshrl.u32 %v2958, 7
        %v2960 = vsub.s32 0, %v2959
        %v2961 = vrot.slane %v2956, %v2960
        %v2971 = vunpack.c.l.b16 %v2947
        %v2972 = vunpack.c.l.b16 %v2948
        %v2973 = vunpack.c.l.b16 %v2949
        %v2974 = vunpack.c.l.b16 %v2950
        %v2975 = vunpack.c.l.b16 %v2951
        %v2976 = vunpack.c.l.b16 %v2952
        %v2977 = vunpack.c.l.b16 %v2953
        %v2978 = vunpack.c.l.b16 %v2954
        %v2979 = vpack.c.b16 %v2972, %v2971
        %v2980 = vpack.c.b16 %v2974, %v2973
        %v2981 = vpack.c.b16 %v2976, %v2975
        %v2982 = vpack.c.b16 %v2978, %v2977
        %vm2987 = vcmask 523264
        %v2989 = vsel %vm2987, %v2955, 0
        %2991 = vmatprep.subr.bf16.mxu0 0
        %2992 = vmatpush1.bf16.msra.mxu0 %v2979
        %2993 = vmatprep.subr.bf16.mxu0 0
        %2994 = vmatpush1.bf16.msra.mxu0 %v2980
        %2995 = vmatprep.subr.bf16.mxu0 0
        %2996 = vmatpush1.bf16.msra.mxu0 %v2981
        %2997 = vmatprep.subr.bf16.mxu0 0
        %2998 = vmatpush1.bf16.msra.mxu0 %v2982
        %2999 = vmatprep.subr.bf16.mxu0 0
        %3000 = vmatpush1.bf16.msra.mxu0 0
        %3001 = vmatprep.subr.bf16.mxu0 0
        %3002 = vmatpush1.bf16.msra.mxu0 0
        %3003 = vmatprep.subr.bf16.mxu0 0
        %3004 = vmatpush1.bf16.msra.mxu0 0
        %3005 = vmatprep.subr.bf16.mxu0 0
        %3006 = vmatpush1.bf16.msra.mxu0 0
        %3007 = vmatprep.subr.bf16.mxu0 0
        %3008 = vmatpush1.bf16.msra.mxu0 0
        %3009 = vmatprep.subr.bf16.mxu0 0
        %3010 = vmatpush1.bf16.msra.mxu0 0
        %3011 = vmatprep.subr.bf16.mxu0 0
        %3012 = vmatpush1.bf16.msra.mxu0 0
        %3013 = vmatprep.subr.bf16.mxu0 0
        %3014 = vmatpush1.bf16.msra.mxu0 0
        %3015 = vmatprep.subr.bf16.mxu0 0
        %3016 = vmatpush1.bf16.msra.mxu0 0
        %3017 = vmatprep.subr.bf16.mxu0 0
        %3018 = vmatpush1.bf16.msra.mxu0 0
        %3019 = vmatprep.subr.bf16.mxu0 0
        %3020 = vmatpush1.bf16.msra.mxu0 0
        %3021 = vmatprep.subr.bf16.mxu0 0
        %3022 = vmatpush1.bf16.msra.mxu0 0
        %3023 = vmatprep.mubr.bf16.mxu0 0
        %3024 = vmatmul.mubr.bf16.gmra.mrb[0].mxu0 %v2989
        %v3025 = vpop.f32.mrb[0].mxu0
        %v3026 = vadd.f32 %v2961, %v3025
        %v3027 = vpop.f32.mrb[0].mxu0
        %v3028 = vpop.f32.mrb[0].mxu0
        %v3029 = vpop.f32.mrb[0].mxu0
        %3030 = vdwg.mxu0
        %v3031 = vadd.f32 %v2878, %v3026
        %v3032 = vsel %vm1928, %v3031, 0.0
        %3033 = vadd.xlane.f32.xlu0 %v3032
        %v3034 = vpop.xlane.xlu0 %3033
        %v3035 = vmul.f32 %v3034, %v2858
        %v3036 = vsub.f32 %v3031, %v3035
        %v3037 = vmul.f32 %v3036, %v3036
        %v3038 = vsel %vm1928, %v3037, 0.0
        %3039 = vadd.xlane.f32.xlu0 %v3038
        %v3040 = vpop.xlane.xlu0 %3039
        %v3041 = vmul.f32 %v3040, %v2858
        %v3042 = vadd.f32 %v3041, 1e-05
        %v3043 = vrsqrt.pop %v3042
        %v3044 = vmul.f32 %v3036, %v3043
        %v3045 = vlaneseq
        %v3046 = vshrl.u32 %v3045, 7
        %v3047 = vsub.s32 2, %v3046
        %v3048 = vrot.slane %v2610, %v3047
        %v3049 = vmul.f32 %v3044, %v3048
        %v3050 = vlaneseq
        %v3051 = vshrl.u32 %v3050, 7
        %v3052 = vsub.s32 2, %v3051
        %v3053 = vrot.slane %v2611, %v3052
        %v3054 = vadd.f32 %v3049, %v3053
        %3055 = vst.msk [vmem:[%s813] sm:$0xff] %vm1928, %v3054
        %v3056 = vsel %vm1928, %v3054, 0.0
        %3057 = vadd.xlane.f32.xlu0 %v3056
        %v3058 = vpop.xlane.xlu0 %3057
        %v3059 = vmul.f32 %v3058, %v2858
        %v3060 = vsub.f32 %v3054, %v3059
        %v3061 = vmul.f32 %v3060, %v3060
        %v3062 = vsel %vm1928, %v3061, 0.0
        %3063 = vadd.xlane.f32.xlu0 %v3062
        %v3064 = vpop.xlane.xlu0 %3063
        %v3065 = vmul.f32 %v3064, %v2858
        %v3066 = vadd.f32 %v3065, 1e-05
        %v3067 = vrsqrt.pop %v3066
        %v3068 = vmul.f32 %v3060, %v3067
        %v3069 = vlaneseq
        %v3070 = vshrl.u32 %v3069, 7
        %v3071 = vsub.s32 3, %v3070
        %v3072 = vrot.slane %v2610, %v3071
        %v3073 = vmul.f32 %v3068, %v3072
        %v3074 = vlaneseq
        %v3075 = vshrl.u32 %v3074, 7
        %v3076 = vsub.s32 3, %v3075
        %v3077 = vrot.slane %v2611, %v3076
        %v3078 = vadd.f32 %v3073, %v3077
        %3079 = vst.msk [vmem:[%s817] sm:$0xff] %vm1928, %v3078
      $region116: #{transformer_decoder_forward.2} parent=107 // pred_fallthru
        _
      %p3080 = scmp.lt.s32.totalorder %s39, 1
      %s3081 = scalar_select %p3080, %s39, 1
      %s3082 = smul.addr %s3081, 8
      %s3083 = scalar_lea.vmem %s22, %s3082
      %p3084 = scmp.lt.s32.totalorder %s39, 1
      %s3085 = scalar_select %p3084, %s39, 1
      %s3086 = smul.addr %s3085, 8
      %s3087 = scalar_lea.vmem %s23, %s3086
      // Predicated region
      $region117: #{transformer_decoder_forward.2} parent=107 // pred_check
        %p3088 = pneg %p551
      $region118: #{transformer_decoder_forward.2} parent=107 // pred_check_branch
        %3090 = sbr.rel (%p3088) target = $region120
      $region119: #{transformer_decoder_forward.2} parent=107 // pred_region
        _
      $region120: #{transformer_decoder_forward.2} parent=107 // pred_fallthru
        _
      // Predicated region
      $region121: #{transformer_decoder_forward.2} parent=107 // pred_check
        %p3091 = pneg %p577
      $region122: #{transformer_decoder_forward.2} parent=107 // pred_check_branch
        %3093 = sbr.rel (%p3091) target = $region124
      $region123: #{transformer_decoder_forward.2} parent=107 // pred_region
        _
      $region124: #{transformer_decoder_forward.2} parent=107 // pred_fallthru
        _
    $region108: #{transformer_decoder_forward.2} parent=5 // pred_fallthru
      _
    %p3094 = scmp.le.s32.totalorder 2, %s30
    // Predicated region
    $region125: #{transformer_decoder_forward.2} parent=5 // pred_check
      %p3095 = pneg %p3094
    $region126: #{transformer_decoder_forward.2} parent=5 // pred_check_branch
      %3097 = sbr.rel (%p3095) target = $region128
    $region127: #{transformer_decoder_forward.2} parent=5 // pred_region
      %s3098 = ssub.s32 %s30, 2
      // Predicated region
      $region129: #{transformer_decoder_forward.2} parent=127 // pred_check
        %p3099 = pneg %p557
      $region130: #{transformer_decoder_forward.2} parent=127 // pred_check_branch
        %3101 = sbr.rel (%p3099) target = $region132
      $region131: #{transformer_decoder_forward.2} parent=127 // pred_region
        %p3102 = scmp.lt.s32.totalorder %s41, 1
        %s3103 = scalar_select %p3102, %s41, 1
        %s3104 = smul.addr %s3103, 8
        %s3105 = scalar_lea.vmem %s22, %s3104
      $region132: #{transformer_decoder_forward.2} parent=127 // pred_fallthru
        _
      // Predicated region
      $region133: #{transformer_decoder_forward.2} parent=127 // pred_check
        %p3106 = pneg %p583
      $region134: #{transformer_decoder_forward.2} parent=127 // pred_check_branch
        %3108 = sbr.rel (%p3106) target = $region136
      $region135: #{transformer_decoder_forward.2} parent=127 // pred_region
        %p3109 = scmp.lt.s32.totalorder %s41, 1
        %s3110 = scalar_select %p3109, %s41, 1
        %s3111 = smul.addr %s3110, 8
        %s3112 = scalar_lea.vmem %s23, %s3111
      $region136: #{transformer_decoder_forward.2} parent=127 // pred_fallthru
        _
    $region128: #{transformer_decoder_forward.2} parent=5 // pred_fallthru
      _
  $region6: #{transformer_decoder_forward.2} parent=0 // loop_footer
    %s34 = sadd.s32 1, %s30
  $region7: #{transformer_decoder_forward.2} parent=0 // loop_footer_branch
    %29 = sbr.rel target = $region3
  $region8: #{transformer_decoder_forward.2} parent=0 // loop_exit
    _

// kernel: transformer_decoder_forward.3
$region0: #{transformer_decoder_forward.3}
  #allocation0 [shape = 'u32[]', space=smem, size = 0x4, offset = 0x4, fixed_abs, tag = 'smem constant byte address 0x4 - core index']
  #allocation1 [shape = 'u32[144,128]{1,0:T(1,128)}', space=vmem, size = 0x12000, scoped, tag = 'internal scratch']
  #allocation2 [shape = 'f32[8,32]{1,0:T(8,128)}', space=vmem, size = 0x1000, scoped, tag = 'scratch operand']
  #allocation3 [shape = 'bf16[4,8,8]{2,1,0:T(8,128)(2,1)}', space=vmem, size = 0x2000, scoped, tag = 'scratch operand']
  #allocation4 [shape = 'f32[4,8,1]{2,1,0:T(8,128)}', space=vmem, size = 0x4000, scoped, tag = 'scratch operand']
  #allocation5 [shape = 'f32[4,8,1]{2,1,0:T(8,128)}', space=vmem, size = 0x4000, scoped, tag = 'scratch operand']
  #allocation6 [shape = 'f32[4,8,8]{2,1,0:T(8,128)}', space=vmem, size = 0x4000, scoped, tag = 'scratch operand']
  %s0 = inlined_call_operand.vmem [shape: f32[2,8,32], index: 0, kind: input, shape index: {}]
  %s1 = inlined_call_operand.vmem [shape: f32[2,8,64], index: 1, kind: input, shape index: {}]
  %s2 = inlined_call_operand.vmem [shape: bf16[2,48,32], index: 2, kind: input, shape index: {}]
  %s3 = inlined_call_operand.vmem [shape: bf16[2,48,32], index: 3, kind: input, shape index: {}]
  %s4 = inlined_call_operand.vmem [shape: bf16[64,32], index: 4, kind: input, shape index: {}]
  %s5 = inlined_call_operand.vmem [shape: bf16[32,32], index: 5, kind: input, shape index: {}]
  %s6 = inlined_call_operand.vmem [shape: f32[2,32], index: 6, kind: input, shape index: {}]
  %s7 = inlined_call_operand.vmem [shape: bf16[32,64], index: 7, kind: input, shape index: {}]
  %s8 = inlined_call_operand.vmem [shape: f32[1,64], index: 8, kind: input, shape index: {}]
  %s9 = inlined_call_operand.vmem [shape: bf16[32,32], index: 9, kind: input, shape index: {}]
  %s10 = inlined_call_operand.vmem [shape: bf16[4,8,32], index: 10, kind: input, shape index: {}]
  %s11 = inlined_call_operand.vmem [shape: f32[2,32], index: 11, kind: input, shape index: {}]
  %s12 = inlined_call_operand.vmem [shape: bf16[32,32], index: 12, kind: input, shape index: {}]
  %s13 = inlined_call_operand.vmem [shape: bf16[2,32,32], index: 13, kind: input, shape index: {}]
  %s14 = inlined_call_operand.vmem [shape: bf16[4,8,32], index: 14, kind: input, shape index: {}]
  %s15 = inlined_call_operand.vmem [shape: f32[4,32], index: 15, kind: input, shape index: {}]
  %s16 = inlined_call_operand.vmem [shape: bf16[32,64], index: 16, kind: input, shape index: {}]
  %s17 = inlined_call_operand.vmem [shape: f32[1,64], index: 17, kind: input, shape index: {}]
  %s18 = inlined_call_operand.vmem [shape: bf16[64,32], index: 18, kind: input, shape index: {}]
  %s19 = inlined_call_operand.vmem [shape: f32[1,32], index: 19, kind: input, shape index: {}]
  %s20 = inlined_call_operand.vmem [shape: f32[4,32], index: 20, kind: input, shape index: {}]
  %s21 = inlined_call_operand.vmem [shape: f32[4,32], index: 21, kind: input, shape index: {}]
  %s22 = inlined_call_operand.hbm [shape: f32[2,8,32], index: 22, kind: output, shape index: {0}]
  %s23 = inlined_call_operand.vmem [shape: f32[2,8,32], index: 23, kind: output, shape index: {1}]
  %24 = xla_tuple %s22, %s23
  %s25 = sld [smem:[#allocation0]]
  $region137: #{transformer_decoder_forward.3} parent=0
    _
  %s27 = ssub.s32 1, %s25
  %s28 = scalar_select 0, %s27, %s25
  $region1: #{transformer_decoder_forward.3} parent=0
    #allocation7 [shape = 'u8[8192]{0}', space=vmem, size = 0x2000, scoped, tag = 'output window, operand 0']
    #allocation8 [shape = 's32[2]{0}', space=sflag, size = 0x8, scoped, tag = 'scoped memory for transformer_decoder_forward.3']
    %29 = vsyncpa [#allocation8], 0
    %s30 = scalar_lea.sflag [#allocation8], 1
    %31 = vsyncpa %s30, 0
    loop: start=0, step=1, limit=8
    $region2: #{transformer_decoder_forward.3} parent=1 // loop_pre_header
      _
    $region3: #{transformer_decoder_forward.3} parent=1 // loop_header
      %s33 = sphi 0, %s37
      %p34 = scmp.ge.s32.totalorder %s33, 8
      %s40 = sphi 0, %s52
      %s41 = sphi 0, %s48
      %s42 = sphi 0, %s40
      %s43 = sphi 0, %s41
      %s44 = sphi 0, %s42
      %s45 = sphi 0, %s43
      %s55 = sphi 0, %s57
      %s58 = sphi 0, %s55
      %s59 = sphi 0, %s58
      %s75 = sphi 0, %s59
      %s81 = sphi 0, %s83
      %s84 = sphi 0, %s81
      %s85 = sphi 0, %s84
      %s101 = sphi 0, %s85
      %s109 = sphi 0, %s111
      %s112 = sphi 0, %s109
      %s113 = sphi 0, %s112
      %s129 = sphi 0, %s113
      %s137 = sphi 0, %s139
      %s140 = sphi 0, %s137
      %s141 = sphi 0, %s140
      %s157 = sphi 0, %s141
      %s161 = sphi 0, %s161
      %s163 = sphi 0, %s161
      %s164 = sphi 0, %s163
      %s178 = sphi 0, %s164
      %s182 = sphi 0, %s182
      %s184 = sphi 0, %s182
      %s185 = sphi 0, %s184
      %s199 = sphi 0, %s185
      %s203 = sphi 0, %s203
      %s205 = sphi 0, %s203
      %s206 = sphi 0, %s205
      %s220 = sphi 0, %s206
      %s224 = sphi 0, %s224
      %s226 = sphi 0, %s224
      %s227 = sphi 0, %s226
      %s241 = sphi 0, %s227
      %s245 = sphi 0, %s245
      %s247 = sphi 0, %s245
      %s248 = sphi 0, %s247
      %s262 = sphi 0, %s248
      %s266 = sphi 0, %s266
      %s268 = sphi 0, %s266
      %s269 = sphi 0, %s268
      %s283 = sphi 0, %s269
      %s287 = sphi 0, %s287
      %s289 = sphi 0, %s287
      %s290 = sphi 0, %s289
      %s304 = sphi 0, %s290
      %s308 = sphi 0, %s308
      %s310 = sphi 0, %s308
      %s311 = sphi 0, %s310
      %s325 = sphi 0, %s311
      %s329 = sphi 0, %s329
      %s331 = sphi 0, %s329
      %s332 = sphi 0, %s331
      %s346 = sphi 0, %s332
      %s350 = sphi 0, %s350
      %s352 = sphi 0, %s350
      %s353 = sphi 0, %s352
      %s367 = sphi 0, %s353
      %s371 = sphi 0, %s371
      %s373 = sphi 0, %s371
      %s374 = sphi 0, %s373
      %s388 = sphi 0, %s374
      %s392 = sphi 0, %s392
      %s394 = sphi 0, %s392
      %s395 = sphi 0, %s394
      %s409 = sphi 0, %s395
      %s413 = sphi 0, %s413
      %s415 = sphi 0, %s413
      %s416 = sphi 0, %s415
      %s430 = sphi 0, %s416
      %s434 = sphi 0, %s434
      %s436 = sphi 0, %s434
      %s437 = sphi 0, %s436
      %s451 = sphi 0, %s437
      %s455 = sphi 0, %s455
      %s457 = sphi 0, %s455
      %s458 = sphi 0, %s457
      %s472 = sphi 0, %s458
      %s476 = sphi 0, %s476
      %s478 = sphi 0, %s476
      %s479 = sphi 0, %s478
      %s493 = sphi 0, %s479
      %s497 = sphi 0, %s497
      %s499 = sphi 0, %s497
      %s500 = sphi 0, %s499
      %s514 = sphi 0, %s500
      %s518 = sphi 0, %s518
      %s520 = sphi 0, %s518
      %s521 = sphi 0, %s520
      %s535 = sphi 0, %s521
      %s541 = sphi 0, %s543
      %s544 = sphi 0, %s541
      %s545 = sphi 0, %s544
      %s561 = sphi 0, %s545
      %s567 = sphi 0, %s569
      %s570 = sphi 0, %s567
      %s571 = sphi 0, %s570
      %s587 = sphi 0, %s571
    $region4: #{transformer_decoder_forward.3} parent=1 // loop_header_branch
      %36 = sbr.rel (%p34) target = $region8
    $region5: #{transformer_decoder_forward.3} parent=1 // loop_body
      %s38 = ssub.s32 %s33, 1
      %s39 = ssub.s32 %s33, 2
      %s46 = sadd.s32 1, %s41
      %p47 = scmp.ge.s32.totalorder %s46, 3
      %s48 = scalar_select %p47, 0, %s46
      %s49 = sadd.s32 1, %s40
      %s50 = scalar_select %p47, %s49, %s40
      %p51 = scmp.ge.s32.totalorder %s50, 2
      %s52 = scalar_select %p51, 0, %s50
      %s53 = ssub.s32 %s40, %s52
      %p54 = scmp.eq.s32.totalorder %s53, 0
      %s56 = sadd.s32 %s55, 1
      %s57 = scalar_select %p54, %s55, %s56
      %p60 = pneg %p54
      %p61 = scmp.eq.s32.totalorder %s33, 5
      %p62 = por %p60, %p61
      %p63 = scmp.ne.s32.totalorder %s55, %s58
      %p64 = scmp.eq.s32.totalorder %s33, 0
      %p65 = por %p63, %p64
      %p66 = scmp.ne.s32.totalorder %s55, %s58
      %p67 = scmp.eq.s32.totalorder %s38, 5
      %p68 = por %p66, %p67
      %p69 = scmp.ne.s32.totalorder %s58, %s59
      %p70 = scmp.eq.s32.totalorder %s38, 0
      %p71 = por %p69, %p70
      %p72 = scmp.ne.s32.totalorder %s58, %s59
      %p73 = scmp.eq.s32.totalorder %s39, 5
      %p74 = por %p72, %p73
      %p76 = scmp.ne.s32.totalorder %s59, %s75
      %p77 = scmp.eq.s32.totalorder %s39, 0
      %p78 = por %p76, %p77
      %s79 = ssub.s32 %s40, %s52
      %p80 = scmp.eq.s32.totalorder %s79, 0
      %s82 = sadd.s32 %s81, 1
      %s83 = scalar_select %p80, %s81, %s82
      %p86 = pneg %p80
      %p87 = scmp.eq.s32.totalorder %s33, 5
      %p88 = por %p86, %p87
      %p89 = scmp.ne.s32.totalorder %s81, %s84
      %p90 = scmp.eq.s32.totalorder %s33, 0
      %p91 = por %p89, %p90
      %p92 = scmp.ne.s32.totalorder %s81, %s84
      %p93 = scmp.eq.s32.totalorder %s38, 5
      %p94 = por %p92, %p93
      %p95 = scmp.ne.s32.totalorder %s84, %s85
      %p96 = scmp.eq.s32.totalorder %s38, 0
      %p97 = por %p95, %p96
      %p98 = scmp.ne.s32.totalorder %s84, %s85
      %p99 = scmp.eq.s32.totalorder %s39, 5
      %p100 = por %p98, %p99
      %p102 = scmp.ne.s32.totalorder %s85, %s101
      %p103 = scmp.eq.s32.totalorder %s39, 0
      %p104 = por %p102, %p103
      %s105 = ssub.s32 %s40, %s52
      %s106 = ssub.s32 %s41, %s48
      %s107 = sor.u32 %s105, %s106
      %p108 = scmp.eq.s32.totalorder %s107, 0
      %s110 = sadd.s32 %s109, 1
      %s111 = scalar_select %p108, %s109, %s110
      %p114 = pneg %p108
      %p115 = scmp.eq.s32.totalorder %s33, 5
      %p116 = por %p114, %p115
      %p117 = scmp.ne.s32.totalorder %s109, %s112
      %p118 = scmp.eq.s32.totalorder %s33, 0
      %p119 = por %p117, %p118
      %p120 = scmp.ne.s32.totalorder %s109, %s112
      %p121 = scmp.eq.s32.totalorder %s38, 5
      %p122 = por %p120, %p121
      %p123 = scmp.ne.s32.totalorder %s112, %s113
      %p124 = scmp.eq.s32.totalorder %s38, 0
      %p125 = por %p123, %p124
      %p126 = scmp.ne.s32.totalorder %s112, %s113
      %p127 = scmp.eq.s32.totalorder %s39, 5
      %p128 = por %p126, %p127
      %p130 = scmp.ne.s32.totalorder %s113, %s129
      %p131 = scmp.eq.s32.totalorder %s39, 0
      %p132 = por %p130, %p131
      %s133 = ssub.s32 %s40, %s52
      %s134 = ssub.s32 %s41, %s48
      %s135 = sor.u32 %s133, %s134
      %p136 = scmp.eq.s32.totalorder %s135, 0
      %s138 = sadd.s32 %s137, 1
      %s139 = scalar_select %p136, %s137, %s138
      %p142 = pneg %p136
      %p143 = scmp.eq.s32.totalorder %s33, 5
      %p144 = por %p142, %p143
      %p145 = scmp.ne.s32.totalorder %s137, %s140
      %p146 = scmp.eq.s32.totalorder %s33, 0
      %p147 = por %p145, %p146
      %p148 = scmp.ne.s32.totalorder %s137, %s140
      %p149 = scmp.eq.s32.totalorder %s38, 5
      %p150 = por %p148, %p149
      %p151 = scmp.ne.s32.totalorder %s140, %s141
      %p152 = scmp.eq.s32.totalorder %s38, 0
      %p153 = por %p151, %p152
      %p154 = scmp.ne.s32.totalorder %s140, %s141
      %p155 = scmp.eq.s32.totalorder %s39, 5
      %p156 = por %p154, %p155
      %p158 = scmp.ne.s32.totalorder %s141, %s157
      %p159 = scmp.eq.s32.totalorder %s39, 0
      %p160 = por %p158, %p159
      %s162 = sadd.s32 %s161, 1
      %p165 = scmp.eq.s32.totalorder %s33, 5
      %p166 = scmp.ne.s32.totalorder %s161, %s163
      %p167 = scmp.eq.s32.totalorder %s33, 0
      %p168 = por %p166, %p167
      %p169 = scmp.ne.s32.totalorder %s161, %s163
      %p170 = scmp.eq.s32.totalorder %s38, 5
      %p171 = por %p169, %p170
      %p172 = scmp.ne.s32.totalorder %s163, %s164
      %p173 = scmp.eq.s32.totalorder %s38, 0
      %p174 = por %p172, %p173
      %p175 = scmp.ne.s32.totalorder %s163, %s164
      %p176 = scmp.eq.s32.totalorder %s39, 5
      %p177 = por %p175, %p176
      %p179 = scmp.ne.s32.totalorder %s164, %s178
      %p180 = scmp.eq.s32.totalorder %s39, 0
      %p181 = por %p179, %p180
      %s183 = sadd.s32 %s182, 1
      %p186 = scmp.eq.s32.totalorder %s33, 5
      %p187 = scmp.ne.s32.totalorder %s182, %s184
      %p188 = scmp.eq.s32.totalorder %s33, 0
      %p189 = por %p187, %p188
      %p190 = scmp.ne.s32.totalorder %s182, %s184
      %p191 = scmp.eq.s32.totalorder %s38, 5
      %p192 = por %p190, %p191
      %p193 = scmp.ne.s32.totalorder %s184, %s185
      %p194 = scmp.eq.s32.totalorder %s38, 0
      %p195 = por %p193, %p194
      %p196 = scmp.ne.s32.totalorder %s184, %s185
      %p197 = scmp.eq.s32.totalorder %s39, 5
      %p198 = por %p196, %p197
      %p200 = scmp.ne.s32.totalorder %s185, %s199
      %p201 = scmp.eq.s32.totalorder %s39, 0
      %p202 = por %p200, %p201
      %s204 = sadd.s32 %s203, 1
      %p207 = scmp.eq.s32.totalorder %s33, 5
      %p208 = scmp.ne.s32.totalorder %s203, %s205
      %p209 = scmp.eq.s32.totalorder %s33, 0
      %p210 = por %p208, %p209
      %p211 = scmp.ne.s32.totalorder %s203, %s205
      %p212 = scmp.eq.s32.totalorder %s38, 5
      %p213 = por %p211, %p212
      %p214 = scmp.ne.s32.totalorder %s205, %s206
      %p215 = scmp.eq.s32.totalorder %s38, 0
      %p216 = por %p214, %p215
      %p217 = scmp.ne.s32.totalorder %s205, %s206
      %p218 = scmp.eq.s32.totalorder %s39, 5
      %p219 = por %p217, %p218
      %p221 = scmp.ne.s32.totalorder %s206, %s220
      %p222 = scmp.eq.s32.totalorder %s39, 0
      %p223 = por %p221, %p222
      %s225 = sadd.s32 %s224, 1
      %p228 = scmp.eq.s32.totalorder %s33, 5
      %p229 = scmp.ne.s32.totalorder %s224, %s226
      %p230 = scmp.eq.s32.totalorder %s33, 0
      %p231 = por %p229, %p230
      %p232 = scmp.ne.s32.totalorder %s224, %s226
      %p233 = scmp.eq.s32.totalorder %s38, 5
      %p234 = por %p232, %p233
      %p235 = scmp.ne.s32.totalorder %s226, %s227
      %p236 = scmp.eq.s32.totalorder %s38, 0
      %p237 = por %p235, %p236
      %p238 = scmp.ne.s32.totalorder %s226, %s227
      %p239 = scmp.eq.s32.totalorder %s39, 5
      %p240 = por %p238, %p239
      %p242 = scmp.ne.s32.totalorder %s227, %s241
      %p243 = scmp.eq.s32.totalorder %s39, 0
      %p244 = por %p242, %p243
      %s246 = sadd.s32 %s245, 1
      %p249 = scmp.eq.s32.totalorder %s33, 5
      %p250 = scmp.ne.s32.totalorder %s245, %s247
      %p251 = scmp.eq.s32.totalorder %s33, 0
      %p252 = por %p250, %p251
      %p253 = scmp.ne.s32.totalorder %s245, %s247
      %p254 = scmp.eq.s32.totalorder %s38, 5
      %p255 = por %p253, %p254
      %p256 = scmp.ne.s32.totalorder %s247, %s248
      %p257 = scmp.eq.s32.totalorder %s38, 0
      %p258 = por %p256, %p257
      %p259 = scmp.ne.s32.totalorder %s247, %s248
      %p260 = scmp.eq.s32.totalorder %s39, 5
      %p261 = por %p259, %p260
      %p263 = scmp.ne.s32.totalorder %s248, %s262
      %p264 = scmp.eq.s32.totalorder %s39, 0
      %p265 = por %p263, %p264
      %s267 = sadd.s32 %s266, 1
      %p270 = scmp.eq.s32.totalorder %s33, 5
      %p271 = scmp.ne.s32.totalorder %s266, %s268
      %p272 = scmp.eq.s32.totalorder %s33, 0
      %p273 = por %p271, %p272
      %p274 = scmp.ne.s32.totalorder %s266, %s268
      %p275 = scmp.eq.s32.totalorder %s38, 5
      %p276 = por %p274, %p275
      %p277 = scmp.ne.s32.totalorder %s268, %s269
      %p278 = scmp.eq.s32.totalorder %s38, 0
      %p279 = por %p277, %p278
      %p280 = scmp.ne.s32.totalorder %s268, %s269
      %p281 = scmp.eq.s32.totalorder %s39, 5
      %p282 = por %p280, %p281
      %p284 = scmp.ne.s32.totalorder %s269, %s283
      %p285 = scmp.eq.s32.totalorder %s39, 0
      %p286 = por %p284, %p285
      %s288 = sadd.s32 %s287, 1
      %p291 = scmp.eq.s32.totalorder %s33, 5
      %p292 = scmp.ne.s32.totalorder %s287, %s289
      %p293 = scmp.eq.s32.totalorder %s33, 0
      %p294 = por %p292, %p293
      %p295 = scmp.ne.s32.totalorder %s287, %s289
      %p296 = scmp.eq.s32.totalorder %s38, 5
      %p297 = por %p295, %p296
      %p298 = scmp.ne.s32.totalorder %s289, %s290
      %p299 = scmp.eq.s32.totalorder %s38, 0
      %p300 = por %p298, %p299
      %p301 = scmp.ne.s32.totalorder %s289, %s290
      %p302 = scmp.eq.s32.totalorder %s39, 5
      %p303 = por %p301, %p302
      %p305 = scmp.ne.s32.totalorder %s290, %s304
      %p306 = scmp.eq.s32.totalorder %s39, 0
      %p307 = por %p305, %p306
      %s309 = sadd.s32 %s308, 1
      %p312 = scmp.eq.s32.totalorder %s33, 5
      %p313 = scmp.ne.s32.totalorder %s308, %s310
      %p314 = scmp.eq.s32.totalorder %s33, 0
      %p315 = por %p313, %p314
      %p316 = scmp.ne.s32.totalorder %s308, %s310
      %p317 = scmp.eq.s32.totalorder %s38, 5
      %p318 = por %p316, %p317
      %p319 = scmp.ne.s32.totalorder %s310, %s311
      %p320 = scmp.eq.s32.totalorder %s38, 0
      %p321 = por %p319, %p320
      %p322 = scmp.ne.s32.totalorder %s310, %s311
      %p323 = scmp.eq.s32.totalorder %s39, 5
      %p324 = por %p322, %p323
      %p326 = scmp.ne.s32.totalorder %s311, %s325
      %p327 = scmp.eq.s32.totalorder %s39, 0
      %p328 = por %p326, %p327
      %s330 = sadd.s32 %s329, 1
      %p333 = scmp.eq.s32.totalorder %s33, 5
      %p334 = scmp.ne.s32.totalorder %s329, %s331
      %p335 = scmp.eq.s32.totalorder %s33, 0
      %p336 = por %p334, %p335
      %p337 = scmp.ne.s32.totalorder %s329, %s331
      %p338 = scmp.eq.s32.totalorder %s38, 5
      %p339 = por %p337, %p338
      %p340 = scmp.ne.s32.totalorder %s331, %s332
      %p341 = scmp.eq.s32.totalorder %s38, 0
      %p342 = por %p340, %p341
      %p343 = scmp.ne.s32.totalorder %s331, %s332
      %p344 = scmp.eq.s32.totalorder %s39, 5
      %p345 = por %p343, %p344
      %p347 = scmp.ne.s32.totalorder %s332, %s346
      %p348 = scmp.eq.s32.totalorder %s39, 0
      %p349 = por %p347, %p348
      %s351 = sadd.s32 %s350, 1
      %p354 = scmp.eq.s32.totalorder %s33, 5
      %p355 = scmp.ne.s32.totalorder %s350, %s352
      %p356 = scmp.eq.s32.totalorder %s33, 0
      %p357 = por %p355, %p356
      %p358 = scmp.ne.s32.totalorder %s350, %s352
      %p359 = scmp.eq.s32.totalorder %s38, 5
      %p360 = por %p358, %p359
      %p361 = scmp.ne.s32.totalorder %s352, %s353
      %p362 = scmp.eq.s32.totalorder %s38, 0
      %p363 = por %p361, %p362
      %p364 = scmp.ne.s32.totalorder %s352, %s353
      %p365 = scmp.eq.s32.totalorder %s39, 5
      %p366 = por %p364, %p365
      %p368 = scmp.ne.s32.totalorder %s353, %s367
      %p369 = scmp.eq.s32.totalorder %s39, 0
      %p370 = por %p368, %p369
      %s372 = sadd.s32 %s371, 1
      %p375 = scmp.eq.s32.totalorder %s33, 5
      %p376 = scmp.ne.s32.totalorder %s371, %s373
      %p377 = scmp.eq.s32.totalorder %s33, 0
      %p378 = por %p376, %p377
      %p379 = scmp.ne.s32.totalorder %s371, %s373
      %p380 = scmp.eq.s32.totalorder %s38, 5
      %p381 = por %p379, %p380
      %p382 = scmp.ne.s32.totalorder %s373, %s374
      %p383 = scmp.eq.s32.totalorder %s38, 0
      %p384 = por %p382, %p383
      %p385 = scmp.ne.s32.totalorder %s373, %s374
      %p386 = scmp.eq.s32.totalorder %s39, 5
      %p387 = por %p385, %p386
      %p389 = scmp.ne.s32.totalorder %s374, %s388
      %p390 = scmp.eq.s32.totalorder %s39, 0
      %p391 = por %p389, %p390
      %s393 = sadd.s32 %s392, 1
      %p396 = scmp.eq.s32.totalorder %s33, 5
      %p397 = scmp.ne.s32.totalorder %s392, %s394
      %p398 = scmp.eq.s32.totalorder %s33, 0
      %p399 = por %p397, %p398
      %p400 = scmp.ne.s32.totalorder %s392, %s394
      %p401 = scmp.eq.s32.totalorder %s38, 5
      %p402 = por %p400, %p401
      %p403 = scmp.ne.s32.totalorder %s394, %s395
      %p404 = scmp.eq.s32.totalorder %s38, 0
      %p405 = por %p403, %p404
      %p406 = scmp.ne.s32.totalorder %s394, %s395
      %p407 = scmp.eq.s32.totalorder %s39, 5
      %p408 = por %p406, %p407
      %p410 = scmp.ne.s32.totalorder %s395, %s409
      %p411 = scmp.eq.s32.totalorder %s39, 0
      %p412 = por %p410, %p411
      %s414 = sadd.s32 %s413, 1
      %p417 = scmp.eq.s32.totalorder %s33, 5
      %p418 = scmp.ne.s32.totalorder %s413, %s415
      %p419 = scmp.eq.s32.totalorder %s33, 0
      %p420 = por %p418, %p419
      %p421 = scmp.ne.s32.totalorder %s413, %s415
      %p422 = scmp.eq.s32.totalorder %s38, 5
      %p423 = por %p421, %p422
      %p424 = scmp.ne.s32.totalorder %s415, %s416
      %p425 = scmp.eq.s32.totalorder %s38, 0
      %p426 = por %p424, %p425
      %p427 = scmp.ne.s32.totalorder %s415, %s416
      %p428 = scmp.eq.s32.totalorder %s39, 5
      %p429 = por %p427, %p428
      %p431 = scmp.ne.s32.totalorder %s416, %s430
      %p432 = scmp.eq.s32.totalorder %s39, 0
      %p433 = por %p431, %p432
      %s435 = sadd.s32 %s434, 1
      %p438 = scmp.eq.s32.totalorder %s33, 5
      %p439 = scmp.ne.s32.totalorder %s434, %s436
      %p440 = scmp.eq.s32.totalorder %s33, 0
      %p441 = por %p439, %p440
      %p442 = scmp.ne.s32.totalorder %s434, %s436
      %p443 = scmp.eq.s32.totalorder %s38, 5
      %p444 = por %p442, %p443
      %p445 = scmp.ne.s32.totalorder %s436, %s437
      %p446 = scmp.eq.s32.totalorder %s38, 0
      %p447 = por %p445, %p446
      %p448 = scmp.ne.s32.totalorder %s436, %s437
      %p449 = scmp.eq.s32.totalorder %s39, 5
      %p450 = por %p448, %p449
      %p452 = scmp.ne.s32.totalorder %s437, %s451
      %p453 = scmp.eq.s32.totalorder %s39, 0
      %p454 = por %p452, %p453
      %s456 = sadd.s32 %s455, 1
      %p459 = scmp.eq.s32.totalorder %s33, 5
      %p460 = scmp.ne.s32.totalorder %s455, %s457
      %p461 = scmp.eq.s32.totalorder %s33, 0
      %p462 = por %p460, %p461
      %p463 = scmp.ne.s32.totalorder %s455, %s457
      %p464 = scmp.eq.s32.totalorder %s38, 5
      %p465 = por %p463, %p464
      %p466 = scmp.ne.s32.totalorder %s457, %s458
      %p467 = scmp.eq.s32.totalorder %s38, 0
      %p468 = por %p466, %p467
      %p469 = scmp.ne.s32.totalorder %s457, %s458
      %p470 = scmp.eq.s32.totalorder %s39, 5
      %p471 = por %p469, %p470
      %p473 = scmp.ne.s32.totalorder %s458, %s472
      %p474 = scmp.eq.s32.totalorder %s39, 0
      %p475 = por %p473, %p474
      %s477 = sadd.s32 %s476, 1
      %p480 = scmp.eq.s32.totalorder %s33, 5
      %p481 = scmp.ne.s32.totalorder %s476, %s478
      %p482 = scmp.eq.s32.totalorder %s33, 0
      %p483 = por %p481, %p482
      %p484 = scmp.ne.s32.totalorder %s476, %s478
      %p485 = scmp.eq.s32.totalorder %s38, 5
      %p486 = por %p484, %p485
      %p487 = scmp.ne.s32.totalorder %s478, %s479
      %p488 = scmp.eq.s32.totalorder %s38, 0
      %p489 = por %p487, %p488
      %p490 = scmp.ne.s32.totalorder %s478, %s479
      %p491 = scmp.eq.s32.totalorder %s39, 5
      %p492 = por %p490, %p491
      %p494 = scmp.ne.s32.totalorder %s479, %s493
      %p495 = scmp.eq.s32.totalorder %s39, 0
      %p496 = por %p494, %p495
      %s498 = sadd.s32 %s497, 1
      %p501 = scmp.eq.s32.totalorder %s33, 5
      %p502 = scmp.ne.s32.totalorder %s497, %s499
      %p503 = scmp.eq.s32.totalorder %s33, 0
      %p504 = por %p502, %p503
      %p505 = scmp.ne.s32.totalorder %s497, %s499
      %p506 = scmp.eq.s32.totalorder %s38, 5
      %p507 = por %p505, %p506
      %p508 = scmp.ne.s32.totalorder %s499, %s500
      %p509 = scmp.eq.s32.totalorder %s38, 0
      %p510 = por %p508, %p509
      %p511 = scmp.ne.s32.totalorder %s499, %s500
      %p512 = scmp.eq.s32.totalorder %s39, 5
      %p513 = por %p511, %p512
      %p515 = scmp.ne.s32.totalorder %s500, %s514
      %p516 = scmp.eq.s32.totalorder %s39, 0
      %p517 = por %p515, %p516
      %s519 = sadd.s32 %s518, 1
      %p522 = scmp.eq.s32.totalorder %s33, 5
      %p523 = scmp.ne.s32.totalorder %s518, %s520
      %p524 = scmp.eq.s32.totalorder %s33, 0
      %p525 = por %p523, %p524
      %p526 = scmp.ne.s32.totalorder %s518, %s520
      %p527 = scmp.eq.s32.totalorder %s38, 5
      %p528 = por %p526, %p527
      %p529 = scmp.ne.s32.totalorder %s520, %s521
      %p530 = scmp.eq.s32.totalorder %s38, 0
      %p531 = por %p529, %p530
      %p532 = scmp.ne.s32.totalorder %s520, %s521
      %p533 = scmp.eq.s32.totalorder %s39, 5
      %p534 = por %p532, %p533
      %p536 = scmp.ne.s32.totalorder %s521, %s535
      %p537 = scmp.eq.s32.totalorder %s39, 0
      %p538 = por %p536, %p537
      %s539 = ssub.s32 %s40, %s52
      %p540 = scmp.eq.s32.totalorder %s539, 0
      %s542 = sadd.s32 %s541, 1
      %s543 = scalar_select %p540, %s541, %s542
      %p546 = pneg %p540
      %p547 = scmp.eq.s32.totalorder %s33, 5
      %p548 = por %p546, %p547
      %p549 = scmp.ne.s32.totalorder %s541, %s544
      %p550 = scmp.eq.s32.totalorder %s33, 0
      %p551 = por %p549, %p550
      %p552 = scmp.ne.s32.totalorder %s541, %s544
      %p553 = scmp.eq.s32.totalorder %s38, 5
      %p554 = por %p552, %p553
      %p555 = scmp.ne.s32.totalorder %s544, %s545
      %p556 = scmp.eq.s32.totalorder %s38, 0
      %p557 = por %p555, %p556
      %p558 = scmp.ne.s32.totalorder %s544, %s545
      %p559 = scmp.eq.s32.totalorder %s39, 5
      %p560 = por %p558, %p559
      %p562 = scmp.ne.s32.totalorder %s545, %s561
      %p563 = scmp.eq.s32.totalorder %s39, 0
      %p564 = por %p562, %p563
      %s565 = ssub.s32 %s40, %s52
      %p566 = scmp.eq.s32.totalorder %s565, 0
      %s568 = sadd.s32 %s567, 1
      %s569 = scalar_select %p566, %s567, %s568
      %p572 = pneg %p566
      %p573 = scmp.eq.s32.totalorder %s33, 5
      %p574 = por %p572, %p573
      %p575 = scmp.ne.s32.totalorder %s567, %s570
      %p576 = scmp.eq.s32.totalorder %s33, 0
      %p577 = por %p575, %p576
      %p578 = scmp.ne.s32.totalorder %s567, %s570
      %p579 = scmp.eq.s32.totalorder %s38, 5
      %p580 = por %p578, %p579
      %p581 = scmp.ne.s32.totalorder %s570, %s571
      %p582 = scmp.eq.s32.totalorder %s38, 0
      %p583 = por %p581, %p582
      %p584 = scmp.ne.s32.totalorder %s570, %s571
      %p585 = scmp.eq.s32.totalorder %s39, 5
      %p586 = por %p584, %p585
      %p588 = scmp.ne.s32.totalorder %s571, %s587
      %p589 = scmp.eq.s32.totalorder %s39, 0
      %p590 = por %p588, %p589
      %p591 = scmp.le.s32.totalorder 1, %s33
      %p592 = scmp.lt.s32.totalorder %s33, 7
      %p593 = pnand %p591, %p592
      %p594 = pneg %p593
      // Predicated region
      $region9: #{transformer_decoder_forward.3} parent=5 // pred_check
        _
      $region10: #{transformer_decoder_forward.3} parent=5 // pred_check_branch
        %596 = sbr.rel (%p593) target = $region12
      $region11: #{transformer_decoder_forward.3} parent=5 // pred_region
        %s597 = ssub.s32 %s33, 1
        // Predicated region
        $region13: #{transformer_decoder_forward.3} parent=11 // pred_check
          %p598 = pneg %p174
        $region14: #{transformer_decoder_forward.3} parent=11 // pred_check_branch
          %600 = sbr.rel (%p598) target = $region16
        $region15: #{transformer_decoder_forward.3} parent=11 // pred_region
          _
        $region16: #{transformer_decoder_forward.3} parent=11 // pred_fallthru
          _
        // Predicated region
        $region17: #{transformer_decoder_forward.3} parent=11 // pred_check
          %p601 = pneg %p195
        $region18: #{transformer_decoder_forward.3} parent=11 // pred_check_branch
          %603 = sbr.rel (%p601) target = $region20
        $region19: #{transformer_decoder_forward.3} parent=11 // pred_region
          _
        $region20: #{transformer_decoder_forward.3} parent=11 // pred_fallthru
          _
        // Predicated region
        $region21: #{transformer_decoder_forward.3} parent=11 // pred_check
          %p604 = pneg %p216
        $region22: #{transformer_decoder_forward.3} parent=11 // pred_check_branch
          %606 = sbr.rel (%p604) target = $region24
        $region23: #{transformer_decoder_forward.3} parent=11 // pred_region
          _
        $region24: #{transformer_decoder_forward.3} parent=11 // pred_fallthru
          _
        // Predicated region
        $region25: #{transformer_decoder_forward.3} parent=11 // pred_check
          %p607 = pneg %p237
        $region26: #{transformer_decoder_forward.3} parent=11 // pred_check_branch
          %609 = sbr.rel (%p607) target = $region28
        $region27: #{transformer_decoder_forward.3} parent=11 // pred_region
          _
        $region28: #{transformer_decoder_forward.3} parent=11 // pred_fallthru
          _
        // Predicated region
        $region29: #{transformer_decoder_forward.3} parent=11 // pred_check
          %p610 = pneg %p258
        $region30: #{transformer_decoder_forward.3} parent=11 // pred_check_branch
          %612 = sbr.rel (%p610) target = $region32
        $region31: #{transformer_decoder_forward.3} parent=11 // pred_region
          _
        $region32: #{transformer_decoder_forward.3} parent=11 // pred_fallthru
          _
        // Predicated region
        $region33: #{transformer_decoder_forward.3} parent=11 // pred_check
          %p613 = pneg %p279
        $region34: #{transformer_decoder_forward.3} parent=11 // pred_check_branch
          %615 = sbr.rel (%p613) target = $region36
        $region35: #{transformer_decoder_forward.3} parent=11 // pred_region
          _
        $region36: #{transformer_decoder_forward.3} parent=11 // pred_fallthru
          _
        // Predicated region
        $region37: #{transformer_decoder_forward.3} parent=11 // pred_check
          %p616 = pneg %p300
        $region38: #{transformer_decoder_forward.3} parent=11 // pred_check_branch
          %618 = sbr.rel (%p616) target = $region40
        $region39: #{transformer_decoder_forward.3} parent=11 // pred_region
          _
        $region40: #{transformer_decoder_forward.3} parent=11 // pred_fallthru
          _
        // Predicated region
        $region41: #{transformer_decoder_forward.3} parent=11 // pred_check
          %p619 = pneg %p321
        $region42: #{transformer_decoder_forward.3} parent=11 // pred_check_branch
          %621 = sbr.rel (%p619) target = $region44
        $region43: #{transformer_decoder_forward.3} parent=11 // pred_region
          _
        $region44: #{transformer_decoder_forward.3} parent=11 // pred_fallthru
          _
        // Predicated region
        $region45: #{transformer_decoder_forward.3} parent=11 // pred_check
          %p622 = pneg %p342
        $region46: #{transformer_decoder_forward.3} parent=11 // pred_check_branch
          %624 = sbr.rel (%p622) target = $region48
        $region47: #{transformer_decoder_forward.3} parent=11 // pred_region
          _
        $region48: #{transformer_decoder_forward.3} parent=11 // pred_fallthru
          _
        // Predicated region
        $region49: #{transformer_decoder_forward.3} parent=11 // pred_check
          %p625 = pneg %p363
        $region50: #{transformer_decoder_forward.3} parent=11 // pred_check_branch
          %627 = sbr.rel (%p625) target = $region52
        $region51: #{transformer_decoder_forward.3} parent=11 // pred_region
          _
        $region52: #{transformer_decoder_forward.3} parent=11 // pred_fallthru
          _
        // Predicated region
        $region53: #{transformer_decoder_forward.3} parent=11 // pred_check
          %p628 = pneg %p384
        $region54: #{transformer_decoder_forward.3} parent=11 // pred_check_branch
          %630 = sbr.rel (%p628) target = $region56
        $region55: #{transformer_decoder_forward.3} parent=11 // pred_region
          _
        $region56: #{transformer_decoder_forward.3} parent=11 // pred_fallthru
          _
        // Predicated region
        $region57: #{transformer_decoder_forward.3} parent=11 // pred_check
          %p631 = pneg %p405
        $region58: #{transformer_decoder_forward.3} parent=11 // pred_check_branch
          %633 = sbr.rel (%p631) target = $region60
        $region59: #{transformer_decoder_forward.3} parent=11 // pred_region
          _
        $region60: #{transformer_decoder_forward.3} parent=11 // pred_fallthru
          _
        // Predicated region
        $region61: #{transformer_decoder_forward.3} parent=11 // pred_check
          %p634 = pneg %p426
        $region62: #{transformer_decoder_forward.3} parent=11 // pred_check_branch
          %636 = sbr.rel (%p634) target = $region64
        $region63: #{transformer_decoder_forward.3} parent=11 // pred_region
          _
        $region64: #{transformer_decoder_forward.3} parent=11 // pred_fallthru
          _
        // Predicated region
        $region65: #{transformer_decoder_forward.3} parent=11 // pred_check
          %p637 = pneg %p447
        $region66: #{transformer_decoder_forward.3} parent=11 // pred_check_branch
          %639 = sbr.rel (%p637) target = $region68
        $region67: #{transformer_decoder_forward.3} parent=11 // pred_region
          _
        $region68: #{transformer_decoder_forward.3} parent=11 // pred_fallthru
          _
        // Predicated region
        $region69: #{transformer_decoder_forward.3} parent=11 // pred_check
          %p640 = pneg %p468
        $region70: #{transformer_decoder_forward.3} parent=11 // pred_check_branch
          %642 = sbr.rel (%p640) target = $region72
        $region71: #{transformer_decoder_forward.3} parent=11 // pred_region
          _
        $region72: #{transformer_decoder_forward.3} parent=11 // pred_fallthru
          _
        // Predicated region
        $region73: #{transformer_decoder_forward.3} parent=11 // pred_check
          %p643 = pneg %p489
        $region74: #{transformer_decoder_forward.3} parent=11 // pred_check_branch
          %645 = sbr.rel (%p643) target = $region76
        $region75: #{transformer_decoder_forward.3} parent=11 // pred_region
          _
        $region76: #{transformer_decoder_forward.3} parent=11 // pred_fallthru
          _
        // Predicated region
        $region77: #{transformer_decoder_forward.3} parent=11 // pred_check
          %p646 = pneg %p510
        $region78: #{transformer_decoder_forward.3} parent=11 // pred_check_branch
          %648 = sbr.rel (%p646) target = $region80
        $region79: #{transformer_decoder_forward.3} parent=11 // pred_region
          _
        $region80: #{transformer_decoder_forward.3} parent=11 // pred_fallthru
          _
        // Predicated region
        $region81: #{transformer_decoder_forward.3} parent=11 // pred_check
          %p649 = pneg %p531
        $region82: #{transformer_decoder_forward.3} parent=11 // pred_check_branch
          %651 = sbr.rel (%p649) target = $region84
        $region83: #{transformer_decoder_forward.3} parent=11 // pred_region
          _
        $region84: #{transformer_decoder_forward.3} parent=11 // pred_fallthru
          _
      $region12: #{transformer_decoder_forward.3} parent=5 // pred_fallthru
        _
      %p652 = scmp.lt.s32.totalorder %s33, 6
      // Predicated region
      $region85: #{transformer_decoder_forward.3} parent=5 // pred_check
        %p653 = pneg %p652
      $region86: #{transformer_decoder_forward.3} parent=5 // pred_check_branch
        %655 = sbr.rel (%p653) target = $region88
      $region87: #{transformer_decoder_forward.3} parent=5 // pred_region
        // Predicated region
        $region89: #{transformer_decoder_forward.3} parent=87 // pred_check
          %p656 = pneg %p65
        $region90: #{transformer_decoder_forward.3} parent=87 // pred_check_branch
          %658 = sbr.rel (%p656) target = $region92
        $region91: #{transformer_decoder_forward.3} parent=87 // pred_region
          %p659 = scmp.lt.s32.totalorder %s40, 1
          %s660 = scalar_select %p659, %s40, 1
          %s661 = smul.addr %s660, 8
          %s662 = scalar_lea.vmem %s0, %s661
        $region92: #{transformer_decoder_forward.3} parent=87 // pred_fallthru
          _
        // Predicated region
        $region93: #{transformer_decoder_forward.3} parent=87 // pred_check
          %p663 = pneg %p91
        $region94: #{transformer_decoder_forward.3} parent=87 // pred_check_branch
          %665 = sbr.rel (%p663) target = $region96
        $region95: #{transformer_decoder_forward.3} parent=87 // pred_region
          %p666 = scmp.lt.s32.totalorder %s40, 1
          %s667 = scalar_select %p666, %s40, 1
          %s668 = smul.addr %s667, 8
          %s669 = scalar_lea.vmem %s1, %s668
        $region96: #{transformer_decoder_forward.3} parent=87 // pred_fallthru
          _
        // Predicated region
        $region97: #{transformer_decoder_forward.3} parent=87 // pred_check
          %p670 = pneg %p119
        $region98: #{transformer_decoder_forward.3} parent=87 // pred_check_branch
          %672 = sbr.rel (%p670) target = $region100
        $region99: #{transformer_decoder_forward.3} parent=87 // pred_region
          %s673 = smul.u32 2, %s41
          %p674 = scmp.lt.s32.totalorder %s40, 1
          %s675 = scalar_select %p674, %s40, 1
          %p676 = scmp.lt.s32.totalorder %s673, 5
          %s677 = scalar_select %p676, %s673, 5
          %s678 = smul.addr %s675, 6
          %s679 = sadd.s32 %s677, %s678
          %s680 = smul.addr %s679, 4
          %s681 = scalar_lea.vmem %s2, %s680
          %s682 = smul.u32 2, %s41
        $region100: #{transformer_decoder_forward.3} parent=87 // pred_fallthru
          _
        // Predicated region
        $region101: #{transformer_decoder_forward.3} parent=87 // pred_check
          %p683 = pneg %p147
        $region102: #{transformer_decoder_forward.3} parent=87 // pred_check_branch
          %685 = sbr.rel (%p683) target = $region104
        $region103: #{transformer_decoder_forward.3} parent=87 // pred_region
          %s686 = smul.u32 2, %s41
          %p687 = scmp.lt.s32.totalorder %s40, 1
          %s688 = scalar_select %p687, %s40, 1
          %p689 = scmp.lt.s32.totalorder %s686, 5
          %s690 = scalar_select %p689, %s686, 5
          %s691 = smul.addr %s688, 6
          %s692 = sadd.s32 %s690, %s691
          %s693 = smul.addr %s692, 4
          %s694 = scalar_lea.vmem %s3, %s693
          %s695 = smul.u32 2, %s41
        $region104: #{transformer_decoder_forward.3} parent=87 // pred_fallthru
          _
      $region88: #{transformer_decoder_forward.3} parent=5 // pred_fallthru
        _
      %p696 = scmp.le.s32.totalorder 1, %s33
      %p697 = scmp.lt.s32.totalorder %s33, 7
      %p698 = pnand %p696, %p697
      %p699 = pneg %p698
      // Predicated region
      $region105: #{transformer_decoder_forward.3} parent=5 // pred_check
        _
      $region106: #{transformer_decoder_forward.3} parent=5 // pred_check_branch
        %701 = sbr.rel (%p698) target = $region108
      $region107: #{transformer_decoder_forward.3} parent=5 // pred_region
        %s702 = ssub.s32 %s33, 1
        %p703 = scmp.lt.s32.totalorder %s42, 1
        %s704 = scalar_select %p703, %s42, 1
        %s705 = smul.addr %s704, 8
        %s706 = scalar_lea.vmem %s0, %s705
        %p707 = pneg %p71
        %p708 = pneg %p68
        %p709 = scmp.lt.s32.totalorder %s42, 1
        %s710 = scalar_select %p709, %s42, 1
        %s711 = smul.addr %s710, 8
        %s712 = scalar_lea.vmem %s1, %s711
        %p713 = pneg %p97
        %p714 = pneg %p94
        %s715 = smul.u32 2, %s43
        %p716 = scmp.lt.s32.totalorder %s42, 1
        %s717 = scalar_select %p716, %s42, 1
        %p718 = scmp.lt.s32.totalorder %s715, 5
        %s719 = scalar_select %p718, %s715, 5
        %s720 = smul.addr %s717, 6
        %s721 = sadd.s32 %s719, %s720
        %s722 = smul.addr %s721, 4
        %s723 = scalar_lea.vmem %s2, %s722
        %p724 = pneg %p125
        %p725 = pneg %p122
        %s726 = smul.u32 2, %s43
        %p727 = scmp.lt.s32.totalorder %s42, 1
        %s728 = scalar_select %p727, %s42, 1
        %p729 = scmp.lt.s32.totalorder %s726, 5
        %s730 = scalar_select %p729, %s726, 5
        %s731 = smul.addr %s728, 6
        %s732 = sadd.s32 %s730, %s731
        %s733 = smul.addr %s732, 4
        %s734 = scalar_lea.vmem %s3, %s733
        %p735 = pneg %p153
        %p736 = pneg %p150
        %p737 = pneg %p174
        %p738 = pneg %p171
        %p739 = pneg %p195
        %p740 = pneg %p192
        %p741 = pneg %p216
        %p742 = pneg %p213
        %p743 = pneg %p237
        %p744 = pneg %p234
        %p745 = pneg %p258
        %p746 = pneg %p255
        %p747 = pneg %p279
        %p748 = pneg %p276
        %p749 = pneg %p300
        %p750 = pneg %p297
        %p751 = pneg %p321
        %p752 = pneg %p318
        %p753 = pneg %p342
        %p754 = pneg %p339
        %p755 = pneg %p363
        %p756 = pneg %p360
        %p757 = pneg %p384
        %p758 = pneg %p381
        %p759 = pneg %p405
        %p760 = pneg %p402
        %p761 = pneg %p426
        %p762 = pneg %p423
        %p763 = pneg %p447
        %p764 = pneg %p444
        %p765 = pneg %p468
        %p766 = pneg %p465
        %p767 = pneg %p489
        %p768 = pneg %p486
        %p769 = pneg %p510
        %p770 = pneg %p507
        %p771 = pneg %p531
        %p772 = pneg %p528
        %p773 = pneg %p557
        %p774 = pneg %p554
        %s775 = sand.u32 %s544, 1
        %s776 = scalar_lea.sflag [#allocation8], %s775
        %s777 = sand.u32 %s544, 1
        %s778 = smul.addr %s777, 8
        %s779 = scalar_lea.vmem [#allocation7], %s778
        %p780 = pneg %p583
        %p781 = pneg %p580
        %p782 = scmp.lt.s32.totalorder %s42, 1
        %s783 = scalar_select %p782, %s42, 1
        %s784 = smul.addr %s783, 8
        %s785 = scalar_lea.vmem %s23, %s784
        %p786 = scmp.lt.s32.totalorder %s42, 1
        %s787 = scalar_select %p786, %s42, 1
        %s788 = smul.addr %s787, 8
        %s789 = scalar_lea.vmem %s0, %s788
        %p790 = scmp.lt.s32.totalorder %s42, 1
        %s791 = scalar_select %p790, %s42, 1
        %s792 = smul.addr %s791, 8
        %s793 = scalar_lea.vmem %s1, %s792
        %s794 = smul.u32 2, %s43
        %p795 = scmp.lt.s32.totalorder %s42, 1
        %s796 = scalar_select %p795, %s42, 1
        %p797 = scmp.lt.s32.totalorder %s794, 5
        %s798 = scalar_select %p797, %s794, 5
        %s799 = smul.addr %s796, 6
        %s800 = sadd.s32 %s798, %s799
        %s801 = smul.addr %s800, 4
        %s802 = scalar_lea.vmem %s2, %s801
        %s803 = smul.u32 2, %s43
        %s804 = smul.u32 2, %s43
        %p805 = scmp.lt.s32.totalorder %s42, 1
        %s806 = scalar_select %p805, %s42, 1
        %p807 = scmp.lt.s32.totalorder %s804, 5
        %s808 = scalar_select %p807, %s804, 5
        %s809 = smul.addr %s806, 6
        %s810 = sadd.s32 %s808, %s809
        %s811 = smul.addr %s810, 4
        %s812 = scalar_lea.vmem %s3, %s811
        %s813 = smul.u32 2, %s43
        %p814 = scmp.lt.s32.totalorder %s42, 1
        %s815 = scalar_select %p814, %s42, 1
        %s816 = smul.addr %s815, 8
        %s817 = scalar_lea.vmem %s23, %s816
        %p819 = scmp.eq.s32.totalorder %s43, 0
        // Predicated region
        $region109: #{transformer_decoder_forward.3} parent=107 // pred_check
          %p820 = pneg %p819
        $region110: #{transformer_decoder_forward.3} parent=107 // pred_check_branch
          %822 = sbr.rel (%p820) target = $region112
        $region111: #{transformer_decoder_forward.3} parent=107 // pred_region
          %v823 = vld [vmem:[%s789] sm:$0xff]
          %v824 = vld [vmem:[%s793] sm:$0xff]
          %v825 = vld [vmem:[%s6] sm:$0x3]
          %v826 = vld [vmem:[%s20] sm:$0xf]
          %v827 = vld [vmem:[%s21] sm:$0xf]
          %v828 = vld [vmem:[%s11] sm:$0x3]
          %v829 = vld [vmem:[%s15] sm:$0xf]
          %v830 = vld [vmem:[%s4] sm:$0xf]
          %v831 = vld [vmem:[%s4 + $0x4] sm:$0xf]
          %v832 = vld [vmem:[%s4 + $0x8] sm:$0xf]
          %v833 = vld [vmem:[%s4 + $0xc] sm:$0xf]
          %v834 = vld [vmem:[%s4 + $0x10] sm:$0xf]
          %v835 = vld [vmem:[%s4 + $0x14] sm:$0xf]
          %v836 = vld [vmem:[%s4 + $0x18] sm:$0xf]
          %v837 = vld [vmem:[%s4 + $0x1c] sm:$0xf]
          %v838 = vpack.c.bf16 %v824, %v824
          %v839 = vlaneseq
          %v840 = vshrl.u32 %v839, 7
          %v841 = vsub.s32 0, %v840
          %v842 = vrot.slane %v825, %v841
          %v851 = vunpack.c.l.b16 %v830
          %v852 = vunpack.c.l.b16 %v831
          %v853 = vunpack.c.l.b16 %v832
          %v854 = vunpack.c.l.b16 %v833
          %v855 = vunpack.c.l.b16 %v834
          %v856 = vunpack.c.l.b16 %v835
          %v857 = vunpack.c.l.b16 %v836
          %v858 = vunpack.c.l.b16 %v837
          %v859 = vpack.c.b16 %v852, %v851
          %v860 = vpack.c.b16 %v854, %v853
          %v861 = vpack.c.b16 %v856, %v855
          %v862 = vpack.c.b16 %v858, %v857
          %vm867 = vcmask 523264
          %v869 = vsel %vm867, %v838, 0
          %871 = vmatprep.subr.bf16.mxu0 0
          %872 = vmatpush1.bf16.msra.mxu0 %v859
          %873 = vmatprep.subr.bf16.mxu0 0
          %874 = vmatpush1.bf16.msra.mxu0 %v860
          %875 = vmatprep.subr.bf16.mxu0 0
          %876 = vmatpush1.bf16.msra.mxu0 %v861
          %877 = vmatprep.subr.bf16.mxu0 0
          %878 = vmatpush1.bf16.msra.mxu0 %v862
          %879 = vmatprep.subr.bf16.mxu0 0
          %880 = vmatpush1.bf16.msra.mxu0 0
          %881 = vmatprep.subr.bf16.mxu0 0
          %882 = vmatpush1.bf16.msra.mxu0 0
          %883 = vmatprep.subr.bf16.mxu0 0
          %884 = vmatpush1.bf16.msra.mxu0 0
          %885 = vmatprep.subr.bf16.mxu0 0
          %886 = vmatpush1.bf16.msra.mxu0 0
          %887 = vmatprep.subr.bf16.mxu0 0
          %888 = vmatpush1.bf16.msra.mxu0 0
          %889 = vmatprep.subr.bf16.mxu0 0
          %890 = vmatpush1.bf16.msra.mxu0 0
          %891 = vmatprep.subr.bf16.mxu0 0
          %892 = vmatpush1.bf16.msra.mxu0 0
          %893 = vmatprep.subr.bf16.mxu0 0
          %894 = vmatpush1.bf16.msra.mxu0 0
          %895 = vmatprep.subr.bf16.mxu0 0
          %896 = vmatpush1.bf16.msra.mxu0 0
          %897 = vmatprep.subr.bf16.mxu0 0
          %898 = vmatpush1.bf16.msra.mxu0 0
          %899 = vmatprep.subr.bf16.mxu0 0
          %900 = vmatpush1.bf16.msra.mxu0 0
          %901 = vmatprep.subr.bf16.mxu0 0
          %902 = vmatpush1.bf16.msra.mxu0 0
          %903 = vmatprep.mubr.bf16.mxu0 0
          %904 = vmatmul.mubr.bf16.gmra.mrb[0].mxu0 %v869
          %v905 = vpop.f32.mrb[0].mxu0
          %v906 = vadd.f32 %v842, %v905
          %v907 = vpop.f32.mrb[0].mxu0
          %v908 = vpop.f32.mrb[0].mxu0
          %v909 = vpop.f32.mrb[0].mxu0
          %910 = vdwg.mxu0
          %v911 = vmax.f32 %v906, 0.0
          %v912 = vld [vmem:[%s5] sm:$0xf]
          %v913 = vld [vmem:[%s5 + $0x4] sm:$0xf]
          %v914 = vld [vmem:[%s5 + $0x8] sm:$0xf]
          %v915 = vld [vmem:[%s5 + $0xc] sm:$0xf]
          %v916 = vpack.c.bf16 %v911, %v911
          %v917 = vlaneseq
          %v918 = vshrl.u32 %v917, 7
          %v919 = vsub.s32 1, %v918
          %v920 = vrot.slane %v825, %v919
          %v925 = vunpack.c.l.b16 %v912
          %v926 = vunpack.c.l.b16 %v913
          %v927 = vunpack.c.l.b16 %v914
          %v928 = vunpack.c.l.b16 %v915
          %v929 = vpack.c.b16 %v926, %v925
          %v930 = vpack.c.b16 %v928, %v927
          %vm933 = vcmask 261120
          %v935 = vsel %vm933, %v916, 0
          %937 = vmatprep.subr.bf16.mxu0 0
          %938 = vmatpush1.bf16.msra.mxu0 %v929
          %939 = vmatprep.subr.bf16.mxu0 0
          %940 = vmatpush1.bf16.msra.mxu0 %v930
          %941 = vmatprep.subr.bf16.mxu0 0
          %942 = vmatpush1.bf16.msra.mxu0 0
          %943 = vmatprep.subr.bf16.mxu0 0
          %944 = vmatpush1.bf16.msra.mxu0 0
          %945 = vmatprep.subr.bf16.mxu0 0
          %946 = vmatpush1.bf16.msra.mxu0 0
          %947 = vmatprep.subr.bf16.mxu0 0
          %948 = vmatpush1.bf16.msra.mxu0 0
          %949 = vmatprep.subr.bf16.mxu0 0
          %950 = vmatpush1.bf16.msra.mxu0 0
          %951 = vmatprep.subr.bf16.mxu0 0
          %952 = vmatpush1.bf16.msra.mxu0 0
          %953 = vmatprep.subr.bf16.mxu0 0
          %954 = vmatpush1.bf16.msra.mxu0 0
          %955 = vmatprep.subr.bf16.mxu0 0
          %956 = vmatpush1.bf16.msra.mxu0 0
          %957 = vmatprep.subr.bf16.mxu0 0
          %958 = vmatpush1.bf16.msra.mxu0 0
          %959 = vmatprep.subr.bf16.mxu0 0
          %960 = vmatpush1.bf16.msra.mxu0 0
          %961 = vmatprep.subr.bf16.mxu0 0
          %962 = vmatpush1.bf16.msra.mxu0 0
          %963 = vmatprep.subr.bf16.mxu0 0
          %964 = vmatpush1.bf16.msra.mxu0 0
          %965 = vmatprep.subr.bf16.mxu0 0
          %966 = vmatpush1.bf16.msra.mxu0 0
          %967 = vmatprep.subr.bf16.mxu0 0
          %968 = vmatpush1.bf16.msra.mxu0 0
          %969 = vmatprep.mubr.bf16.mxu0 0
          %970 = vmatmul.mubr.bf16.gmra.mrb[0].mxu0 %v935
          %v971 = vpop.f32.mrb[0].mxu0
          %v972 = vadd.f32 %v920, %v971
          %v973 = vpop.f32.mrb[0].mxu0
          %v974 = vpop.f32.mrb[0].mxu0
          %v975 = vpop.f32.mrb[0].mxu0
          %976 = vdwg.mxu0
          %v977 = vadd.f32 %v823, %v972
          %v978 = vld [vmem:[%s7] sm:$0xf]
          %v979 = vld [vmem:[%s7 + $0x4] sm:$0xf]
          %v980 = vld [vmem:[%s7 + $0x8] sm:$0xf]
          %v981 = vld [vmem:[%s7 + $0xc] sm:$0xf]
          %v982 = vpack.c.bf16 %v977, %v977
          %v983 = vld [vmem:[%s8] sm:$0x1]
          %v985 = vlaneseq
          %v986 = vshrl.u32 %v985, 7
          %v987 = vsub.s32 0, %v986
          %v988 = vrot.slane %v983, %v987
          %v994 = vunpack.c.l.b16 %v978
          %v995 = vunpack.c.l.b16 %v979
          %v996 = vunpack.c.l.b16 %v980
          %v997 = vunpack.c.l.b16 %v981
          %v998 = vpack.c.b16 %v995, %v994
          %v999 = vpack.c.b16 %v997, %v996
          %v1003 = vsel %vm933, %v982, 0
          %1005 = vmatprep.subr.bf16.mxu0 0
          %1006 = vmatpush1.bf16.msra.mxu0 %v998
          %1007 = vmatprep.subr.bf16.mxu0 0
          %1008 = vmatpush1.bf16.msra.mxu0 %v999
          %1009 = vmatprep.subr.bf16.mxu0 0
          %1010 = vmatpush1.bf16.msra.mxu0 0
          %1011 = vmatprep.subr.bf16.mxu0 0
          %1012 = vmatpush1.bf16.msra.mxu0 0
          %1013 = vmatprep.subr.bf16.mxu0 0
          %1014 = vmatpush1.bf16.msra.mxu0 0
          %1015 = vmatprep.subr.bf16.mxu0 0
          %1016 = vmatpush1.bf16.msra.mxu0 0
          %1017 = vmatprep.subr.bf16.mxu0 0
          %1018 = vmatpush1.bf16.msra.mxu0 0
          %1019 = vmatprep.subr.bf16.mxu0 0
          %1020 = vmatpush1.bf16.msra.mxu0 0
          %1021 = vmatprep.subr.bf16.mxu0 0
          %1022 = vmatpush1.bf16.msra.mxu0 0
          %1023 = vmatprep.subr.bf16.mxu0 0
          %1024 = vmatpush1.bf16.msra.mxu0 0
          %1025 = vmatprep.subr.bf16.mxu0 0
          %1026 = vmatpush1.bf16.msra.mxu0 0
          %1027 = vmatprep.subr.bf16.mxu0 0
          %1028 = vmatpush1.bf16.msra.mxu0 0
          %1029 = vmatprep.subr.bf16.mxu0 0
          %1030 = vmatpush1.bf16.msra.mxu0 0
          %1031 = vmatprep.subr.bf16.mxu0 0
          %1032 = vmatpush1.bf16.msra.mxu0 0
          %1033 = vmatprep.subr.bf16.mxu0 0
          %1034 = vmatpush1.bf16.msra.mxu0 0
          %1035 = vmatprep.subr.bf16.mxu0 0
          %1036 = vmatpush1.bf16.msra.mxu0 0
          %1037 = vmatprep.mubr.bf16.mxu0 0
          %1038 = vmatmul.mubr.bf16.gmra.mrb[0].mxu0 %v1003
          %v1039 = vpop.f32.mrb[0].mxu0
          %v1040 = vadd.f32 %v988, %v1039
          %v1041 = vpop.f32.mrb[0].mxu0
          %v1042 = vpop.f32.mrb[0].mxu0
          %v1043 = vpop.f32.mrb[0].mxu0
          %1044 = vdwg.mxu0
          %v1045 = vld [vmem:[%s9] sm:$0xf]
          %v1046 = vld [vmem:[%s9 + $0x4] sm:$0xf]
          %v1047 = vld [vmem:[%s9 + $0x8] sm:$0xf]
          %v1048 = vld [vmem:[%s9 + $0xc] sm:$0xf]
          %v1049 = vpack.c.bf16 %v823, %v823
          %v1050 = vlaneseq
          %v1051 = vshrl.u32 %v1050, 7
          %v1052 = vsub.s32 0, %v1051
          %v1053 = vrot.slane %v828, %v1052
          %v1058 = vunpack.c.l.b16 %v1045
          %v1059 = vunpack.c.l.b16 %v1046
          %v1060 = vunpack.c.l.b16 %v1047
          %v1061 = vunpack.c.l.b16 %v1048
          %v1062 = vpack.c.b16 %v1059, %v1058
          %v1063 = vpack.c.b16 %v1061, %v1060
          %v1067 = vsel %vm933, %v1049, 0
          %1069 = vmatprep.subr.bf16.mxu0 0
          %1070 = vmatpush1.bf16.msra.mxu0 %v1062
          %1071 = vmatprep.subr.bf16.mxu0 0
          %1072 = vmatpush1.bf16.msra.mxu0 %v1063
          %1073 = vmatprep.subr.bf16.mxu0 0
          %1074 = vmatpush1.bf16.msra.mxu0 0
          %1075 = vmatprep.subr.bf16.mxu0 0
          %1076 = vmatpush1.bf16.msra.mxu0 0
          %1077 = vmatprep.subr.bf16.mxu0 0
          %1078 = vmatpush1.bf16.msra.mxu0 0
          %1079 = vmatprep.subr.bf16.mxu0 0
          %1080 = vmatpush1.bf16.msra.mxu0 0
          %1081 = vmatprep.subr.bf16.mxu0 0
          %1082 = vmatpush1.bf16.msra.mxu0 0
          %1083 = vmatprep.subr.bf16.mxu0 0
          %1084 = vmatpush1.bf16.msra.mxu0 0
          %1085 = vmatprep.subr.bf16.mxu0 0
          %1086 = vmatpush1.bf16.msra.mxu0 0
          %1087 = vmatprep.subr.bf16.mxu0 0
          %1088 = vmatpush1.bf16.msra.mxu0 0
          %1089 = vmatprep.subr.bf16.mxu0 0
          %1090 = vmatpush1.bf16.msra.mxu0 0
          %1091 = vmatprep.subr.bf16.mxu0 0
          %1092 = vmatpush1.bf16.msra.mxu0 0
          %1093 = vmatprep.subr.bf16.mxu0 0
          %1094 = vmatpush1.bf16.msra.mxu0 0
          %1095 = vmatprep.subr.bf16.mxu0 0
          %1096 = vmatpush1.bf16.msra.mxu0 0
          %1097 = vmatprep.subr.bf16.mxu0 0
          %1098 = vmatpush1.bf16.msra.mxu0 0
          %1099 = vmatprep.subr.bf16.mxu0 0
          %1100 = vmatpush1.bf16.msra.mxu0 0
          %1101 = vmatprep.mubr.bf16.mxu0 0
          %1102 = vmatmul.mubr.bf16.gmra.mrb[0].mxu0 %v1067
          %v1103 = vpop.f32.mrb[0].mxu0
          %v1104 = vadd.f32 %v1053, %v1103
          %v1105 = vpop.f32.mrb[0].mxu0
          %v1106 = vpop.f32.mrb[0].mxu0
          %v1107 = vpop.f32.mrb[0].mxu0
          %1108 = vdwg.mxu0
          %1110 = vrot.lane.b32.xlu0 %v1040, 120
          %v1111 = vpop.permute.xlu0 %1110
          %1113 = vrot.lane.b32.xlu0 %v1040, 112
          %v1114 = vpop.permute.xlu0 %1113
          %1116 = vrot.lane.b32.xlu0 %v1040, 104
          %v1117 = vpop.permute.xlu0 %1116
          %v1119 = vpack.c.bf16 %v1040, %v1040
          %v1120 = vpack.c.bf16 %v1111, %v1111
          %v1121 = vpack.c.bf16 %v1114, %v1114
          %v1122 = vpack.c.bf16 %v1117, %v1117
          %1124 = vrot.lane.b32.xlu0 %v1104, 120
          %v1125 = vpop.permute.xlu0 %1124
          %1127 = vrot.lane.b32.xlu0 %v1104, 112
          %v1128 = vpop.permute.xlu0 %1127
          %1130 = vrot.lane.b32.xlu0 %v1104, 104
          %v1131 = vpop.permute.xlu0 %1130
          %v1133 = vpack.c.bf16 %v1104, %v1104
          %v1134 = vpack.c.bf16 %v1125, %v1125
          %v1135 = vpack.c.bf16 %v1128, %v1128
          %v1136 = vpack.c.bf16 %v1131, %v1131
          %v1137 = vld [vmem:[%s10] sm:$0xf]
          %v1138 = vld [vmem:[%s10 + $0x4] sm:$0xf]
          %v1139 = vld [vmem:[%s10 + $0x8] sm:$0xf]
          %v1140 = vld [vmem:[%s10 + $0xc] sm:$0xf]
          %1142 = vrot.lane.b32.xlu0 %v1119, 96
          %v1143 = vpop.permute.xlu0 %1142
          %vm1144 = vcmask 64512
          %v1146 = vsel %vm1144, %v1119, 0
          %v1149 = vsel %vm1144, %v1143, 0
          %1151 = vmatprep.subr.bf16.mxu0 0
          %1152 = vmatpush1.bf16.xpose.msra.mxu0 %v1149
          %1153 = vmatprep.subr.bf16.mxu0 0
          %1154 = vmatpush1.bf16.xpose.msra.mxu0 0
          %1155 = vmatprep.subr.bf16.mxu0 0
          %1156 = vmatpush1.bf16.xpose.msra.mxu0 0
          %1157 = vmatprep.subr.bf16.mxu0 0
          %1158 = vmatpush1.bf16.xpose.msra.mxu0 0
          %1159 = vmatprep.subr.bf16.mxu0 0
          %1160 = vmatpush1.bf16.xpose.msra.mxu0 0
          %1161 = vmatprep.subr.bf16.mxu0 0
          %1162 = vmatpush1.bf16.xpose.msra.mxu0 0
          %1163 = vmatprep.subr.bf16.mxu0 0
          %1164 = vmatpush1.bf16.xpose.msra.mxu0 0
          %1165 = vmatprep.subr.bf16.mxu0 0
          %1166 = vmatpush1.bf16.xpose.msra.mxu0 0
          %1167 = vmatprep.subr.bf16.mxu0 0
          %1168 = vmatpush1.bf16.xpose.msra.mxu0 0
          %1169 = vmatprep.subr.bf16.mxu0 0
          %1170 = vmatpush1.bf16.xpose.msra.mxu0 0
          %1171 = vmatprep.subr.bf16.mxu0 0
          %1172 = vmatpush1.bf16.xpose.msra.mxu0 0
          %1173 = vmatprep.subr.bf16.mxu0 0
          %1174 = vmatpush1.bf16.xpose.msra.mxu0 0
          %1175 = vmatprep.subr.bf16.mxu0 0
          %1176 = vmatpush1.bf16.xpose.msra.mxu0 0
          %1177 = vmatprep.subr.bf16.mxu0 0
          %1178 = vmatpush1.bf16.xpose.msra.mxu0 0
          %1179 = vmatprep.subr.bf16.mxu0 0
          %1180 = vmatpush1.bf16.xpose.msra.mxu0 0
          %1181 = vmatprep.subr.bf16.mxu0 0
          %1182 = vmatpush1.bf16.xpose.msra.mxu0 0
          %1183 = vmatprep.mubr.bf16.mxu0 0
          %1184 = vmatmul.mubr.bf16.gmra.mrb[0].mxu0 %v1146
          %v1185 = vpop.f32.mrb[0].mxu0
          %v1186 = vadd.f32 0.0, %v1185
          %v1187 = vpop.f32.mrb[0].mxu0
          %v1188 = vpop.f32.mrb[0].mxu0
          %v1189 = vpop.f32.mrb[0].mxu0
          %1190 = vdwg.mxu0
          %1192 = vrot.lane.b32.xlu0 %v1120, 96
          %v1193 = vpop.permute.xlu0 %1192
          %v1195 = vsel %vm1144, %v1120, 0
          %v1198 = vsel %vm1144, %v1193, 0
          %1200 = vmatprep.subr.bf16.mxu0 0
          %1201 = vmatpush1.bf16.xpose.msra.mxu0 %v1198
          %1202 = vmatprep.subr.bf16.mxu0 0
          %1203 = vmatpush1.bf16.xpose.msra.mxu0 0
          %1204 = vmatprep.subr.bf16.mxu0 0
          %1205 = vmatpush1.bf16.xpose.msra.mxu0 0
          %1206 = vmatprep.subr.bf16.mxu0 0
          %1207 = vmatpush1.bf16.xpose.msra.mxu0 0
          %1208 = vmatprep.subr.bf16.mxu0 0
          %1209 = vmatpush1.bf16.xpose.msra.mxu0 0
          %1210 = vmatprep.subr.bf16.mxu0 0
          %1211 = vmatpush1.bf16.xpose.msra.mxu0 0
          %1212 = vmatprep.subr.bf16.mxu0 0
          %1213 = vmatpush1.bf16.xpose.msra.mxu0 0
          %1214 = vmatprep.subr.bf16.mxu0 0
          %1215 = vmatpush1.bf16.xpose.msra.mxu0 0
          %1216 = vmatprep.subr.bf16.mxu0 0
          %1217 = vmatpush1.bf16.xpose.msra.mxu0 0
          %1218 = vmatprep.subr.bf16.mxu0 0
          %1219 = vmatpush1.bf16.xpose.msra.mxu0 0
          %1220 = vmatprep.subr.bf16.mxu0 0
          %1221 = vmatpush1.bf16.xpose.msra.mxu0 0
          %1222 = vmatprep.subr.bf16.mxu0 0
          %1223 = vmatpush1.bf16.xpose.msra.mxu0 0
          %1224 = vmatprep.subr.bf16.mxu0 0
          %1225 = vmatpush1.bf16.xpose.msra.mxu0 0
          %1226 = vmatprep.subr.bf16.mxu0 0
          %1227 = vmatpush1.bf16.xpose.msra.mxu0 0
          %1228 = vmatprep.subr.bf16.mxu0 0
          %1229 = vmatpush1.bf16.xpose.msra.mxu0 0
          %1230 = vmatprep.subr.bf16.mxu0 0
          %1231 = vmatpush1.bf16.xpose.msra.mxu0 0
          %1232 = vmatprep.mubr.bf16.mxu0 0
          %1233 = vmatmul.mubr.bf16.gmra.mrb[0].mxu0 %v1195
          %v1234 = vpop.f32.mrb[0].mxu0
          %v1235 = vadd.f32 0.0, %v1234
          %v1236 = vpop.f32.mrb[0].mxu0
          %v1237 = vpop.f32.mrb[0].mxu0
          %v1238 = vpop.f32.mrb[0].mxu0
          %1239 = vdwg.mxu0
          %1241 = vrot.lane.b32.xlu0 %v1121, 96
          %v1242 = vpop.permute.xlu0 %1241
          %v1244 = vsel %vm1144, %v1121, 0
          %v1247 = vsel %vm1144, %v1242, 0
          %1249 = vmatprep.subr.bf16.mxu0 0
          %1250 = vmatpush1.bf16.xpose.msra.mxu0 %v1247
          %1251 = vmatprep.subr.bf16.mxu0 0
          %1252 = vmatpush1.bf16.xpose.msra.mxu0 0
          %1253 = vmatprep.subr.bf16.mxu0 0
          %1254 = vmatpush1.bf16.xpose.msra.mxu0 0
          %1255 = vmatprep.subr.bf16.mxu0 0
          %1256 = vmatpush1.bf16.xpose.msra.mxu0 0
          %1257 = vmatprep.subr.bf16.mxu0 0
          %1258 = vmatpush1.bf16.xpose.msra.mxu0 0
          %1259 = vmatprep.subr.bf16.mxu0 0
          %1260 = vmatpush1.bf16.xpose.msra.mxu0 0
          %1261 = vmatprep.subr.bf16.mxu0 0
          %1262 = vmatpush1.bf16.xpose.msra.mxu0 0
          %1263 = vmatprep.subr.bf16.mxu0 0
          %1264 = vmatpush1.bf16.xpose.msra.mxu0 0
          %1265 = vmatprep.subr.bf16.mxu0 0
          %1266 = vmatpush1.bf16.xpose.msra.mxu0 0
          %1267 = vmatprep.subr.bf16.mxu0 0
          %1268 = vmatpush1.bf16.xpose.msra.mxu0 0
          %1269 = vmatprep.subr.bf16.mxu0 0
          %1270 = vmatpush1.bf16.xpose.msra.mxu0 0
          %1271 = vmatprep.subr.bf16.mxu0 0
          %1272 = vmatpush1.bf16.xpose.msra.mxu0 0
          %1273 = vmatprep.subr.bf16.mxu0 0
          %1274 = vmatpush1.bf16.xpose.msra.mxu0 0
          %1275 = vmatprep.subr.bf16.mxu0 0
          %1276 = vmatpush1.bf16.xpose.msra.mxu0 0
          %1277 = vmatprep.subr.bf16.mxu0 0
          %1278 = vmatpush1.bf16.xpose.msra.mxu0 0
          %1279 = vmatprep.subr.bf16.mxu0 0
          %1280 = vmatpush1.bf16.xpose.msra.mxu0 0
          %1281 = vmatprep.mubr.bf16.mxu0 0
          %1282 = vmatmul.mubr.bf16.gmra.mrb[0].mxu0 %v1244
          %v1283 = vpop.f32.mrb[0].mxu0
          %v1284 = vadd.f32 0.0, %v1283
          %v1285 = vpop.f32.mrb[0].mxu0
          %v1286 = vpop.f32.mrb[0].mxu0
          %v1287 = vpop.f32.mrb[0].mxu0
          %1288 = vdwg.mxu0
          %1290 = vrot.lane.b32.xlu0 %v1122, 96
          %v1291 = vpop.permute.xlu0 %1290
          %v1293 = vsel %vm1144, %v1122, 0
          %v1296 = vsel %vm1144, %v1291, 0
          %1298 = vmatprep.subr.bf16.mxu0 0
          %1299 = vmatpush1.bf16.xpose.msra.mxu0 %v1296
          %1300 = vmatprep.subr.bf16.mxu0 0
          %1301 = vmatpush1.bf16.xpose.msra.mxu0 0
          %1302 = vmatprep.subr.bf16.mxu0 0
          %1303 = vmatpush1.bf16.xpose.msra.mxu0 0
          %1304 = vmatprep.subr.bf16.mxu0 0
          %1305 = vmatpush1.bf16.xpose.msra.mxu0 0
          %1306 = vmatprep.subr.bf16.mxu0 0
          %1307 = vmatpush1.bf16.xpose.msra.mxu0 0
          %1308 = vmatprep.subr.bf16.mxu0 0
          %1309 = vmatpush1.bf16.xpose.msra.mxu0 0
          %1310 = vmatprep.subr.bf16.mxu0 0
          %1311 = vmatpush1.bf16.xpose.msra.mxu0 0
          %1312 = vmatprep.subr.bf16.mxu0 0
          %1313 = vmatpush1.bf16.xpose.msra.mxu0 0
          %1314 = vmatprep.subr.bf16.mxu0 0
          %1315 = vmatpush1.bf16.xpose.msra.mxu0 0
          %1316 = vmatprep.subr.bf16.mxu0 0
          %1317 = vmatpush1.bf16.xpose.msra.mxu0 0
          %1318 = vmatprep.subr.bf16.mxu0 0
          %1319 = vmatpush1.bf16.xpose.msra.mxu0 0
          %1320 = vmatprep.subr.bf16.mxu0 0
          %1321 = vmatpush1.bf16.xpose.msra.mxu0 0
          %1322 = vmatprep.subr.bf16.mxu0 0
          %1323 = vmatpush1.bf16.xpose.msra.mxu0 0
          %1324 = vmatprep.subr.bf16.mxu0 0
          %1325 = vmatpush1.bf16.xpose.msra.mxu0 0
          %1326 = vmatprep.subr.bf16.mxu0 0
          %1327 = vmatpush1.bf16.xpose.msra.mxu0 0
          %1328 = vmatprep.subr.bf16.mxu0 0
          %1329 = vmatpush1.bf16.xpose.msra.mxu0 0
          %1330 = vmatprep.mubr.bf16.mxu0 0
          %1331 = vmatmul.mubr.bf16.gmra.mrb[0].mxu0 %v1293
          %v1332 = vpop.f32.mrb[0].mxu0
          %v1333 = vadd.f32 0.0, %v1332
          %v1334 = vpop.f32.mrb[0].mxu0
          %v1335 = vpop.f32.mrb[0].mxu0
          %v1336 = vpop.f32.mrb[0].mxu0
          %1337 = vdwg.mxu0
          %v1338 = vmul.f32 %v1186, 0.35355338
          %v1339 = vmul.f32 %v1235, 0.35355338
          %v1340 = vmul.f32 %v1284, 0.35355338
          %v1341 = vmul.f32 %v1333, 0.35355338
          %v1342 = vsel %vm1144, %v1338, -inf
          %1343 = vmax.xlane.f32.xlu0 %v1342
          %v1344 = vpop.xlane.xlu0 %1343
          %v1345 = vsel %vm1144, %v1339, -inf
          %1346 = vmax.xlane.f32.xlu0 %v1345
          %v1347 = vpop.xlane.xlu0 %1346
          %v1348 = vsel %vm1144, %v1340, -inf
          %1349 = vmax.xlane.f32.xlu0 %v1348
          %v1350 = vpop.xlane.xlu0 %1349
          %v1351 = vsel %vm1144, %v1341, -inf
          %1352 = vmax.xlane.f32.xlu0 %v1351
          %v1353 = vpop.xlane.xlu0 %1352
          %v1354 = vsub.f32 %v1338, %v1344
          %v1355 = vsub.f32 %v1339, %v1347
          %v1356 = vsub.f32 %v1340, %v1350
          %v1357 = vsub.f32 %v1341, %v1353
          %v1358 = vmul.f32 %v1354, 1.442695
          %v1359 = vpow.pop %v1358
          %v1360 = vmul.f32 %v1355, 1.442695
          %v1361 = vpow.pop %v1360
          %v1362 = vmul.f32 %v1356, 1.442695
          %v1363 = vpow.pop %v1362
          %v1364 = vmul.f32 %v1357, 1.442695
          %v1365 = vpow.pop %v1364
          %v1366 = vsel %vm1144, %v1359, 0.0
          %1367 = vadd.xlane.f32.xlu0 %v1366
          %v1368 = vpop.xlane.xlu0 %1367
          %v1369 = vsel %vm1144, %v1361, 0.0
          %1370 = vadd.xlane.f32.xlu0 %v1369
          %v1371 = vpop.xlane.xlu0 %1370
          %v1372 = vsel %vm1144, %v1363, 0.0
          %1373 = vadd.xlane.f32.xlu0 %v1372
          %v1374 = vpop.xlane.xlu0 %1373
          %v1375 = vsel %vm1144, %v1365, 0.0
          %1376 = vadd.xlane.f32.xlu0 %v1375
          %v1377 = vpop.xlane.xlu0 %1376
          %v1378 = vrcp.pop %v1368
          %v1379 = vrcp.pop %v1371
          %v1380 = vrcp.pop %v1374
          %v1381 = vrcp.pop %v1377
          %v1382 = vmul.f32 %v1359, %v1378
          %v1383 = vmul.f32 %v1361, %v1379
          %v1384 = vmul.f32 %v1363, %v1380
          %v1385 = vmul.f32 %v1365, %v1381
          %v1386 = vpack.c.bf16 %v1382, %v1382
          %v1387 = vpack.c.bf16 %v1383, %v1383
          %v1388 = vpack.c.bf16 %v1384, %v1384
          %v1389 = vpack.c.bf16 %v1385, %v1385
          %v1391 = vsel %vm1144, %v1386, 0
          %vm1393 = vcmask 1043456
          %v1395 = vsel %vm1393, %v1133, 0
          %1397 = vmatprep.subr.bf16.mxu0 0
          %1398 = vmatpush1.bf16.msra.mxu0 %v1395
          %1399 = vmatprep.subr.bf16.mxu0 0
          %1400 = vmatpush1.bf16.msra.mxu0 0
          %1401 = vmatprep.subr.bf16.mxu0 0
          %1402 = vmatpush1.bf16.msra.mxu0 0
          %1403 = vmatprep.subr.bf16.mxu0 0
          %1404 = vmatpush1.bf16.msra.mxu0 0
          %1405 = vmatprep.subr.bf16.mxu0 0
          %1406 = vmatpush1.bf16.msra.mxu0 0
          %1407 = vmatprep.subr.bf16.mxu0 0
          %1408 = vmatpush1.bf16.msra.mxu0 0
          %1409 = vmatprep.subr.bf16.mxu0 0
          %1410 = vmatpush1.bf16.msra.mxu0 0
          %1411 = vmatprep.subr.bf16.mxu0 0
          %1412 = vmatpush1.bf16.msra.mxu0 0
          %1413 = vmatprep.subr.bf16.mxu0 0
          %1414 = vmatpush1.bf16.msra.mxu0 0
          %1415 = vmatprep.subr.bf16.mxu0 0
          %1416 = vmatpush1.bf16.msra.mxu0 0
          %1417 = vmatprep.subr.bf16.mxu0 0
          %1418 = vmatpush1.bf16.msra.mxu0 0
          %1419 = vmatprep.subr.bf16.mxu0 0
          %1420 = vmatpush1.bf16.msra.mxu0 0
          %1421 = vmatprep.subr.bf16.mxu0 0
          %1422 = vmatpush1.bf16.msra.mxu0 0
          %1423 = vmatprep.subr.bf16.mxu0 0
          %1424 = vmatpush1.bf16.msra.mxu0 0
          %1425 = vmatprep.subr.bf16.mxu0 0
          %1426 = vmatpush1.bf16.msra.mxu0 0
          %1427 = vmatprep.subr.bf16.mxu0 0
          %1428 = vmatpush1.bf16.msra.mxu0 0
          %1429 = vmatprep.mubr.bf16.mxu0 0
          %1430 = vmatmul.mubr.bf16.gmra.mrb[0].mxu0 %v1391
          %v1431 = vpop.f32.mrb[0].mxu0
          %v1432 = vadd.f32 0.0, %v1431
          %v1433 = vpop.f32.mrb[0].mxu0
          %v1434 = vpop.f32.mrb[0].mxu0
          %v1435 = vpop.f32.mrb[0].mxu0
          %1436 = vdwg.mxu0
          %v1438 = vsel %vm1144, %v1387, 0
          %v1441 = vsel %vm1393, %v1134, 0
          %1443 = vmatprep.subr.bf16.mxu0 0
          %1444 = vmatpush1.bf16.msra.mxu0 %v1441
          %1445 = vmatprep.subr.bf16.mxu0 0
          %1446 = vmatpush1.bf16.msra.mxu0 0
          %1447 = vmatprep.subr.bf16.mxu0 0
          %1448 = vmatpush1.bf16.msra.mxu0 0
          %1449 = vmatprep.subr.bf16.mxu0 0
          %1450 = vmatpush1.bf16.msra.mxu0 0
          %1451 = vmatprep.subr.bf16.mxu0 0
          %1452 = vmatpush1.bf16.msra.mxu0 0
          %1453 = vmatprep.subr.bf16.mxu0 0
          %1454 = vmatpush1.bf16.msra.mxu0 0
          %1455 = vmatprep.subr.bf16.mxu0 0
          %1456 = vmatpush1.bf16.msra.mxu0 0
          %1457 = vmatprep.subr.bf16.mxu0 0
          %1458 = vmatpush1.bf16.msra.mxu0 0
          %1459 = vmatprep.subr.bf16.mxu0 0
          %1460 = vmatpush1.bf16.msra.mxu0 0
          %1461 = vmatprep.subr.bf16.mxu0 0
          %1462 = vmatpush1.bf16.msra.mxu0 0
          %1463 = vmatprep.subr.bf16.mxu0 0
          %1464 = vmatpush1.bf16.msra.mxu0 0
          %1465 = vmatprep.subr.bf16.mxu0 0
          %1466 = vmatpush1.bf16.msra.mxu0 0
          %1467 = vmatprep.subr.bf16.mxu0 0
          %1468 = vmatpush1.bf16.msra.mxu0 0
          %1469 = vmatprep.subr.bf16.mxu0 0
          %1470 = vmatpush1.bf16.msra.mxu0 0
          %1471 = vmatprep.subr.bf16.mxu0 0
          %1472 = vmatpush1.bf16.msra.mxu0 0
          %1473 = vmatprep.subr.bf16.mxu0 0
          %1474 = vmatpush1.bf16.msra.mxu0 0
          %1475 = vmatprep.mubr.bf16.mxu0 0
          %1476 = vmatmul.mubr.bf16.gmra.mrb[0].mxu0 %v1438
          %v1477 = vpop.f32.mrb[0].mxu0
          %v1478 = vadd.f32 0.0, %v1477
          %v1479 = vpop.f32.mrb[0].mxu0
          %v1480 = vpop.f32.mrb[0].mxu0
          %v1481 = vpop.f32.mrb[0].mxu0
          %1482 = vdwg.mxu0
          %v1484 = vsel %vm1144, %v1388, 0
          %v1487 = vsel %vm1393, %v1135, 0
          %1489 = vmatprep.subr.bf16.mxu0 0
          %1490 = vmatpush1.bf16.msra.mxu0 %v1487
          %1491 = vmatprep.subr.bf16.mxu0 0
          %1492 = vmatpush1.bf16.msra.mxu0 0
          %1493 = vmatprep.subr.bf16.mxu0 0
          %1494 = vmatpush1.bf16.msra.mxu0 0
          %1495 = vmatprep.subr.bf16.mxu0 0
          %1496 = vmatpush1.bf16.msra.mxu0 0
          %1497 = vmatprep.subr.bf16.mxu0 0
          %1498 = vmatpush1.bf16.msra.mxu0 0
          %1499 = vmatprep.subr.bf16.mxu0 0
          %1500 = vmatpush1.bf16.msra.mxu0 0
          %1501 = vmatprep.subr.bf16.mxu0 0
          %1502 = vmatpush1.bf16.msra.mxu0 0
          %1503 = vmatprep.subr.bf16.mxu0 0
          %1504 = vmatpush1.bf16.msra.mxu0 0
          %1505 = vmatprep.subr.bf16.mxu0 0
          %1506 = vmatpush1.bf16.msra.mxu0 0
          %1507 = vmatprep.subr.bf16.mxu0 0
          %1508 = vmatpush1.bf16.msra.mxu0 0
          %1509 = vmatprep.subr.bf16.mxu0 0
          %1510 = vmatpush1.bf16.msra.mxu0 0
          %1511 = vmatprep.subr.bf16.mxu0 0
          %1512 = vmatpush1.bf16.msra.mxu0 0
          %1513 = vmatprep.subr.bf16.mxu0 0
          %1514 = vmatpush1.bf16.msra.mxu0 0
          %1515 = vmatprep.subr.bf16.mxu0 0
          %1516 = vmatpush1.bf16.msra.mxu0 0
          %1517 = vmatprep.subr.bf16.mxu0 0
          %1518 = vmatpush1.bf16.msra.mxu0 0
          %1519 = vmatprep.subr.bf16.mxu0 0
          %1520 = vmatpush1.bf16.msra.mxu0 0
          %1521 = vmatprep.mubr.bf16.mxu0 0
          %1522 = vmatmul.mubr.bf16.gmra.mrb[0].mxu0 %v1484
          %v1523 = vpop.f32.mrb[0].mxu0
          %v1524 = vadd.f32 0.0, %v1523
          %v1525 = vpop.f32.mrb[0].mxu0
          %v1526 = vpop.f32.mrb[0].mxu0
          %v1527 = vpop.f32.mrb[0].mxu0
          %1528 = vdwg.mxu0
          %v1530 = vsel %vm1144, %v1389, 0
          %v1533 = vsel %vm1393, %v1136, 0
          %1535 = vmatprep.subr.bf16.mxu0 0
          %1536 = vmatpush1.bf16.msra.mxu0 %v1533
          %1537 = vmatprep.subr.bf16.mxu0 0
          %1538 = vmatpush1.bf16.msra.mxu0 0
          %1539 = vmatprep.subr.bf16.mxu0 0
          %1540 = vmatpush1.bf16.msra.mxu0 0
          %1541 = vmatprep.subr.bf16.mxu0 0
          %1542 = vmatpush1.bf16.msra.mxu0 0
          %1543 = vmatprep.subr.bf16.mxu0 0
          %1544 = vmatpush1.bf16.msra.mxu0 0
          %1545 = vmatprep.subr.bf16.mxu0 0
          %1546 = vmatpush1.bf16.msra.mxu0 0
          %1547 = vmatprep.subr.bf16.mxu0 0
          %1548 = vmatpush1.bf16.msra.mxu0 0
          %1549 = vmatprep.subr.bf16.mxu0 0
          %1550 = vmatpush1.bf16.msra.mxu0 0
          %1551 = vmatprep.subr.bf16.mxu0 0
          %1552 = vmatpush1.bf16.msra.mxu0 0
          %1553 = vmatprep.subr.bf16.mxu0 0
          %1554 = vmatpush1.bf16.msra.mxu0 0
          %1555 = vmatprep.subr.bf16.mxu0 0
          %1556 = vmatpush1.bf16.msra.mxu0 0
          %1557 = vmatprep.subr.bf16.mxu0 0
          %1558 = vmatpush1.bf16.msra.mxu0 0
          %1559 = vmatprep.subr.bf16.mxu0 0
          %1560 = vmatpush1.bf16.msra.mxu0 0
          %1561 = vmatprep.subr.bf16.mxu0 0
          %1562 = vmatpush1.bf16.msra.mxu0 0
          %1563 = vmatprep.subr.bf16.mxu0 0
          %1564 = vmatpush1.bf16.msra.mxu0 0
          %1565 = vmatprep.subr.bf16.mxu0 0
          %1566 = vmatpush1.bf16.msra.mxu0 0
          %1567 = vmatprep.mubr.bf16.mxu0 0
          %1568 = vmatmul.mubr.bf16.gmra.mrb[0].mxu0 %v1530
          %v1569 = vpop.f32.mrb[0].mxu0
          %v1570 = vadd.f32 0.0, %v1569
          %v1571 = vpop.f32.mrb[0].mxu0
          %v1572 = vpop.f32.mrb[0].mxu0
          %v1573 = vpop.f32.mrb[0].mxu0
          %1574 = vdwg.mxu0
          %v1575 = vpack.c.bf16 %v1432, %v1432
          %v1576 = vpack.c.bf16 %v1478, %v1478
          %v1577 = vpack.c.bf16 %v1524, %v1524
          %v1578 = vpack.c.bf16 %v1570, %v1570
          %v1580 = vsel %vm1144, %v1575, 0
          %v1583 = vsel %vm1393, %v1137, 0
          %1585 = vmatprep.subr.bf16.mxu0 0
          %1586 = vmatpush1.bf16.msra.mxu0 %v1583
          %1587 = vmatprep.subr.bf16.mxu0 0
          %1588 = vmatpush1.bf16.msra.mxu0 0
          %1589 = vmatprep.subr.bf16.mxu0 0
          %1590 = vmatpush1.bf16.msra.mxu0 0
          %1591 = vmatprep.subr.bf16.mxu0 0
          %1592 = vmatpush1.bf16.msra.mxu0 0
          %1593 = vmatprep.subr.bf16.mxu0 0
          %1594 = vmatpush1.bf16.msra.mxu0 0
          %1595 = vmatprep.subr.bf16.mxu0 0
          %1596 = vmatpush1.bf16.msra.mxu0 0
          %1597 = vmatprep.subr.bf16.mxu0 0
          %1598 = vmatpush1.bf16.msra.mxu0 0
          %1599 = vmatprep.subr.bf16.mxu0 0
          %1600 = vmatpush1.bf16.msra.mxu0 0
          %1601 = vmatprep.subr.bf16.mxu0 0
          %1602 = vmatpush1.bf16.msra.mxu0 0
          %1603 = vmatprep.subr.bf16.mxu0 0
          %1604 = vmatpush1.bf16.msra.mxu0 0
          %1605 = vmatprep.subr.bf16.mxu0 0
          %1606 = vmatpush1.bf16.msra.mxu0 0
          %1607 = vmatprep.subr.bf16.mxu0 0
          %1608 = vmatpush1.bf16.msra.mxu0 0
          %1609 = vmatprep.subr.bf16.mxu0 0
          %1610 = vmatpush1.bf16.msra.mxu0 0
          %1611 = vmatprep.subr.bf16.mxu0 0
          %1612 = vmatpush1.bf16.msra.mxu0 0
          %1613 = vmatprep.subr.bf16.mxu0 0
          %1614 = vmatpush1.bf16.msra.mxu0 0
          %1615 = vmatprep.subr.bf16.mxu0 0
          %1616 = vmatpush1.bf16.msra.mxu0 0
          %1617 = vmatprep.mubr.bf16.mxu0 0
          %1618 = vmatmul.mubr.bf16.gmra.mrb[0].mxu0 %v1580
          %v1619 = vpop.f32.mrb[0].mxu0
          %v1620 = vadd.f32 0.0, %v1619
          %v1621 = vpop.f32.mrb[0].mxu0
          %v1622 = vpop.f32.mrb[0].mxu0
          %v1623 = vpop.f32.mrb[0].mxu0
          %1624 = vdwg.mxu0
          %v1626 = vsel %vm1144, %v1576, 0
          %v1629 = vsel %vm1393, %v1138, 0
          %1631 = vmatprep.subr.bf16.mxu0 0
          %1632 = vmatpush1.bf16.msra.mxu0 %v1629
          %1633 = vmatprep.subr.bf16.mxu0 0
          %1634 = vmatpush1.bf16.msra.mxu0 0
          %1635 = vmatprep.subr.bf16.mxu0 0
          %1636 = vmatpush1.bf16.msra.mxu0 0
          %1637 = vmatprep.subr.bf16.mxu0 0
          %1638 = vmatpush1.bf16.msra.mxu0 0
          %1639 = vmatprep.subr.bf16.mxu0 0
          %1640 = vmatpush1.bf16.msra.mxu0 0
          %1641 = vmatprep.subr.bf16.mxu0 0
          %1642 = vmatpush1.bf16.msra.mxu0 0
          %1643 = vmatprep.subr.bf16.mxu0 0
          %1644 = vmatpush1.bf16.msra.mxu0 0
          %1645 = vmatprep.subr.bf16.mxu0 0
          %1646 = vmatpush1.bf16.msra.mxu0 0
          %1647 = vmatprep.subr.bf16.mxu0 0
          %1648 = vmatpush1.bf16.msra.mxu0 0
          %1649 = vmatprep.subr.bf16.mxu0 0
          %1650 = vmatpush1.bf16.msra.mxu0 0
          %1651 = vmatprep.subr.bf16.mxu0 0
          %1652 = vmatpush1.bf16.msra.mxu0 0
          %1653 = vmatprep.subr.bf16.mxu0 0
          %1654 = vmatpush1.bf16.msra.mxu0 0
          %1655 = vmatprep.subr.bf16.mxu0 0
          %1656 = vmatpush1.bf16.msra.mxu0 0
          %1657 = vmatprep.subr.bf16.mxu0 0
          %1658 = vmatpush1.bf16.msra.mxu0 0
          %1659 = vmatprep.subr.bf16.mxu0 0
          %1660 = vmatpush1.bf16.msra.mxu0 0
          %1661 = vmatprep.subr.bf16.mxu0 0
          %1662 = vmatpush1.bf16.msra.mxu0 0
          %1663 = vmatprep.mubr.bf16.mxu0 0
          %1664 = vmatmul.mubr.bf16.gmra.mrb[0].mxu0 %v1626
          %v1665 = vpop.f32.mrb[0].mxu0
          %v1666 = vadd.f32 0.0, %v1665
          %v1667 = vpop.f32.mrb[0].mxu0
          %v1668 = vpop.f32.mrb[0].mxu0
          %v1669 = vpop.f32.mrb[0].mxu0
          %1670 = vdwg.mxu0
          %v1672 = vsel %vm1144, %v1577, 0
          %v1675 = vsel %vm1393, %v1139, 0
          %1677 = vmatprep.subr.bf16.mxu0 0
          %1678 = vmatpush1.bf16.msra.mxu0 %v1675
          %1679 = vmatprep.subr.bf16.mxu0 0
          %1680 = vmatpush1.bf16.msra.mxu0 0
          %1681 = vmatprep.subr.bf16.mxu0 0
          %1682 = vmatpush1.bf16.msra.mxu0 0
          %1683 = vmatprep.subr.bf16.mxu0 0
          %1684 = vmatpush1.bf16.msra.mxu0 0
          %1685 = vmatprep.subr.bf16.mxu0 0
          %1686 = vmatpush1.bf16.msra.mxu0 0
          %1687 = vmatprep.subr.bf16.mxu0 0
          %1688 = vmatpush1.bf16.msra.mxu0 0
          %1689 = vmatprep.subr.bf16.mxu0 0
          %1690 = vmatpush1.bf16.msra.mxu0 0
          %1691 = vmatprep.subr.bf16.mxu0 0
          %1692 = vmatpush1.bf16.msra.mxu0 0
          %1693 = vmatprep.subr.bf16.mxu0 0
          %1694 = vmatpush1.bf16.msra.mxu0 0
          %1695 = vmatprep.subr.bf16.mxu0 0
          %1696 = vmatpush1.bf16.msra.mxu0 0
          %1697 = vmatprep.subr.bf16.mxu0 0
          %1698 = vmatpush1.bf16.msra.mxu0 0
          %1699 = vmatprep.subr.bf16.mxu0 0
          %1700 = vmatpush1.bf16.msra.mxu0 0
          %1701 = vmatprep.subr.bf16.mxu0 0
          %1702 = vmatpush1.bf16.msra.mxu0 0
          %1703 = vmatprep.subr.bf16.mxu0 0
          %1704 = vmatpush1.bf16.msra.mxu0 0
          %1705 = vmatprep.subr.bf16.mxu0 0
          %1706 = vmatpush1.bf16.msra.mxu0 0
          %1707 = vmatprep.subr.bf16.mxu0 0
          %1708 = vmatpush1.bf16.msra.mxu0 0
          %1709 = vmatprep.mubr.bf16.mxu0 0
          %1710 = vmatmul.mubr.bf16.gmra.mrb[0].mxu0 %v1672
          %v1711 = vpop.f32.mrb[0].mxu0
          %v1712 = vadd.f32 0.0, %v1711
          %v1713 = vpop.f32.mrb[0].mxu0
          %v1714 = vpop.f32.mrb[0].mxu0
          %v1715 = vpop.f32.mrb[0].mxu0
          %1716 = vdwg.mxu0
          %v1718 = vsel %vm1144, %v1578, 0
          %v1721 = vsel %vm1393, %v1140, 0
          %1723 = vmatprep.subr.bf16.mxu0 0
          %1724 = vmatpush1.bf16.msra.mxu0 %v1721
          %1725 = vmatprep.subr.bf16.mxu0 0
          %1726 = vmatpush1.bf16.msra.mxu0 0
          %1727 = vmatprep.subr.bf16.mxu0 0
          %1728 = vmatpush1.bf16.msra.mxu0 0
          %1729 = vmatprep.subr.bf16.mxu0 0
          %1730 = vmatpush1.bf16.msra.mxu0 0
          %1731 = vmatprep.subr.bf16.mxu0 0
          %1732 = vmatpush1.bf16.msra.mxu0 0
          %1733 = vmatprep.subr.bf16.mxu0 0
          %1734 = vmatpush1.bf16.msra.mxu0 0
          %1735 = vmatprep.subr.bf16.mxu0 0
          %1736 = vmatpush1.bf16.msra.mxu0 0
          %1737 = vmatprep.subr.bf16.mxu0 0
          %1738 = vmatpush1.bf16.msra.mxu0 0
          %1739 = vmatprep.subr.bf16.mxu0 0
          %1740 = vmatpush1.bf16.msra.mxu0 0
          %1741 = vmatprep.subr.bf16.mxu0 0
          %1742 = vmatpush1.bf16.msra.mxu0 0
          %1743 = vmatprep.subr.bf16.mxu0 0
          %1744 = vmatpush1.bf16.msra.mxu0 0
          %1745 = vmatprep.subr.bf16.mxu0 0
          %1746 = vmatpush1.bf16.msra.mxu0 0
          %1747 = vmatprep.subr.bf16.mxu0 0
          %1748 = vmatpush1.bf16.msra.mxu0 0
          %1749 = vmatprep.subr.bf16.mxu0 0
          %1750 = vmatpush1.bf16.msra.mxu0 0
          %1751 = vmatprep.subr.bf16.mxu0 0
          %1752 = vmatpush1.bf16.msra.mxu0 0
          %1753 = vmatprep.subr.bf16.mxu0 0
          %1754 = vmatpush1.bf16.msra.mxu0 0
          %1755 = vmatprep.mubr.bf16.mxu0 0
          %1756 = vmatmul.mubr.bf16.gmra.mrb[0].mxu0 %v1718
          %v1757 = vpop.f32.mrb[0].mxu0
          %v1758 = vadd.f32 0.0, %v1757
          %v1759 = vpop.f32.mrb[0].mxu0
          %v1760 = vpop.f32.mrb[0].mxu0
          %v1761 = vpop.f32.mrb[0].mxu0
          %1762 = vdwg.mxu0
          %v1763 = vsel %vm933, %v1620, 0.0
          %v1764 = vsel %vm933, %v1666, 0.0
          %v1765 = vadd.f32 %v1763, %v1764
          %v1766 = vsel %vm933, %v1712, 0.0
          %v1767 = vadd.f32 %v1765, %v1766
          %v1768 = vsel %vm933, %v1758, 0.0
          %v1769 = vadd.f32 %v1767, %v1768
          %v1770 = vlaneseq
          %v1771 = vshrl.u32 %v1770, 7
          %v1772 = vsub.s32 1, %v1771
          %v1773 = vrot.slane %v828, %v1772
          %v1774 = vadd.f32 %v1769, %v1773
          %v1775 = vadd.f32 %v823, %v1774
          %v1776 = vsel %vm933, %v1775, 0.0
          %1777 = vadd.xlane.f32.xlu0 %v1776
          %v1778 = vpop.xlane.xlu0 %1777
          %v1779 = vrcp.pop 32.0
          %v1780 = vmul.f32 %v1778, %v1779
          %v1781 = vsub.f32 %v1775, %v1780
          %v1782 = vmul.f32 %v1781, %v1781
          %v1783 = vsel %vm933, %v1782, 0.0
          %1784 = vadd.xlane.f32.xlu0 %v1783
          %v1785 = vpop.xlane.xlu0 %1784
          %v1786 = vmul.f32 %v1785, %v1779
          %v1787 = vadd.f32 %v1786, 1e-05
          %v1788 = vrsqrt.pop %v1787
          %v1789 = vmul.f32 %v1781, %v1788
          %v1790 = vlaneseq
          %v1791 = vshrl.u32 %v1790, 7
          %v1792 = vsub.s32 0, %v1791
          %v1793 = vrot.slane %v826, %v1792
          %v1794 = vmul.f32 %v1789, %v1793
          %v1795 = vlaneseq
          %v1796 = vshrl.u32 %v1795, 7
          %v1797 = vsub.s32 0, %v1796
          %v1798 = vrot.slane %v827, %v1797
          %v1799 = vadd.f32 %v1794, %v1798
          %1800 = vst.msk [vmem:[#allocation2] sm:$0xff] %vm933, %v1799
          %v1801 = vadd.f32 %v1799, %v972
          %v1802 = vld [vmem:[%s12] sm:$0xf]
          %v1803 = vld [vmem:[%s12 + $0x4] sm:$0xf]
          %v1804 = vld [vmem:[%s12 + $0x8] sm:$0xf]
          %v1805 = vld [vmem:[%s12 + $0xc] sm:$0xf]
          %v1806 = vpack.c.bf16 %v1801, %v1801
          %v1807 = vlaneseq
          %v1808 = vshrl.u32 %v1807, 7
          %v1809 = vsub.s32 0, %v1808
          %v1810 = vrot.slane %v829, %v1809
          %v1815 = vunpack.c.l.b16 %v1802
          %v1816 = vunpack.c.l.b16 %v1803
          %v1817 = vunpack.c.l.b16 %v1804
          %v1818 = vunpack.c.l.b16 %v1805
          %v1819 = vpack.c.b16 %v1816, %v1815
          %v1820 = vpack.c.b16 %v1818, %v1817
          %v1824 = vsel %vm933, %v1806, 0
          %1826 = vmatprep.subr.bf16.mxu0 0
          %1827 = vmatpush1.bf16.msra.mxu0 %v1819
          %1828 = vmatprep.subr.bf16.mxu0 0
          %1829 = vmatpush1.bf16.msra.mxu0 %v1820
          %1830 = vmatprep.subr.bf16.mxu0 0
          %1831 = vmatpush1.bf16.msra.mxu0 0
          %1832 = vmatprep.subr.bf16.mxu0 0
          %1833 = vmatpush1.bf16.msra.mxu0 0
          %1834 = vmatprep.subr.bf16.mxu0 0
          %1835 = vmatpush1.bf16.msra.mxu0 0
          %1836 = vmatprep.subr.bf16.mxu0 0
          %1837 = vmatpush1.bf16.msra.mxu0 0
          %1838 = vmatprep.subr.bf16.mxu0 0
          %1839 = vmatpush1.bf16.msra.mxu0 0
          %1840 = vmatprep.subr.bf16.mxu0 0
          %1841 = vmatpush1.bf16.msra.mxu0 0
          %1842 = vmatprep.subr.bf16.mxu0 0
          %1843 = vmatpush1.bf16.msra.mxu0 0
          %1844 = vmatprep.subr.bf16.mxu0 0
          %1845 = vmatpush1.bf16.msra.mxu0 0
          %1846 = vmatprep.subr.bf16.mxu0 0
          %1847 = vmatpush1.bf16.msra.mxu0 0
          %1848 = vmatprep.subr.bf16.mxu0 0
          %1849 = vmatpush1.bf16.msra.mxu0 0
          %1850 = vmatprep.subr.bf16.mxu0 0
          %1851 = vmatpush1.bf16.msra.mxu0 0
          %1852 = vmatprep.subr.bf16.mxu0 0
          %1853 = vmatpush1.bf16.msra.mxu0 0
          %1854 = vmatprep.subr.bf16.mxu0 0
          %1855 = vmatpush1.bf16.msra.mxu0 0
          %1856 = vmatprep.subr.bf16.mxu0 0
          %1857 = vmatpush1.bf16.msra.mxu0 0
          %1858 = vmatprep.mubr.bf16.mxu0 0
          %1859 = vmatmul.mubr.bf16.gmra.mrb[0].mxu0 %v1824
          %v1860 = vpop.f32.mrb[0].mxu0
          %v1861 = vadd.f32 %v1810, %v1860
          %v1862 = vpop.f32.mrb[0].mxu0
          %v1863 = vpop.f32.mrb[0].mxu0
          %v1864 = vpop.f32.mrb[0].mxu0
          %1865 = vdwg.mxu0
          %1867 = vrot.lane.b32.xlu0 %v1861, 120
          %v1868 = vpop.permute.xlu0 %1867
          %1870 = vrot.lane.b32.xlu0 %v1861, 112
          %v1871 = vpop.permute.xlu0 %1870
          %1873 = vrot.lane.b32.xlu0 %v1861, 104
          %v1874 = vpop.permute.xlu0 %1873
          %v1876 = vpack.c.bf16 %v1861, %v1861
          %v1877 = vpack.c.bf16 %v1868, %v1868
          %v1878 = vpack.c.bf16 %v1871, %v1871
          %v1879 = vpack.c.bf16 %v1874, %v1874
          %vm1880 = vcmask 60416
          %1881 = vst.msk [vmem:[#allocation3] sm:$0xf] %vm1880, %v1876
          %1882 = vst.msk [vmem:[#allocation3 + $0x4] sm:$0xf] %vm1880, %v1877
          %1883 = vst.msk [vmem:[#allocation3 + $0x8] sm:$0xf] %vm1880, %v1878
          %1884 = vst.msk [vmem:[#allocation3 + $0xc] sm:$0xf] %vm1880, %v1879
          %vm1885 = vcmask 7168
          %1886 = vst.msk [vmem:[#allocation4] sm:$0xff] %vm1885, -1e+30
          %1887 = vst.msk [vmem:[#allocation4 + $0x8] sm:$0xff] %vm1885, -1e+30
          %1888 = vst.msk [vmem:[#allocation4 + $0x10] sm:$0xff] %vm1885, -1e+30
          %1889 = vst.msk [vmem:[#allocation4 + $0x18] sm:$0xff] %vm1885, -1e+30
          %1890 = vst.msk [vmem:[#allocation5] sm:$0xff] %vm1885, 0.0
          %1891 = vst.msk [vmem:[#allocation5 + $0x8] sm:$0xff] %vm1885, 0.0
          %1892 = vst.msk [vmem:[#allocation5 + $0x10] sm:$0xff] %vm1885, 0.0
          %1893 = vst.msk [vmem:[#allocation5 + $0x18] sm:$0xff] %vm1885, 0.0
          %1894 = vst.msk [vmem:[#allocation6] sm:$0xff] %vm1144, 0.0
          %1895 = vst.msk [vmem:[#allocation6 + $0x8] sm:$0xff] %vm1144, 0.0
          %1896 = vst.msk [vmem:[#allocation6 + $0x10] sm:$0xff] %vm1144, 0.0
          %1897 = vst.msk [vmem:[#allocation6 + $0x18] sm:$0xff] %vm1144, 0.0
        $region112: #{transformer_decoder_forward.3} parent=107 // pred_fallthru
          _
        %v1898 = vld [vmem:[%s15] sm:$0xf]
        %v1899 = vld [vmem:[%s802] sm:$0xf]
        %v1900 = vld [vmem:[%s802 + $0x4] sm:$0xf]
        %v1901 = vld [vmem:[%s812] sm:$0xf]
        %v1902 = vld [vmem:[%s812 + $0x4] sm:$0xf]
        %v1903 = vld [vmem:[%s13] sm:$0xf]
        %v1904 = vld [vmem:[%s13 + $0x4] sm:$0xf]
        %v1905 = vld [vmem:[%s13 + $0x8] sm:$0xf]
        %v1906 = vld [vmem:[%s13 + $0xc] sm:$0xf]
        %v1907 = vlaneseq
        %v1908 = vshrl.u32 %v1907, 7
        %v1909 = vsub.s32 1, %v1908
        %v1910 = vrot.slane %v1898, %v1909
        %v1913 = vunpack.c.l.b16 %v1899
        %v1914 = vunpack.c.l.b16 %v1900
        %v1915 = vpack.c.b16 %v1914, %v1913
        %v1920 = vunpack.c.l.b16 %v1903
        %v1921 = vunpack.c.l.b16 %v1904
        %v1922 = vunpack.c.l.b16 %v1905
        %v1923 = vunpack.c.l.b16 %v1906
        %v1924 = vpack.c.b16 %v1921, %v1920
        %v1925 = vpack.c.b16 %v1923, %v1922
        %vm1928 = vcmask 261120
        %v1930 = vsel %vm1928, %v1915, 0
        %1932 = vmatprep.subr.bf16.mxu0 0
        %1933 = vmatpush1.bf16.msra.mxu0 %v1924
        %1934 = vmatprep.subr.bf16.mxu0 0
        %1935 = vmatpush1.bf16.msra.mxu0 %v1925
        %1936 = vmatprep.subr.bf16.mxu0 0
        %1937 = vmatpush1.bf16.msra.mxu0 0
        %1938 = vmatprep.subr.bf16.mxu0 0
        %1939 = vmatpush1.bf16.msra.mxu0 0
        %1940 = vmatprep.subr.bf16.mxu0 0
        %1941 = vmatpush1.bf16.msra.mxu0 0
        %1942 = vmatprep.subr.bf16.mxu0 0
        %1943 = vmatpush1.bf16.msra.mxu0 0
        %1944 = vmatprep.subr.bf16.mxu0 0
        %1945 = vmatpush1.bf16.msra.mxu0 0
        %1946 = vmatprep.subr.bf16.mxu0 0
        %1947 = vmatpush1.bf16.msra.mxu0 0
        %1948 = vmatprep.subr.bf16.mxu0 0
        %1949 = vmatpush1.bf16.msra.mxu0 0
        %1950 = vmatprep.subr.bf16.mxu0 0
        %1951 = vmatpush1.bf16.msra.mxu0 0
        %1952 = vmatprep.subr.bf16.mxu0 0
        %1953 = vmatpush1.bf16.msra.mxu0 0
        %1954 = vmatprep.subr.bf16.mxu0 0
        %1955 = vmatpush1.bf16.msra.mxu0 0
        %1956 = vmatprep.subr.bf16.mxu0 0
        %1957 = vmatpush1.bf16.msra.mxu0 0
        %1958 = vmatprep.subr.bf16.mxu0 0
        %1959 = vmatpush1.bf16.msra.mxu0 0
        %1960 = vmatprep.subr.bf16.mxu0 0
        %1961 = vmatpush1.bf16.msra.mxu0 0
        %1962 = vmatprep.subr.bf16.mxu0 0
        %1963 = vmatpush1.bf16.msra.mxu0 0
        %1964 = vmatprep.mubr.bf16.mxu0 0
        %1965 = vmatmul.mubr.bf16.gmra.mrb[0].mxu0 %v1930
        %v1966 = vpop.f32.mrb[0].mxu0
        %v1967 = vadd.f32 %v1910, %v1966
        %v1968 = vpop.f32.mrb[0].mxu0
        %v1969 = vpop.f32.mrb[0].mxu0
        %v1970 = vadd.f32 %v1910, %v1969
        %v1971 = vpop.f32.mrb[0].mxu0
        %1972 = vdwg.mxu0
        %s1973 = scalar_lea.vmem %s13, 16
        %v1974 = vld [vmem:[%s1973] sm:$0xf]
        %v1975 = vld [vmem:[%s1973 + $0x4] sm:$0xf]
        %v1976 = vld [vmem:[%s1973 + $0x8] sm:$0xf]
        %v1977 = vld [vmem:[%s1973 + $0xc] sm:$0xf]
        %v1978 = vlaneseq
        %v1979 = vshrl.u32 %v1978, 7
        %v1980 = vsub.s32 2, %v1979
        %v1981 = vrot.slane %v1898, %v1980
        %v1984 = vunpack.c.l.b16 %v1901
        %v1985 = vunpack.c.l.b16 %v1902
        %v1986 = vpack.c.b16 %v1985, %v1984
        %v1991 = vunpack.c.l.b16 %v1974
        %v1992 = vunpack.c.l.b16 %v1975
        %v1993 = vunpack.c.l.b16 %v1976
        %v1994 = vunpack.c.l.b16 %v1977
        %v1995 = vpack.c.b16 %v1992, %v1991
        %v1996 = vpack.c.b16 %v1994, %v1993
        %v2000 = vsel %vm1928, %v1986, 0
        %2002 = vmatprep.subr.bf16.mxu0 0
        %2003 = vmatpush1.bf16.msra.mxu0 %v1995
        %2004 = vmatprep.subr.bf16.mxu0 0
        %2005 = vmatpush1.bf16.msra.mxu0 %v1996
        %2006 = vmatprep.subr.bf16.mxu0 0
        %2007 = vmatpush1.bf16.msra.mxu0 0
        %2008 = vmatprep.subr.bf16.mxu0 0
        %2009 = vmatpush1.bf16.msra.mxu0 0
        %2010 = vmatprep.subr.bf16.mxu0 0
        %2011 = vmatpush1.bf16.msra.mxu0 0
        %2012 = vmatprep.subr.bf16.mxu0 0
        %2013 = vmatpush1.bf16.msra.mxu0 0
        %2014 = vmatprep.subr.bf16.mxu0 0
        %2015 = vmatpush1.bf16.msra.mxu0 0
        %2016 = vmatprep.subr.bf16.mxu0 0
        %2017 = vmatpush1.bf16.msra.mxu0 0
        %2018 = vmatprep.subr.bf16.mxu0 0
        %2019 = vmatpush1.bf16.msra.mxu0 0
        %2020 = vmatprep.subr.bf16.mxu0 0
        %2021 = vmatpush1.bf16.msra.mxu0 0
        %2022 = vmatprep.subr.bf16.mxu0 0
        %2023 = vmatpush1.bf16.msra.mxu0 0
        %2024 = vmatprep.subr.bf16.mxu0 0
        %2025 = vmatpush1.bf16.msra.mxu0 0
        %2026 = vmatprep.subr.bf16.mxu0 0
        %2027 = vmatpush1.bf16.msra.mxu0 0
        %2028 = vmatprep.subr.bf16.mxu0 0
        %2029 = vmatpush1.bf16.msra.mxu0 0
        %2030 = vmatprep.subr.bf16.mxu0 0
        %2031 = vmatpush1.bf16.msra.mxu0 0
        %2032 = vmatprep.subr.bf16.mxu0 0
        %2033 = vmatpush1.bf16.msra.mxu0 0
        %2034 = vmatprep.mubr.bf16.mxu0 0
        %2035 = vmatmul.mubr.bf16.gmra.mrb[0].mxu0 %v2000
        %v2036 = vpop.f32.mrb[0].mxu0
        %v2037 = vadd.f32 %v1981, %v2036
        %v2038 = vpop.f32.mrb[0].mxu0
        %v2039 = vpop.f32.mrb[0].mxu0
        %v2040 = vadd.f32 %v1981, %v2039
        %v2041 = vpop.f32.mrb[0].mxu0
        %2042 = vdwg.mxu0
        %2045 = vrot.lane.b32.xlu0 %v1967, 120
        %v2046 = vpop.permute.xlu0 %2045
        %2047 = vrot.lane.b32.xlu0 %v1970, 120
        %v2048 = vpop.permute.xlu0 %2047
        %2051 = vrot.lane.b32.xlu0 %v1967, 112
        %v2052 = vpop.permute.xlu0 %2051
        %2053 = vrot.lane.b32.xlu0 %v1970, 112
        %v2054 = vpop.permute.xlu0 %2053
        %2057 = vrot.lane.b32.xlu0 %v1967, 104
        %v2058 = vpop.permute.xlu0 %2057
        %2059 = vrot.lane.b32.xlu0 %v1970, 104
        %v2060 = vpop.permute.xlu0 %2059
        %v2063 = vpack.c.bf16 %v1970, %v1967
        %v2064 = vpack.c.bf16 %v2048, %v2046
        %v2065 = vpack.c.bf16 %v2054, %v2052
        %v2066 = vpack.c.bf16 %v2060, %v2058
        %2069 = vrot.lane.b32.xlu0 %v2037, 120
        %v2070 = vpop.permute.xlu0 %2069
        %2071 = vrot.lane.b32.xlu0 %v2040, 120
        %v2072 = vpop.permute.xlu0 %2071
        %2075 = vrot.lane.b32.xlu0 %v2037, 112
        %v2076 = vpop.permute.xlu0 %2075
        %2077 = vrot.lane.b32.xlu0 %v2040, 112
        %v2078 = vpop.permute.xlu0 %2077
        %2081 = vrot.lane.b32.xlu0 %v2037, 104
        %v2082 = vpop.permute.xlu0 %2081
        %2083 = vrot.lane.b32.xlu0 %v2040, 104
        %v2084 = vpop.permute.xlu0 %2083
        %v2087 = vpack.c.bf16 %v2040, %v2037
        %v2088 = vpack.c.bf16 %v2072, %v2070
        %v2089 = vpack.c.bf16 %v2078, %v2076
        %v2090 = vpack.c.bf16 %v2084, %v2082
        %v2091 = vld [vmem:[#allocation3] sm:$0xf]
        %v2092 = vld [vmem:[#allocation3 + $0x4] sm:$0xf]
        %v2093 = vld [vmem:[#allocation3 + $0x8] sm:$0xf]
        %v2094 = vld [vmem:[#allocation3 + $0xc] sm:$0xf]
        %vm2095 = vcmask 64512
        %v2097 = vsel %vm2095, %v2091, 0
        %v2100 = vsel %vm2095, %v2063, 0
        %2102 = vmatprep.subr.bf16.mxu0 0
        %2103 = vmatpush1.bf16.xpose.msra.mxu0 %v2100
        %2104 = vmatprep.subr.bf16.mxu0 0
        %2105 = vmatpush1.bf16.xpose.msra.mxu0 0
        %2106 = vmatprep.subr.bf16.mxu0 0
        %2107 = vmatpush1.bf16.xpose.msra.mxu0 0
        %2108 = vmatprep.subr.bf16.mxu0 0
        %2109 = vmatpush1.bf16.xpose.msra.mxu0 0
        %2110 = vmatprep.subr.bf16.mxu0 0
        %2111 = vmatpush1.bf16.xpose.msra.mxu0 0
        %2112 = vmatprep.subr.bf16.mxu0 0
        %2113 = vmatpush1.bf16.xpose.msra.mxu0 0
        %2114 = vmatprep.subr.bf16.mxu0 0
        %2115 = vmatpush1.bf16.xpose.msra.mxu0 0
        %2116 = vmatprep.subr.bf16.mxu0 0
        %2117 = vmatpush1.bf16.xpose.msra.mxu0 0
        %2118 = vmatprep.subr.bf16.mxu0 0
        %2119 = vmatpush1.bf16.xpose.msra.mxu0 0
        %2120 = vmatprep.subr.bf16.mxu0 0
        %2121 = vmatpush1.bf16.xpose.msra.mxu0 0
        %2122 = vmatprep.subr.bf16.mxu0 0
        %2123 = vmatpush1.bf16.xpose.msra.mxu0 0
        %2124 = vmatprep.subr.bf16.mxu0 0
        %2125 = vmatpush1.bf16.xpose.msra.mxu0 0
        %2126 = vmatprep.subr.bf16.mxu0 0
        %2127 = vmatpush1.bf16.xpose.msra.mxu0 0
        %2128 = vmatprep.subr.bf16.mxu0 0
        %2129 = vmatpush1.bf16.xpose.msra.mxu0 0
        %2130 = vmatprep.subr.bf16.mxu0 0
        %2131 = vmatpush1.bf16.xpose.msra.mxu0 0
        %2132 = vmatprep.subr.bf16.mxu0 0
        %2133 = vmatpush1.bf16.xpose.msra.mxu0 0
        %2134 = vmatprep.mubr.bf16.mxu0 0
        %2135 = vmatmul.mubr.bf16.gmra.mrb[0].mxu0 %v2097
        %v2136 = vpop.f32.mrb[0].mxu0
        %v2137 = vadd.f32 0.0, %v2136
        %v2138 = vpop.f32.mrb[0].mxu0
        %v2139 = vpop.f32.mrb[0].mxu0
        %v2140 = vpop.f32.mrb[0].mxu0
        %2141 = vdwg.mxu0
        %v2143 = vsel %vm2095, %v2092, 0
        %v2146 = vsel %vm2095, %v2064, 0
        %2148 = vmatprep.subr.bf16.mxu0 0
        %2149 = vmatpush1.bf16.xpose.msra.mxu0 %v2146
        %2150 = vmatprep.subr.bf16.mxu0 0
        %2151 = vmatpush1.bf16.xpose.msra.mxu0 0
        %2152 = vmatprep.subr.bf16.mxu0 0
        %2153 = vmatpush1.bf16.xpose.msra.mxu0 0
        %2154 = vmatprep.subr.bf16.mxu0 0
        %2155 = vmatpush1.bf16.xpose.msra.mxu0 0
        %2156 = vmatprep.subr.bf16.mxu0 0
        %2157 = vmatpush1.bf16.xpose.msra.mxu0 0
        %2158 = vmatprep.subr.bf16.mxu0 0
        %2159 = vmatpush1.bf16.xpose.msra.mxu0 0
        %2160 = vmatprep.subr.bf16.mxu0 0
        %2161 = vmatpush1.bf16.xpose.msra.mxu0 0
        %2162 = vmatprep.subr.bf16.mxu0 0
        %2163 = vmatpush1.bf16.xpose.msra.mxu0 0
        %2164 = vmatprep.subr.bf16.mxu0 0
        %2165 = vmatpush1.bf16.xpose.msra.mxu0 0
        %2166 = vmatprep.subr.bf16.mxu0 0
        %2167 = vmatpush1.bf16.xpose.msra.mxu0 0
        %2168 = vmatprep.subr.bf16.mxu0 0
        %2169 = vmatpush1.bf16.xpose.msra.mxu0 0
        %2170 = vmatprep.subr.bf16.mxu0 0
        %2171 = vmatpush1.bf16.xpose.msra.mxu0 0
        %2172 = vmatprep.subr.bf16.mxu0 0
        %2173 = vmatpush1.bf16.xpose.msra.mxu0 0
        %2174 = vmatprep.subr.bf16.mxu0 0
        %2175 = vmatpush1.bf16.xpose.msra.mxu0 0
        %2176 = vmatprep.subr.bf16.mxu0 0
        %2177 = vmatpush1.bf16.xpose.msra.mxu0 0
        %2178 = vmatprep.subr.bf16.mxu0 0
        %2179 = vmatpush1.bf16.xpose.msra.mxu0 0
        %2180 = vmatprep.mubr.bf16.mxu0 0
        %2181 = vmatmul.mubr.bf16.gmra.mrb[0].mxu0 %v2143
        %v2182 = vpop.f32.mrb[0].mxu0
        %v2183 = vadd.f32 0.0, %v2182
        %v2184 = vpop.f32.mrb[0].mxu0
        %v2185 = vpop.f32.mrb[0].mxu0
        %v2186 = vpop.f32.mrb[0].mxu0
        %2187 = vdwg.mxu0
        %v2189 = vsel %vm2095, %v2093, 0
        %v2192 = vsel %vm2095, %v2065, 0
        %2194 = vmatprep.subr.bf16.mxu0 0
        %2195 = vmatpush1.bf16.xpose.msra.mxu0 %v2192
        %2196 = vmatprep.subr.bf16.mxu0 0
        %2197 = vmatpush1.bf16.xpose.msra.mxu0 0
        %2198 = vmatprep.subr.bf16.mxu0 0
        %2199 = vmatpush1.bf16.xpose.msra.mxu0 0
        %2200 = vmatprep.subr.bf16.mxu0 0
        %2201 = vmatpush1.bf16.xpose.msra.mxu0 0
        %2202 = vmatprep.subr.bf16.mxu0 0
        %2203 = vmatpush1.bf16.xpose.msra.mxu0 0
        %2204 = vmatprep.subr.bf16.mxu0 0
        %2205 = vmatpush1.bf16.xpose.msra.mxu0 0
        %2206 = vmatprep.subr.bf16.mxu0 0
        %2207 = vmatpush1.bf16.xpose.msra.mxu0 0
        %2208 = vmatprep.subr.bf16.mxu0 0
        %2209 = vmatpush1.bf16.xpose.msra.mxu0 0
        %2210 = vmatprep.subr.bf16.mxu0 0
        %2211 = vmatpush1.bf16.xpose.msra.mxu0 0
        %2212 = vmatprep.subr.bf16.mxu0 0
        %2213 = vmatpush1.bf16.xpose.msra.mxu0 0
        %2214 = vmatprep.subr.bf16.mxu0 0
        %2215 = vmatpush1.bf16.xpose.msra.mxu0 0
        %2216 = vmatprep.subr.bf16.mxu0 0
        %2217 = vmatpush1.bf16.xpose.msra.mxu0 0
        %2218 = vmatprep.subr.bf16.mxu0 0
        %2219 = vmatpush1.bf16.xpose.msra.mxu0 0
        %2220 = vmatprep.subr.bf16.mxu0 0
        %2221 = vmatpush1.bf16.xpose.msra.mxu0 0
        %2222 = vmatprep.subr.bf16.mxu0 0
        %2223 = vmatpush1.bf16.xpose.msra.mxu0 0
        %2224 = vmatprep.subr.bf16.mxu0 0
        %2225 = vmatpush1.bf16.xpose.msra.mxu0 0
        %2226 = vmatprep.mubr.bf16.mxu0 0
        %2227 = vmatmul.mubr.bf16.gmra.mrb[0].mxu0 %v2189
        %v2228 = vpop.f32.mrb[0].mxu0
        %v2229 = vadd.f32 0.0, %v2228
        %v2230 = vpop.f32.mrb[0].mxu0
        %v2231 = vpop.f32.mrb[0].mxu0
        %v2232 = vpop.f32.mrb[0].mxu0
        %2233 = vdwg.mxu0
        %v2235 = vsel %vm2095, %v2094, 0
        %v2238 = vsel %vm2095, %v2066, 0
        %2240 = vmatprep.subr.bf16.mxu0 0
        %2241 = vmatpush1.bf16.xpose.msra.mxu0 %v2238
        %2242 = vmatprep.subr.bf16.mxu0 0
        %2243 = vmatpush1.bf16.xpose.msra.mxu0 0
        %2244 = vmatprep.subr.bf16.mxu0 0
        %2245 = vmatpush1.bf16.xpose.msra.mxu0 0
        %2246 = vmatprep.subr.bf16.mxu0 0
        %2247 = vmatpush1.bf16.xpose.msra.mxu0 0
        %2248 = vmatprep.subr.bf16.mxu0 0
        %2249 = vmatpush1.bf16.xpose.msra.mxu0 0
        %2250 = vmatprep.subr.bf16.mxu0 0
        %2251 = vmatpush1.bf16.xpose.msra.mxu0 0
        %2252 = vmatprep.subr.bf16.mxu0 0
        %2253 = vmatpush1.bf16.xpose.msra.mxu0 0
        %2254 = vmatprep.subr.bf16.mxu0 0
        %2255 = vmatpush1.bf16.xpose.msra.mxu0 0
        %2256 = vmatprep.subr.bf16.mxu0 0
        %2257 = vmatpush1.bf16.xpose.msra.mxu0 0
        %2258 = vmatprep.subr.bf16.mxu0 0
        %2259 = vmatpush1.bf16.xpose.msra.mxu0 0
        %2260 = vmatprep.subr.bf16.mxu0 0
        %2261 = vmatpush1.bf16.xpose.msra.mxu0 0
        %2262 = vmatprep.subr.bf16.mxu0 0
        %2263 = vmatpush1.bf16.xpose.msra.mxu0 0
        %2264 = vmatprep.subr.bf16.mxu0 0
        %2265 = vmatpush1.bf16.xpose.msra.mxu0 0
        %2266 = vmatprep.subr.bf16.mxu0 0
        %2267 = vmatpush1.bf16.xpose.msra.mxu0 0
        %2268 = vmatprep.subr.bf16.mxu0 0
        %2269 = vmatpush1.bf16.xpose.msra.mxu0 0
        %2270 = vmatprep.subr.bf16.mxu0 0
        %2271 = vmatpush1.bf16.xpose.msra.mxu0 0
        %2272 = vmatprep.mubr.bf16.mxu0 0
        %2273 = vmatmul.mubr.bf16.gmra.mrb[0].mxu0 %v2235
        %v2274 = vpop.f32.mrb[0].mxu0
        %v2275 = vadd.f32 0.0, %v2274
        %v2276 = vpop.f32.mrb[0].mxu0
        %v2277 = vpop.f32.mrb[0].mxu0
        %v2278 = vpop.f32.mrb[0].mxu0
        %2279 = vdwg.mxu0
        %v2280 = vmul.f32 %v2137, 0.35355338
        %v2281 = vmul.f32 %v2183, 0.35355338
        %v2282 = vmul.f32 %v2229, 0.35355338
        %v2283 = vmul.f32 %v2275, 0.35355338
        %v2284 = vlaneseq
        %v2285 = vand.u32 %v2284, 127
        %s2286 = smul.u32 %s43, 16
        %v2287 = vstv %s2286
        %v2288 = vadd.s32 %v2285, %v2287
        %vm2289 = vcmp.lt.s32.totalorder %v2288, 40
        %v2290 = vsel %vm2289, 1, 0
        %vm2291 = vcmp.eq.s32.totalorder %v2290, 1
        %v2292 = vsel %vm2291, %v2280, -1e+30
        %v2293 = vsel %vm2291, %v2281, -1e+30
        %v2294 = vsel %vm2291, %v2282, -1e+30
        %v2295 = vsel %vm2291, %v2283, -1e+30
        %v2296 = vld [vmem:[#allocation4] sm:$0xff]
        %v2297 = vld [vmem:[#allocation4 + $0x8] sm:$0xff]
        %v2298 = vld [vmem:[#allocation4 + $0x10] sm:$0xff]
        %v2299 = vld [vmem:[#allocation4 + $0x18] sm:$0xff]
        %vm2300 = vcmask 130048
        %v2301 = vsel %vm2300, %v2292, -inf
        %2302 = vmax.xlane.f32.xlu0 %v2301
        %v2303 = vpop.xlane.xlu0 %2302
        %v2304 = vsel %vm2300, %v2293, -inf
        %2305 = vmax.xlane.f32.xlu0 %v2304
        %v2306 = vpop.xlane.xlu0 %2305
        %v2307 = vsel %vm2300, %v2294, -inf
        %2308 = vmax.xlane.f32.xlu0 %v2307
        %v2309 = vpop.xlane.xlu0 %2308
        %v2310 = vsel %vm2300, %v2295, -inf
        %2311 = vmax.xlane.f32.xlu0 %v2310
        %v2312 = vpop.xlane.xlu0 %2311
        %v2313 = vmax.f32 %v2296, %v2303
        %v2314 = vmax.f32 %v2297, %v2306
        %v2315 = vmax.f32 %v2298, %v2309
        %v2316 = vmax.f32 %v2299, %v2312
        %v2317 = vsub.f32 %v2296, %v2313
        %v2318 = vsub.f32 %v2297, %v2314
        %v2319 = vsub.f32 %v2298, %v2315
        %v2320 = vsub.f32 %v2299, %v2316
        %v2321 = vmul.f32 %v2317, 1.442695
        %v2322 = vpow.pop %v2321
        %v2323 = vmul.f32 %v2318, 1.442695
        %v2324 = vpow.pop %v2323
        %v2325 = vmul.f32 %v2319, 1.442695
        %v2326 = vpow.pop %v2325
        %v2327 = vmul.f32 %v2320, 1.442695
        %v2328 = vpow.pop %v2327
        %2330 = vset.pattern.permute.xlu0 0
        %2331 = vperm.xlu0 %2330, %v2313
        %v2332 = vpop.permute.xlu0 %2331
        %2335 = vset.pattern.permute.xlu0 0
        %2336 = vperm.xlu0 %2335, %v2314
        %v2337 = vpop.permute.xlu0 %2336
        %2340 = vset.pattern.permute.xlu0 0
        %2341 = vperm.xlu0 %2340, %v2315
        %v2342 = vpop.permute.xlu0 %2341
        %2345 = vset.pattern.permute.xlu0 0
        %2346 = vperm.xlu0 %2345, %v2316
        %v2347 = vpop.permute.xlu0 %2346
        %v2349 = vsub.f32 %v2292, %v2332
        %v2350 = vsub.f32 %v2293, %v2337
        %v2351 = vsub.f32 %v2294, %v2342
        %v2352 = vsub.f32 %v2295, %v2347
        %v2353 = vmul.f32 %v2349, 1.442695
        %v2354 = vpow.pop %v2353
        %v2355 = vmul.f32 %v2350, 1.442695
        %v2356 = vpow.pop %v2355
        %v2357 = vmul.f32 %v2351, 1.442695
        %v2358 = vpow.pop %v2357
        %v2359 = vmul.f32 %v2352, 1.442695
        %v2360 = vpow.pop %v2359
        %v2361 = vld [vmem:[#allocation5] sm:$0xff]
        %v2362 = vld [vmem:[#allocation5 + $0x8] sm:$0xff]
        %v2363 = vld [vmem:[#allocation5 + $0x10] sm:$0xff]
        %v2364 = vld [vmem:[#allocation5 + $0x18] sm:$0xff]
        %v2365 = vmul.f32 %v2322, %v2361
        %v2366 = vmul.f32 %v2324, %v2362
        %v2367 = vmul.f32 %v2326, %v2363
        %v2368 = vmul.f32 %v2328, %v2364
        %v2369 = vsel %vm2300, %v2354, 0.0
        %2370 = vadd.xlane.f32.xlu0 %v2369
        %v2371 = vpop.xlane.xlu0 %2370
        %v2372 = vsel %vm2300, %v2356, 0.0
        %2373 = vadd.xlane.f32.xlu0 %v2372
        %v2374 = vpop.xlane.xlu0 %2373
        %v2375 = vsel %vm2300, %v2358, 0.0
        %2376 = vadd.xlane.f32.xlu0 %v2375
        %v2377 = vpop.xlane.xlu0 %2376
        %v2378 = vsel %vm2300, %v2360, 0.0
        %2379 = vadd.xlane.f32.xlu0 %v2378
        %v2380 = vpop.xlane.xlu0 %2379
        %v2381 = vadd.f32 %v2365, %v2371
        %v2382 = vadd.f32 %v2366, %v2374
        %v2383 = vadd.f32 %v2367, %v2377
        %v2384 = vadd.f32 %v2368, %v2380
        %vm2385 = vcmask 7168
        %2386 = vst.msk [vmem:[#allocation5] sm:$0xff] %vm2385, %v2381
        %2387 = vst.msk [vmem:[#allocation5 + $0x8] sm:$0xff] %vm2385, %v2382
        %2388 = vst.msk [vmem:[#allocation5 + $0x10] sm:$0xff] %vm2385, %v2383
        %2389 = vst.msk [vmem:[#allocation5 + $0x18] sm:$0xff] %vm2385, %v2384
        %v2390 = vpack.c.bf16 %v2354, %v2354
        %v2391 = vpack.c.bf16 %v2356, %v2356
        %v2392 = vpack.c.bf16 %v2358, %v2358
        %v2393 = vpack.c.bf16 %v2360, %v2360
        %v2395 = vsel %vm2300, %v2390, 0
        %2397 = vmatprep.subr.bf16.mxu0 0
        %2398 = vmatpush1.bf16.msra.mxu0 %v2087
        %2399 = vmatprep.subr.bf16.mxu0 0
        %2400 = vmatpush1.bf16.msra.mxu0 0
        %2401 = vmatprep.subr.bf16.mxu0 0
        %2402 = vmatpush1.bf16.msra.mxu0 0
        %2403 = vmatprep.subr.bf16.mxu0 0
        %2404 = vmatpush1.bf16.msra.mxu0 0
        %2405 = vmatprep.subr.bf16.mxu0 0
        %2406 = vmatpush1.bf16.msra.mxu0 0
        %2407 = vmatprep.subr.bf16.mxu0 0
        %2408 = vmatpush1.bf16.msra.mxu0 0
        %2409 = vmatprep.subr.bf16.mxu0 0
        %2410 = vmatpush1.bf16.msra.mxu0 0
        %2411 = vmatprep.subr.bf16.mxu0 0
        %2412 = vmatpush1.bf16.msra.mxu0 0
        %2413 = vmatprep.subr.bf16.mxu0 0
        %2414 = vmatpush1.bf16.msra.mxu0 0
        %2415 = vmatprep.subr.bf16.mxu0 0
        %2416 = vmatpush1.bf16.msra.mxu0 0
        %2417 = vmatprep.subr.bf16.mxu0 0
        %2418 = vmatpush1.bf16.msra.mxu0 0
        %2419 = vmatprep.subr.bf16.mxu0 0
        %2420 = vmatpush1.bf16.msra.mxu0 0
        %2421 = vmatprep.subr.bf16.mxu0 0
        %2422 = vmatpush1.bf16.msra.mxu0 0
        %2423 = vmatprep.subr.bf16.mxu0 0
        %2424 = vmatpush1.bf16.msra.mxu0 0
        %2425 = vmatprep.subr.bf16.mxu0 0
        %2426 = vmatpush1.bf16.msra.mxu0 0
        %2427 = vmatprep.subr.bf16.mxu0 0
        %2428 = vmatpush1.bf16.msra.mxu0 0
        %2429 = vmatprep.mubr.bf16.mxu0 0
        %2430 = vmatmul.mubr.bf16.gmra.mrb[0].mxu0 %v2395
        %v2431 = vpop.f32.mrb[0].mxu0
        %v2432 = vadd.f32 0.0, %v2431
        %v2433 = vpop.f32.mrb[0].mxu0
        %v2434 = vpop.f32.mrb[0].mxu0
        %v2435 = vpop.f32.mrb[0].mxu0
        %2436 = vdwg.mxu0
        %v2438 = vsel %vm2300, %v2391, 0
        %2440 = vmatprep.subr.bf16.mxu0 0
        %2441 = vmatpush1.bf16.msra.mxu0 %v2088
        %2442 = vmatprep.subr.bf16.mxu0 0
        %2443 = vmatpush1.bf16.msra.mxu0 0
        %2444 = vmatprep.subr.bf16.mxu0 0
        %2445 = vmatpush1.bf16.msra.mxu0 0
        %2446 = vmatprep.subr.bf16.mxu0 0
        %2447 = vmatpush1.bf16.msra.mxu0 0
        %2448 = vmatprep.subr.bf16.mxu0 0
        %2449 = vmatpush1.bf16.msra.mxu0 0
        %2450 = vmatprep.subr.bf16.mxu0 0
        %2451 = vmatpush1.bf16.msra.mxu0 0
        %2452 = vmatprep.subr.bf16.mxu0 0
        %2453 = vmatpush1.bf16.msra.mxu0 0
        %2454 = vmatprep.subr.bf16.mxu0 0
        %2455 = vmatpush1.bf16.msra.mxu0 0
        %2456 = vmatprep.subr.bf16.mxu0 0
        %2457 = vmatpush1.bf16.msra.mxu0 0
        %2458 = vmatprep.subr.bf16.mxu0 0
        %2459 = vmatpush1.bf16.msra.mxu0 0
        %2460 = vmatprep.subr.bf16.mxu0 0
        %2461 = vmatpush1.bf16.msra.mxu0 0
        %2462 = vmatprep.subr.bf16.mxu0 0
        %2463 = vmatpush1.bf16.msra.mxu0 0
        %2464 = vmatprep.subr.bf16.mxu0 0
        %2465 = vmatpush1.bf16.msra.mxu0 0
        %2466 = vmatprep.subr.bf16.mxu0 0
        %2467 = vmatpush1.bf16.msra.mxu0 0
        %2468 = vmatprep.subr.bf16.mxu0 0
        %2469 = vmatpush1.bf16.msra.mxu0 0
        %2470 = vmatprep.subr.bf16.mxu0 0
        %2471 = vmatpush1.bf16.msra.mxu0 0
        %2472 = vmatprep.mubr.bf16.mxu0 0
        %2473 = vmatmul.mubr.bf16.gmra.mrb[0].mxu0 %v2438
        %v2474 = vpop.f32.mrb[0].mxu0
        %v2475 = vadd.f32 0.0, %v2474
        %v2476 = vpop.f32.mrb[0].mxu0
        %v2477 = vpop.f32.mrb[0].mxu0
        %v2478 = vpop.f32.mrb[0].mxu0
        %2479 = vdwg.mxu0
        %v2481 = vsel %vm2300, %v2392, 0
        %2483 = vmatprep.subr.bf16.mxu0 0
        %2484 = vmatpush1.bf16.msra.mxu0 %v2089
        %2485 = vmatprep.subr.bf16.mxu0 0
        %2486 = vmatpush1.bf16.msra.mxu0 0
        %2487 = vmatprep.subr.bf16.mxu0 0
        %2488 = vmatpush1.bf16.msra.mxu0 0
        %2489 = vmatprep.subr.bf16.mxu0 0
        %2490 = vmatpush1.bf16.msra.mxu0 0
        %2491 = vmatprep.subr.bf16.mxu0 0
        %2492 = vmatpush1.bf16.msra.mxu0 0
        %2493 = vmatprep.subr.bf16.mxu0 0
        %2494 = vmatpush1.bf16.msra.mxu0 0
        %2495 = vmatprep.subr.bf16.mxu0 0
        %2496 = vmatpush1.bf16.msra.mxu0 0
        %2497 = vmatprep.subr.bf16.mxu0 0
        %2498 = vmatpush1.bf16.msra.mxu0 0
        %2499 = vmatprep.subr.bf16.mxu0 0
        %2500 = vmatpush1.bf16.msra.mxu0 0
        %2501 = vmatprep.subr.bf16.mxu0 0
        %2502 = vmatpush1.bf16.msra.mxu0 0
        %2503 = vmatprep.subr.bf16.mxu0 0
        %2504 = vmatpush1.bf16.msra.mxu0 0
        %2505 = vmatprep.subr.bf16.mxu0 0
        %2506 = vmatpush1.bf16.msra.mxu0 0
        %2507 = vmatprep.subr.bf16.mxu0 0
        %2508 = vmatpush1.bf16.msra.mxu0 0
        %2509 = vmatprep.subr.bf16.mxu0 0
        %2510 = vmatpush1.bf16.msra.mxu0 0
        %2511 = vmatprep.subr.bf16.mxu0 0
        %2512 = vmatpush1.bf16.msra.mxu0 0
        %2513 = vmatprep.subr.bf16.mxu0 0
        %2514 = vmatpush1.bf16.msra.mxu0 0
        %2515 = vmatprep.mubr.bf16.mxu0 0
        %2516 = vmatmul.mubr.bf16.gmra.mrb[0].mxu0 %v2481
        %v2517 = vpop.f32.mrb[0].mxu0
        %v2518 = vadd.f32 0.0, %v2517
        %v2519 = vpop.f32.mrb[0].mxu0
        %v2520 = vpop.f32.mrb[0].mxu0
        %v2521 = vpop.f32.mrb[0].mxu0
        %2522 = vdwg.mxu0
        %v2524 = vsel %vm2300, %v2393, 0
        %2526 = vmatprep.subr.bf16.mxu0 0
        %2527 = vmatpush1.bf16.msra.mxu0 %v2090
        %2528 = vmatprep.subr.bf16.mxu0 0
        %2529 = vmatpush1.bf16.msra.mxu0 0
        %2530 = vmatprep.subr.bf16.mxu0 0
        %2531 = vmatpush1.bf16.msra.mxu0 0
        %2532 = vmatprep.subr.bf16.mxu0 0
        %2533 = vmatpush1.bf16.msra.mxu0 0
        %2534 = vmatprep.subr.bf16.mxu0 0
        %2535 = vmatpush1.bf16.msra.mxu0 0
        %2536 = vmatprep.subr.bf16.mxu0 0
        %2537 = vmatpush1.bf16.msra.mxu0 0
        %2538 = vmatprep.subr.bf16.mxu0 0
        %2539 = vmatpush1.bf16.msra.mxu0 0
        %2540 = vmatprep.subr.bf16.mxu0 0
        %2541 = vmatpush1.bf16.msra.mxu0 0
        %2542 = vmatprep.subr.bf16.mxu0 0
        %2543 = vmatpush1.bf16.msra.mxu0 0
        %2544 = vmatprep.subr.bf16.mxu0 0
        %2545 = vmatpush1.bf16.msra.mxu0 0
        %2546 = vmatprep.subr.bf16.mxu0 0
        %2547 = vmatpush1.bf16.msra.mxu0 0
        %2548 = vmatprep.subr.bf16.mxu0 0
        %2549 = vmatpush1.bf16.msra.mxu0 0
        %2550 = vmatprep.subr.bf16.mxu0 0
        %2551 = vmatpush1.bf16.msra.mxu0 0
        %2552 = vmatprep.subr.bf16.mxu0 0
        %2553 = vmatpush1.bf16.msra.mxu0 0
        %2554 = vmatprep.subr.bf16.mxu0 0
        %2555 = vmatpush1.bf16.msra.mxu0 0
        %2556 = vmatprep.subr.bf16.mxu0 0
        %2557 = vmatpush1.bf16.msra.mxu0 0
        %2558 = vmatprep.mubr.bf16.mxu0 0
        %2559 = vmatmul.mubr.bf16.gmra.mrb[0].mxu0 %v2524
        %v2560 = vpop.f32.mrb[0].mxu0
        %v2561 = vadd.f32 0.0, %v2560
        %v2562 = vpop.f32.mrb[0].mxu0
        %v2563 = vpop.f32.mrb[0].mxu0
        %v2564 = vpop.f32.mrb[0].mxu0
        %2565 = vdwg.mxu0
        %v2566 = vld [vmem:[#allocation6] sm:$0xff]
        %v2567 = vld [vmem:[#allocation6 + $0x8] sm:$0xff]
        %v2568 = vld [vmem:[#allocation6 + $0x10] sm:$0xff]
        %v2569 = vld [vmem:[#allocation6 + $0x18] sm:$0xff]
        %2571 = vset.pattern.permute.xlu0 0
        %2572 = vperm.xlu0 %2571, %v2322
        %v2573 = vpop.permute.xlu0 %2572
        %2576 = vset.pattern.permute.xlu0 0
        %2577 = vperm.xlu0 %2576, %v2324
        %v2578 = vpop.permute.xlu0 %2577
        %2581 = vset.pattern.permute.xlu0 0
        %2582 = vperm.xlu0 %2581, %v2326
        %v2583 = vpop.permute.xlu0 %2582
        %2586 = vset.pattern.permute.xlu0 0
        %2587 = vperm.xlu0 %2586, %v2328
        %v2588 = vpop.permute.xlu0 %2587
        %v2590 = vmul.f32 %v2573, %v2566
        %v2591 = vmul.f32 %v2578, %v2567
        %v2592 = vmul.f32 %v2583, %v2568
        %v2593 = vmul.f32 %v2588, %v2569
        %v2594 = vadd.f32 %v2590, %v2432
        %v2595 = vadd.f32 %v2591, %v2475
        %v2596 = vadd.f32 %v2592, %v2518
        %v2597 = vadd.f32 %v2593, %v2561
        %2598 = vst.msk [vmem:[#allocation6] sm:$0xff] %vm2095, %v2594
        %2599 = vst.msk [vmem:[#allocation6 + $0x8] sm:$0xff] %vm2095, %v2595
        %2600 = vst.msk [vmem:[#allocation6 + $0x10] sm:$0xff] %vm2095, %v2596
        %2601 = vst.msk [vmem:[#allocation6 + $0x18] sm:$0xff] %vm2095, %v2597
        %2602 = vst.msk [vmem:[#allocation4] sm:$0xff] %vm2385, %v2313
        %2603 = vst.msk [vmem:[#allocation4 + $0x8] sm:$0xff] %vm2385, %v2314
        %2604 = vst.msk [vmem:[#allocation4 + $0x10] sm:$0xff] %vm2385, %v2315
        %2605 = vst.msk [vmem:[#allocation4 + $0x18] sm:$0xff] %vm2385, %v2316
        %p2606 = scmp.eq.s32.totalorder %s43, 2
        // Predicated region
        $region113: #{transformer_decoder_forward.3} parent=107 // pred_check
          %p2607 = pneg %p2606
        $region114: #{transformer_decoder_forward.3} parent=107 // pred_check_branch
          %2609 = sbr.rel (%p2607) target = $region116
        $region115: #{transformer_decoder_forward.3} parent=107 // pred_region
          %v2610 = vld [vmem:[%s20] sm:$0xf]
          %v2611 = vld [vmem:[%s21] sm:$0xf]
          %v2612 = vld [vmem:[#allocation6] sm:$0xff]
          %v2613 = vld [vmem:[#allocation6 + $0x8] sm:$0xff]
          %v2614 = vld [vmem:[#allocation6 + $0x10] sm:$0xff]
          %v2615 = vld [vmem:[#allocation6 + $0x18] sm:$0xff]
          %v2616 = vld [vmem:[#allocation5] sm:$0xff]
          %v2617 = vld [vmem:[#allocation5 + $0x8] sm:$0xff]
          %v2618 = vld [vmem:[#allocation5 + $0x10] sm:$0xff]
          %v2619 = vld [vmem:[#allocation5 + $0x18] sm:$0xff]
          %v2620 = vrcp.pop %v2616
          %v2621 = vrcp.pop %v2617
          %v2622 = vrcp.pop %v2618
          %v2623 = vrcp.pop %v2619
          %2625 = vset.pattern.permute.xlu0 0
          %2626 = vperm.xlu0 %2625, %v2620
          %v2627 = vpop.permute.xlu0 %2626
          %2630 = vset.pattern.permute.xlu0 0
          %2631 = vperm.xlu0 %2630, %v2621
          %v2632 = vpop.permute.xlu0 %2631
          %2635 = vset.pattern.permute.xlu0 0
          %2636 = vperm.xlu0 %2635, %v2622
          %v2637 = vpop.permute.xlu0 %2636
          %2640 = vset.pattern.permute.xlu0 0
          %2641 = vperm.xlu0 %2640, %v2623
          %v2642 = vpop.permute.xlu0 %2641
          %v2644 = vmul.f32 %v2612, %v2627
          %v2645 = vmul.f32 %v2613, %v2632
          %v2646 = vmul.f32 %v2614, %v2637
          %v2647 = vmul.f32 %v2615, %v2642
          %v2648 = vld [vmem:[%s14] sm:$0xf]
          %v2649 = vld [vmem:[%s14 + $0x4] sm:$0xf]
          %v2650 = vld [vmem:[%s14 + $0x8] sm:$0xf]
          %v2651 = vld [vmem:[%s14 + $0xc] sm:$0xf]
          %v2652 = vpack.c.bf16 %v2644, %v2644
          %v2653 = vpack.c.bf16 %v2645, %v2645
          %v2654 = vpack.c.bf16 %v2646, %v2646
          %v2655 = vpack.c.bf16 %v2647, %v2647
          %v2657 = vsel %vm2095, %v2652, 0
          %vm2659 = vcmask 1043456
          %v2661 = vsel %vm2659, %v2648, 0
          %2663 = vmatprep.subr.bf16.mxu0 0
          %2664 = vmatpush1.bf16.msra.mxu0 %v2661
          %2665 = vmatprep.subr.bf16.mxu0 0
          %2666 = vmatpush1.bf16.msra.mxu0 0
          %2667 = vmatprep.subr.bf16.mxu0 0
          %2668 = vmatpush1.bf16.msra.mxu0 0
          %2669 = vmatprep.subr.bf16.mxu0 0
          %2670 = vmatpush1.bf16.msra.mxu0 0
          %2671 = vmatprep.subr.bf16.mxu0 0
          %2672 = vmatpush1.bf16.msra.mxu0 0
          %2673 = vmatprep.subr.bf16.mxu0 0
          %2674 = vmatpush1.bf16.msra.mxu0 0
          %2675 = vmatprep.subr.bf16.mxu0 0
          %2676 = vmatpush1.bf16.msra.mxu0 0
          %2677 = vmatprep.subr.bf16.mxu0 0
          %2678 = vmatpush1.bf16.msra.mxu0 0
          %2679 = vmatprep.subr.bf16.mxu0 0
          %2680 = vmatpush1.bf16.msra.mxu0 0
          %2681 = vmatprep.subr.bf16.mxu0 0
          %2682 = vmatpush1.bf16.msra.mxu0 0
          %2683 = vmatprep.subr.bf16.mxu0 0
          %2684 = vmatpush1.bf16.msra.mxu0 0
          %2685 = vmatprep.subr.bf16.mxu0 0
          %2686 = vmatpush1.bf16.msra.mxu0 0
          %2687 = vmatprep.subr.bf16.mxu0 0
          %2688 = vmatpush1.bf16.msra.mxu0 0
          %2689 = vmatprep.subr.bf16.mxu0 0
          %2690 = vmatpush1.bf16.msra.mxu0 0
          %2691 = vmatprep.subr.bf16.mxu0 0
          %2692 = vmatpush1.bf16.msra.mxu0 0
          %2693 = vmatprep.subr.bf16.mxu0 0
          %2694 = vmatpush1.bf16.msra.mxu0 0
          %2695 = vmatprep.mubr.bf16.mxu0 0
          %2696 = vmatmul.mubr.bf16.gmra.mrb[0].mxu0 %v2657
          %v2697 = vpop.f32.mrb[0].mxu0
          %v2698 = vadd.f32 0.0, %v2697
          %v2699 = vpop.f32.mrb[0].mxu0
          %v2700 = vpop.f32.mrb[0].mxu0
          %v2701 = vpop.f32.mrb[0].mxu0
          %2702 = vdwg.mxu0
          %v2704 = vsel %vm2095, %v2653, 0
          %v2707 = vsel %vm2659, %v2649, 0
          %2709 = vmatprep.subr.bf16.mxu0 0
          %2710 = vmatpush1.bf16.msra.mxu0 %v2707
          %2711 = vmatprep.subr.bf16.mxu0 0
          %2712 = vmatpush1.bf16.msra.mxu0 0
          %2713 = vmatprep.subr.bf16.mxu0 0
          %2714 = vmatpush1.bf16.msra.mxu0 0
          %2715 = vmatprep.subr.bf16.mxu0 0
          %2716 = vmatpush1.bf16.msra.mxu0 0
          %2717 = vmatprep.subr.bf16.mxu0 0
          %2718 = vmatpush1.bf16.msra.mxu0 0
          %2719 = vmatprep.subr.bf16.mxu0 0
          %2720 = vmatpush1.bf16.msra.mxu0 0
          %2721 = vmatprep.subr.bf16.mxu0 0
          %2722 = vmatpush1.bf16.msra.mxu0 0
          %2723 = vmatprep.subr.bf16.mxu0 0
          %2724 = vmatpush1.bf16.msra.mxu0 0
          %2725 = vmatprep.subr.bf16.mxu0 0
          %2726 = vmatpush1.bf16.msra.mxu0 0
          %2727 = vmatprep.subr.bf16.mxu0 0
          %2728 = vmatpush1.bf16.msra.mxu0 0
          %2729 = vmatprep.subr.bf16.mxu0 0
          %2730 = vmatpush1.bf16.msra.mxu0 0
          %2731 = vmatprep.subr.bf16.mxu0 0
          %2732 = vmatpush1.bf16.msra.mxu0 0
          %2733 = vmatprep.subr.bf16.mxu0 0
          %2734 = vmatpush1.bf16.msra.mxu0 0
          %2735 = vmatprep.subr.bf16.mxu0 0
          %2736 = vmatpush1.bf16.msra.mxu0 0
          %2737 = vmatprep.subr.bf16.mxu0 0
          %2738 = vmatpush1.bf16.msra.mxu0 0
          %2739 = vmatprep.subr.bf16.mxu0 0
          %2740 = vmatpush1.bf16.msra.mxu0 0
          %2741 = vmatprep.mubr.bf16.mxu0 0
          %2742 = vmatmul.mubr.bf16.gmra.mrb[0].mxu0 %v2704
          %v2743 = vpop.f32.mrb[0].mxu0
          %v2744 = vadd.f32 0.0, %v2743
          %v2745 = vpop.f32.mrb[0].mxu0
          %v2746 = vpop.f32.mrb[0].mxu0
          %v2747 = vpop.f32.mrb[0].mxu0
          %2748 = vdwg.mxu0
          %v2750 = vsel %vm2095, %v2654, 0
          %v2753 = vsel %vm2659, %v2650, 0
          %2755 = vmatprep.subr.bf16.mxu0 0
          %2756 = vmatpush1.bf16.msra.mxu0 %v2753
          %2757 = vmatprep.subr.bf16.mxu0 0
          %2758 = vmatpush1.bf16.msra.mxu0 0
          %2759 = vmatprep.subr.bf16.mxu0 0
          %2760 = vmatpush1.bf16.msra.mxu0 0
          %2761 = vmatprep.subr.bf16.mxu0 0
          %2762 = vmatpush1.bf16.msra.mxu0 0
          %2763 = vmatprep.subr.bf16.mxu0 0
          %2764 = vmatpush1.bf16.msra.mxu0 0
          %2765 = vmatprep.subr.bf16.mxu0 0
          %2766 = vmatpush1.bf16.msra.mxu0 0
          %2767 = vmatprep.subr.bf16.mxu0 0
          %2768 = vmatpush1.bf16.msra.mxu0 0
          %2769 = vmatprep.subr.bf16.mxu0 0
          %2770 = vmatpush1.bf16.msra.mxu0 0
          %2771 = vmatprep.subr.bf16.mxu0 0
          %2772 = vmatpush1.bf16.msra.mxu0 0
          %2773 = vmatprep.subr.bf16.mxu0 0
          %2774 = vmatpush1.bf16.msra.mxu0 0
          %2775 = vmatprep.subr.bf16.mxu0 0
          %2776 = vmatpush1.bf16.msra.mxu0 0
          %2777 = vmatprep.subr.bf16.mxu0 0
          %2778 = vmatpush1.bf16.msra.mxu0 0
          %2779 = vmatprep.subr.bf16.mxu0 0
          %2780 = vmatpush1.bf16.msra.mxu0 0
          %2781 = vmatprep.subr.bf16.mxu0 0
          %2782 = vmatpush1.bf16.msra.mxu0 0
          %2783 = vmatprep.subr.bf16.mxu0 0
          %2784 = vmatpush1.bf16.msra.mxu0 0
          %2785 = vmatprep.subr.bf16.mxu0 0
          %2786 = vmatpush1.bf16.msra.mxu0 0
          %2787 = vmatprep.mubr.bf16.mxu0 0
          %2788 = vmatmul.mubr.bf16.gmra.mrb[0].mxu0 %v2750
          %v2789 = vpop.f32.mrb[0].mxu0
          %v2790 = vadd.f32 0.0, %v2789
          %v2791 = vpop.f32.mrb[0].mxu0
          %v2792 = vpop.f32.mrb[0].mxu0
          %v2793 = vpop.f32.mrb[0].mxu0
          %2794 = vdwg.mxu0
          %v2796 = vsel %vm2095, %v2655, 0
          %v2799 = vsel %vm2659, %v2651, 0
          %2801 = vmatprep.subr.bf16.mxu0 0
          %2802 = vmatpush1.bf16.msra.mxu0 %v2799
          %2803 = vmatprep.subr.bf16.mxu0 0
          %2804 = vmatpush1.bf16.msra.mxu0 0
          %2805 = vmatprep.subr.bf16.mxu0 0
          %2806 = vmatpush1.bf16.msra.mxu0 0
          %2807 = vmatprep.subr.bf16.mxu0 0
          %2808 = vmatpush1.bf16.msra.mxu0 0
          %2809 = vmatprep.subr.bf16.mxu0 0
          %2810 = vmatpush1.bf16.msra.mxu0 0
          %2811 = vmatprep.subr.bf16.mxu0 0
          %2812 = vmatpush1.bf16.msra.mxu0 0
          %2813 = vmatprep.subr.bf16.mxu0 0
          %2814 = vmatpush1.bf16.msra.mxu0 0
          %2815 = vmatprep.subr.bf16.mxu0 0
          %2816 = vmatpush1.bf16.msra.mxu0 0
          %2817 = vmatprep.subr.bf16.mxu0 0
          %2818 = vmatpush1.bf16.msra.mxu0 0
          %2819 = vmatprep.subr.bf16.mxu0 0
          %2820 = vmatpush1.bf16.msra.mxu0 0
          %2821 = vmatprep.subr.bf16.mxu0 0
          %2822 = vmatpush1.bf16.msra.mxu0 0
          %2823 = vmatprep.subr.bf16.mxu0 0
          %2824 = vmatpush1.bf16.msra.mxu0 0
          %2825 = vmatprep.subr.bf16.mxu0 0
          %2826 = vmatpush1.bf16.msra.mxu0 0
          %2827 = vmatprep.subr.bf16.mxu0 0
          %2828 = vmatpush1.bf16.msra.mxu0 0
          %2829 = vmatprep.subr.bf16.mxu0 0
          %2830 = vmatpush1.bf16.msra.mxu0 0
          %2831 = vmatprep.subr.bf16.mxu0 0
          %2832 = vmatpush1.bf16.msra.mxu0 0
          %2833 = vmatprep.mubr.bf16.mxu0 0
          %2834 = vmatmul.mubr.bf16.gmra.mrb[0].mxu0 %v2796
          %v2835 = vpop.f32.mrb[0].mxu0
          %v2836 = vadd.f32 0.0, %v2835
          %v2837 = vpop.f32.mrb[0].mxu0
          %v2838 = vpop.f32.mrb[0].mxu0
          %v2839 = vpop.f32.mrb[0].mxu0
          %2840 = vdwg.mxu0
          %v2841 = vsel %vm1928, %v2698, 0.0
          %v2842 = vsel %vm1928, %v2744, 0.0
          %v2843 = vadd.f32 %v2841, %v2842
          %v2844 = vsel %vm1928, %v2790, 0.0
          %v2845 = vadd.f32 %v2843, %v2844
          %v2846 = vsel %vm1928, %v2836, 0.0
          %v2847 = vadd.f32 %v2845, %v2846
          %v2848 = vlaneseq
          %v2849 = vshrl.u32 %v2848, 7
          %v2850 = vsub.s32 3, %v2849
          %v2851 = vrot.slane %v1898, %v2850
          %v2852 = vadd.f32 %v2847, %v2851
          %v2853 = vld [vmem:[#allocation2] sm:$0xff]
          %v2854 = vadd.f32 %v2853, %v2852
          %v2855 = vsel %vm1928, %v2854, 0.0
          %2856 = vadd.xlane.f32.xlu0 %v2855
          %v2857 = vpop.xlane.xlu0 %2856
          %v2858 = vrcp.pop 32.0
          %v2859 = vmul.f32 %v2857, %v2858
          %v2860 = vsub.f32 %v2854, %v2859
          %v2861 = vmul.f32 %v2860, %v2860
          %v2862 = vsel %vm1928, %v2861, 0.0
          %2863 = vadd.xlane.f32.xlu0 %v2862
          %v2864 = vpop.xlane.xlu0 %2863
          %v2865 = vmul.f32 %v2864, %v2858
          %v2866 = vadd.f32 %v2865, 1e-05
          %v2867 = vrsqrt.pop %v2866
          %v2868 = vmul.f32 %v2860, %v2867
          %v2869 = vlaneseq
          %v2870 = vshrl.u32 %v2869, 7
          %v2871 = vsub.s32 1, %v2870
          %v2872 = vrot.slane %v2610, %v2871
          %v2873 = vmul.f32 %v2868, %v2872
          %v2874 = vlaneseq
          %v2875 = vshrl.u32 %v2874, 7
          %v2876 = vsub.s32 1, %v2875
          %v2877 = vrot.slane %v2611, %v2876
          %v2878 = vadd.f32 %v2873, %v2877
          %v2879 = vld [vmem:[%s16] sm:$0xf]
          %v2880 = vld [vmem:[%s16 + $0x4] sm:$0xf]
          %v2881 = vld [vmem:[%s16 + $0x8] sm:$0xf]
          %v2882 = vld [vmem:[%s16 + $0xc] sm:$0xf]
          %v2883 = vpack.c.bf16 %v2878, %v2878
          %v2884 = vld [vmem:[%s17] sm:$0x1]
          %v2886 = vlaneseq
          %v2887 = vshrl.u32 %v2886, 7
          %v2888 = vsub.s32 0, %v2887
          %v2889 = vrot.slane %v2884, %v2888
          %v2895 = vunpack.c.l.b16 %v2879
          %v2896 = vunpack.c.l.b16 %v2880
          %v2897 = vunpack.c.l.b16 %v2881
          %v2898 = vunpack.c.l.b16 %v2882
          %v2899 = vpack.c.b16 %v2896, %v2895
          %v2900 = vpack.c.b16 %v2898, %v2897
          %v2904 = vsel %vm1928, %v2883, 0
          %2906 = vmatprep.subr.bf16.mxu0 0
          %2907 = vmatpush1.bf16.msra.mxu0 %v2899
          %2908 = vmatprep.subr.bf16.mxu0 0
          %2909 = vmatpush1.bf16.msra.mxu0 %v2900
          %2910 = vmatprep.subr.bf16.mxu0 0
          %2911 = vmatpush1.bf16.msra.mxu0 0
          %2912 = vmatprep.subr.bf16.mxu0 0
          %2913 = vmatpush1.bf16.msra.mxu0 0
          %2914 = vmatprep.subr.bf16.mxu0 0
          %2915 = vmatpush1.bf16.msra.mxu0 0
          %2916 = vmatprep.subr.bf16.mxu0 0
          %2917 = vmatpush1.bf16.msra.mxu0 0
          %2918 = vmatprep.subr.bf16.mxu0 0
          %2919 = vmatpush1.bf16.msra.mxu0 0
          %2920 = vmatprep.subr.bf16.mxu0 0
          %2921 = vmatpush1.bf16.msra.mxu0 0
          %2922 = vmatprep.subr.bf16.mxu0 0
          %2923 = vmatpush1.bf16.msra.mxu0 0
          %2924 = vmatprep.subr.bf16.mxu0 0
          %2925 = vmatpush1.bf16.msra.mxu0 0
          %2926 = vmatprep.subr.bf16.mxu0 0
          %2927 = vmatpush1.bf16.msra.mxu0 0
          %2928 = vmatprep.subr.bf16.mxu0 0
          %2929 = vmatpush1.bf16.msra.mxu0 0
          %2930 = vmatprep.subr.bf16.mxu0 0
          %2931 = vmatpush1.bf16.msra.mxu0 0
          %2932 = vmatprep.subr.bf16.mxu0 0
          %2933 = vmatpush1.bf16.msra.mxu0 0
          %2934 = vmatprep.subr.bf16.mxu0 0
          %2935 = vmatpush1.bf16.msra.mxu0 0
          %2936 = vmatprep.subr.bf16.mxu0 0
          %2937 = vmatpush1.bf16.msra.mxu0 0
          %2938 = vmatprep.mubr.bf16.mxu0 0
          %2939 = vmatmul.mubr.bf16.gmra.mrb[0].mxu0 %v2904
          %v2940 = vpop.f32.mrb[0].mxu0
          %v2941 = vadd.f32 %v2889, %v2940
          %v2942 = vpop.f32.mrb[0].mxu0
          %v2943 = vpop.f32.mrb[0].mxu0
          %v2944 = vpop.f32.mrb[0].mxu0
          %2945 = vdwg.mxu0
          %v2946 = vmax.f32 %v2941, 0.0
          %v2947 = vld [vmem:[%s18] sm:$0xf]
          %v2948 = vld [vmem:[%s18 + $0x4] sm:$0xf]
          %v2949 = vld [vmem:[%s18 + $0x8] sm:$0xf]
          %v2950 = vld [vmem:[%s18 + $0xc] sm:$0xf]
          %v2951 = vld [vmem:[%s18 + $0x10] sm:$0xf]
          %v2952 = vld [vmem:[%s18 + $0x14] sm:$0xf]
          %v2953 = vld [vmem:[%s18 + $0x18] sm:$0xf]
          %v2954 = vld [vmem:[%s18 + $0x1c] sm:$0xf]
          %v2955 = vpack.c.bf16 %v2946, %v2946
          %v2956 = vld [vmem:[%s19] sm:$0x1]
          %v2958 = vlaneseq
          %v2959 = vshrl.u32 %v2958, 7
          %v2960 = vsub.s32 0, %v2959
          %v2961 = vrot.slane %v2956, %v2960
          %v2971 = vunpack.c.l.b16 %v2947
          %v2972 = vunpack.c.l.b16 %v2948
          %v2973 = vunpack.c.l.b16 %v2949
          %v2974 = vunpack.c.l.b16 %v2950
          %v2975 = vunpack.c.l.b16 %v2951
          %v2976 = vunpack.c.l.b16 %v2952
          %v2977 = vunpack.c.l.b16 %v2953
          %v2978 = vunpack.c.l.b16 %v2954
          %v2979 = vpack.c.b16 %v2972, %v2971
          %v2980 = vpack.c.b16 %v2974, %v2973
          %v2981 = vpack.c.b16 %v2976, %v2975
          %v2982 = vpack.c.b16 %v2978, %v2977
          %vm2987 = vcmask 523264
          %v2989 = vsel %vm2987, %v2955, 0
          %2991 = vmatprep.subr.bf16.mxu0 0
          %2992 = vmatpush1.bf16.msra.mxu0 %v2979
          %2993 = vmatprep.subr.bf16.mxu0 0
          %2994 = vmatpush1.bf16.msra.mxu0 %v2980
          %2995 = vmatprep.subr.bf16.mxu0 0
          %2996 = vmatpush1.bf16.msra.mxu0 %v2981
          %2997 = vmatprep.subr.bf16.mxu0 0
          %2998 = vmatpush1.bf16.msra.mxu0 %v2982
          %2999 = vmatprep.subr.bf16.mxu0 0
          %3000 = vmatpush1.bf16.msra.mxu0 0
          %3001 = vmatprep.subr.bf16.mxu0 0
          %3002 = vmatpush1.bf16.msra.mxu0 0
          %3003 = vmatprep.subr.bf16.mxu0 0
          %3004 = vmatpush1.bf16.msra.mxu0 0
          %3005 = vmatprep.subr.bf16.mxu0 0
          %3006 = vmatpush1.bf16.msra.mxu0 0
          %3007 = vmatprep.subr.bf16.mxu0 0
          %3008 = vmatpush1.bf16.msra.mxu0 0
          %3009 = vmatprep.subr.bf16.mxu0 0
          %3010 = vmatpush1.bf16.msra.mxu0 0
          %3011 = vmatprep.subr.bf16.mxu0 0
          %3012 = vmatpush1.bf16.msra.mxu0 0
          %3013 = vmatprep.subr.bf16.mxu0 0
          %3014 = vmatpush1.bf16.msra.mxu0 0
          %3015 = vmatprep.subr.bf16.mxu0 0
          %3016 = vmatpush1.bf16.msra.mxu0 0
          %3017 = vmatprep.subr.bf16.mxu0 0
          %3018 = vmatpush1.bf16.msra.mxu0 0
          %3019 = vmatprep.subr.bf16.mxu0 0
          %3020 = vmatpush1.bf16.msra.mxu0 0
          %3021 = vmatprep.subr.bf16.mxu0 0
          %3022 = vmatpush1.bf16.msra.mxu0 0
          %3023 = vmatprep.mubr.bf16.mxu0 0
          %3024 = vmatmul.mubr.bf16.gmra.mrb[0].mxu0 %v2989
          %v3025 = vpop.f32.mrb[0].mxu0
          %v3026 = vadd.f32 %v2961, %v3025
          %v3027 = vpop.f32.mrb[0].mxu0
          %v3028 = vpop.f32.mrb[0].mxu0
          %v3029 = vpop.f32.mrb[0].mxu0
          %3030 = vdwg.mxu0
          %v3031 = vadd.f32 %v2878, %v3026
          %v3032 = vsel %vm1928, %v3031, 0.0
          %3033 = vadd.xlane.f32.xlu0 %v3032
          %v3034 = vpop.xlane.xlu0 %3033
          %v3035 = vmul.f32 %v3034, %v2858
          %v3036 = vsub.f32 %v3031, %v3035
          %v3037 = vmul.f32 %v3036, %v3036
          %v3038 = vsel %vm1928, %v3037, 0.0
          %3039 = vadd.xlane.f32.xlu0 %v3038
          %v3040 = vpop.xlane.xlu0 %3039
          %v3041 = vmul.f32 %v3040, %v2858
          %v3042 = vadd.f32 %v3041, 1e-05
          %v3043 = vrsqrt.pop %v3042
          %v3044 = vmul.f32 %v3036, %v3043
          %v3045 = vlaneseq
          %v3046 = vshrl.u32 %v3045, 7
          %v3047 = vsub.s32 2, %v3046
          %v3048 = vrot.slane %v2610, %v3047
          %v3049 = vmul.f32 %v3044, %v3048
          %v3050 = vlaneseq
          %v3051 = vshrl.u32 %v3050, 7
          %v3052 = vsub.s32 2, %v3051
          %v3053 = vrot.slane %v2611, %v3052
          %v3054 = vadd.f32 %v3049, %v3053
          %3055 = vst.msk [vmem:[%s779] sm:$0xff] %vm1928, %v3054
          %v3056 = vsel %vm1928, %v3054, 0.0
          %3057 = vadd.xlane.f32.xlu0 %v3056
          %v3058 = vpop.xlane.xlu0 %3057
          %v3059 = vmul.f32 %v3058, %v2858
          %v3060 = vsub.f32 %v3054, %v3059
          %v3061 = vmul.f32 %v3060, %v3060
          %v3062 = vsel %vm1928, %v3061, 0.0
          %3063 = vadd.xlane.f32.xlu0 %v3062
          %v3064 = vpop.xlane.xlu0 %3063
          %v3065 = vmul.f32 %v3064, %v2858
          %v3066 = vadd.f32 %v3065, 1e-05
          %v3067 = vrsqrt.pop %v3066
          %v3068 = vmul.f32 %v3060, %v3067
          %v3069 = vlaneseq
          %v3070 = vshrl.u32 %v3069, 7
          %v3071 = vsub.s32 3, %v3070
          %v3072 = vrot.slane %v2610, %v3071
          %v3073 = vmul.f32 %v3068, %v3072
          %v3074 = vlaneseq
          %v3075 = vshrl.u32 %v3074, 7
          %v3076 = vsub.s32 3, %v3075
          %v3077 = vrot.slane %v2611, %v3076
          %v3078 = vadd.f32 %v3073, %v3077
          %3079 = vst.msk [vmem:[%s817] sm:$0xff] %vm1928, %v3078
        $region116: #{transformer_decoder_forward.3} parent=107 // pred_fallthru
          _
        %s3080 = sand.u32 %s544, 1
        %s3081 = scalar_lea.sflag [#allocation8], %s3080
        %s3082 = sand.u32 %s544, 1
        %s3083 = smul.addr %s3082, 8
        %s3084 = scalar_lea.vmem [#allocation7], %s3083
        %p3085 = scmp.lt.s32.totalorder %s42, 1
        %s3086 = scalar_select %p3085, %s42, 1
        %s3087 = smul.addr %s3086, 8
        %s3088 = scalar_lea.vmem %s23, %s3087
        // Predicated region
        $region117: #{transformer_decoder_forward.3} parent=107 // pred_check
          %p3089 = pneg %p554
        $region118: #{transformer_decoder_forward.3} parent=107 // pred_check_branch
          %3091 = sbr.rel (%p3089) target = $region120
        $region119: #{transformer_decoder_forward.3} parent=107 // pred_region
          %s3093 = ssub.s32 128, 128
          %3094 = vsyncadd %s3081, %s3093
          %s3095 = smul.addr %s42, 128
          %s3096 = scalar_lea.hbm %s22, %s3095
          %s3098 = sshll.u32 %s3084, 4
          %s3099 = int_to_ptr.vmem [resolvable:$true] %s3098
          %3101 = dma.vmem_to_hbm [thread:$0]  %s3099, 128, %s3096, %s3081
        $region120: #{transformer_decoder_forward.3} parent=107 // pred_fallthru
          _
        // Predicated region
        $region121: #{transformer_decoder_forward.3} parent=107 // pred_check
          %p3102 = pneg %p580
        $region122: #{transformer_decoder_forward.3} parent=107 // pred_check_branch
          %3104 = sbr.rel (%p3102) target = $region124
        $region123: #{transformer_decoder_forward.3} parent=107 // pred_region
          _
        $region124: #{transformer_decoder_forward.3} parent=107 // pred_fallthru
          _
      $region108: #{transformer_decoder_forward.3} parent=5 // pred_fallthru
        _
      %p3105 = scmp.le.s32.totalorder 2, %s33
      // Predicated region
      $region125: #{transformer_decoder_forward.3} parent=5 // pred_check
        %p3106 = pneg %p3105
      $region126: #{transformer_decoder_forward.3} parent=5 // pred_check_branch
        %3108 = sbr.rel (%p3106) target = $region128
      $region127: #{transformer_decoder_forward.3} parent=5 // pred_region
        %s3109 = ssub.s32 %s33, 2
        // Predicated region
        $region129: #{transformer_decoder_forward.3} parent=127 // pred_check
          %p3110 = pneg %p560
        $region130: #{transformer_decoder_forward.3} parent=127 // pred_check_branch
          %3112 = sbr.rel (%p3110) target = $region132
        $region131: #{transformer_decoder_forward.3} parent=127 // pred_region
          %s3113 = sand.u32 %s545, 1
          %s3114 = scalar_lea.sflag [#allocation8], %s3113
          %s3115 = sand.u32 %s545, 1
          %s3116 = smul.addr %s3115, 8
          %s3117 = scalar_lea.vmem [#allocation7], %s3116
          %3118 = dma.done %s3114, 128
        $region132: #{transformer_decoder_forward.3} parent=127 // pred_fallthru
          _
        // Predicated region
        $region133: #{transformer_decoder_forward.3} parent=127 // pred_check
          %p3119 = pneg %p586
        $region134: #{transformer_decoder_forward.3} parent=127 // pred_check_branch
          %3121 = sbr.rel (%p3119) target = $region136
        $region135: #{transformer_decoder_forward.3} parent=127 // pred_region
          %p3122 = scmp.lt.s32.totalorder %s44, 1
          %s3123 = scalar_select %p3122, %s44, 1
          %s3124 = smul.addr %s3123, 8
          %s3125 = scalar_lea.vmem %s23, %s3124
        $region136: #{transformer_decoder_forward.3} parent=127 // pred_fallthru
          _
      $region128: #{transformer_decoder_forward.3} parent=5 // pred_fallthru
        _
    $region6: #{transformer_decoder_forward.3} parent=1 // loop_footer
      %s37 = sadd.s32 1, %s33
    $region7: #{transformer_decoder_forward.3} parent=1 // loop_footer_branch
      %32 = sbr.rel target = $region3
    $region8: #{transformer_decoder_forward.3} parent=1 // loop_exit
      _
    %3126 = vsyncpa [#allocation8], 1
    %s3127 = scalar_lea.sflag [#allocation8], 1
    %3128 = vsyncpa %s3127, 1

</llo_original>
